<compile_context>
chip_gen: v5e
topology: v5e:2x2
jax: 0.10.0
libtpu: 0.0.40
codegen_flags: <defaults>
</compile_context>

<pallas_src>
import functools
import math

import jax
import jax.numpy as jnp
from jax.experimental import pallas as pl
from jax.experimental.pallas import tpu as pltpu

# ---- shapes implied by the module ----
TS_INPUT = 512            # ts_input_size (forced to 512 by the PE broadcast)
C_IN = 512                # conv1 in_channels
C1 = 16                   # conv1 out_channels
K1, S1 = 3, 2             # conv1 kernel / stride
C2 = 8                    # conv2 out_channels (= encoder_hidden_size = MHA embed_dim)
K2, D2 = 5, 2             # conv2 kernel / dilation
L1 = (TS_INPUT - K1) // S1 + 1          # 255
L2 = L1 - D2 * (K2 - 1)                 # 247 (= encoder_output_size)
EMB = C2                                # 8
HEADS = 4
HEAD_DIM = EMB // HEADS                 # 2
HID = 128
HALF_T = TS_INPUT // 2                  # 256
B_TILE = 8                              # samples per grid step (keep <=16 for v7x VMEM)


def cnn_encoder_kernel(
    b_tile,
    xe_ref,       # (B_TILE, 256, 512) bf16   even time rows, layout (t, c)
    xo_ref,       # (B_TILE, 256, 512) bf16   odd time rows
    pec1_ref,     # (255, 16)  f32    conv1(positional_encoding), precomputed
    w1e_ref,      # (512, 32)  bf16   conv1 even taps [w1_k0 | w1_k2], layout (cin, cout)
    w1o_ref,      # (512, 16)  bf16   conv1 odd tap w1_k1
    w2_ref,       # (16, 40)   f32    conv2, 5 taps stacked along out: [w2_k0 | ... | w2_k4]
    wattn_ref,    # (8, 48)    f32    [Wq*scale | Wk | folded V*Wout (4 heads x 8)]
    battn_ref,    # (1, 24)    f32    [bq*scale | bk | out_bias + b_v @ Wout]
    wl1_ref,      # (8, 247, 128) bf16 Linear1 weight as [c, t, out_j]
    bl1_ref,      # (1, 128)   f32
    wl2_ref,      # (128, 128) f32    Linear2 weight transposed (in, out)
    bl2_ref,      # (1, 128)   f32
    out_ref,      # (B_TILE, 128) f32 lane-dense per-step output
    ye_ref,       # scratch (256, 32) f32     merged even-tap conv1 partials
    c1_ref,       # scratch (255, 16) f32     conv1 output (post-ReLU)
    y2_ref,       # scratch (255, 40) f32     stacked conv2 tap outputs
    x3t_ref,      # scratch (B_TILE, 8, 247) f32  staged channel-major attention outputs
):
    eye_c = jnp.eye(EMB, dtype=jnp.float32)   # used for the exact MXU-based (247,8)->(8,247) transpose

    def sample_body(b, carry):
        # --- conv1: kernel 3, stride 2, no bias; PE folded in as a precomputed additive term ---
        # even/odd deinterleave makes every tap a contiguous sublane slice:
        #   k=0 -> even rows [0:255], k=1 -> odd rows [0:255], k=2 -> even rows [1:256]
        # Even taps merged into one N=32 matmul (better MXU lane utilization).
        ye_ref[...] = jnp.dot(xe_ref[b], w1e_ref[...],
                              preferred_element_type=jnp.float32)           # (256, 32)
        yo = jnp.dot(xo_ref[b], w1o_ref[...],
                     preferred_element_type=jnp.float32)                    # (256, 16)
        acc1 = (pec1_ref[...]
                + ye_ref[pl.ds(0, L1), 0:C1]
                + ye_ref[pl.ds(1, L1), C1:2 * C1]
                + yo[0:L1, :])
        c1_ref[...] = jnp.maximum(acc1, 0.0)                                 # ReLU

        # --- conv2: kernel 5, dilation 2, stride 1, no bias; taps stacked along N ---
        y2_ref[...] = jnp.dot(c1_ref[...], w2_ref[...],
                              preferred_element_type=jnp.float32)            # (255, 40)
        x2 = y2_ref[pl.ds(0, L2), 0:C2]
        for k in range(1, K2):
            x2 = x2 + y2_ref[pl.ds(k * D2, L2), k * C2:(k + 1) * C2]         # (247, 8)

        # --- multihead self-attention (embed 8, 4 heads, head_dim 2) ---
        # out-projection pre-folded into per-head V weights; q already scaled.
        qkv = jnp.dot(x2, wattn_ref[...], preferred_element_type=jnp.float32)   # (247, 48)
        qk = (qkv[:, 0:2 * EMB] + battn_ref[:, 0:2 * EMB]).astype(jnp.bfloat16)  # (247, 16)
        vf = qkv[:, 2 * EMB:6 * EMB].astype(jnp.bfloat16)                        # (247, 32)
        x3 = jnp.zeros((L2, EMB), jnp.float32)
        for h in range(HEADS):
            lo = h * HEAD_DIM
            qh = qk[:, lo:lo + HEAD_DIM]                                     # (247, 2) bf16, scaled
            kh = qk[:, EMB + lo:EMB + lo + HEAD_DIM]                         # (247, 2) bf16
            s = jnp.einsum('td,sd->ts', qh, kh,
                           preferred_element_type=jnp.float32)               # (247, 247) f32
            s = s - jnp.max(s, axis=-1, keepdims=True)
            p = jnp.exp(s)
            r = pl.reciprocal(jnp.sum(p, axis=-1, keepdims=True), approx=True)  # (247, 1)
            pv = jnp.dot(p.astype(jnp.bfloat16), vf[:, h * EMB:(h + 1) * EMB],
                         preferred_element_type=jnp.float32)                 # (247, 8), bf16 MXU
            x3 = x3 + pv * r                                                 # normalize after PV
        x3 = x3 + battn_ref[:, 2 * EMB:3 * EMB]                              # (247, 8)

        # Stage channel-major (8, 247) slab for the batched Linear1.  The transpose is done as
        # eye(8) contracted against x3's channel dim (A @ B^T form) - exact, one tiny MXU op.
        x3_t = jnp.einsum('ij,tj->it', eye_c, x3,
                          preferred_element_type=jnp.float32)                # (8, 247)
        x3t_ref[b] = x3_t
        return carry

    jax.lax.fori_loop(0, b_tile, sample_body, 0)

    # --- contrastive_enc: Linear(1976->128) -> ReLU -> Dropout(identity) -> Linear(128->128) ---
    # PyTorch flattens channel-major: flat[c*247 + t] = x3[t, c].
    # Batched over the tile: 8 x (B_TILE, 247) @ (247, 128) bf16 matmuls -> (B_TILE, 128).
    h1 = jnp.zeros((b_tile, HID), jnp.float32)
    for c in range(C2):
        xc = x3t_ref[:, c, :].astype(jnp.bfloat16)                           # (B_TILE, 247)
        h1 = h1 + jnp.dot(xc, wl1_ref[c], preferred_element_type=jnp.float32)
    h1 = jnp.maximum(h1 + bl1_ref[...], 0.0)
    # TODO(synk): nn.Dropout(p=0.1) implemented as identity (eval/inference semantics).
    out_ref[...] = jnp.dot(h1, wl2_ref[...],
                           preferred_element_type=jnp.float32) + bl2_ref[...]   # (B_TILE, 128)


def cnn_encoder_forward(x_ncl, kp, b_tile=B_TILE):
    """x_ncl: (B, 512, 512) float32 in PyTorch NCL layout. Returns (B, 128) float32."""
    B = x_ncl.shape[0]
    assert B % b_tile == 0, "batch must be a multiple of B_TILE"
    # channel-last + even/odd time deinterleave + bf16 cast (one XLA copy fusion)
    x_blc = jnp.transpose(x_ncl, (0, 2, 1))                  # (B, T, C)
    x_even = x_blc[:, 0::2, :].astype(jnp.bfloat16)          # (B, 256, 512)
    x_odd = x_blc[:, 1::2, :].astype(jnp.bfloat16)           # (B, 256, 512)

    grid_spec = pltpu.PrefetchScalarGridSpec(
        num_scalar_prefetch=0,
        grid=(B // b_tile,),
        in_specs=[
            pl.BlockSpec((b_tile, HALF_T, C_IN), lambda i: (i, 0, 0)),   # x_even
            pl.BlockSpec((b_tile, HALF_T, C_IN), lambda i: (i, 0, 0)),   # x_odd
            pl.BlockSpec((L1, C1), lambda i: (0, 0)),                    # pe_c1
            pl.BlockSpec((C_IN, 2 * C1), lambda i: (0, 0)),              # w1e
            pl.BlockSpec((C_IN, C1), lambda i: (0, 0)),                  # w1o
            pl.BlockSpec((C1, K2 * C2), lambda i: (0, 0)),               # w2 (stacked taps)
            pl.BlockSpec((EMB, 6 * EMB), lambda i: (0, 0)),              # w_attn
            pl.BlockSpec((1, 3 * EMB), lambda i: (0, 0)),                # b_attn
            pl.BlockSpec((C2, L2, HID), lambda i: (0, 0, 0)),            # w_l1 (c, t, j) bf16
            pl.BlockSpec((1, HID), lambda i: (0, 0)),                    # b_l1
            pl.BlockSpec((HID, HID), lambda i: (0, 0)),                  # w_l2 (in, out)
            pl.BlockSpec((1, HID), lambda i: (0, 0)),                    # b_l2
        ],
        out_specs=pl.BlockSpec((b_tile, HID), lambda i: (i, 0)),
        scratch_shapes=[
            pltpu.VMEM((HALF_T, 2 * C1), jnp.float32),    # ye
            pltpu.VMEM((L1, C1), jnp.float32),            # c1
            pltpu.VMEM((L1, K2 * C2), jnp.float32),       # y2
            pltpu.VMEM((b_tile, C2, L2), jnp.float32),    # staged x3^T per sample
        ],
    )
    out = pl.pallas_call(
        functools.partial(cnn_encoder_kernel, b_tile),
        out_shape=jax.ShapeDtypeStruct((B, HID), jnp.float32),
        grid_spec=grid_spec,
        compiler_params=pltpu.CompilerParams(
            dimension_semantics=("parallel",),
            vmem_limit_bytes=32 * 1024 * 1024),
    )(x_even, x_odd,
      kp['pe_c1'], kp['w1e'], kp['w1o'], kp['w2'],
      kp['w_attn'], kp['b_attn'],
      kp['w_l1'], kp['b_l1'], kp['w_l2'], kp['b_l2'])
    return out


# ---------------- parameter / buffer construction (deterministic, synthetic) ----------------
def make_positional_encoding():
    position = jnp.arange(TS_INPUT, dtype=jnp.float32)[:, None]                  # (512, 1)
    div_term = jnp.exp(jnp.arange(0, 512, 2, dtype=jnp.float32)
                       * (-math.log(10000.0) / 512.0))                           # (256,)
    pe = jnp.zeros((TS_INPUT, 512), jnp.float32)
    pe = pe.at[:, 0::2].set(jnp.sin(position * div_term))
    pe = pe.at[:, 1::2].set(jnp.cos(position * div_term))
    return pe                                                                    # indexed [pos, enc]


def init_params(key):
    ks = jax.random.split(key, 10)
    pt = {  # PyTorch-orientation parameters (used by the pure-JAX reference)
        'w1': jax.random.normal(ks[0], (C1, C_IN, K1), jnp.float32) * 0.05,      # Conv1d (O,I,K)
        'w2': jax.random.normal(ks[1], (C2, C1, K2), jnp.float32) * 0.10,
        'in_proj_w': jax.random.normal(ks[2], (3 * EMB, EMB), jnp.float32) * 0.20,
        'in_proj_b': jax.random.normal(ks[3], (3 * EMB,), jnp.float32) * 0.10,
        'out_proj_w': jax.random.normal(ks[4], (EMB, EMB), jnp.float32) * 0.20,
        'out_proj_b': jax.random.normal(ks[5], (EMB,), jnp.float32) * 0.10,
        'w_lin1': jax.random.normal(ks[6], (HID, L2 * C2), jnp.float32) * 0.05,  # Linear (out,in)
        'b_lin1': jax.random.normal(ks[7], (HID,), jnp.float32) * 0.10,
        'w_lin2': jax.random.normal(ks[8], (HID, HID), jnp.float32) * 0.10,
        'b_lin2': jax.random.normal(ks[9], (HID,), jnp.float32) * 0.10,
    }

    pe = make_positional_encoding()                       # [pos(=channel), enc(=time)]
    pe_lc = pe.T                                          # kernel layout [t, c]
    w1_kio = jnp.transpose(pt['w1'], (2, 1, 0))           # (k, cin, cout), f32
    # Fold positional encoding through conv1 (exact: conv1 is linear and bias-free).
    pe_c1 = sum(pe_lc[k::2][:L1] @ w1_kio[k] for k in range(K1))                 # (255, 16)

    # conv1: even taps merged, bf16 weights
    w1e = jnp.concatenate([w1_kio[0], w1_kio[2]], axis=1).astype(jnp.bfloat16)   # (512, 32)
    w1o = w1_kio[1].astype(jnp.bfloat16)                                         # (512, 16)
    # conv2: 5 taps stacked along out
    w2_kio = jnp.transpose(pt['w2'], (2, 1, 0))                                  # (5, 16, 8)
    w2all = jnp.concatenate([w2_kio[k] for k in range(K2)], axis=1)              # (16, 40)

    w_in = pt['in_proj_w'].T                              # (8, 24)
    b_in = pt['in_proj_b']
    w_out_t = pt['out_proj_w'].T                          # (8, 8): x3 = attn @ w_out_t + b_out
    scale = 1.0 / math.sqrt(HEAD_DIM)
    w_qk = jnp.concatenate([w_in[:, :EMB] * scale, w_in[:, EMB:2 * EMB]], axis=1)   # (8, 16)
    b_qk = jnp.concatenate([b_in[:EMB] * scale, b_in[EMB:2 * EMB]])[None, :]        # (1, 16)
    w_v = w_in[:, 2 * EMB:]
    b_v = b_in[2 * EMB:]
    # Per-head fold of V-projection and output projection; softmax rows sum to 1 so the V bias
    # contribution collapses into a single output bias term.
    w_vf = jnp.concatenate(
        [w_v[:, h * HEAD_DIM:(h + 1) * HEAD_DIM]
         @ w_out_t[h * HEAD_DIM:(h + 1) * HEAD_DIM, :] for h in range(HEADS)],
        axis=1)                                                                      # (8, 32)
    b_o = (pt['out_proj_b'] + b_v @ w_out_t)[None, :]                                # (1, 8)
    w_attn = jnp.concatenate([w_qk, w_vf], axis=1)                                   # (8, 48)
    b_attn = jnp.concatenate([b_qk, b_o], axis=1)                                    # (1, 24)

    # Linear1 as (c, t, out_j) bf16: w_l1[c, t, j] = w_lin1[j, c*247 + t]
    w_l1 = jnp.transpose(pt['w_lin1'].reshape(HID, C2, L2), (1, 2, 0)).astype(jnp.bfloat16)

    kp = {  # kernel-layout parameters
        'pe_c1': pe_c1,
        'w1e': w1e, 'w1o': w1o, 'w2': w2all,
        'w_attn': w_attn, 'b_attn': b_attn,
        'w_l1': w_l1,                                                                # (8, 247, 128)
        'b_l1': pt['b_lin1'][None, :],                                               # (1, 128)
        'w_l2': pt['w_lin2'].T,                                                      # (in, out)
        'b_l2': pt['b_lin2'][None, :],                                               # (1, 128)
    }
    return pt, kp, pe


# ---------------- pure-JAX reference (mirrors the PyTorch forward, all f32) ----------------
def reference_forward(x_ncl, pt, pe):
    x = x_ncl + pe[None, :, :]
    y = jax.lax.conv_general_dilated(x, pt['w1'], window_strides=(S1,), padding='VALID',
                                     dimension_numbers=('NCH', 'OIH', 'NCH'))
    y = jnp.maximum(y, 0.0)
    y = jax.lax.conv_general_dilated(y, pt['w2'], window_strides=(1,), padding='VALID',
                                     rhs_dilation=(D2,),
                                     dimension_numbers=('NCH', 'OIH', 'NCH'))   # (B, 8, 247)
    xt = jnp.transpose(y, (0, 2, 1))                                            # (B, 247, 8)
    proj = xt @ pt['in_proj_w'].T + pt['in_proj_b']
    q, k, v = proj[..., :EMB], proj[..., EMB:2 * EMB], proj[..., 2 * EMB:]
    heads = []
    for h in range(HEADS):
        lo, hi = h * HEAD_DIM, (h + 1) * HEAD_DIM
        qh = q[..., lo:hi] / math.sqrt(HEAD_DIM)
        s = jnp.einsum('btd,bsd->bts', qh, k[..., lo:hi])
        a = jax.nn.softmax(s, axis=-1)
        heads.append(jnp.einsum('bts,bsd->btd', a, v[..., lo:hi]))
    attn = jnp.concatenate(heads, axis=-1) @ pt['out_proj_w'].T + pt['out_proj_b']
    flat = jnp.transpose(attn, (0, 2, 1)).reshape(x_ncl.shape[0], -1)           # channel-major
    h1 = jnp.maximum(flat @ pt['w_lin1'].T + pt['b_lin1'], 0.0)
    return h1 @ pt['w_lin2'].T + pt['b_lin2']


if __name__ == "__main__":
    key = jax.random.PRNGKey(0)
    kx, kparams = jax.random.split(key)
    B = 2 * B_TILE   # 16 -> two grid steps (keeps both v7x TensorCores busy)
    x = jax.random.normal(kx, (B, C_IN, TS_INPUT), jnp.float32) * 0.5
    pt_params, kern_params, pe = init_params(kparams)

    out = jax.block_until_ready(cnn_encoder_forward(x, kern_params))
    assert out.shape == (B, HID) and out.dtype == jnp.float32

    ref = jax.block_until_ready(reference_forward(x, pt_params, pe))
    max_err = float(jnp.max(jnp.abs(out - ref)))
    tol = 1e-2 + 1e-2 * float(jnp.max(jnp.abs(ref)))
    if not (max_err < tol):
        raise AssertionError(f"kernel/reference mismatch: max_err={max_err} tol={tol}")
    print("KERNEL_OK")
</pallas_src>

<mosaic_0001>
module attributes {stable_mosaic.version = 11 : i64} {
  func.func @cnn_encoder_kernel(%arg0: i32, %arg1: memref<8x256x512xbf16, #tpu.memory_space<vmem>>, %arg2: memref<8x256x512xbf16, #tpu.memory_space<vmem>>, %arg3: memref<255x16xf32, #tpu.memory_space<vmem>>, %arg4: memref<512x32xbf16, #tpu.memory_space<vmem>>, %arg5: memref<512x16xbf16, #tpu.memory_space<vmem>>, %arg6: memref<16x40xf32, #tpu.memory_space<vmem>>, %arg7: memref<8x48xf32, #tpu.memory_space<vmem>>, %arg8: memref<1x24xf32, #tpu.memory_space<vmem>>, %arg9: memref<8x247x128xbf16, #tpu.memory_space<vmem>>, %arg10: memref<1x128xf32, #tpu.memory_space<vmem>>, %arg11: memref<128x128xf32, #tpu.memory_space<vmem>>, %arg12: memref<1x128xf32, #tpu.memory_space<vmem>>, %arg13: memref<8x128xf32, #tpu.memory_space<vmem>>, %arg14: memref<256x32xf32, #tpu.memory_space<vmem>>, %arg15: memref<255x16xf32, #tpu.memory_space<vmem>>, %arg16: memref<255x40xf32, #tpu.memory_space<vmem>>, %arg17: memref<8x8x247xf32, #tpu.memory_space<vmem>>) attributes {dimension_semantics = [#tpu.dimension_semantics<parallel>], iteration_bounds = array<i64: 2>, scalar_prefetch = 0 : i64, scratch_operands = 4 : i64, tpu.core_type = #tpu.core_type<tc>, window_params = [{transform_indices = @transform_0, window_bounds = array<i64: 8, 256, 512>}, {transform_indices = @transform_1, window_bounds = array<i64: 8, 256, 512>}, {pipeline_mode = #tpu.pipeline_mode<synchronous>, transform_indices = @transform_2, window_bounds = array<i64: 255, 16>}, {pipeline_mode = #tpu.pipeline_mode<synchronous>, transform_indices = @transform_3, window_bounds = array<i64: 512, 32>}, {pipeline_mode = #tpu.pipeline_mode<synchronous>, transform_indices = @transform_4, window_bounds = array<i64: 512, 16>}, {pipeline_mode = #tpu.pipeline_mode<synchronous>, transform_indices = @transform_5, window_bounds = array<i64: 16, 40>}, {pipeline_mode = #tpu.pipeline_mode<synchronous>, transform_indices = @transform_6, window_bounds = array<i64: 8, 48>}, {pipeline_mode = #tpu.pipeline_mode<synchronous>, transform_indices = @transform_7, window_bounds = array<i64: 1, 24>}, {pipeline_mode = #tpu.pipeline_mode<synchronous>, transform_indices = @transform_8, window_bounds = array<i64: 8, 247, 128>}, {pipeline_mode = #tpu.pipeline_mode<synchronous>, transform_indices = @transform_9, window_bounds = array<i64: 1, 128>}, {pipeline_mode = #tpu.pipeline_mode<synchronous>, transform_indices = @transform_10, window_bounds = array<i64: 128, 128>}, {pipeline_mode = #tpu.pipeline_mode<synchronous>, transform_indices = @transform_11, window_bounds = array<i64: 1, 128>}, {transform_indices = @transform_12, window_bounds = array<i64: 8, 128>}]} {
    %0 = tpu.iota {dimensions = array<i32: 0>} : vector<8x8xi32>
    %1 = tpu.iota {dimensions = array<i32: 1>} : vector<8x8xi32>
    %c0_i32 = arith.constant 0 : i32
    %2 = vector.broadcast %c0_i32 : i32 to vector<8x8xi32>
    %3 = arith.addi %0, %2 : vector<8x8xi32>
    %4 = arith.cmpi eq, %3, %1 : vector<8x8xi32>
    %5 = arith.extui %4 : vector<8x8xi1> to vector<8x8xi32>
    %6 = arith.sitofp %5 : vector<8x8xi32> to vector<8x8xf32>
    %c0_i32_0 = arith.constant 0 : i32
    %c8_i32 = arith.constant 8 : i32
    %7 = arith.addi %c0_i32_0, %c8_i32 : i32
    %c1_i32 = arith.constant 1 : i32
    scf.for %arg18 = %c0_i32_0 to %7 step %c1_i32  : i32 {
      %76 = arith.index_cast %arg18 : i32 to index
      %c0_60 = arith.constant 0 : index
      %c0_61 = arith.constant 0 : index
      %77 = vector.load %arg1[%76, %c0_60, %c0_61] : memref<8x256x512xbf16, #tpu.memory_space<vmem>>, vector<1x256x512xbf16>
      %78 = vector.shape_cast %77 : vector<1x256x512xbf16> to vector<256x512xbf16>
      %c0_62 = arith.constant 0 : index
      %c0_63 = arith.constant 0 : index
      %79 = vector.load %arg4[%c0_62, %c0_63] : memref<512x32xbf16, #tpu.memory_space<vmem>>, vector<512x32xbf16>
      %cst_64 = arith.constant dense<0.000000e+00> : vector<256x32xf32>
      %80 = tpu.matmul %78, %79, %cst_64 {dimension_numbers = #tpu.dot_dimension_numbers<[1], [0], [0], [1], [0, 0, 1, 1], [], []>} : vector<256x512xbf16>, vector<512x32xbf16>, vector<256x32xf32> -> vector<256x32xf32>
      %c0_65 = arith.constant 0 : index
      %c0_66 = arith.constant 0 : index
      %81 = vector.load %arg14[%c0_65, %c0_66] : memref<256x32xf32, #tpu.memory_space<vmem>>, vector<256x32xf32>
      tpu.vector_store %arg14[%c0_65, %c0_66], %80 {strides = array<i32>} : memref<256x32xf32, #tpu.memory_space<vmem>>, vector<256x32xf32>,
      %82 = arith.index_cast %arg18 : i32 to index
      %c0_67 = arith.constant 0 : index
      %c0_68 = arith.constant 0 : index
      %83 = vector.load %arg2[%82, %c0_67, %c0_68] : memref<8x256x512xbf16, #tpu.memory_space<vmem>>, vector<1x256x512xbf16>
      %84 = vector.shape_cast %83 : vector<1x256x512xbf16> to vector<256x512xbf16>
      %c0_69 = arith.constant 0 : index
      %c0_70 = arith.constant 0 : index
      %85 = vector.load %arg5[%c0_69, %c0_70] : memref<512x16xbf16, #tpu.memory_space<vmem>>, vector<512x16xbf16>
      %cst_71 = arith.constant dense<0.000000e+00> : vector<256x16xf32>
      %86 = tpu.matmul %84, %85, %cst_71 {dimension_numbers = #tpu.dot_dimension_numbers<[1], [0], [0], [1], [0, 0, 1, 1], [], []>} : vector<256x512xbf16>, vector<512x16xbf16>, vector<256x16xf32> -> vector<256x16xf32>
      %c0_72 = arith.constant 0 : index
      %c0_73 = arith.constant 0 : index
      %87 = vector.load %arg3[%c0_72, %c0_73] : memref<255x16xf32, #tpu.memory_space<vmem>>, vector<255x16xf32>
      %c0_74 = arith.constant 0 : index
      %c0_75 = arith.constant 0 : index
      %88 = vector.load %arg14[%c0_74, %c0_75] : memref<256x32xf32, #tpu.memory_space<vmem>>, vector<255x16xf32>
      %89 = arith.addf %87, %88 : vector<255x16xf32>
      %c1_76 = arith.constant 1 : index
      %c16 = arith.constant 16 : index
      %90 = vector.load %arg14[%c1_76, %c16] : memref<256x32xf32, #tpu.memory_space<vmem>>, vector<255x16xf32>
      %91 = arith.addf %89, %90 : vector<255x16xf32>
      %92 = vector.extract_strided_slice %86 {offsets = [0, 0], sizes = [255, 16], strides = [1, 1]} : vector<256x16xf32> to vector<255x16xf32>
      %93 = arith.addf %91, %92 : vector<255x16xf32>
      %cst_77 = arith.constant 0.000000e+00 : f32
      %94 = vector.broadcast %cst_77 : f32 to vector<255x16xf32>
      %95 = arith.maximumf %93, %94 : vector<255x16xf32>
      %c0_78 = arith.constant 0 : index
      %c0_79 = arith.constant 0 : index
      %96 = vector.load %arg15[%c0_78, %c0_79] : memref<255x16xf32, #tpu.memory_space<vmem>>, vector<255x16xf32>
      tpu.vector_store %arg15[%c0_78, %c0_79], %95 {strides = array<i32>} : memref<255x16xf32, #tpu.memory_space<vmem>>, vector<255x16xf32>,
      %c0_80 = arith.constant 0 : index
      %c0_81 = arith.constant 0 : index
      %97 = vector.load %arg15[%c0_80, %c0_81] : memref<255x16xf32, #tpu.memory_space<vmem>>, vector<255x16xf32>
      %c0_82 = arith.constant 0 : index
      %c0_83 = arith.constant 0 : index
      %98 = vector.load %arg6[%c0_82, %c0_83] : memref<16x40xf32, #tpu.memory_space<vmem>>, vector<16x40xf32>
      %cst_84 = arith.constant dense<0.000000e+00> : vector<255x40xf32>
      %99 = tpu.matmul %97, %98, %cst_84 {dimension_numbers = #tpu.dot_dimension_numbers<[1], [0], [0], [1], [0, 0, 1, 1], [], []>} : vector<255x16xf32>, vector<16x40xf32>, vector<255x40xf32> -> vector<255x40xf32>
      %c0_85 = arith.constant 0 : index
      %c0_86 = arith.constant 0 : index
      %100 = vector.load %arg16[%c0_85, %c0_86] : memref<255x40xf32, #tpu.memory_space<vmem>>, vector<255x40xf32>
      tpu.vector_store %arg16[%c0_85, %c0_86], %99 {strides = array<i32>} : memref<255x40xf32, #tpu.memory_space<vmem>>, vector<255x40xf32>,
      %c0_87 = arith.constant 0 : index
      %c0_88 = arith.constant 0 : index
      %101 = vector.load %arg16[%c0_87, %c0_88] : memref<255x40xf32, #tpu.memory_space<vmem>>, vector<247x8xf32>
      %c2_89 = arith.constant 2 : index
      %c8 = arith.constant 8 : index
      %102 = vector.load %arg16[%c2_89, %c8] : memref<255x40xf32, #tpu.memory_space<vmem>>, vector<247x8xf32>
      %103 = arith.addf %101, %102 : vector<247x8xf32>
      %c4_90 = arith.constant 4 : index
      %c16_91 = arith.constant 16 : index
      %104 = vector.load %arg16[%c4_90, %c16_91] : memref<255x40xf32, #tpu.memory_space<vmem>>, vector<247x8xf32>
      %105 = arith.addf %103, %104 : vector<247x8xf32>
      %c6_92 = arith.constant 6 : index
      %c24 = arith.constant 24 : index
      %106 = vector.load %arg16[%c6_92, %c24] : memref<255x40xf32, #tpu.memory_space<vmem>>, vector<247x8xf32>
      %107 = arith.addf %105, %106 : vector<247x8xf32>
      %c8_93 = arith.constant 8 : index
      %c32 = arith.constant 32 : index
      %108 = vector.load %arg16[%c8_93, %c32] : memref<255x40xf32, #tpu.memory_space<vmem>>, vector<247x8xf32>
      %109 = arith.addf %107, %108 : vector<247x8xf32>
      %c0_94 = arith.constant 0 : index
      %c0_95 = arith.constant 0 : index
      %110 = vector.load %arg7[%c0_94, %c0_95] : memref<8x48xf32, #tpu.memory_space<vmem>>, vector<8x48xf32>
      %cst_96 = arith.constant dense<0.000000e+00> : vector<247x48xf32>
      %111 = tpu.matmul %109, %110, %cst_96 {dimension_numbers = #tpu.dot_dimension_numbers<[1], [0], [0], [1], [0, 0, 1, 1], [], []>} : vector<247x8xf32>, vector<8x48xf32>, vector<247x48xf32> -> vector<247x48xf32>
      %112 = vector.extract_strided_slice %111 {offsets = [0, 0], sizes = [247, 16], strides = [1, 1]} : vector<247x48xf32> to vector<247x16xf32>
      %c0_97 = arith.constant 0 : index
      %c0_98 = arith.constant 0 : index
      %113 = vector.load %arg8[%c0_97, %c0_98] : memref<1x24xf32, #tpu.memory_space<vmem>>, vector<1x16xf32>
      %114 = vector.broadcast %113 : vector<1x16xf32> to vector<247x16xf32>
      %115 = arith.addf %112, %114 : vector<247x16xf32>
      %116 = arith.truncf %115 : vector<247x16xf32> to vector<247x16xbf16>
      %117 = vector.extract_strided_slice %111 {offsets = [0, 16], sizes = [247, 32], strides = [1, 1]} : vector<247x48xf32> to vector<247x32xf32>
      %118 = arith.truncf %117 : vector<247x32xf32> to vector<247x32xbf16>
      %cst_99 = arith.constant 0.000000e+00 : f32
      %119 = vector.broadcast %cst_99 : f32 to vector<247x8xf32>
      %120 = vector.extract_strided_slice %116 {offsets = [0, 0], sizes = [247, 2], strides = [1, 1]} : vector<247x16xbf16> to vector<247x2xbf16>
      %121 = vector.extract_strided_slice %116 {offsets = [0, 8], sizes = [247, 2], strides = [1, 1]} : vector<247x16xbf16> to vector<247x2xbf16>
      "tpu.trace_start"() <{level = 10 : i32, message = "td,sd->ts"}> : () -> ()
      %cst_100 = arith.constant dense<0.000000e+00> : vector<247x247xf32>
      %122 = tpu.matmul %120, %121, %cst_100 {dimension_numbers = #tpu.dot_dimension_numbers<[1], [1], [0], [0], [0, 0, 1, 0], [], []>} : vector<247x2xbf16>, vector<247x2xbf16>, vector<247x247xf32> -> vector<247x247xf32>
      "tpu.trace_stop"() : () -> ()
      %cst_101 = arith.constant dense<0xFF800000> : vector<247xf32>
      %123 = vector.multi_reduction <maximumf>, %122, %cst_101 [1] : vector<247x247xf32> to vector<247xf32>
      %124 = vector.shape_cast %123 : vector<247xf32> to vector<247x1xf32>
      %125 = vector.broadcast %124 : vector<247x1xf32> to vector<247x247xf32>
      %126 = arith.subf %122, %125 : vector<247x247xf32>
      %127 = math.exp %126 : vector<247x247xf32>
      %cst_102 = arith.constant dense<0.000000e+00> : vector<247xf32>
      %128 = vector.multi_reduction <add>, %127, %cst_102 [1] : vector<247x247xf32> to vector<247xf32>
      %129 = vector.shape_cast %128 : vector<247xf32> to vector<247x1xf32>
      %130 = tpu.reciprocal %129 {approx = true} : vector<247x1xf32> -> vector<247x1xf32>
      %131 = arith.truncf %127 : vector<247x247xf32> to vector<247x247xbf16>
      %132 = vector.extract_strided_slice %118 {offsets = [0, 0], sizes = [247, 8], strides = [1, 1]} : vector<247x32xbf16> to vector<247x8xbf16>
      %cst_103 = arith.constant dense<0.000000e+00> : vector<247x8xf32>
      %133 = tpu.matmul %131, %132, %cst_103 {dimension_numbers = #tpu.dot_dimension_numbers<[1], [0], [0], [1], [0, 0, 1, 1], [], []>} : vector<247x247xbf16>, vector<247x8xbf16>, vector<247x8xf32> -> vector<247x8xf32>
      %134 = vector.broadcast %130 : vector<247x1xf32> to vector<247x8xf32>
      %135 = arith.mulf %133, %134 : vector<247x8xf32>
      %136 = arith.addf %119, %135 : vector<247x8xf32>
      %137 = vector.extract_strided_slice %116 {offsets = [0, 2], sizes = [247, 2], strides = [1, 1]} : vector<247x16xbf16> to vector<247x2xbf16>
      %138 = vector.extract_strided_slice %116 {offsets = [0, 10], sizes = [247, 2], strides = [1, 1]} : vector<247x16xbf16> to vector<247x2xbf16>
      "tpu.trace_start"() <{level = 10 : i32, message = "td,sd->ts"}> : () -> ()
      %cst_104 = arith.constant dense<0.000000e+00> : vector<247x247xf32>
      %139 = tpu.matmul %137, %138, %cst_104 {dimension_numbers = #tpu.dot_dimension_numbers<[1], [1], [0], [0], [0, 0, 1, 0], [], []>} : vector<247x2xbf16>, vector<247x2xbf16>, vector<247x247xf32> -> vector<247x247xf32>
      "tpu.trace_stop"() : () -> ()
      %cst_105 = arith.constant dense<0xFF800000> : vector<247xf32>
      %140 = vector.multi_reduction <maximumf>, %139, %cst_105 [1] : vector<247x247xf32> to vector<247xf32>
      %141 = vector.shape_cast %140 : vector<247xf32> to vector<247x1xf32>
      %142 = vector.broadcast %141 : vector<247x1xf32> to vector<247x247xf32>
      %143 = arith.subf %139, %142 : vector<247x247xf32>
      %144 = math.exp %143 : vector<247x247xf32>
      %cst_106 = arith.constant dense<0.000000e+00> : vector<247xf32>
      %145 = vector.multi_reduction <add>, %144, %cst_106 [1] : vector<247x247xf32> to vector<247xf32>
      %146 = vector.shape_cast %145 : vector<247xf32> to vector<247x1xf32>
      %147 = tpu.reciprocal %146 {approx = true} : vector<247x1xf32> -> vector<247x1xf32>
      %148 = arith.truncf %144 : vector<247x247xf32> to vector<247x247xbf16>
      %149 = vector.extract_strided_slice %118 {offsets = [0, 8], sizes = [247, 8], strides = [1, 1]} : vector<247x32xbf16> to vector<247x8xbf16>
      %cst_107 = arith.constant dense<0.000000e+00> : vector<247x8xf32>
      %150 = tpu.matmul %148, %149, %cst_107 {dimension_numbers = #tpu.dot_dimension_numbers<[1], [0], [0], [1], [0, 0, 1, 1], [], []>} : vector<247x247xbf16>, vector<247x8xbf16>, vector<247x8xf32> -> vector<247x8xf32>
      %151 = vector.broadcast %147 : vector<247x1xf32> to vector<247x8xf32>
      %152 = arith.mulf %150, %151 : vector<247x8xf32>
      %153 = arith.addf %136, %152 : vector<247x8xf32>
      %154 = vector.extract_strided_slice %116 {offsets = [0, 4], sizes = [247, 2], strides = [1, 1]} : vector<247x16xbf16> to vector<247x2xbf16>
      %155 = vector.extract_strided_slice %116 {offsets = [0, 12], sizes = [247, 2], strides = [1, 1]} : vector<247x16xbf16> to vector<247x2xbf16>
      "tpu.trace_start"() <{level = 10 : i32, message = "td,sd->ts"}> : () -> ()
      %cst_108 = arith.constant dense<0.000000e+00> : vector<247x247xf32>
      %156 = tpu.matmul %154, %155, %cst_108 {dimension_numbers = #tpu.dot_dimension_numbers<[1], [1], [0], [0], [0, 0, 1, 0], [], []>} : vector<247x2xbf16>, vector<247x2xbf16>, vector<247x247xf32> -> vector<247x247xf32>
      "tpu.trace_stop"() : () -> ()
      %cst_109 = arith.constant dense<0xFF800000> : vector<247xf32>
      %157 = vector.multi_reduction <maximumf>, %156, %cst_109 [1] : vector<247x247xf32> to vector<247xf32>
      %158 = vector.shape_cast %157 : vector<247xf32> to vector<247x1xf32>
      %159 = vector.broadcast %158 : vector<247x1xf32> to vector<247x247xf32>
      %160 = arith.subf %156, %159 : vector<247x247xf32>
      %161 = math.exp %160 : vector<247x247xf32>
      %cst_110 = arith.constant dense<0.000000e+00> : vector<247xf32>
      %162 = vector.multi_reduction <add>, %161, %cst_110 [1] : vector<247x247xf32> to vector<247xf32>
      %163 = vector.shape_cast %162 : vector<247xf32> to vector<247x1xf32>
      %164 = tpu.reciprocal %163 {approx = true} : vector<247x1xf32> -> vector<247x1xf32>
      %165 = arith.truncf %161 : vector<247x247xf32> to vector<247x247xbf16>
      %166 = vector.extract_strided_slice %118 {offsets = [0, 16], sizes = [247, 8], strides = [1, 1]} : vector<247x32xbf16> to vector<247x8xbf16>
      %cst_111 = arith.constant dense<0.000000e+00> : vector<247x8xf32>
      %167 = tpu.matmul %165, %166, %cst_111 {dimension_numbers = #tpu.dot_dimension_numbers<[1], [0], [0], [1], [0, 0, 1, 1], [], []>} : vector<247x247xbf16>, vector<247x8xbf16>, vector<247x8xf32> -> vector<247x8xf32>
      %168 = vector.broadcast %164 : vector<247x1xf32> to vector<247x8xf32>
      %169 = arith.mulf %167, %168 : vector<247x8xf32>
      %170 = arith.addf %153, %169 : vector<247x8xf32>
      %171 = vector.extract_strided_slice %116 {offsets = [0, 6], sizes = [247, 2], strides = [1, 1]} : vector<247x16xbf16> to vector<247x2xbf16>
      %172 = vector.extract_strided_slice %116 {offsets = [0, 14], sizes = [247, 2], strides = [1, 1]} : vector<247x16xbf16> to vector<247x2xbf16>
      "tpu.trace_start"() <{level = 10 : i32, message = "td,sd->ts"}> : () -> ()
      %cst_112 = arith.constant dense<0.000000e+00> : vector<247x247xf32>
      %173 = tpu.matmul %171, %172, %cst_112 {dimension_numbers = #tpu.dot_dimension_numbers<[1], [1], [0], [0], [0, 0, 1, 0], [], []>} : vector<247x2xbf16>, vector<247x2xbf16>, vector<247x247xf32> -> vector<247x247xf32>
      "tpu.trace_stop"() : () -> ()
      %cst_113 = arith.constant dense<0xFF800000> : vector<247xf32>
      %174 = vector.multi_reduction <maximumf>, %173, %cst_113 [1] : vector<247x247xf32> to vector<247xf32>
      %175 = vector.shape_cast %174 : vector<247xf32> to vector<247x1xf32>
      %176 = vector.broadcast %175 : vector<247x1xf32> to vector<247x247xf32>
      %177 = arith.subf %173, %176 : vector<247x247xf32>
      %178 = math.exp %177 : vector<247x247xf32>
      %cst_114 = arith.constant dense<0.000000e+00> : vector<247xf32>
      %179 = vector.multi_reduction <add>, %178, %cst_114 [1] : vector<247x247xf32> to vector<247xf32>
      %180 = vector.shape_cast %179 : vector<247xf32> to vector<247x1xf32>
      %181 = tpu.reciprocal %180 {approx = true} : vector<247x1xf32> -> vector<247x1xf32>
      %182 = arith.truncf %178 : vector<247x247xf32> to vector<247x247xbf16>
      %183 = vector.extract_strided_slice %118 {offsets = [0, 24], sizes = [247, 8], strides = [1, 1]} : vector<247x32xbf16> to vector<247x8xbf16>
      %cst_115 = arith.constant dense<0.000000e+00> : vector<247x8xf32>
      %184 = tpu.matmul %182, %183, %cst_115 {dimension_numbers = #tpu.dot_dimension_numbers<[1], [0], [0], [1], [0, 0, 1, 1], [], []>} : vector<247x247xbf16>, vector<247x8xbf16>, vector<247x8xf32> -> vector<247x8xf32>
      %185 = vector.broadcast %181 : vector<247x1xf32> to vector<247x8xf32>
      %186 = arith.mulf %184, %185 : vector<247x8xf32>
      %187 = arith.addf %170, %186 : vector<247x8xf32>
      %c0_116 = arith.constant 0 : index
      %c16_117 = arith.constant 16 : index
      %188 = vector.load %arg8[%c0_116, %c16_117] : memref<1x24xf32, #tpu.memory_space<vmem>>, vector<1x8xf32>
      %189 = vector.broadcast %188 : vector<1x8xf32> to vector<247x8xf32>
      %190 = arith.addf %187, %189 : vector<247x8xf32>
      "tpu.trace_start"() <{level = 10 : i32, message = "ij,tj->it"}> : () -> ()
      %cst_118 = arith.constant dense<0.000000e+00> : vector<8x247xf32>
      %191 = tpu.matmul %6, %190, %cst_118 {dimension_numbers = #tpu.dot_dimension_numbers<[1], [1], [0], [0], [0, 0, 1, 0], [], []>} : vector<8x8xf32>, vector<247x8xf32>, vector<8x247xf32> -> vector<8x247xf32>
      "tpu.trace_stop"() : () -> ()
      %192 = arith.index_cast %arg18 : i32 to index
      %c0_119 = arith.constant 0 : index
      %c0_120 = arith.constant 0 : index
      %193 = vector.load %arg17[%192, %c0_119, %c0_120] : memref<8x8x247xf32, #tpu.memory_space<vmem>>, vector<1x8x247xf32>
      %194 = vector.shape_cast %193 : vector<1x8x247xf32> to vector<8x247xf32>
      %195 = vector.shape_cast %191 : vector<8x247xf32> to vector<1x8x247xf32>
      tpu.vector_store %arg17[%192, %c0_119, %c0_120], %195 {strides = array<i32>} : memref<8x8x247xf32, #tpu.memory_space<vmem>>, vector<1x8x247xf32>,
    }
    %c8_i32_1 = arith.constant 8 : i32
    %cst = arith.constant 0.000000e+00 : f32
    %8 = vector.broadcast %cst : f32 to vector<8x128xf32>
    %c0 = arith.constant 0 : index
    %c0_2 = arith.constant 0 : index
    %c0_3 = arith.constant 0 : index
    %9 = vector.load %arg17[%c0, %c0_2, %c0_3] : memref<8x8x247xf32, #tpu.memory_space<vmem>>, vector<8x1x247xf32>
    %10 = vector.shape_cast %9 : vector<8x1x247xf32> to vector<8x247xf32>
    %11 = arith.truncf %10 : vector<8x247xf32> to vector<8x247xbf16>
    %c0_4 = arith.constant 0 : index
    %c0_5 = arith.constant 0 : index
    %c0_6 = arith.constant 0 : index
    %12 = vector.load %arg9[%c0_4, %c0_5, %c0_6] : memref<8x247x128xbf16, #tpu.memory_space<vmem>>, vector<1x247x128xbf16>
    %13 = vector.shape_cast %12 : vector<1x247x128xbf16> to vector<247x128xbf16>
    %cst_7 = arith.constant dense<0.000000e+00> : vector<8x128xf32>
    %14 = tpu.matmul %11, %13, %cst_7 {dimension_numbers = #tpu.dot_dimension_numbers<[1], [0], [0], [1], [0, 0, 1, 1], [], []>} : vector<8x247xbf16>, vector<247x128xbf16>, vector<8x128xf32> -> vector<8x128xf32>
    %15 = arith.addf %8, %14 : vector<8x128xf32>
    %c0_8 = arith.constant 0 : index
    %c1 = arith.constant 1 : index
    %c0_9 = arith.constant 0 : index
    %16 = vector.load %arg17[%c0_8, %c1, %c0_9] : memref<8x8x247xf32, #tpu.memory_space<vmem>>, vector<8x1x247xf32>
    %17 = vector.shape_cast %16 : vector<8x1x247xf32> to vector<8x247xf32>
    %18 = arith.truncf %17 : vector<8x247xf32> to vector<8x247xbf16>
    %c1_10 = arith.constant 1 : index
    %c0_11 = arith.constant 0 : index
    %c0_12 = arith.constant 0 : index
    %19 = vector.load %arg9[%c1_10, %c0_11, %c0_12] : memref<8x247x128xbf16, #tpu.memory_space<vmem>>, vector<1x247x128xbf16>
    %20 = vector.shape_cast %19 : vector<1x247x128xbf16> to vector<247x128xbf16>
    %cst_13 = arith.constant dense<0.000000e+00> : vector<8x128xf32>
    %21 = tpu.matmul %18, %20, %cst_13 {dimension_numbers = #tpu.dot_dimension_numbers<[1], [0], [0], [1], [0, 0, 1, 1], [], []>} : vector<8x247xbf16>, vector<247x128xbf16>, vector<8x128xf32> -> vector<8x128xf32>
    %22 = arith.addf %15, %21 : vector<8x128xf32>
    %c0_14 = arith.constant 0 : index
    %c2 = arith.constant 2 : index
    %c0_15 = arith.constant 0 : index
    %23 = vector.load %arg17[%c0_14, %c2, %c0_15] : memref<8x8x247xf32, #tpu.memory_space<vmem>>, vector<8x1x247xf32>
    %24 = vector.shape_cast %23 : vector<8x1x247xf32> to vector<8x247xf32>
    %25 = arith.truncf %24 : vector<8x247xf32> to vector<8x247xbf16>
    %c2_16 = arith.constant 2 : index
    %c0_17 = arith.constant 0 : index
    %c0_18 = arith.constant 0 : index
    %26 = vector.load %arg9[%c2_16, %c0_17, %c0_18] : memref<8x247x128xbf16, #tpu.memory_space<vmem>>, vector<1x247x128xbf16>
    %27 = vector.shape_cast %26 : vector<1x247x128xbf16> to vector<247x128xbf16>
    %cst_19 = arith.constant dense<0.000000e+00> : vector<8x128xf32>
    %28 = tpu.matmul %25, %27, %cst_19 {dimension_numbers = #tpu.dot_dimension_numbers<[1], [0], [0], [1], [0, 0, 1, 1], [], []>} : vector<8x247xbf16>, vector<247x128xbf16>, vector<8x128xf32> -> vector<8x128xf32>
    %29 = arith.addf %22, %28 : vector<8x128xf32>
    %c0_20 = arith.constant 0 : index
    %c3 = arith.constant 3 : index
    %c0_21 = arith.constant 0 : index
    %30 = vector.load %arg17[%c0_20, %c3, %c0_21] : memref<8x8x247xf32, #tpu.memory_space<vmem>>, vector<8x1x247xf32>
    %31 = vector.shape_cast %30 : vector<8x1x247xf32> to vector<8x247xf32>
    %32 = arith.truncf %31 : vector<8x247xf32> to vector<8x247xbf16>
    %c3_22 = arith.constant 3 : index
    %c0_23 = arith.constant 0 : index
    %c0_24 = arith.constant 0 : index
    %33 = vector.load %arg9[%c3_22, %c0_23, %c0_24] : memref<8x247x128xbf16, #tpu.memory_space<vmem>>, vector<1x247x128xbf16>
    %34 = vector.shape_cast %33 : vector<1x247x128xbf16> to vector<247x128xbf16>
    %cst_25 = arith.constant dense<0.000000e+00> : vector<8x128xf32>
    %35 = tpu.matmul %32, %34, %cst_25 {dimension_numbers = #tpu.dot_dimension_numbers<[1], [0], [0], [1], [0, 0, 1, 1], [], []>} : vector<8x247xbf16>, vector<247x128xbf16>, vector<8x128xf32> -> vector<8x128xf32>
    %36 = arith.addf %29, %35 : vector<8x128xf32>
    %c0_26 = arith.constant 0 : index
    %c4 = arith.constant 4 : index
    %c0_27 = arith.constant 0 : index
    %37 = vector.load %arg17[%c0_26, %c4, %c0_27] : memref<8x8x247xf32, #tpu.memory_space<vmem>>, vector<8x1x247xf32>
    %38 = vector.shape_cast %37 : vector<8x1x247xf32> to vector<8x247xf32>
    %39 = arith.truncf %38 : vector<8x247xf32> to vector<8x247xbf16>
    %c4_28 = arith.constant 4 : index
    %c0_29 = arith.constant 0 : index
    %c0_30 = arith.constant 0 : index
    %40 = vector.load %arg9[%c4_28, %c0_29, %c0_30] : memref<8x247x128xbf16, #tpu.memory_space<vmem>>, vector<1x247x128xbf16>
    %41 = vector.shape_cast %40 : vector<1x247x128xbf16> to vector<247x128xbf16>
    %cst_31 = arith.constant dense<0.000000e+00> : vector<8x128xf32>
    %42 = tpu.matmul %39, %41, %cst_31 {dimension_numbers = #tpu.dot_dimension_numbers<[1], [0], [0], [1], [0, 0, 1, 1], [], []>} : vector<8x247xbf16>, vector<247x128xbf16>, vector<8x128xf32> -> vector<8x128xf32>
    %43 = arith.addf %36, %42 : vector<8x128xf32>
    %c0_32 = arith.constant 0 : index
    %c5 = arith.constant 5 : index
    %c0_33 = arith.constant 0 : index
    %44 = vector.load %arg17[%c0_32, %c5, %c0_33] : memref<8x8x247xf32, #tpu.memory_space<vmem>>, vector<8x1x247xf32>
    %45 = vector.shape_cast %44 : vector<8x1x247xf32> to vector<8x247xf32>
    %46 = arith.truncf %45 : vector<8x247xf32> to vector<8x247xbf16>
    %c5_34 = arith.constant 5 : index
    %c0_35 = arith.constant 0 : index
    %c0_36 = arith.constant 0 : index
    %47 = vector.load %arg9[%c5_34, %c0_35, %c0_36] : memref<8x247x128xbf16, #tpu.memory_space<vmem>>, vector<1x247x128xbf16>
    %48 = vector.shape_cast %47 : vector<1x247x128xbf16> to vector<247x128xbf16>
    %cst_37 = arith.constant dense<0.000000e+00> : vector<8x128xf32>
    %49 = tpu.matmul %46, %48, %cst_37 {dimension_numbers = #tpu.dot_dimension_numbers<[1], [0], [0], [1], [0, 0, 1, 1], [], []>} : vector<8x247xbf16>, vector<247x128xbf16>, vector<8x128xf32> -> vector<8x128xf32>
    %50 = arith.addf %43, %49 : vector<8x128xf32>
    %c0_38 = arith.constant 0 : index
    %c6 = arith.constant 6 : index
    %c0_39 = arith.constant 0 : index
    %51 = vector.load %arg17[%c0_38, %c6, %c0_39] : memref<8x8x247xf32, #tpu.memory_space<vmem>>, vector<8x1x247xf32>
    %52 = vector.shape_cast %51 : vector<8x1x247xf32> to vector<8x247xf32>
    %53 = arith.truncf %52 : vector<8x247xf32> to vector<8x247xbf16>
    %c6_40 = arith.constant 6 : index
    %c0_41 = arith.constant 0 : index
    %c0_42 = arith.constant 0 : index
    %54 = vector.load %arg9[%c6_40, %c0_41, %c0_42] : memref<8x247x128xbf16, #tpu.memory_space<vmem>>, vector<1x247x128xbf16>
    %55 = vector.shape_cast %54 : vector<1x247x128xbf16> to vector<247x128xbf16>
    %cst_43 = arith.constant dense<0.000000e+00> : vector<8x128xf32>
    %56 = tpu.matmul %53, %55, %cst_43 {dimension_numbers = #tpu.dot_dimension_numbers<[1], [0], [0], [1], [0, 0, 1, 1], [], []>} : vector<8x247xbf16>, vector<247x128xbf16>, vector<8x128xf32> -> vector<8x128xf32>
    %57 = arith.addf %50, %56 : vector<8x128xf32>
    %c0_44 = arith.constant 0 : index
    %c7 = arith.constant 7 : index
    %c0_45 = arith.constant 0 : index
    %58 = vector.load %arg17[%c0_44, %c7, %c0_45] : memref<8x8x247xf32, #tpu.memory_space<vmem>>, vector<8x1x247xf32>
    %59 = vector.shape_cast %58 : vector<8x1x247xf32> to vector<8x247xf32>
    %60 = arith.truncf %59 : vector<8x247xf32> to vector<8x247xbf16>
    %c7_46 = arith.constant 7 : index
    %c0_47 = arith.constant 0 : index
    %c0_48 = arith.constant 0 : index
    %61 = vector.load %arg9[%c7_46, %c0_47, %c0_48] : memref<8x247x128xbf16, #tpu.memory_space<vmem>>, vector<1x247x128xbf16>
    %62 = vector.shape_cast %61 : vector<1x247x128xbf16> to vector<247x128xbf16>
    %cst_49 = arith.constant dense<0.000000e+00> : vector<8x128xf32>
    %63 = tpu.matmul %60, %62, %cst_49 {dimension_numbers = #tpu.dot_dimension_numbers<[1], [0], [0], [1], [0, 0, 1, 1], [], []>} : vector<8x247xbf16>, vector<247x128xbf16>, vector<8x128xf32> -> vector<8x128xf32>
    %64 = arith.addf %57, %63 : vector<8x128xf32>
    %c0_50 = arith.constant 0 : index
    %c0_51 = arith.constant 0 : index
    %65 = vector.load %arg10[%c0_50, %c0_51] : memref<1x128xf32, #tpu.memory_space<vmem>>, vector<1x128xf32>
    %66 = vector.broadcast %65 : vector<1x128xf32> to vector<8x128xf32>
    %67 = arith.addf %64, %66 : vector<8x128xf32>
    %cst_52 = arith.constant 0.000000e+00 : f32
    %68 = vector.broadcast %cst_52 : f32 to vector<8x128xf32>
    %69 = arith.maximumf %67, %68 : vector<8x128xf32>
    %c0_53 = arith.constant 0 : index
    %c0_54 = arith.constant 0 : index
    %70 = vector.load %arg11[%c0_53, %c0_54] : memref<128x128xf32, #tpu.memory_space<vmem>>, vector<128x128xf32>
    %cst_55 = arith.constant dense<0.000000e+00> : vector<8x128xf32>
    %71 = tpu.matmul %69, %70, %cst_55 {dimension_numbers = #tpu.dot_dimension_numbers<[1], [0], [0], [1], [0, 0, 1, 1], [], []>} : vector<8x128xf32>, vector<128x128xf32>, vector<8x128xf32> -> vector<8x128xf32>
    %c0_56 = arith.constant 0 : index
    %c0_57 = arith.constant 0 : index
    %72 = vector.load %arg12[%c0_56, %c0_57] : memref<1x128xf32, #tpu.memory_space<vmem>>, vector<1x128xf32>
    %73 = vector.broadcast %72 : vector<1x128xf32> to vector<8x128xf32>
    %74 = arith.addf %71, %73 : vector<8x128xf32>
    %c0_58 = arith.constant 0 : index
    %c0_59 = arith.constant 0 : index
    %75 = vector.load %arg13[%c0_58, %c0_59] : memref<8x128xf32, #tpu.memory_space<vmem>>, vector<8x128xf32>
    tpu.vector_store %arg13[%c0_58, %c0_59], %74 {strides = array<i32>} : memref<8x128xf32, #tpu.memory_space<vmem>>, vector<8x128xf32>,
    return
  }
  func.func @transform_0(%arg0: i32) -> (i32, i32, i32) {
    %c0_i32 = arith.constant 0 : i32
    %c0_i32_0 = arith.constant 0 : i32
    %c0_i32_1 = arith.constant 0 : i32
    return %arg0, %c0_i32, %c0_i32_0 : i32, i32, i32
  }
  func.func @transform_1(%arg0: i32) -> (i32, i32, i32) {
    %c0_i32 = arith.constant 0 : i32
    %c0_i32_0 = arith.constant 0 : i32
    %c0_i32_1 = arith.constant 0 : i32
    return %arg0, %c0_i32, %c0_i32_0 : i32, i32, i32
  }
  func.func @transform_2(%arg0: i32) -> (i32, i32) {
    %c0_i32 = arith.constant 0 : i32
    %c0_i32_0 = arith.constant 0 : i32
    %c0_i32_1 = arith.constant 0 : i32
    return %c0_i32, %c0_i32_0 : i32, i32
  }
  func.func @transform_3(%arg0: i32) -> (i32, i32) {
    %c0_i32 = arith.constant 0 : i32
    %c0_i32_0 = arith.constant 0 : i32
    %c0_i32_1 = arith.constant 0 : i32
    return %c0_i32, %c0_i32_0 : i32, i32
  }
  func.func @transform_4(%arg0: i32) -> (i32, i32) {
    %c0_i32 = arith.constant 0 : i32
    %c0_i32_0 = arith.constant 0 : i32
    %c0_i32_1 = arith.constant 0 : i32
    return %c0_i32, %c0_i32_0 : i32, i32
  }
  func.func @transform_5(%arg0: i32) -> (i32, i32) {
    %c0_i32 = arith.constant 0 : i32
    %c0_i32_0 = arith.constant 0 : i32
    %c0_i32_1 = arith.constant 0 : i32
    return %c0_i32, %c0_i32_0 : i32, i32
  }
  func.func @transform_6(%arg0: i32) -> (i32, i32) {
    %c0_i32 = arith.constant 0 : i32
    %c0_i32_0 = arith.constant 0 : i32
    %c0_i32_1 = arith.constant 0 : i32
    return %c0_i32, %c0_i32_0 : i32, i32
  }
  func.func @transform_7(%arg0: i32) -> (i32, i32) {
    %c0_i32 = arith.constant 0 : i32
    %c0_i32_0 = arith.constant 0 : i32
    %c0_i32_1 = arith.constant 0 : i32
    return %c0_i32, %c0_i32_0 : i32, i32
  }
  func.func @transform_8(%arg0: i32) -> (i32, i32, i32) {
    %c0_i32 = arith.constant 0 : i32
    %c0_i32_0 = arith.constant 0 : i32
    %c0_i32_1 = arith.constant 0 : i32
    %c0_i32_2 = arith.constant 0 : i32
    return %c0_i32, %c0_i32_0, %c0_i32_1 : i32, i32, i32
  }
  func.func @transform_9(%arg0: i32) -> (i32, i32) {
    %c0_i32 = arith.constant 0 : i32
    %c0_i32_0 = arith.constant 0 : i32
    %c0_i32_1 = arith.constant 0 : i32
    return %c0_i32, %c0_i32_0 : i32, i32
  }
  func.func @transform_10(%arg0: i32) -> (i32, i32) {
    %c0_i32 = arith.constant 0 : i32
    %c0_i32_0 = arith.constant 0 : i32
    %c0_i32_1 = arith.constant 0 : i32
    return %c0_i32, %c0_i32_0 : i32, i32
  }
  func.func @transform_11(%arg0: i32) -> (i32, i32) {
    %c0_i32 = arith.constant 0 : i32
    %c0_i32_0 = arith.constant 0 : i32
    %c0_i32_1 = arith.constant 0 : i32
    return %c0_i32, %c0_i32_0 : i32, i32
  }
  func.func @transform_12(%arg0: i32) -> (i32, i32) {
    %c0_i32 = arith.constant 0 : i32
    %c0_i32_0 = arith.constant 0 : i32
    return %arg0, %c0_i32 : i32, i32
  }
}

</mosaic_0001>

<llo_original>
// kernel: tpu_custom_call.1
$region0: #{tpu_custom_call.1}
  #allocation0 [shape = 'u32[]', space=smem, size = 0x4, offset = 0x4, fixed_abs, tag = 'smem constant byte address 0x4 - core index']
  #allocation1 [shape = 'u32[72,128]{1,0:T(1,128)}', space=vmem, size = 0x9000, scoped, tag = 'internal scratch']
  #allocation2 [shape = 'f32[256,32]{1,0:T(8,128)}', space=vmem, size = 0x20000, scoped, tag = 'scratch operand']
  #allocation3 [shape = 'f32[255,16]{1,0:T(8,128)}', space=vmem, size = 0x20000, scoped, tag = 'scratch operand']
  #allocation4 [shape = 'f32[255,40]{1,0:T(8,128)}', space=vmem, size = 0x20000, scoped, tag = 'scratch operand']
  #allocation5 [shape = 'f32[8,8,247]{2,1,0:T(8,128)}', space=vmem, size = 0x10000, scoped, tag = 'scratch operand']
  %s0 = inlined_call_operand.hbm [shape: bf16[16,256,512], index: 0, kind: input, shape index: {}]
  %s1 = inlined_call_operand.hbm [shape: bf16[16,256,512], index: 1, kind: input, shape index: {}]
  %s2 = inlined_call_operand.vmem [shape: f32[255,16], index: 2, kind: input, shape index: {}]
  %s3 = inlined_call_operand.vmem [shape: bf16[512,32], index: 3, kind: input, shape index: {}]
  %s4 = inlined_call_operand.vmem [shape: bf16[512,16], index: 4, kind: input, shape index: {}]
  %s5 = inlined_call_operand.hbm [shape: f32[16,40], index: 5, kind: input, shape index: {}]
  %s6 = inlined_call_operand.hbm [shape: f32[8,48], index: 6, kind: input, shape index: {}]
  %s7 = inlined_call_operand.hbm [shape: f32[1,24], index: 7, kind: input, shape index: {}]
  %s8 = inlined_call_operand.vmem [shape: bf16[8,247,128], index: 8, kind: input, shape index: {}]
  %s9 = inlined_call_operand.hbm [shape: f32[1,128], index: 9, kind: input, shape index: {}]
  %s10 = inlined_call_operand.hbm [shape: f32[128,128], index: 10, kind: input, shape index: {}]
  %s11 = inlined_call_operand.hbm [shape: f32[1,128], index: 11, kind: input, shape index: {}]
  %s12 = inlined_call_operand.hbm [shape: f32[16,128], index: 12, kind: output, shape index: {}]
  %s13 = sld [smem:[#allocation0]]
  $region120: #{tpu_custom_call.1} parent=0
    _
  %s15 = ssub.s32 1, %s13
  %s16 = scalar_select 0, %s15, %s13
  $region1: #{tpu_custom_call.1} parent=0
    #allocation6 [shape = 'u8[4194304]{0}', space=vmem, size = 0x400000, scoped, tag = 'input window, operand 0']
    #allocation7 [shape = 's32[2]{0}', space=sflag, size = 0x8, scoped, tag = 'scoped memory for tpu_custom_call.1']
    #allocation8 [shape = 's32[2]{0}', space=sflag, size = 0x8, scoped, tag = 'scoped memory for tpu_custom_call.1']
    #allocation9 [shape = 'u8[4194304]{0}', space=vmem, size = 0x400000, scoped, tag = 'input window, operand 1']
    #allocation10 [shape = 's32[2]{0}', space=sflag, size = 0x8, scoped, tag = 'scoped memory for tpu_custom_call.1']
    #allocation11 [shape = 'u8[8192]{0}', space=vmem, size = 0x2000, scoped, tag = 'input window, operand 5, single buffered']
    #allocation12 [shape = 'u8[4096]{0}', space=vmem, size = 0x1000, scoped, tag = 'input window, operand 6, single buffered']
    #allocation13 [shape = 's32[1]{0}', space=sflag, size = 0x4, scoped, tag = 'scoped memory for tpu_custom_call.1']
    #allocation14 [shape = 'u8[512]{0}', space=vmem, size = 0x400, scoped, tag = 'input window, operand 7, single buffered']
    #allocation15 [shape = 'u8[512]{0}', space=vmem, size = 0x400, scoped, tag = 'input window, operand 9, single buffered']
    #allocation16 [shape = 's32[1]{0}', space=sflag, size = 0x4, scoped, tag = 'scoped memory for tpu_custom_call.1']
    #allocation17 [shape = 'u8[65536]{0}', space=vmem, size = 0x10000, scoped, tag = 'input window, operand 10, single buffered']
    #allocation18 [shape = 'u8[512]{0}', space=vmem, size = 0x400, scoped, tag = 'input window, operand 11, single buffered']
    #allocation19 [shape = 's32[1]{0}', space=sflag, size = 0x4, scoped, tag = 'scoped memory for tpu_custom_call.1']
    #allocation20 [shape = 'u8[8192]{0}', space=vmem, size = 0x2000, scoped, tag = 'output window, operand 0']
    %17 = vsyncpa [#allocation7], 0
    %s18 = scalar_lea.sflag [#allocation7], 1
    %19 = vsyncpa %s18, 0
    %20 = vsyncpa [#allocation10], 0
    %s21 = scalar_lea.sflag [#allocation10], 1
    %22 = vsyncpa %s21, 0
    %23 = vsyncpa [#allocation13], 0
    %24 = vsyncpa [#allocation16], 0
    %25 = vsyncpa [#allocation19], 0
    %26 = vsyncpa [#allocation8], 0
    %s27 = scalar_lea.sflag [#allocation8], 1
    %28 = vsyncpa %s27, 0
    loop: start=0, step=1, limit=4
    $region2: #{tpu_custom_call.1} parent=1 // loop_pre_header
      _
    $region3: #{tpu_custom_call.1} parent=1 // loop_header
      %s30 = sphi 0, %s34
      %p31 = scmp.ge.s32.totalorder %s30, 4
      %s40 = sphi 0, %s42
      %s43 = sphi 0, %s40
      %s44 = sphi 0, %s43
      %s60 = sphi 0, %s44
      %s66 = sphi 0, %s68
      %s69 = sphi 0, %s66
      %s70 = sphi 0, %s69
      %s86 = sphi 0, %s70
      %s90 = sphi 0, %s90
      %s92 = sphi 0, %s90
      %s93 = sphi 0, %s92
      %s107 = sphi 0, %s93
      %s111 = sphi 0, %s111
      %s113 = sphi 0, %s111
      %s114 = sphi 0, %s113
      %s128 = sphi 0, %s114
      %s132 = sphi 0, %s132
      %s134 = sphi 0, %s132
      %s135 = sphi 0, %s134
      %s149 = sphi 0, %s135
      %s153 = sphi 0, %s153
      %s155 = sphi 0, %s153
      %s156 = sphi 0, %s155
      %s170 = sphi 0, %s156
      %s174 = sphi 0, %s174
      %s176 = sphi 0, %s174
      %s177 = sphi 0, %s176
      %s191 = sphi 0, %s177
      %s195 = sphi 0, %s195
      %s197 = sphi 0, %s195
      %s198 = sphi 0, %s197
      %s212 = sphi 0, %s198
      %s216 = sphi 0, %s216
      %s218 = sphi 0, %s216
      %s219 = sphi 0, %s218
      %s233 = sphi 0, %s219
      %s237 = sphi 0, %s237
      %s239 = sphi 0, %s237
      %s240 = sphi 0, %s239
      %s254 = sphi 0, %s240
      %s258 = sphi 0, %s258
      %s260 = sphi 0, %s258
      %s261 = sphi 0, %s260
      %s275 = sphi 0, %s261
      %s279 = sphi 0, %s279
      %s281 = sphi 0, %s279
      %s282 = sphi 0, %s281
      %s296 = sphi 0, %s282
      %s302 = sphi 0, %s304
      %s305 = sphi 0, %s302
      %s306 = sphi 0, %s305
      %s322 = sphi 0, %s306
    $region4: #{tpu_custom_call.1} parent=1 // loop_header_branch
      %33 = sbr.rel (%p31) target = $region8
    $region5: #{tpu_custom_call.1} parent=1 // loop_body
      %s35 = ssub.s32 %s30, 1
      %s36 = ssub.s32 %s30, 2
      %s37 = sadd.s32 %s30, 1
      %s38 = ssub.s32 %s30, %s37
      %p39 = scmp.eq.s32.totalorder %s38, 0
      %s41 = sadd.s32 %s40, 1
      %s42 = scalar_select %p39, %s40, %s41
      %p45 = pneg %p39
      %p46 = scmp.eq.s32.totalorder %s30, 1
      %p47 = por %p45, %p46
      %p48 = scmp.ne.s32.totalorder %s40, %s43
      %p49 = scmp.eq.s32.totalorder %s30, 0
      %p50 = por %p48, %p49
      %p51 = scmp.ne.s32.totalorder %s40, %s43
      %p52 = scmp.eq.s32.totalorder %s35, 1
      %p53 = por %p51, %p52
      %p54 = scmp.ne.s32.totalorder %s43, %s44
      %p55 = scmp.eq.s32.totalorder %s35, 0
      %p56 = por %p54, %p55
      %p57 = scmp.ne.s32.totalorder %s43, %s44
      %p58 = scmp.eq.s32.totalorder %s36, 1
      %p59 = por %p57, %p58
      %p61 = scmp.ne.s32.totalorder %s44, %s60
      %p62 = scmp.eq.s32.totalorder %s36, 0
      %p63 = por %p61, %p62
      %s64 = ssub.s32 %s30, %s37
      %p65 = scmp.eq.s32.totalorder %s64, 0
      %s67 = sadd.s32 %s66, 1
      %s68 = scalar_select %p65, %s66, %s67
      %p71 = pneg %p65
      %p72 = scmp.eq.s32.totalorder %s30, 1
      %p73 = por %p71, %p72
      %p74 = scmp.ne.s32.totalorder %s66, %s69
      %p75 = scmp.eq.s32.totalorder %s30, 0
      %p76 = por %p74, %p75
      %p77 = scmp.ne.s32.totalorder %s66, %s69
      %p78 = scmp.eq.s32.totalorder %s35, 1
      %p79 = por %p77, %p78
      %p80 = scmp.ne.s32.totalorder %s69, %s70
      %p81 = scmp.eq.s32.totalorder %s35, 0
      %p82 = por %p80, %p81
      %p83 = scmp.ne.s32.totalorder %s69, %s70
      %p84 = scmp.eq.s32.totalorder %s36, 1
      %p85 = por %p83, %p84
      %p87 = scmp.ne.s32.totalorder %s70, %s86
      %p88 = scmp.eq.s32.totalorder %s36, 0
      %p89 = por %p87, %p88
      %s91 = sadd.s32 %s90, 1
      %p94 = scmp.eq.s32.totalorder %s30, 1
      %p95 = scmp.ne.s32.totalorder %s90, %s92
      %p96 = scmp.eq.s32.totalorder %s30, 0
      %p97 = por %p95, %p96
      %p98 = scmp.ne.s32.totalorder %s90, %s92
      %p99 = scmp.eq.s32.totalorder %s35, 1
      %p100 = por %p98, %p99
      %p101 = scmp.ne.s32.totalorder %s92, %s93
      %p102 = scmp.eq.s32.totalorder %s35, 0
      %p103 = por %p101, %p102
      %p104 = scmp.ne.s32.totalorder %s92, %s93
      %p105 = scmp.eq.s32.totalorder %s36, 1
      %p106 = por %p104, %p105
      %p108 = scmp.ne.s32.totalorder %s93, %s107
      %p109 = scmp.eq.s32.totalorder %s36, 0
      %p110 = por %p108, %p109
      %s112 = sadd.s32 %s111, 1
      %p115 = scmp.eq.s32.totalorder %s30, 1
      %p116 = scmp.ne.s32.totalorder %s111, %s113
      %p117 = scmp.eq.s32.totalorder %s30, 0
      %p118 = por %p116, %p117
      %p119 = scmp.ne.s32.totalorder %s111, %s113
      %p120 = scmp.eq.s32.totalorder %s35, 1
      %p121 = por %p119, %p120
      %p122 = scmp.ne.s32.totalorder %s113, %s114
      %p123 = scmp.eq.s32.totalorder %s35, 0
      %p124 = por %p122, %p123
      %p125 = scmp.ne.s32.totalorder %s113, %s114
      %p126 = scmp.eq.s32.totalorder %s36, 1
      %p127 = por %p125, %p126
      %p129 = scmp.ne.s32.totalorder %s114, %s128
      %p130 = scmp.eq.s32.totalorder %s36, 0
      %p131 = por %p129, %p130
      %s133 = sadd.s32 %s132, 1
      %p136 = scmp.eq.s32.totalorder %s30, 1
      %p137 = scmp.ne.s32.totalorder %s132, %s134
      %p138 = scmp.eq.s32.totalorder %s30, 0
      %p139 = por %p137, %p138
      %p140 = scmp.ne.s32.totalorder %s132, %s134
      %p141 = scmp.eq.s32.totalorder %s35, 1
      %p142 = por %p140, %p141
      %p143 = scmp.ne.s32.totalorder %s134, %s135
      %p144 = scmp.eq.s32.totalorder %s35, 0
      %p145 = por %p143, %p144
      %p146 = scmp.ne.s32.totalorder %s134, %s135
      %p147 = scmp.eq.s32.totalorder %s36, 1
      %p148 = por %p146, %p147
      %p150 = scmp.ne.s32.totalorder %s135, %s149
      %p151 = scmp.eq.s32.totalorder %s36, 0
      %p152 = por %p150, %p151
      %s154 = sadd.s32 %s153, 1
      %p157 = scmp.eq.s32.totalorder %s30, 1
      %p158 = scmp.ne.s32.totalorder %s153, %s155
      %p159 = scmp.eq.s32.totalorder %s30, 0
      %p160 = por %p158, %p159
      %p161 = scmp.ne.s32.totalorder %s153, %s155
      %p162 = scmp.eq.s32.totalorder %s35, 1
      %p163 = por %p161, %p162
      %p164 = scmp.ne.s32.totalorder %s155, %s156
      %p165 = scmp.eq.s32.totalorder %s35, 0
      %p166 = por %p164, %p165
      %p167 = scmp.ne.s32.totalorder %s155, %s156
      %p168 = scmp.eq.s32.totalorder %s36, 1
      %p169 = por %p167, %p168
      %p171 = scmp.ne.s32.totalorder %s156, %s170
      %p172 = scmp.eq.s32.totalorder %s36, 0
      %p173 = por %p171, %p172
      %s175 = sadd.s32 %s174, 1
      %p178 = scmp.eq.s32.totalorder %s30, 1
      %p179 = scmp.ne.s32.totalorder %s174, %s176
      %p180 = scmp.eq.s32.totalorder %s30, 0
      %p181 = por %p179, %p180
      %p182 = scmp.ne.s32.totalorder %s174, %s176
      %p183 = scmp.eq.s32.totalorder %s35, 1
      %p184 = por %p182, %p183
      %p185 = scmp.ne.s32.totalorder %s176, %s177
      %p186 = scmp.eq.s32.totalorder %s35, 0
      %p187 = por %p185, %p186
      %p188 = scmp.ne.s32.totalorder %s176, %s177
      %p189 = scmp.eq.s32.totalorder %s36, 1
      %p190 = por %p188, %p189
      %p192 = scmp.ne.s32.totalorder %s177, %s191
      %p193 = scmp.eq.s32.totalorder %s36, 0
      %p194 = por %p192, %p193
      %s196 = sadd.s32 %s195, 1
      %p199 = scmp.eq.s32.totalorder %s30, 1
      %p200 = scmp.ne.s32.totalorder %s195, %s197
      %p201 = scmp.eq.s32.totalorder %s30, 0
      %p202 = por %p200, %p201
      %p203 = scmp.ne.s32.totalorder %s195, %s197
      %p204 = scmp.eq.s32.totalorder %s35, 1
      %p205 = por %p203, %p204
      %p206 = scmp.ne.s32.totalorder %s197, %s198
      %p207 = scmp.eq.s32.totalorder %s35, 0
      %p208 = por %p206, %p207
      %p209 = scmp.ne.s32.totalorder %s197, %s198
      %p210 = scmp.eq.s32.totalorder %s36, 1
      %p211 = por %p209, %p210
      %p213 = scmp.ne.s32.totalorder %s198, %s212
      %p214 = scmp.eq.s32.totalorder %s36, 0
      %p215 = por %p213, %p214
      %s217 = sadd.s32 %s216, 1
      %p220 = scmp.eq.s32.totalorder %s30, 1
      %p221 = scmp.ne.s32.totalorder %s216, %s218
      %p222 = scmp.eq.s32.totalorder %s30, 0
      %p223 = por %p221, %p222
      %p224 = scmp.ne.s32.totalorder %s216, %s218
      %p225 = scmp.eq.s32.totalorder %s35, 1
      %p226 = por %p224, %p225
      %p227 = scmp.ne.s32.totalorder %s218, %s219
      %p228 = scmp.eq.s32.totalorder %s35, 0
      %p229 = por %p227, %p228
      %p230 = scmp.ne.s32.totalorder %s218, %s219
      %p231 = scmp.eq.s32.totalorder %s36, 1
      %p232 = por %p230, %p231
      %p234 = scmp.ne.s32.totalorder %s219, %s233
      %p235 = scmp.eq.s32.totalorder %s36, 0
      %p236 = por %p234, %p235
      %s238 = sadd.s32 %s237, 1
      %p241 = scmp.eq.s32.totalorder %s30, 1
      %p242 = scmp.ne.s32.totalorder %s237, %s239
      %p243 = scmp.eq.s32.totalorder %s30, 0
      %p244 = por %p242, %p243
      %p245 = scmp.ne.s32.totalorder %s237, %s239
      %p246 = scmp.eq.s32.totalorder %s35, 1
      %p247 = por %p245, %p246
      %p248 = scmp.ne.s32.totalorder %s239, %s240
      %p249 = scmp.eq.s32.totalorder %s35, 0
      %p250 = por %p248, %p249
      %p251 = scmp.ne.s32.totalorder %s239, %s240
      %p252 = scmp.eq.s32.totalorder %s36, 1
      %p253 = por %p251, %p252
      %p255 = scmp.ne.s32.totalorder %s240, %s254
      %p256 = scmp.eq.s32.totalorder %s36, 0
      %p257 = por %p255, %p256
      %s259 = sadd.s32 %s258, 1
      %p262 = scmp.eq.s32.totalorder %s30, 1
      %p263 = scmp.ne.s32.totalorder %s258, %s260
      %p264 = scmp.eq.s32.totalorder %s30, 0
      %p265 = por %p263, %p264
      %p266 = scmp.ne.s32.totalorder %s258, %s260
      %p267 = scmp.eq.s32.totalorder %s35, 1
      %p268 = por %p266, %p267
      %p269 = scmp.ne.s32.totalorder %s260, %s261
      %p270 = scmp.eq.s32.totalorder %s35, 0
      %p271 = por %p269, %p270
      %p272 = scmp.ne.s32.totalorder %s260, %s261
      %p273 = scmp.eq.s32.totalorder %s36, 1
      %p274 = por %p272, %p273
      %p276 = scmp.ne.s32.totalorder %s261, %s275
      %p277 = scmp.eq.s32.totalorder %s36, 0
      %p278 = por %p276, %p277
      %s280 = sadd.s32 %s279, 1
      %p283 = scmp.eq.s32.totalorder %s30, 1
      %p284 = scmp.ne.s32.totalorder %s279, %s281
      %p285 = scmp.eq.s32.totalorder %s30, 0
      %p286 = por %p284, %p285
      %p287 = scmp.ne.s32.totalorder %s279, %s281
      %p288 = scmp.eq.s32.totalorder %s35, 1
      %p289 = por %p287, %p288
      %p290 = scmp.ne.s32.totalorder %s281, %s282
      %p291 = scmp.eq.s32.totalorder %s35, 0
      %p292 = por %p290, %p291
      %p293 = scmp.ne.s32.totalorder %s281, %s282
      %p294 = scmp.eq.s32.totalorder %s36, 1
      %p295 = por %p293, %p294
      %p297 = scmp.ne.s32.totalorder %s282, %s296
      %p298 = scmp.eq.s32.totalorder %s36, 0
      %p299 = por %p297, %p298
      %s300 = ssub.s32 %s30, %s37
      %p301 = scmp.eq.s32.totalorder %s300, 0
      %s303 = sadd.s32 %s302, 1
      %s304 = scalar_select %p301, %s302, %s303
      %p307 = pneg %p301
      %p308 = scmp.eq.s32.totalorder %s30, 1
      %p309 = por %p307, %p308
      %p310 = scmp.ne.s32.totalorder %s302, %s305
      %p311 = scmp.eq.s32.totalorder %s30, 0
      %p312 = por %p310, %p311
      %p313 = scmp.ne.s32.totalorder %s302, %s305
      %p314 = scmp.eq.s32.totalorder %s35, 1
      %p315 = por %p313, %p314
      %p316 = scmp.ne.s32.totalorder %s305, %s306
      %p317 = scmp.eq.s32.totalorder %s35, 0
      %p318 = por %p316, %p317
      %p319 = scmp.ne.s32.totalorder %s305, %s306
      %p320 = scmp.eq.s32.totalorder %s36, 1
      %p321 = por %p319, %p320
      %p323 = scmp.ne.s32.totalorder %s306, %s322
      %p324 = scmp.eq.s32.totalorder %s36, 0
      %p325 = por %p323, %p324
      %p326 = scmp.le.s32.totalorder 1, %s30
      %p327 = scmp.lt.s32.totalorder %s30, 3
      %p328 = pnand %p326, %p327
      %p329 = pneg %p328
      // Predicated region
      $region9: #{tpu_custom_call.1} parent=5 // pred_check
        _
      $region10: #{tpu_custom_call.1} parent=5 // pred_check_branch
        %331 = sbr.rel (%p328) target = $region12
      $region11: #{tpu_custom_call.1} parent=5 // pred_region
        %s332 = ssub.s32 %s30, 1
        // Predicated region
        $region13: #{tpu_custom_call.1} parent=11 // pred_check
          %p333 = pneg %p103
        $region14: #{tpu_custom_call.1} parent=11 // pred_check_branch
          %335 = sbr.rel (%p333) target = $region16
        $region15: #{tpu_custom_call.1} parent=11 // pred_region
          _
        $region16: #{tpu_custom_call.1} parent=11 // pred_fallthru
          _
        // Predicated region
        $region17: #{tpu_custom_call.1} parent=11 // pred_check
          %p336 = pneg %p124
        $region18: #{tpu_custom_call.1} parent=11 // pred_check_branch
          %338 = sbr.rel (%p336) target = $region20
        $region19: #{tpu_custom_call.1} parent=11 // pred_region
          _
        $region20: #{tpu_custom_call.1} parent=11 // pred_fallthru
          _
        // Predicated region
        $region21: #{tpu_custom_call.1} parent=11 // pred_check
          %p339 = pneg %p145
        $region22: #{tpu_custom_call.1} parent=11 // pred_check_branch
          %341 = sbr.rel (%p339) target = $region24
        $region23: #{tpu_custom_call.1} parent=11 // pred_region
          _
        $region24: #{tpu_custom_call.1} parent=11 // pred_fallthru
          _
        // Predicated region
        $region25: #{tpu_custom_call.1} parent=11 // pred_check
          %p342 = pneg %p166
        $region26: #{tpu_custom_call.1} parent=11 // pred_check_branch
          %344 = sbr.rel (%p342) target = $region28
        $region27: #{tpu_custom_call.1} parent=11 // pred_region
          %346 = vsyncadd [#allocation10], 0
          %s347 = sshll.u32 %s5, 4
          %s348 = int_to_ptr.hbm [resolvable:$true] %s347
          %s349 = sshll.u32 [#allocation11], 4
          %s350 = int_to_ptr.vmem [resolvable:$true] %s349
          %355 = dma.hbm_to_vmem [thread:$0]  %s348, 256, %s350, [#allocation10], 128, 128, 8
        $region28: #{tpu_custom_call.1} parent=11 // pred_fallthru
          _
        // Predicated region
        $region29: #{tpu_custom_call.1} parent=11 // pred_check
          %p356 = pneg %p187
        $region30: #{tpu_custom_call.1} parent=11 // pred_check_branch
          %358 = sbr.rel (%p356) target = $region32
        $region31: #{tpu_custom_call.1} parent=11 // pred_region
          %360 = vsyncadd [#allocation13], 0
          %s362 = sshll.u32 %s6, 4
          %s363 = int_to_ptr.hbm [resolvable:$true] %s362
          %s364 = sshll.u32 [#allocation12], 4
          %s365 = int_to_ptr.vmem [resolvable:$true] %s364
          %367 = dma.hbm_to_vmem [thread:$0]  %s363, 128, %s365, [#allocation13]
        $region32: #{tpu_custom_call.1} parent=11 // pred_fallthru
          _
        // Predicated region
        $region33: #{tpu_custom_call.1} parent=11 // pred_check
          %p368 = pneg %p208
        $region34: #{tpu_custom_call.1} parent=11 // pred_check_branch
          %370 = sbr.rel (%p368) target = $region36
        $region35: #{tpu_custom_call.1} parent=11 // pred_region
          %372 = vsyncadd [#allocation13], 0
          %s374 = sshll.u32 %s7, 4
          %s375 = int_to_ptr.hbm [resolvable:$true] %s374
          %s376 = sshll.u32 [#allocation14], 4
          %s377 = int_to_ptr.vmem [resolvable:$true] %s376
          %379 = dma.hbm_to_vmem [thread:$0]  %s375, 16, %s377, [#allocation13]
        $region36: #{tpu_custom_call.1} parent=11 // pred_fallthru
          _
        // Predicated region
        $region37: #{tpu_custom_call.1} parent=11 // pred_check
          %p380 = pneg %p229
        $region38: #{tpu_custom_call.1} parent=11 // pred_check_branch
          %382 = sbr.rel (%p380) target = $region40
        $region39: #{tpu_custom_call.1} parent=11 // pred_region
          _
        $region40: #{tpu_custom_call.1} parent=11 // pred_fallthru
          _
        // Predicated region
        $region41: #{tpu_custom_call.1} parent=11 // pred_check
          %p383 = pneg %p250
        $region42: #{tpu_custom_call.1} parent=11 // pred_check_branch
          %385 = sbr.rel (%p383) target = $region44
        $region43: #{tpu_custom_call.1} parent=11 // pred_region
          %387 = vsyncadd [#allocation16], 0
          %s389 = sshll.u32 %s9, 4
          %s390 = int_to_ptr.hbm [resolvable:$true] %s389
          %s391 = sshll.u32 [#allocation15], 4
          %s392 = int_to_ptr.vmem [resolvable:$true] %s391
          %394 = dma.hbm_to_vmem [thread:$0]  %s390, 16, %s392, [#allocation16]
        $region44: #{tpu_custom_call.1} parent=11 // pred_fallthru
          _
        // Predicated region
        $region45: #{tpu_custom_call.1} parent=11 // pred_check
          %p395 = pneg %p271
        $region46: #{tpu_custom_call.1} parent=11 // pred_check_branch
          %397 = sbr.rel (%p395) target = $region48
        $region47: #{tpu_custom_call.1} parent=11 // pred_region
          %399 = vsyncadd [#allocation16], 0
          %s400 = sshll.u32 %s10, 4
          %s401 = int_to_ptr.hbm [resolvable:$true] %s400
          %s402 = sshll.u32 [#allocation17], 4
          %s403 = int_to_ptr.vmem [resolvable:$true] %s402
          %408 = dma.hbm_to_vmem [thread:$0]  %s401, 2048, %s403, [#allocation16], 128, 128, 8
        $region48: #{tpu_custom_call.1} parent=11 // pred_fallthru
          _
        // Predicated region
        $region49: #{tpu_custom_call.1} parent=11 // pred_check
          %p409 = pneg %p292
        $region50: #{tpu_custom_call.1} parent=11 // pred_check_branch
          %411 = sbr.rel (%p409) target = $region52
        $region51: #{tpu_custom_call.1} parent=11 // pred_region
          %413 = vsyncadd [#allocation19], 0
          %s415 = sshll.u32 %s11, 4
          %s416 = int_to_ptr.hbm [resolvable:$true] %s415
          %s417 = sshll.u32 [#allocation18], 4
          %s418 = int_to_ptr.vmem [resolvable:$true] %s417
          %420 = dma.hbm_to_vmem [thread:$0]  %s416, 16, %s418, [#allocation19]
        $region52: #{tpu_custom_call.1} parent=11 // pred_fallthru
          _
      $region12: #{tpu_custom_call.1} parent=5 // pred_fallthru
        _
      %p421 = scmp.lt.s32.totalorder %s30, 2
      // Predicated region
      $region53: #{tpu_custom_call.1} parent=5 // pred_check
        %p422 = pneg %p421
      $region54: #{tpu_custom_call.1} parent=5 // pred_check_branch
        %424 = sbr.rel (%p422) target = $region56
      $region55: #{tpu_custom_call.1} parent=5 // pred_region
        // Predicated region
        $region57: #{tpu_custom_call.1} parent=55 // pred_check
          %p425 = pneg %p50
        $region58: #{tpu_custom_call.1} parent=55 // pred_check_branch
          %427 = sbr.rel (%p425) target = $region60
        $region59: #{tpu_custom_call.1} parent=55 // pred_region
          %s428 = sand.u32 %s40, 1
          %s429 = scalar_lea.sflag [#allocation7], %s428
          %s430 = sand.u32 %s40, 1
          %s431 = smul.addr %s430, 4096
          %s432 = scalar_lea.vmem [#allocation6], %s431
          %s433 = smul.u32 8, %s30
          %435 = vsyncadd %s429, 0
          %s436 = smul.addr %s433, 128
          %s437 = smul.addr %s436, 4
          %s438 = scalar_lea.hbm %s0, %s437
          %s439 = sshll.u32 %s438, 4
          %s440 = int_to_ptr.hbm [resolvable:$true] %s439
          %s441 = sshll.u32 %s432, 4
          %s442 = int_to_ptr.vmem [resolvable:$true] %s441
          %447 = dma.hbm_to_vmem [thread:$0]  %s440, 65536, %s442, %s429, 256, 256, 16
        $region60: #{tpu_custom_call.1} parent=55 // pred_fallthru
          _
        // Predicated region
        $region61: #{tpu_custom_call.1} parent=55 // pred_check
          %p448 = pneg %p76
        $region62: #{tpu_custom_call.1} parent=55 // pred_check_branch
          %450 = sbr.rel (%p448) target = $region64
        $region63: #{tpu_custom_call.1} parent=55 // pred_region
          %s451 = sand.u32 %s30, 1
          %s452 = scalar_lea.sflag [#allocation10], %s451
          %s453 = sand.u32 %s66, 1
          %s454 = smul.addr %s453, 4096
          %s455 = scalar_lea.vmem [#allocation9], %s454
          %s456 = smul.u32 8, %s30
          %458 = vsyncadd %s452, 0
          %s459 = smul.addr %s456, 128
          %s460 = smul.addr %s459, 4
          %s461 = scalar_lea.hbm %s1, %s460
          %s462 = sshll.u32 %s461, 4
          %s463 = int_to_ptr.hbm [resolvable:$true] %s462
          %s464 = sshll.u32 %s455, 4
          %s465 = int_to_ptr.vmem [resolvable:$true] %s464
          %470 = dma.hbm_to_vmem [thread:$0]  %s463, 65536, %s465, %s452, 256, 256, 16
        $region64: #{tpu_custom_call.1} parent=55 // pred_fallthru
          _
      $region56: #{tpu_custom_call.1} parent=5 // pred_fallthru
        _
      %p471 = scmp.le.s32.totalorder 1, %s30
      %p472 = scmp.lt.s32.totalorder %s30, 3
      %p473 = pnand %p471, %p472
      %p474 = pneg %p473
      // Predicated region
      $region65: #{tpu_custom_call.1} parent=5 // pred_check
        _
      $region66: #{tpu_custom_call.1} parent=5 // pred_check_branch
        %476 = sbr.rel (%p473) target = $region68
      $region67: #{tpu_custom_call.1} parent=5 // pred_region
        %s477 = ssub.s32 %s30, 1
        %s478 = sand.u32 %s43, 1
        %s479 = scalar_lea.sflag [#allocation7], %s478
        %s480 = sand.u32 %s43, 1
        %s481 = smul.addr %s480, 4096
        %s482 = scalar_lea.vmem [#allocation6], %s481
        // Predicated region
        $region69: #{tpu_custom_call.1} parent=67 // pred_check
          %p483 = pneg %p56
        $region70: #{tpu_custom_call.1} parent=67 // pred_check_branch
          %485 = sbr.rel (%p483) target = $region72
        $region71: #{tpu_custom_call.1} parent=67 // pred_region
          %487 = dma.done %s479, 65536
        $region72: #{tpu_custom_call.1} parent=67 // pred_fallthru
          _
        %s488 = sand.u32 %s35, 1
        %s489 = scalar_lea.sflag [#allocation10], %s488
        %s490 = sand.u32 %s69, 1
        %s491 = smul.addr %s490, 4096
        %s492 = scalar_lea.vmem [#allocation9], %s491
        // Predicated region
        $region73: #{tpu_custom_call.1} parent=67 // pred_check
          %p493 = pneg %p82
        $region74: #{tpu_custom_call.1} parent=67 // pred_check_branch
          %495 = sbr.rel (%p493) target = $region76
        $region75: #{tpu_custom_call.1} parent=67 // pred_region
          %497 = dma.done %s489, 65536
        $region76: #{tpu_custom_call.1} parent=67 // pred_fallthru
          _
        // Predicated region
        $region77: #{tpu_custom_call.1} parent=67 // pred_check
          %p498 = pneg %p166
        $region78: #{tpu_custom_call.1} parent=67 // pred_check_branch
          %500 = sbr.rel (%p498) target = $region80
        $region79: #{tpu_custom_call.1} parent=67 // pred_region
          %502 = dma.done [#allocation10], 256
        $region80: #{tpu_custom_call.1} parent=67 // pred_fallthru
          _
        // Predicated region
        $region81: #{tpu_custom_call.1} parent=67 // pred_check
          %p503 = pneg %p187
        $region82: #{tpu_custom_call.1} parent=67 // pred_check_branch
          %505 = sbr.rel (%p503) target = $region84
        $region83: #{tpu_custom_call.1} parent=67 // pred_region
          %507 = dma.done [#allocation13], 128
        $region84: #{tpu_custom_call.1} parent=67 // pred_fallthru
          _
        // Predicated region
        $region85: #{tpu_custom_call.1} parent=67 // pred_check
          %p508 = pneg %p208
        $region86: #{tpu_custom_call.1} parent=67 // pred_check_branch
          %510 = sbr.rel (%p508) target = $region88
        $region87: #{tpu_custom_call.1} parent=67 // pred_region
          %512 = dma.done [#allocation13], 16
        $region88: #{tpu_custom_call.1} parent=67 // pred_fallthru
          _
        // Predicated region
        $region89: #{tpu_custom_call.1} parent=67 // pred_check
          %p513 = pneg %p250
        $region90: #{tpu_custom_call.1} parent=67 // pred_check_branch
          %515 = sbr.rel (%p513) target = $region92
        $region91: #{tpu_custom_call.1} parent=67 // pred_region
          %517 = dma.done [#allocation16], 16
        $region92: #{tpu_custom_call.1} parent=67 // pred_fallthru
          _
        // Predicated region
        $region93: #{tpu_custom_call.1} parent=67 // pred_check
          %p518 = pneg %p271
        $region94: #{tpu_custom_call.1} parent=67 // pred_check_branch
          %520 = sbr.rel (%p518) target = $region96
        $region95: #{tpu_custom_call.1} parent=67 // pred_region
          %522 = dma.done [#allocation16], 2048
        $region96: #{tpu_custom_call.1} parent=67 // pred_fallthru
          _
        // Predicated region
        $region97: #{tpu_custom_call.1} parent=67 // pred_check
          %p523 = pneg %p292
        $region98: #{tpu_custom_call.1} parent=67 // pred_check_branch
          %525 = sbr.rel (%p523) target = $region100
        $region99: #{tpu_custom_call.1} parent=67 // pred_region
          %527 = dma.done [#allocation19], 16
        $region100: #{tpu_custom_call.1} parent=67 // pred_fallthru
          _
        %s528 = sand.u32 %s43, 1
        %s529 = scalar_lea.sflag [#allocation7], %s528
        %s530 = sand.u32 %s43, 1
        %s531 = smul.addr %s530, 4096
        %s532 = scalar_lea.vmem [#allocation6], %s531
        %p533 = pneg %p56
        %p534 = pneg %p53
        %s535 = sand.u32 %s35, 1
        %s536 = scalar_lea.sflag [#allocation10], %s535
        %s537 = sand.u32 %s69, 1
        %s538 = smul.addr %s537, 4096
        %s539 = scalar_lea.vmem [#allocation9], %s538
        %p540 = pneg %p82
        %p541 = pneg %p79
        %p542 = pneg %p103
        %p543 = pneg %p100
        %p544 = pneg %p124
        %p545 = pneg %p121
        %p546 = pneg %p145
        %p547 = pneg %p142
        %p548 = pneg %p166
        %p549 = pneg %p163
        %p550 = pneg %p187
        %p551 = pneg %p184
        %p552 = pneg %p208
        %p553 = pneg %p205
        %p554 = pneg %p229
        %p555 = pneg %p226
        %p556 = pneg %p250
        %p557 = pneg %p247
        %p558 = pneg %p271
        %p559 = pneg %p268
        %p560 = pneg %p292
        %p561 = pneg %p289
        %p562 = pneg %p318
        %p563 = pneg %p315
        %s564 = sand.u32 %s305, 1
        %s565 = scalar_lea.sflag [#allocation8], %s564
        %s566 = sand.u32 %s305, 1
        %s567 = smul.addr %s566, 8
        %s568 = scalar_lea.vmem [#allocation20], %s567
        %s569 = smul.u32 8, %s35
        %s570 = smul.u32 8, %s35
        %v571 = vlaneseq
        %v572 = vshrl.u32 %v571, 7
        %v573 = vlaneseq
        %v574 = vand.u32 %v573, 127
        %vm575 = vcmp.eq.s32.totalorder %v572, %v574
        %v576 = vsel %vm575, 1, 0
        %v577 = vcvt.s32.f32 %v576
        loop: start=0, step=1, limit=8
        $region101: #{tpu_custom_call.1} parent=67 // loop_pre_header
          _
        $region102: #{tpu_custom_call.1} parent=67 // loop_header
          %s579 = sphi 0, %s583
          %p580 = scmp.ge.s32.totalorder %s579, 8
        $region103: #{tpu_custom_call.1} parent=67 // loop_header_branch
          %582 = sbr.rel (%p580) target = $region107
        $region104: #{tpu_custom_call.1} parent=67 // loop_body
          %s584 = smul.u32 %s579, 128
          %s585 = smul.addr %s584, 4
          %s586 = scalar_lea.vmem %s482, %s585 [#allocation6]
          %v587 = vld [vmem:[%s586] sm:$0xff]
          %v588 = vld [vmem:[%s586 + $0x8] sm:$0xff]
          %v589 = vld [vmem:[%s586 + $0x10] sm:$0xff]
          %v590 = vld [vmem:[%s586 + $0x18] sm:$0xff]
          %v591 = vld [vmem:[%s586 + $0x20] sm:$0xff]
          %v592 = vld [vmem:[%s586 + $0x28] sm:$0xff]
          %v593 = vld [vmem:[%s586 + $0x30] sm:$0xff]
          %v594 = vld [vmem:[%s586 + $0x38] sm:$0xff]
          %v595 = vld [vmem:[%s586 + $0x40] sm:$0xff]
          %v596 = vld [vmem:[%s586 + $0x48] sm:$0xff]
          %v597 = vld [vmem:[%s586 + $0x50] sm:$0xff]
          %v598 = vld [vmem:[%s586 + $0x58] sm:$0xff]
          %v599 = vld [vmem:[%s586 + $0x60] sm:$0xff]
          %v600 = vld [vmem:[%s586 + $0x68] sm:$0xff]
          %v601 = vld [vmem:[%s586 + $0x70] sm:$0xff]
          %v602 = vld [vmem:[%s586 + $0x78] sm:$0xff]
          %v603 = vld [vmem:[%s586 + $0x80] sm:$0xff]
          %v604 = vld [vmem:[%s586 + $0x88] sm:$0xff]
          %v605 = vld [vmem:[%s586 + $0x90] sm:$0xff]
          %v606 = vld [vmem:[%s586 + $0x98] sm:$0xff]
          %v607 = vld [vmem:[%s586 + $0xa0] sm:$0xff]
          %v608 = vld [vmem:[%s586 + $0xa8] sm:$0xff]
          %v609 = vld [vmem:[%s586 + $0xb0] sm:$0xff]
          %v610 = vld [vmem:[%s586 + $0xb8] sm:$0xff]
          %v611 = vld [vmem:[%s586 + $0xc0] sm:$0xff]
          %v612 = vld [vmem:[%s586 + $0xc8] sm:$0xff]
          %v613 = vld [vmem:[%s586 + $0xd0] sm:$0xff]
          %v614 = vld [vmem:[%s586 + $0xd8] sm:$0xff]
          %v615 = vld [vmem:[%s586 + $0xe0] sm:$0xff]
          %v616 = vld [vmem:[%s586 + $0xe8] sm:$0xff]
          %v617 = vld [vmem:[%s586 + $0xf0] sm:$0xff]
          %v618 = vld [vmem:[%s586 + $0xf8] sm:$0xff]
          %v619 = vld [vmem:[%s586 + $0x100] sm:$0xff]
          %v620 = vld [vmem:[%s586 + $0x108] sm:$0xff]
          %v621 = vld [vmem:[%s586 + $0x110] sm:$0xff]
          %v622 = vld [vmem:[%s586 + $0x118] sm:$0xff]
          %v623 = vld [vmem:[%s586 + $0x120] sm:$0xff]
          %v624 = vld [vmem:[%s586 + $0x128] sm:$0xff]
          %v625 = vld [vmem:[%s586 + $0x130] sm:$0xff]
          %v626 = vld [vmem:[%s586 + $0x138] sm:$0xff]
          %v627 = vld [vmem:[%s586 + $0x140] sm:$0xff]
          %v628 = vld [vmem:[%s586 + $0x148] sm:$0xff]
          %v629 = vld [vmem:[%s586 + $0x150] sm:$0xff]
          %v630 = vld [vmem:[%s586 + $0x158] sm:$0xff]
          %v631 = vld [vmem:[%s586 + $0x160] sm:$0xff]
          %v632 = vld [vmem:[%s586 + $0x168] sm:$0xff]
          %v633 = vld [vmem:[%s586 + $0x170] sm:$0xff]
          %v634 = vld [vmem:[%s586 + $0x178] sm:$0xff]
          %v635 = vld [vmem:[%s586 + $0x180] sm:$0xff]
          %v636 = vld [vmem:[%s586 + $0x188] sm:$0xff]
          %v637 = vld [vmem:[%s586 + $0x190] sm:$0xff]
          %v638 = vld [vmem:[%s586 + $0x198] sm:$0xff]
          %v639 = vld [vmem:[%s586 + $0x1a0] sm:$0xff]
          %v640 = vld [vmem:[%s586 + $0x1a8] sm:$0xff]
          %v641 = vld [vmem:[%s586 + $0x1b0] sm:$0xff]
          %v642 = vld [vmem:[%s586 + $0x1b8] sm:$0xff]
          %v643 = vld [vmem:[%s586 + $0x1c0] sm:$0xff]
          %v644 = vld [vmem:[%s586 + $0x1c8] sm:$0xff]
          %v645 = vld [vmem:[%s586 + $0x1d0] sm:$0xff]
          %v646 = vld [vmem:[%s586 + $0x1d8] sm:$0xff]
          %v647 = vld [vmem:[%s586 + $0x1e0] sm:$0xff]
          %v648 = vld [vmem:[%s586 + $0x1e8] sm:$0xff]
          %v649 = vld [vmem:[%s586 + $0x1f0] sm:$0xff]
          %v650 = vld [vmem:[%s586 + $0x1f8] sm:$0xff]
          %v651 = vld [vmem:[%s3] sm:$0xf]
          %v652 = vld [vmem:[%s3 + $0x4] sm:$0xf]
          %v653 = vld [vmem:[%s3 + $0x8] sm:$0xf]
          %v654 = vld [vmem:[%s3 + $0xc] sm:$0xf]
          %v655 = vld [vmem:[%s3 + $0x10] sm:$0xf]
          %v656 = vld [vmem:[%s3 + $0x14] sm:$0xf]
          %v657 = vld [vmem:[%s3 + $0x18] sm:$0xf]
          %v658 = vld [vmem:[%s3 + $0x1c] sm:$0xf]
          %v659 = vld [vmem:[%s3 + $0x20] sm:$0xf]
          %v660 = vld [vmem:[%s3 + $0x24] sm:$0xf]
          %v661 = vld [vmem:[%s3 + $0x28] sm:$0xf]
          %v662 = vld [vmem:[%s3 + $0x2c] sm:$0xf]
          %v663 = vld [vmem:[%s3 + $0x30] sm:$0xf]
          %v664 = vld [vmem:[%s3 + $0x34] sm:$0xf]
          %v665 = vld [vmem:[%s3 + $0x38] sm:$0xf]
          %v666 = vld [vmem:[%s3 + $0x3c] sm:$0xf]
          %v667 = vld [vmem:[%s3 + $0x40] sm:$0xf]
          %v668 = vld [vmem:[%s3 + $0x44] sm:$0xf]
          %v669 = vld [vmem:[%s3 + $0x48] sm:$0xf]
          %v670 = vld [vmem:[%s3 + $0x4c] sm:$0xf]
          %v671 = vld [vmem:[%s3 + $0x50] sm:$0xf]
          %v672 = vld [vmem:[%s3 + $0x54] sm:$0xf]
          %v673 = vld [vmem:[%s3 + $0x58] sm:$0xf]
          %v674 = vld [vmem:[%s3 + $0x5c] sm:$0xf]
          %v675 = vld [vmem:[%s3 + $0x60] sm:$0xf]
          %v676 = vld [vmem:[%s3 + $0x64] sm:$0xf]
          %v677 = vld [vmem:[%s3 + $0x68] sm:$0xf]
          %v678 = vld [vmem:[%s3 + $0x6c] sm:$0xf]
          %v679 = vld [vmem:[%s3 + $0x70] sm:$0xf]
          %v680 = vld [vmem:[%s3 + $0x74] sm:$0xf]
          %v681 = vld [vmem:[%s3 + $0x78] sm:$0xf]
          %v682 = vld [vmem:[%s3 + $0x7c] sm:$0xf]
          %v683 = vld [vmem:[%s3 + $0x80] sm:$0xf]
          %v684 = vld [vmem:[%s3 + $0x84] sm:$0xf]
          %v685 = vld [vmem:[%s3 + $0x88] sm:$0xf]
          %v686 = vld [vmem:[%s3 + $0x8c] sm:$0xf]
          %v687 = vld [vmem:[%s3 + $0x90] sm:$0xf]
          %v688 = vld [vmem:[%s3 + $0x94] sm:$0xf]
          %v689 = vld [vmem:[%s3 + $0x98] sm:$0xf]
          %v690 = vld [vmem:[%s3 + $0x9c] sm:$0xf]
          %v691 = vld [vmem:[%s3 + $0xa0] sm:$0xf]
          %v692 = vld [vmem:[%s3 + $0xa4] sm:$0xf]
          %v693 = vld [vmem:[%s3 + $0xa8] sm:$0xf]
          %v694 = vld [vmem:[%s3 + $0xac] sm:$0xf]
          %v695 = vld [vmem:[%s3 + $0xb0] sm:$0xf]
          %v696 = vld [vmem:[%s3 + $0xb4] sm:$0xf]
          %v697 = vld [vmem:[%s3 + $0xb8] sm:$0xf]
          %v698 = vld [vmem:[%s3 + $0xbc] sm:$0xf]
          %v699 = vld [vmem:[%s3 + $0xc0] sm:$0xf]
          %v700 = vld [vmem:[%s3 + $0xc4] sm:$0xf]
          %v701 = vld [vmem:[%s3 + $0xc8] sm:$0xf]
          %v702 = vld [vmem:[%s3 + $0xcc] sm:$0xf]
          %v703 = vld [vmem:[%s3 + $0xd0] sm:$0xf]
          %v704 = vld [vmem:[%s3 + $0xd4] sm:$0xf]
          %v705 = vld [vmem:[%s3 + $0xd8] sm:$0xf]
          %v706 = vld [vmem:[%s3 + $0xdc] sm:$0xf]
          %v707 = vld [vmem:[%s3 + $0xe0] sm:$0xf]
          %v708 = vld [vmem:[%s3 + $0xe4] sm:$0xf]
          %v709 = vld [vmem:[%s3 + $0xe8] sm:$0xf]
          %v710 = vld [vmem:[%s3 + $0xec] sm:$0xf]
          %v711 = vld [vmem:[%s3 + $0xf0] sm:$0xf]
          %v712 = vld [vmem:[%s3 + $0xf4] sm:$0xf]
          %v713 = vld [vmem:[%s3 + $0xf8] sm:$0xf]
          %v714 = vld [vmem:[%s3 + $0xfc] sm:$0xf]
          %v779 = vunpack.c.l.b16 %v587
          %v780 = vunpack.c.h.b16 %v587
          %v781 = vunpack.c.l.b16 %v588
          %v782 = vunpack.c.h.b16 %v588
          %v783 = vunpack.c.l.b16 %v589
          %v784 = vunpack.c.h.b16 %v589
          %v785 = vunpack.c.l.b16 %v590
          %v786 = vunpack.c.h.b16 %v590
          %v787 = vunpack.c.l.b16 %v591
          %v788 = vunpack.c.h.b16 %v591
          %v789 = vunpack.c.l.b16 %v592
          %v790 = vunpack.c.h.b16 %v592
          %v791 = vunpack.c.l.b16 %v593
          %v792 = vunpack.c.h.b16 %v593
          %v793 = vunpack.c.l.b16 %v594
          %v794 = vunpack.c.h.b16 %v594
          %v795 = vunpack.c.l.b16 %v595
          %v796 = vunpack.c.h.b16 %v595
          %v797 = vunpack.c.l.b16 %v596
          %v798 = vunpack.c.h.b16 %v596
          %v799 = vunpack.c.l.b16 %v597
          %v800 = vunpack.c.h.b16 %v597
          %v801 = vunpack.c.l.b16 %v598
          %v802 = vunpack.c.h.b16 %v598
          %v803 = vunpack.c.l.b16 %v599
          %v804 = vunpack.c.h.b16 %v599
          %v805 = vunpack.c.l.b16 %v600
          %v806 = vunpack.c.h.b16 %v600
          %v807 = vunpack.c.l.b16 %v601
          %v808 = vunpack.c.h.b16 %v601
          %v809 = vunpack.c.l.b16 %v602
          %v810 = vunpack.c.h.b16 %v602
          %v811 = vunpack.c.l.b16 %v603
          %v812 = vunpack.c.h.b16 %v603
          %v813 = vunpack.c.l.b16 %v604
          %v814 = vunpack.c.h.b16 %v604
          %v815 = vunpack.c.l.b16 %v605
          %v816 = vunpack.c.h.b16 %v605
          %v817 = vunpack.c.l.b16 %v606
          %v818 = vunpack.c.h.b16 %v606
          %v819 = vunpack.c.l.b16 %v607
          %v820 = vunpack.c.h.b16 %v607
          %v821 = vunpack.c.l.b16 %v608
          %v822 = vunpack.c.h.b16 %v608
          %v823 = vunpack.c.l.b16 %v609
          %v824 = vunpack.c.h.b16 %v609
          %v825 = vunpack.c.l.b16 %v610
          %v826 = vunpack.c.h.b16 %v610
          %v827 = vunpack.c.l.b16 %v611
          %v828 = vunpack.c.h.b16 %v611
          %v829 = vunpack.c.l.b16 %v612
          %v830 = vunpack.c.h.b16 %v612
          %v831 = vunpack.c.l.b16 %v613
          %v832 = vunpack.c.h.b16 %v613
          %v833 = vunpack.c.l.b16 %v614
          %v834 = vunpack.c.h.b16 %v614
          %v835 = vunpack.c.l.b16 %v615
          %v836 = vunpack.c.h.b16 %v615
          %v837 = vunpack.c.l.b16 %v616
          %v838 = vunpack.c.h.b16 %v616
          %v839 = vunpack.c.l.b16 %v617
          %v840 = vunpack.c.h.b16 %v617
          %v841 = vunpack.c.l.b16 %v618
          %v842 = vunpack.c.h.b16 %v618
          %v843 = vunpack.c.l.b16 %v619
          %v844 = vunpack.c.h.b16 %v619
          %v845 = vunpack.c.l.b16 %v620
          %v846 = vunpack.c.h.b16 %v620
          %v847 = vunpack.c.l.b16 %v621
          %v848 = vunpack.c.h.b16 %v621
          %v849 = vunpack.c.l.b16 %v622
          %v850 = vunpack.c.h.b16 %v622
          %v851 = vunpack.c.l.b16 %v623
          %v852 = vunpack.c.h.b16 %v623
          %v853 = vunpack.c.l.b16 %v624
          %v854 = vunpack.c.h.b16 %v624
          %v855 = vunpack.c.l.b16 %v625
          %v856 = vunpack.c.h.b16 %v625
          %v857 = vunpack.c.l.b16 %v626
          %v858 = vunpack.c.h.b16 %v626
          %v859 = vunpack.c.l.b16 %v627
          %v860 = vunpack.c.h.b16 %v627
          %v861 = vunpack.c.l.b16 %v628
          %v862 = vunpack.c.h.b16 %v628
          %v863 = vunpack.c.l.b16 %v629
          %v864 = vunpack.c.h.b16 %v629
          %v865 = vunpack.c.l.b16 %v630
          %v866 = vunpack.c.h.b16 %v630
          %v867 = vunpack.c.l.b16 %v631
          %v868 = vunpack.c.h.b16 %v631
          %v869 = vunpack.c.l.b16 %v632
          %v870 = vunpack.c.h.b16 %v632
          %v871 = vunpack.c.l.b16 %v633
          %v872 = vunpack.c.h.b16 %v633
          %v873 = vunpack.c.l.b16 %v634
          %v874 = vunpack.c.h.b16 %v634
          %v875 = vunpack.c.l.b16 %v635
          %v876 = vunpack.c.h.b16 %v635
          %v877 = vunpack.c.l.b16 %v636
          %v878 = vunpack.c.h.b16 %v636
          %v879 = vunpack.c.l.b16 %v637
          %v880 = vunpack.c.h.b16 %v637
          %v881 = vunpack.c.l.b16 %v638
          %v882 = vunpack.c.h.b16 %v638
          %v883 = vunpack.c.l.b16 %v639
          %v884 = vunpack.c.h.b16 %v639
          %v885 = vunpack.c.l.b16 %v640
          %v886 = vunpack.c.h.b16 %v640
          %v887 = vunpack.c.l.b16 %v641
          %v888 = vunpack.c.h.b16 %v641
          %v889 = vunpack.c.l.b16 %v642
          %v890 = vunpack.c.h.b16 %v642
          %v891 = vunpack.c.l.b16 %v643
          %v892 = vunpack.c.h.b16 %v643
          %v893 = vunpack.c.l.b16 %v644
          %v894 = vunpack.c.h.b16 %v644
          %v895 = vunpack.c.l.b16 %v645
          %v896 = vunpack.c.h.b16 %v645
          %v897 = vunpack.c.l.b16 %v646
          %v898 = vunpack.c.h.b16 %v646
          %v899 = vunpack.c.l.b16 %v647
          %v900 = vunpack.c.h.b16 %v647
          %v901 = vunpack.c.l.b16 %v648
          %v902 = vunpack.c.h.b16 %v648
          %v903 = vunpack.c.l.b16 %v649
          %v904 = vunpack.c.h.b16 %v649
          %v905 = vunpack.c.l.b16 %v650
          %v906 = vunpack.c.h.b16 %v650
          %v907 = vpack.c.b16 %v783, %v779
          %v908 = vpack.c.b16 %v784, %v780
          %v909 = vpack.c.b16 %v785, %v781
          %v910 = vpack.c.b16 %v786, %v782
          %v911 = vpack.c.b16 %v791, %v787
          %v912 = vpack.c.b16 %v792, %v788
          %v913 = vpack.c.b16 %v793, %v789
          %v914 = vpack.c.b16 %v794, %v790
          %v915 = vpack.c.b16 %v799, %v795
          %v916 = vpack.c.b16 %v800, %v796
          %v917 = vpack.c.b16 %v801, %v797
          %v918 = vpack.c.b16 %v802, %v798
          %v919 = vpack.c.b16 %v807, %v803
          %v920 = vpack.c.b16 %v808, %v804
          %v921 = vpack.c.b16 %v809, %v805
          %v922 = vpack.c.b16 %v810, %v806
          %v923 = vpack.c.b16 %v815, %v811
          %v924 = vpack.c.b16 %v816, %v812
          %v925 = vpack.c.b16 %v817, %v813
          %v926 = vpack.c.b16 %v818, %v814
          %v927 = vpack.c.b16 %v823, %v819
          %v928 = vpack.c.b16 %v824, %v820
          %v929 = vpack.c.b16 %v825, %v821
          %v930 = vpack.c.b16 %v826, %v822
          %v931 = vpack.c.b16 %v831, %v827
          %v932 = vpack.c.b16 %v832, %v828
          %v933 = vpack.c.b16 %v833, %v829
          %v934 = vpack.c.b16 %v834, %v830
          %v935 = vpack.c.b16 %v839, %v835
          %v936 = vpack.c.b16 %v840, %v836
          %v937 = vpack.c.b16 %v841, %v837
          %v938 = vpack.c.b16 %v842, %v838
          %v939 = vpack.c.b16 %v847, %v843
          %v940 = vpack.c.b16 %v848, %v844
          %v941 = vpack.c.b16 %v849, %v845
          %v942 = vpack.c.b16 %v850, %v846
          %v943 = vpack.c.b16 %v855, %v851
          %v944 = vpack.c.b16 %v856, %v852
          %v945 = vpack.c.b16 %v857, %v853
          %v946 = vpack.c.b16 %v858, %v854
          %v947 = vpack.c.b16 %v863, %v859
          %v948 = vpack.c.b16 %v864, %v860
          %v949 = vpack.c.b16 %v865, %v861
          %v950 = vpack.c.b16 %v866, %v862
          %v951 = vpack.c.b16 %v871, %v867
          %v952 = vpack.c.b16 %v872, %v868
          %v953 = vpack.c.b16 %v873, %v869
          %v954 = vpack.c.b16 %v874, %v870
          %v955 = vpack.c.b16 %v879, %v875
          %v956 = vpack.c.b16 %v880, %v876
          %v957 = vpack.c.b16 %v881, %v877
          %v958 = vpack.c.b16 %v882, %v878
          %v959 = vpack.c.b16 %v887, %v883
          %v960 = vpack.c.b16 %v888, %v884
          %v961 = vpack.c.b16 %v889, %v885
          %v962 = vpack.c.b16 %v890, %v886
          %v963 = vpack.c.b16 %v895, %v891
          %v964 = vpack.c.b16 %v896, %v892
          %v965 = vpack.c.b16 %v897, %v893
          %v966 = vpack.c.b16 %v898, %v894
          %v967 = vpack.c.b16 %v903, %v899
          %v968 = vpack.c.b16 %v904, %v900
          %v969 = vpack.c.b16 %v905, %v901
          %v970 = vpack.c.b16 %v906, %v902
          %v1099 = vunpack.c.l.b16 %v651
          %v1100 = vunpack.c.l.b16 %v652
          %v1101 = vunpack.c.l.b16 %v653
          %v1102 = vunpack.c.l.b16 %v654
          %v1103 = vunpack.c.l.b16 %v655
          %v1104 = vunpack.c.l.b16 %v656
          %v1105 = vunpack.c.l.b16 %v657
          %v1106 = vunpack.c.l.b16 %v658
          %v1107 = vunpack.c.l.b16 %v659
          %v1108 = vunpack.c.l.b16 %v660
          %v1109 = vunpack.c.l.b16 %v661
          %v1110 = vunpack.c.l.b16 %v662
          %v1111 = vunpack.c.l.b16 %v663
          %v1112 = vunpack.c.l.b16 %v664
          %v1113 = vunpack.c.l.b16 %v665
          %v1114 = vunpack.c.l.b16 %v666
          %v1115 = vunpack.c.l.b16 %v667
          %v1116 = vunpack.c.l.b16 %v668
          %v1117 = vunpack.c.l.b16 %v669
          %v1118 = vunpack.c.l.b16 %v670
          %v1119 = vunpack.c.l.b16 %v671
          %v1120 = vunpack.c.l.b16 %v672
          %v1121 = vunpack.c.l.b16 %v673
          %v1122 = vunpack.c.l.b16 %v674
          %v1123 = vunpack.c.l.b16 %v675
          %v1124 = vunpack.c.l.b16 %v676
          %v1125 = vunpack.c.l.b16 %v677
          %v1126 = vunpack.c.l.b16 %v678
          %v1127 = vunpack.c.l.b16 %v679
          %v1128 = vunpack.c.l.b16 %v680
          %v1129 = vunpack.c.l.b16 %v681
          %v1130 = vunpack.c.l.b16 %v682
          %v1131 = vunpack.c.l.b16 %v683
          %v1132 = vunpack.c.l.b16 %v684
          %v1133 = vunpack.c.l.b16 %v685
          %v1134 = vunpack.c.l.b16 %v686
          %v1135 = vunpack.c.l.b16 %v687
          %v1136 = vunpack.c.l.b16 %v688
          %v1137 = vunpack.c.l.b16 %v689
          %v1138 = vunpack.c.l.b16 %v690
          %v1139 = vunpack.c.l.b16 %v691
          %v1140 = vunpack.c.l.b16 %v692
          %v1141 = vunpack.c.l.b16 %v693
          %v1142 = vunpack.c.l.b16 %v694
          %v1143 = vunpack.c.l.b16 %v695
          %v1144 = vunpack.c.l.b16 %v696
          %v1145 = vunpack.c.l.b16 %v697
          %v1146 = vunpack.c.l.b16 %v698
          %v1147 = vunpack.c.l.b16 %v699
          %v1148 = vunpack.c.l.b16 %v700
          %v1149 = vunpack.c.l.b16 %v701
          %v1150 = vunpack.c.l.b16 %v702
          %v1151 = vunpack.c.l.b16 %v703
          %v1152 = vunpack.c.l.b16 %v704
          %v1153 = vunpack.c.l.b16 %v705
          %v1154 = vunpack.c.l.b16 %v706
          %v1155 = vunpack.c.l.b16 %v707
          %v1156 = vunpack.c.l.b16 %v708
          %v1157 = vunpack.c.l.b16 %v709
          %v1158 = vunpack.c.l.b16 %v710
          %v1159 = vunpack.c.l.b16 %v711
          %v1160 = vunpack.c.l.b16 %v712
          %v1161 = vunpack.c.l.b16 %v713
          %v1162 = vunpack.c.l.b16 %v714
          %v1163 = vpack.c.b16 %v1100, %v1099
          %v1164 = vpack.c.b16 %v1102, %v1101
          %v1165 = vpack.c.b16 %v1104, %v1103
          %v1166 = vpack.c.b16 %v1106, %v1105
          %v1167 = vpack.c.b16 %v1108, %v1107
          %v1168 = vpack.c.b16 %v1110, %v1109
          %v1169 = vpack.c.b16 %v1112, %v1111
          %v1170 = vpack.c.b16 %v1114, %v1113
          %v1171 = vpack.c.b16 %v1116, %v1115
          %v1172 = vpack.c.b16 %v1118, %v1117
          %v1173 = vpack.c.b16 %v1120, %v1119
          %v1174 = vpack.c.b16 %v1122, %v1121
          %v1175 = vpack.c.b16 %v1124, %v1123
          %v1176 = vpack.c.b16 %v1126, %v1125
          %v1177 = vpack.c.b16 %v1128, %v1127
          %v1178 = vpack.c.b16 %v1130, %v1129
          %v1179 = vpack.c.b16 %v1132, %v1131
          %v1180 = vpack.c.b16 %v1134, %v1133
          %v1181 = vpack.c.b16 %v1136, %v1135
          %v1182 = vpack.c.b16 %v1138, %v1137
          %v1183 = vpack.c.b16 %v1140, %v1139
          %v1184 = vpack.c.b16 %v1142, %v1141
          %v1185 = vpack.c.b16 %v1144, %v1143
          %v1186 = vpack.c.b16 %v1146, %v1145
          %v1187 = vpack.c.b16 %v1148, %v1147
          %v1188 = vpack.c.b16 %v1150, %v1149
          %v1189 = vpack.c.b16 %v1152, %v1151
          %v1190 = vpack.c.b16 %v1154, %v1153
          %v1191 = vpack.c.b16 %v1156, %v1155
          %v1192 = vpack.c.b16 %v1158, %v1157
          %v1193 = vpack.c.b16 %v1160, %v1159
          %v1194 = vpack.c.b16 %v1162, %v1161
          %1227 = vmatpush.bf16.msra.mxu0 %v1170
          %1228 = vmatpush.bf16.msra.mxu0 %v1169
          %1229 = vmatpush.bf16.msra.mxu0 %v1168
          %1230 = vmatpush.bf16.msra.mxu0 %v1167
          %1231 = vmatpush.bf16.msra.mxu0 %v1166
          %1232 = vmatpush.bf16.msra.mxu0 %v1165
          %1233 = vmatpush.bf16.msra.mxu0 %v1164
          %1234 = vmatpush.bf16.msra.mxu0 %v1163
          %1235 = vmatmul.bf16.gmra.mxu0 %v907
          %v1236 = vpop.f32.mrf.mxu0
          %v1237 = vadd.f32 0.0, %v1236
          %v1238 = vpop.f32.mrf.mxu0
          %v1239 = vadd.f32 0.0, %v1238
          %1240 = vmatmul.bf16.gmra.mxu0 %v911
          %v1241 = vpop.f32.mrf.mxu0
          %v1242 = vadd.f32 0.0, %v1241
          %v1243 = vpop.f32.mrf.mxu0
          %v1244 = vadd.f32 0.0, %v1243
          %1245 = vmatmul.bf16.gmra.mxu0 %v915
          %v1246 = vpop.f32.mrf.mxu0
          %v1247 = vadd.f32 0.0, %v1246
          %v1248 = vpop.f32.mrf.mxu0
          %v1249 = vadd.f32 0.0, %v1248
          %1250 = vmatmul.bf16.gmra.mxu0 %v919
          %v1251 = vpop.f32.mrf.mxu0
          %v1252 = vadd.f32 0.0, %v1251
          %v1253 = vpop.f32.mrf.mxu0
          %v1254 = vadd.f32 0.0, %v1253
          %1255 = vmatmul.bf16.gmra.mxu0 %v923
          %v1256 = vpop.f32.mrf.mxu0
          %v1257 = vadd.f32 0.0, %v1256
          %v1258 = vpop.f32.mrf.mxu0
          %v1259 = vadd.f32 0.0, %v1258
          %1260 = vmatmul.bf16.gmra.mxu0 %v927
          %v1261 = vpop.f32.mrf.mxu0
          %v1262 = vadd.f32 0.0, %v1261
          %v1263 = vpop.f32.mrf.mxu0
          %v1264 = vadd.f32 0.0, %v1263
          %1265 = vmatmul.bf16.gmra.mxu0 %v931
          %v1266 = vpop.f32.mrf.mxu0
          %v1267 = vadd.f32 0.0, %v1266
          %v1268 = vpop.f32.mrf.mxu0
          %v1269 = vadd.f32 0.0, %v1268
          %1270 = vmatmul.bf16.gmra.mxu0 %v935
          %v1271 = vpop.f32.mrf.mxu0
          %v1272 = vadd.f32 0.0, %v1271
          %v1273 = vpop.f32.mrf.mxu0
          %v1274 = vadd.f32 0.0, %v1273
          %1275 = vmatmul.bf16.gmra.mxu0 %v939
          %v1276 = vpop.f32.mrf.mxu0
          %v1277 = vadd.f32 0.0, %v1276
          %v1278 = vpop.f32.mrf.mxu0
          %v1279 = vadd.f32 0.0, %v1278
          %1280 = vmatmul.bf16.gmra.mxu0 %v943
          %v1281 = vpop.f32.mrf.mxu0
          %v1282 = vadd.f32 0.0, %v1281
          %v1283 = vpop.f32.mrf.mxu0
          %v1284 = vadd.f32 0.0, %v1283
          %1285 = vmatmul.bf16.gmra.mxu0 %v947
          %v1286 = vpop.f32.mrf.mxu0
          %v1287 = vadd.f32 0.0, %v1286
          %v1288 = vpop.f32.mrf.mxu0
          %v1289 = vadd.f32 0.0, %v1288
          %1290 = vmatmul.bf16.gmra.mxu0 %v951
          %v1291 = vpop.f32.mrf.mxu0
          %v1292 = vadd.f32 0.0, %v1291
          %v1293 = vpop.f32.mrf.mxu0
          %v1294 = vadd.f32 0.0, %v1293
          %1295 = vmatmul.bf16.gmra.mxu0 %v955
          %v1296 = vpop.f32.mrf.mxu0
          %v1297 = vadd.f32 0.0, %v1296
          %v1298 = vpop.f32.mrf.mxu0
          %v1299 = vadd.f32 0.0, %v1298
          %1300 = vmatmul.bf16.gmra.mxu0 %v959
          %v1301 = vpop.f32.mrf.mxu0
          %v1302 = vadd.f32 0.0, %v1301
          %v1303 = vpop.f32.mrf.mxu0
          %v1304 = vadd.f32 0.0, %v1303
          %1305 = vmatmul.bf16.gmra.mxu0 %v963
          %v1306 = vpop.f32.mrf.mxu0
          %v1307 = vadd.f32 0.0, %v1306
          %v1308 = vpop.f32.mrf.mxu0
          %v1309 = vadd.f32 0.0, %v1308
          %1310 = vmatmul.bf16.gmra.mxu0 %v967
          %v1311 = vpop.f32.mrf.mxu0
          %v1312 = vadd.f32 0.0, %v1311
          %v1313 = vpop.f32.mrf.mxu0
          %v1314 = vadd.f32 0.0, %v1313
          %1315 = vdwg.mxu0
          %1316 = vmatpush.bf16.msra.mxu0 %v1178
          %1317 = vmatpush.bf16.msra.mxu0 %v1177
          %1318 = vmatpush.bf16.msra.mxu0 %v1176
          %1319 = vmatpush.bf16.msra.mxu0 %v1175
          %1320 = vmatpush.bf16.msra.mxu0 %v1174
          %1321 = vmatpush.bf16.msra.mxu0 %v1173
          %1322 = vmatpush.bf16.msra.mxu0 %v1172
          %1323 = vmatpush.bf16.msra.mxu0 %v1171
          %1324 = vmatmul.bf16.gmra.mxu0 %v908
          %v1325 = vpop.f32.mrf.mxu0
          %v1326 = vadd.f32 %v1237, %v1325
          %v1327 = vpop.f32.mrf.mxu0
          %v1328 = vadd.f32 %v1239, %v1327
          %1329 = vmatmul.bf16.gmra.mxu0 %v912
          %v1330 = vpop.f32.mrf.mxu0
          %v1331 = vadd.f32 %v1242, %v1330
          %v1332 = vpop.f32.mrf.mxu0
          %v1333 = vadd.f32 %v1244, %v1332
          %1334 = vmatmul.bf16.gmra.mxu0 %v916
          %v1335 = vpop.f32.mrf.mxu0
          %v1336 = vadd.f32 %v1247, %v1335
          %v1337 = vpop.f32.mrf.mxu0
          %v1338 = vadd.f32 %v1249, %v1337
          %1339 = vmatmul.bf16.gmra.mxu0 %v920
          %v1340 = vpop.f32.mrf.mxu0
          %v1341 = vadd.f32 %v1252, %v1340
          %v1342 = vpop.f32.mrf.mxu0
          %v1343 = vadd.f32 %v1254, %v1342
          %1344 = vmatmul.bf16.gmra.mxu0 %v924
          %v1345 = vpop.f32.mrf.mxu0
          %v1346 = vadd.f32 %v1257, %v1345
          %v1347 = vpop.f32.mrf.mxu0
          %v1348 = vadd.f32 %v1259, %v1347
          %1349 = vmatmul.bf16.gmra.mxu0 %v928
          %v1350 = vpop.f32.mrf.mxu0
          %v1351 = vadd.f32 %v1262, %v1350
          %v1352 = vpop.f32.mrf.mxu0
          %v1353 = vadd.f32 %v1264, %v1352
          %1354 = vmatmul.bf16.gmra.mxu0 %v932
          %v1355 = vpop.f32.mrf.mxu0
          %v1356 = vadd.f32 %v1267, %v1355
          %v1357 = vpop.f32.mrf.mxu0
          %v1358 = vadd.f32 %v1269, %v1357
          %1359 = vmatmul.bf16.gmra.mxu0 %v936
          %v1360 = vpop.f32.mrf.mxu0
          %v1361 = vadd.f32 %v1272, %v1360
          %v1362 = vpop.f32.mrf.mxu0
          %v1363 = vadd.f32 %v1274, %v1362
          %1364 = vmatmul.bf16.gmra.mxu0 %v940
          %v1365 = vpop.f32.mrf.mxu0
          %v1366 = vadd.f32 %v1277, %v1365
          %v1367 = vpop.f32.mrf.mxu0
          %v1368 = vadd.f32 %v1279, %v1367
          %1369 = vmatmul.bf16.gmra.mxu0 %v944
          %v1370 = vpop.f32.mrf.mxu0
          %v1371 = vadd.f32 %v1282, %v1370
          %v1372 = vpop.f32.mrf.mxu0
          %v1373 = vadd.f32 %v1284, %v1372
          %1374 = vmatmul.bf16.gmra.mxu0 %v948
          %v1375 = vpop.f32.mrf.mxu0
          %v1376 = vadd.f32 %v1287, %v1375
          %v1377 = vpop.f32.mrf.mxu0
          %v1378 = vadd.f32 %v1289, %v1377
          %1379 = vmatmul.bf16.gmra.mxu0 %v952
          %v1380 = vpop.f32.mrf.mxu0
          %v1381 = vadd.f32 %v1292, %v1380
          %v1382 = vpop.f32.mrf.mxu0
          %v1383 = vadd.f32 %v1294, %v1382
          %1384 = vmatmul.bf16.gmra.mxu0 %v956
          %v1385 = vpop.f32.mrf.mxu0
          %v1386 = vadd.f32 %v1297, %v1385
          %v1387 = vpop.f32.mrf.mxu0
          %v1388 = vadd.f32 %v1299, %v1387
          %1389 = vmatmul.bf16.gmra.mxu0 %v960
          %v1390 = vpop.f32.mrf.mxu0
          %v1391 = vadd.f32 %v1302, %v1390
          %v1392 = vpop.f32.mrf.mxu0
          %v1393 = vadd.f32 %v1304, %v1392
          %1394 = vmatmul.bf16.gmra.mxu0 %v964
          %v1395 = vpop.f32.mrf.mxu0
          %v1396 = vadd.f32 %v1307, %v1395
          %v1397 = vpop.f32.mrf.mxu0
          %v1398 = vadd.f32 %v1309, %v1397
          %1399 = vmatmul.bf16.gmra.mxu0 %v968
          %v1400 = vpop.f32.mrf.mxu0
          %v1401 = vadd.f32 %v1312, %v1400
          %v1402 = vpop.f32.mrf.mxu0
          %v1403 = vadd.f32 %v1314, %v1402
          %1404 = vdwg.mxu0
          %1405 = vmatpush.bf16.msra.mxu0 %v1186
          %1406 = vmatpush.bf16.msra.mxu0 %v1185
          %1407 = vmatpush.bf16.msra.mxu0 %v1184
          %1408 = vmatpush.bf16.msra.mxu0 %v1183
          %1409 = vmatpush.bf16.msra.mxu0 %v1182
          %1410 = vmatpush.bf16.msra.mxu0 %v1181
          %1411 = vmatpush.bf16.msra.mxu0 %v1180
          %1412 = vmatpush.bf16.msra.mxu0 %v1179
          %1413 = vmatmul.bf16.gmra.mxu0 %v909
          %v1414 = vpop.f32.mrf.mxu0
          %v1415 = vadd.f32 %v1326, %v1414
          %v1416 = vpop.f32.mrf.mxu0
          %v1417 = vadd.f32 %v1328, %v1416
          %1418 = vmatmul.bf16.gmra.mxu0 %v913
          %v1419 = vpop.f32.mrf.mxu0
          %v1420 = vadd.f32 %v1331, %v1419
          %v1421 = vpop.f32.mrf.mxu0
          %v1422 = vadd.f32 %v1333, %v1421
          %1423 = vmatmul.bf16.gmra.mxu0 %v917
          %v1424 = vpop.f32.mrf.mxu0
          %v1425 = vadd.f32 %v1336, %v1424
          %v1426 = vpop.f32.mrf.mxu0
          %v1427 = vadd.f32 %v1338, %v1426
          %1428 = vmatmul.bf16.gmra.mxu0 %v921
          %v1429 = vpop.f32.mrf.mxu0
          %v1430 = vadd.f32 %v1341, %v1429
          %v1431 = vpop.f32.mrf.mxu0
          %v1432 = vadd.f32 %v1343, %v1431
          %1433 = vmatmul.bf16.gmra.mxu0 %v925
          %v1434 = vpop.f32.mrf.mxu0
          %v1435 = vadd.f32 %v1346, %v1434
          %v1436 = vpop.f32.mrf.mxu0
          %v1437 = vadd.f32 %v1348, %v1436
          %1438 = vmatmul.bf16.gmra.mxu0 %v929
          %v1439 = vpop.f32.mrf.mxu0
          %v1440 = vadd.f32 %v1351, %v1439
          %v1441 = vpop.f32.mrf.mxu0
          %v1442 = vadd.f32 %v1353, %v1441
          %1443 = vmatmul.bf16.gmra.mxu0 %v933
          %v1444 = vpop.f32.mrf.mxu0
          %v1445 = vadd.f32 %v1356, %v1444
          %v1446 = vpop.f32.mrf.mxu0
          %v1447 = vadd.f32 %v1358, %v1446
          %1448 = vmatmul.bf16.gmra.mxu0 %v937
          %v1449 = vpop.f32.mrf.mxu0
          %v1450 = vadd.f32 %v1361, %v1449
          %v1451 = vpop.f32.mrf.mxu0
          %v1452 = vadd.f32 %v1363, %v1451
          %1453 = vmatmul.bf16.gmra.mxu0 %v941
          %v1454 = vpop.f32.mrf.mxu0
          %v1455 = vadd.f32 %v1366, %v1454
          %v1456 = vpop.f32.mrf.mxu0
          %v1457 = vadd.f32 %v1368, %v1456
          %1458 = vmatmul.bf16.gmra.mxu0 %v945
          %v1459 = vpop.f32.mrf.mxu0
          %v1460 = vadd.f32 %v1371, %v1459
          %v1461 = vpop.f32.mrf.mxu0
          %v1462 = vadd.f32 %v1373, %v1461
          %1463 = vmatmul.bf16.gmra.mxu0 %v949
          %v1464 = vpop.f32.mrf.mxu0
          %v1465 = vadd.f32 %v1376, %v1464
          %v1466 = vpop.f32.mrf.mxu0
          %v1467 = vadd.f32 %v1378, %v1466
          %1468 = vmatmul.bf16.gmra.mxu0 %v953
          %v1469 = vpop.f32.mrf.mxu0
          %v1470 = vadd.f32 %v1381, %v1469
          %v1471 = vpop.f32.mrf.mxu0
          %v1472 = vadd.f32 %v1383, %v1471
          %1473 = vmatmul.bf16.gmra.mxu0 %v957
          %v1474 = vpop.f32.mrf.mxu0
          %v1475 = vadd.f32 %v1386, %v1474
          %v1476 = vpop.f32.mrf.mxu0
          %v1477 = vadd.f32 %v1388, %v1476
          %1478 = vmatmul.bf16.gmra.mxu0 %v961
          %v1479 = vpop.f32.mrf.mxu0
          %v1480 = vadd.f32 %v1391, %v1479
          %v1481 = vpop.f32.mrf.mxu0
          %v1482 = vadd.f32 %v1393, %v1481
          %1483 = vmatmul.bf16.gmra.mxu0 %v965
          %v1484 = vpop.f32.mrf.mxu0
          %v1485 = vadd.f32 %v1396, %v1484
          %v1486 = vpop.f32.mrf.mxu0
          %v1487 = vadd.f32 %v1398, %v1486
          %1488 = vmatmul.bf16.gmra.mxu0 %v969
          %v1489 = vpop.f32.mrf.mxu0
          %v1490 = vadd.f32 %v1401, %v1489
          %v1491 = vpop.f32.mrf.mxu0
          %v1492 = vadd.f32 %v1403, %v1491
          %1493 = vdwg.mxu0
          %1494 = vmatpush.bf16.msra.mxu0 %v1194
          %1495 = vmatpush.bf16.msra.mxu0 %v1193
          %1496 = vmatpush.bf16.msra.mxu0 %v1192
          %1497 = vmatpush.bf16.msra.mxu0 %v1191
          %1498 = vmatpush.bf16.msra.mxu0 %v1190
          %1499 = vmatpush.bf16.msra.mxu0 %v1189
          %1500 = vmatpush.bf16.msra.mxu0 %v1188
          %1501 = vmatpush.bf16.msra.mxu0 %v1187
          %1502 = vmatmul.bf16.gmra.mxu0 %v910
          %v1503 = vpop.f32.mrf.mxu0
          %v1504 = vadd.f32 %v1415, %v1503
          %v1505 = vpop.f32.mrf.mxu0
          %v1506 = vadd.f32 %v1417, %v1505
          %1507 = vmatmul.bf16.gmra.mxu0 %v914
          %v1508 = vpop.f32.mrf.mxu0
          %v1509 = vadd.f32 %v1420, %v1508
          %v1510 = vpop.f32.mrf.mxu0
          %v1511 = vadd.f32 %v1422, %v1510
          %1512 = vmatmul.bf16.gmra.mxu0 %v918
          %v1513 = vpop.f32.mrf.mxu0
          %v1514 = vadd.f32 %v1425, %v1513
          %v1515 = vpop.f32.mrf.mxu0
          %v1516 = vadd.f32 %v1427, %v1515
          %1517 = vmatmul.bf16.gmra.mxu0 %v922
          %v1518 = vpop.f32.mrf.mxu0
          %v1519 = vadd.f32 %v1430, %v1518
          %v1520 = vpop.f32.mrf.mxu0
          %v1521 = vadd.f32 %v1432, %v1520
          %1522 = vmatmul.bf16.gmra.mxu0 %v926
          %v1523 = vpop.f32.mrf.mxu0
          %v1524 = vadd.f32 %v1435, %v1523
          %v1525 = vpop.f32.mrf.mxu0
          %v1526 = vadd.f32 %v1437, %v1525
          %1527 = vmatmul.bf16.gmra.mxu0 %v930
          %v1528 = vpop.f32.mrf.mxu0
          %v1529 = vadd.f32 %v1440, %v1528
          %v1530 = vpop.f32.mrf.mxu0
          %v1531 = vadd.f32 %v1442, %v1530
          %1532 = vmatmul.bf16.gmra.mxu0 %v934
          %v1533 = vpop.f32.mrf.mxu0
          %v1534 = vadd.f32 %v1445, %v1533
          %v1535 = vpop.f32.mrf.mxu0
          %v1536 = vadd.f32 %v1447, %v1535
          %1537 = vmatmul.bf16.gmra.mxu0 %v938
          %v1538 = vpop.f32.mrf.mxu0
          %v1539 = vadd.f32 %v1450, %v1538
          %v1540 = vpop.f32.mrf.mxu0
          %v1541 = vadd.f32 %v1452, %v1540
          %1542 = vmatmul.bf16.gmra.mxu0 %v942
          %v1543 = vpop.f32.mrf.mxu0
          %v1544 = vadd.f32 %v1455, %v1543
          %v1545 = vpop.f32.mrf.mxu0
          %v1546 = vadd.f32 %v1457, %v1545
          %1547 = vmatmul.bf16.gmra.mxu0 %v946
          %v1548 = vpop.f32.mrf.mxu0
          %v1549 = vadd.f32 %v1460, %v1548
          %v1550 = vpop.f32.mrf.mxu0
          %v1551 = vadd.f32 %v1462, %v1550
          %1552 = vmatmul.bf16.gmra.mxu0 %v950
          %v1553 = vpop.f32.mrf.mxu0
          %v1554 = vadd.f32 %v1465, %v1553
          %v1555 = vpop.f32.mrf.mxu0
          %v1556 = vadd.f32 %v1467, %v1555
          %1557 = vmatmul.bf16.gmra.mxu0 %v954
          %v1558 = vpop.f32.mrf.mxu0
          %v1559 = vadd.f32 %v1470, %v1558
          %v1560 = vpop.f32.mrf.mxu0
          %v1561 = vadd.f32 %v1472, %v1560
          %1562 = vmatmul.bf16.gmra.mxu0 %v958
          %v1563 = vpop.f32.mrf.mxu0
          %v1564 = vadd.f32 %v1475, %v1563
          %v1565 = vpop.f32.mrf.mxu0
          %v1566 = vadd.f32 %v1477, %v1565
          %1567 = vmatmul.bf16.gmra.mxu0 %v962
          %v1568 = vpop.f32.mrf.mxu0
          %v1569 = vadd.f32 %v1480, %v1568
          %v1570 = vpop.f32.mrf.mxu0
          %v1571 = vadd.f32 %v1482, %v1570
          %1572 = vmatmul.bf16.gmra.mxu0 %v966
          %v1573 = vpop.f32.mrf.mxu0
          %v1574 = vadd.f32 %v1485, %v1573
          %v1575 = vpop.f32.mrf.mxu0
          %v1576 = vadd.f32 %v1487, %v1575
          %1577 = vmatmul.bf16.gmra.mxu0 %v970
          %v1578 = vpop.f32.mrf.mxu0
          %v1579 = vadd.f32 %v1490, %v1578
          %v1580 = vpop.f32.mrf.mxu0
          %v1581 = vadd.f32 %v1492, %v1580
          %1582 = vdwg.mxu0
          %vm1583 = vcmask 261120
          %1584 = vst.msk [vmem:[#allocation2] sm:$0xff] %vm1583, %v1504
          %1585 = vst.msk [vmem:[#allocation2 + $0x8] sm:$0xff] %vm1583, %v1506
          %1586 = vst.msk [vmem:[#allocation2 + $0x10] sm:$0xff] %vm1583, %v1509
          %1587 = vst.msk [vmem:[#allocation2 + $0x18] sm:$0xff] %vm1583, %v1511
          %1588 = vst.msk [vmem:[#allocation2 + $0x20] sm:$0xff] %vm1583, %v1514
          %1589 = vst.msk [vmem:[#allocation2 + $0x28] sm:$0xff] %vm1583, %v1516
          %1590 = vst.msk [vmem:[#allocation2 + $0x30] sm:$0xff] %vm1583, %v1519
          %1591 = vst.msk [vmem:[#allocation2 + $0x38] sm:$0xff] %vm1583, %v1521
          %1592 = vst.msk [vmem:[#allocation2 + $0x40] sm:$0xff] %vm1583, %v1524
          %1593 = vst.msk [vmem:[#allocation2 + $0x48] sm:$0xff] %vm1583, %v1526
          %1594 = vst.msk [vmem:[#allocation2 + $0x50] sm:$0xff] %vm1583, %v1529
          %1595 = vst.msk [vmem:[#allocation2 + $0x58] sm:$0xff] %vm1583, %v1531
          %1596 = vst.msk [vmem:[#allocation2 + $0x60] sm:$0xff] %vm1583, %v1534
          %1597 = vst.msk [vmem:[#allocation2 + $0x68] sm:$0xff] %vm1583, %v1536
          %1598 = vst.msk [vmem:[#allocation2 + $0x70] sm:$0xff] %vm1583, %v1539
          %1599 = vst.msk [vmem:[#allocation2 + $0x78] sm:$0xff] %vm1583, %v1541
          %1600 = vst.msk [vmem:[#allocation2 + $0x80] sm:$0xff] %vm1583, %v1544
          %1601 = vst.msk [vmem:[#allocation2 + $0x88] sm:$0xff] %vm1583, %v1546
          %1602 = vst.msk [vmem:[#allocation2 + $0x90] sm:$0xff] %vm1583, %v1549
          %1603 = vst.msk [vmem:[#allocation2 + $0x98] sm:$0xff] %vm1583, %v1551
          %1604 = vst.msk [vmem:[#allocation2 + $0xa0] sm:$0xff] %vm1583, %v1554
          %1605 = vst.msk [vmem:[#allocation2 + $0xa8] sm:$0xff] %vm1583, %v1556
          %1606 = vst.msk [vmem:[#allocation2 + $0xb0] sm:$0xff] %vm1583, %v1559
          %1607 = vst.msk [vmem:[#allocation2 + $0xb8] sm:$0xff] %vm1583, %v1561
          %1608 = vst.msk [vmem:[#allocation2 + $0xc0] sm:$0xff] %vm1583, %v1564
          %1609 = vst.msk [vmem:[#allocation2 + $0xc8] sm:$0xff] %vm1583, %v1566
          %1610 = vst.msk [vmem:[#allocation2 + $0xd0] sm:$0xff] %vm1583, %v1569
          %1611 = vst.msk [vmem:[#allocation2 + $0xd8] sm:$0xff] %vm1583, %v1571
          %1612 = vst.msk [vmem:[#allocation2 + $0xe0] sm:$0xff] %vm1583, %v1574
          %1613 = vst.msk [vmem:[#allocation2 + $0xe8] sm:$0xff] %vm1583, %v1576
          %1614 = vst.msk [vmem:[#allocation2 + $0xf0] sm:$0xff] %vm1583, %v1579
          %1615 = vst.msk [vmem:[#allocation2 + $0xf8] sm:$0xff] %vm1583, %v1581
          %s1616 = smul.addr %s584, 4
          %s1617 = scalar_lea.vmem %s492, %s1616 [#allocation9]
          %v1618 = vld [vmem:[%s1617] sm:$0xff]
          %v1619 = vld [vmem:[%s1617 + $0x8] sm:$0xff]
          %v1620 = vld [vmem:[%s1617 + $0x10] sm:$0xff]
          %v1621 = vld [vmem:[%s1617 + $0x18] sm:$0xff]
          %v1622 = vld [vmem:[%s1617 + $0x20] sm:$0xff]
          %v1623 = vld [vmem:[%s1617 + $0x28] sm:$0xff]
          %v1624 = vld [vmem:[%s1617 + $0x30] sm:$0xff]
          %v1625 = vld [vmem:[%s1617 + $0x38] sm:$0xff]
          %v1626 = vld [vmem:[%s1617 + $0x40] sm:$0xff]
          %v1627 = vld [vmem:[%s1617 + $0x48] sm:$0xff]
          %v1628 = vld [vmem:[%s1617 + $0x50] sm:$0xff]
          %v1629 = vld [vmem:[%s1617 + $0x58] sm:$0xff]
          %v1630 = vld [vmem:[%s1617 + $0x60] sm:$0xff]
          %v1631 = vld [vmem:[%s1617 + $0x68] sm:$0xff]
          %v1632 = vld [vmem:[%s1617 + $0x70] sm:$0xff]
          %v1633 = vld [vmem:[%s1617 + $0x78] sm:$0xff]
          %v1634 = vld [vmem:[%s1617 + $0x80] sm:$0xff]
          %v1635 = vld [vmem:[%s1617 + $0x88] sm:$0xff]
          %v1636 = vld [vmem:[%s1617 + $0x90] sm:$0xff]
          %v1637 = vld [vmem:[%s1617 + $0x98] sm:$0xff]
          %v1638 = vld [vmem:[%s1617 + $0xa0] sm:$0xff]
          %v1639 = vld [vmem:[%s1617 + $0xa8] sm:$0xff]
          %v1640 = vld [vmem:[%s1617 + $0xb0] sm:$0xff]
          %v1641 = vld [vmem:[%s1617 + $0xb8] sm:$0xff]
          %v1642 = vld [vmem:[%s1617 + $0xc0] sm:$0xff]
          %v1643 = vld [vmem:[%s1617 + $0xc8] sm:$0xff]
          %v1644 = vld [vmem:[%s1617 + $0xd0] sm:$0xff]
          %v1645 = vld [vmem:[%s1617 + $0xd8] sm:$0xff]
          %v1646 = vld [vmem:[%s1617 + $0xe0] sm:$0xff]
          %v1647 = vld [vmem:[%s1617 + $0xe8] sm:$0xff]
          %v1648 = vld [vmem:[%s1617 + $0xf0] sm:$0xff]
          %v1649 = vld [vmem:[%s1617 + $0xf8] sm:$0xff]
          %v1650 = vld [vmem:[%s1617 + $0x100] sm:$0xff]
          %v1651 = vld [vmem:[%s1617 + $0x108] sm:$0xff]
          %v1652 = vld [vmem:[%s1617 + $0x110] sm:$0xff]
          %v1653 = vld [vmem:[%s1617 + $0x118] sm:$0xff]
          %v1654 = vld [vmem:[%s1617 + $0x120] sm:$0xff]
          %v1655 = vld [vmem:[%s1617 + $0x128] sm:$0xff]
          %v1656 = vld [vmem:[%s1617 + $0x130] sm:$0xff]
          %v1657 = vld [vmem:[%s1617 + $0x138] sm:$0xff]
          %v1658 = vld [vmem:[%s1617 + $0x140] sm:$0xff]
          %v1659 = vld [vmem:[%s1617 + $0x148] sm:$0xff]
          %v1660 = vld [vmem:[%s1617 + $0x150] sm:$0xff]
          %v1661 = vld [vmem:[%s1617 + $0x158] sm:$0xff]
          %v1662 = vld [vmem:[%s1617 + $0x160] sm:$0xff]
          %v1663 = vld [vmem:[%s1617 + $0x168] sm:$0xff]
          %v1664 = vld [vmem:[%s1617 + $0x170] sm:$0xff]
          %v1665 = vld [vmem:[%s1617 + $0x178] sm:$0xff]
          %v1666 = vld [vmem:[%s1617 + $0x180] sm:$0xff]
          %v1667 = vld [vmem:[%s1617 + $0x188] sm:$0xff]
          %v1668 = vld [vmem:[%s1617 + $0x190] sm:$0xff]
          %v1669 = vld [vmem:[%s1617 + $0x198] sm:$0xff]
          %v1670 = vld [vmem:[%s1617 + $0x1a0] sm:$0xff]
          %v1671 = vld [vmem:[%s1617 + $0x1a8] sm:$0xff]
          %v1672 = vld [vmem:[%s1617 + $0x1b0] sm:$0xff]
          %v1673 = vld [vmem:[%s1617 + $0x1b8] sm:$0xff]
          %v1674 = vld [vmem:[%s1617 + $0x1c0] sm:$0xff]
          %v1675 = vld [vmem:[%s1617 + $0x1c8] sm:$0xff]
          %v1676 = vld [vmem:[%s1617 + $0x1d0] sm:$0xff]
          %v1677 = vld [vmem:[%s1617 + $0x1d8] sm:$0xff]
          %v1678 = vld [vmem:[%s1617 + $0x1e0] sm:$0xff]
          %v1679 = vld [vmem:[%s1617 + $0x1e8] sm:$0xff]
          %v1680 = vld [vmem:[%s1617 + $0x1f0] sm:$0xff]
          %v1681 = vld [vmem:[%s1617 + $0x1f8] sm:$0xff]
          %v1682 = vld [vmem:[%s4] sm:$0xf]
          %v1683 = vld [vmem:[%s4 + $0x4] sm:$0xf]
          %v1684 = vld [vmem:[%s4 + $0x8] sm:$0xf]
          %v1685 = vld [vmem:[%s4 + $0xc] sm:$0xf]
          %v1686 = vld [vmem:[%s4 + $0x10] sm:$0xf]
          %v1687 = vld [vmem:[%s4 + $0x14] sm:$0xf]
          %v1688 = vld [vmem:[%s4 + $0x18] sm:$0xf]
          %v1689 = vld [vmem:[%s4 + $0x1c] sm:$0xf]
          %v1690 = vld [vmem:[%s4 + $0x20] sm:$0xf]
          %v1691 = vld [vmem:[%s4 + $0x24] sm:$0xf]
          %v1692 = vld [vmem:[%s4 + $0x28] sm:$0xf]
          %v1693 = vld [vmem:[%s4 + $0x2c] sm:$0xf]
          %v1694 = vld [vmem:[%s4 + $0x30] sm:$0xf]
          %v1695 = vld [vmem:[%s4 + $0x34] sm:$0xf]
          %v1696 = vld [vmem:[%s4 + $0x38] sm:$0xf]
          %v1697 = vld [vmem:[%s4 + $0x3c] sm:$0xf]
          %v1698 = vld [vmem:[%s4 + $0x40] sm:$0xf]
          %v1699 = vld [vmem:[%s4 + $0x44] sm:$0xf]
          %v1700 = vld [vmem:[%s4 + $0x48] sm:$0xf]
          %v1701 = vld [vmem:[%s4 + $0x4c] sm:$0xf]
          %v1702 = vld [vmem:[%s4 + $0x50] sm:$0xf]
          %v1703 = vld [vmem:[%s4 + $0x54] sm:$0xf]
          %v1704 = vld [vmem:[%s4 + $0x58] sm:$0xf]
          %v1705 = vld [vmem:[%s4 + $0x5c] sm:$0xf]
          %v1706 = vld [vmem:[%s4 + $0x60] sm:$0xf]
          %v1707 = vld [vmem:[%s4 + $0x64] sm:$0xf]
          %v1708 = vld [vmem:[%s4 + $0x68] sm:$0xf]
          %v1709 = vld [vmem:[%s4 + $0x6c] sm:$0xf]
          %v1710 = vld [vmem:[%s4 + $0x70] sm:$0xf]
          %v1711 = vld [vmem:[%s4 + $0x74] sm:$0xf]
          %v1712 = vld [vmem:[%s4 + $0x78] sm:$0xf]
          %v1713 = vld [vmem:[%s4 + $0x7c] sm:$0xf]
          %v1714 = vld [vmem:[%s4 + $0x80] sm:$0xf]
          %v1715 = vld [vmem:[%s4 + $0x84] sm:$0xf]
          %v1716 = vld [vmem:[%s4 + $0x88] sm:$0xf]
          %v1717 = vld [vmem:[%s4 + $0x8c] sm:$0xf]
          %v1718 = vld [vmem:[%s4 + $0x90] sm:$0xf]
          %v1719 = vld [vmem:[%s4 + $0x94] sm:$0xf]
          %v1720 = vld [vmem:[%s4 + $0x98] sm:$0xf]
          %v1721 = vld [vmem:[%s4 + $0x9c] sm:$0xf]
          %v1722 = vld [vmem:[%s4 + $0xa0] sm:$0xf]
          %v1723 = vld [vmem:[%s4 + $0xa4] sm:$0xf]
          %v1724 = vld [vmem:[%s4 + $0xa8] sm:$0xf]
          %v1725 = vld [vmem:[%s4 + $0xac] sm:$0xf]
          %v1726 = vld [vmem:[%s4 + $0xb0] sm:$0xf]
          %v1727 = vld [vmem:[%s4 + $0xb4] sm:$0xf]
          %v1728 = vld [vmem:[%s4 + $0xb8] sm:$0xf]
          %v1729 = vld [vmem:[%s4 + $0xbc] sm:$0xf]
          %v1730 = vld [vmem:[%s4 + $0xc0] sm:$0xf]
          %v1731 = vld [vmem:[%s4 + $0xc4] sm:$0xf]
          %v1732 = vld [vmem:[%s4 + $0xc8] sm:$0xf]
          %v1733 = vld [vmem:[%s4 + $0xcc] sm:$0xf]
          %v1734 = vld [vmem:[%s4 + $0xd0] sm:$0xf]
          %v1735 = vld [vmem:[%s4 + $0xd4] sm:$0xf]
          %v1736 = vld [vmem:[%s4 + $0xd8] sm:$0xf]
          %v1737 = vld [vmem:[%s4 + $0xdc] sm:$0xf]
          %v1738 = vld [vmem:[%s4 + $0xe0] sm:$0xf]
          %v1739 = vld [vmem:[%s4 + $0xe4] sm:$0xf]
          %v1740 = vld [vmem:[%s4 + $0xe8] sm:$0xf]
          %v1741 = vld [vmem:[%s4 + $0xec] sm:$0xf]
          %v1742 = vld [vmem:[%s4 + $0xf0] sm:$0xf]
          %v1743 = vld [vmem:[%s4 + $0xf4] sm:$0xf]
          %v1744 = vld [vmem:[%s4 + $0xf8] sm:$0xf]
          %v1745 = vld [vmem:[%s4 + $0xfc] sm:$0xf]
          %v1810 = vunpack.c.l.b16 %v1618
          %v1811 = vunpack.c.h.b16 %v1618
          %v1812 = vunpack.c.l.b16 %v1619
          %v1813 = vunpack.c.h.b16 %v1619
          %v1814 = vunpack.c.l.b16 %v1620
          %v1815 = vunpack.c.h.b16 %v1620
          %v1816 = vunpack.c.l.b16 %v1621
          %v1817 = vunpack.c.h.b16 %v1621
          %v1818 = vunpack.c.l.b16 %v1622
          %v1819 = vunpack.c.h.b16 %v1622
          %v1820 = vunpack.c.l.b16 %v1623
          %v1821 = vunpack.c.h.b16 %v1623
          %v1822 = vunpack.c.l.b16 %v1624
          %v1823 = vunpack.c.h.b16 %v1624
          %v1824 = vunpack.c.l.b16 %v1625
          %v1825 = vunpack.c.h.b16 %v1625
          %v1826 = vunpack.c.l.b16 %v1626
          %v1827 = vunpack.c.h.b16 %v1626
          %v1828 = vunpack.c.l.b16 %v1627
          %v1829 = vunpack.c.h.b16 %v1627
          %v1830 = vunpack.c.l.b16 %v1628
          %v1831 = vunpack.c.h.b16 %v1628
          %v1832 = vunpack.c.l.b16 %v1629
          %v1833 = vunpack.c.h.b16 %v1629
          %v1834 = vunpack.c.l.b16 %v1630
          %v1835 = vunpack.c.h.b16 %v1630
          %v1836 = vunpack.c.l.b16 %v1631
          %v1837 = vunpack.c.h.b16 %v1631
          %v1838 = vunpack.c.l.b16 %v1632
          %v1839 = vunpack.c.h.b16 %v1632
          %v1840 = vunpack.c.l.b16 %v1633
          %v1841 = vunpack.c.h.b16 %v1633
          %v1842 = vunpack.c.l.b16 %v1634
          %v1843 = vunpack.c.h.b16 %v1634
          %v1844 = vunpack.c.l.b16 %v1635
          %v1845 = vunpack.c.h.b16 %v1635
          %v1846 = vunpack.c.l.b16 %v1636
          %v1847 = vunpack.c.h.b16 %v1636
          %v1848 = vunpack.c.l.b16 %v1637
          %v1849 = vunpack.c.h.b16 %v1637
          %v1850 = vunpack.c.l.b16 %v1638
          %v1851 = vunpack.c.h.b16 %v1638
          %v1852 = vunpack.c.l.b16 %v1639
          %v1853 = vunpack.c.h.b16 %v1639
          %v1854 = vunpack.c.l.b16 %v1640
          %v1855 = vunpack.c.h.b16 %v1640
          %v1856 = vunpack.c.l.b16 %v1641
          %v1857 = vunpack.c.h.b16 %v1641
          %v1858 = vunpack.c.l.b16 %v1642
          %v1859 = vunpack.c.h.b16 %v1642
          %v1860 = vunpack.c.l.b16 %v1643
          %v1861 = vunpack.c.h.b16 %v1643
          %v1862 = vunpack.c.l.b16 %v1644
          %v1863 = vunpack.c.h.b16 %v1644
          %v1864 = vunpack.c.l.b16 %v1645
          %v1865 = vunpack.c.h.b16 %v1645
          %v1866 = vunpack.c.l.b16 %v1646
          %v1867 = vunpack.c.h.b16 %v1646
          %v1868 = vunpack.c.l.b16 %v1647
          %v1869 = vunpack.c.h.b16 %v1647
          %v1870 = vunpack.c.l.b16 %v1648
          %v1871 = vunpack.c.h.b16 %v1648
          %v1872 = vunpack.c.l.b16 %v1649
          %v1873 = vunpack.c.h.b16 %v1649
          %v1874 = vunpack.c.l.b16 %v1650
          %v1875 = vunpack.c.h.b16 %v1650
          %v1876 = vunpack.c.l.b16 %v1651
          %v1877 = vunpack.c.h.b16 %v1651
          %v1878 = vunpack.c.l.b16 %v1652
          %v1879 = vunpack.c.h.b16 %v1652
          %v1880 = vunpack.c.l.b16 %v1653
          %v1881 = vunpack.c.h.b16 %v1653
          %v1882 = vunpack.c.l.b16 %v1654
          %v1883 = vunpack.c.h.b16 %v1654
          %v1884 = vunpack.c.l.b16 %v1655
          %v1885 = vunpack.c.h.b16 %v1655
          %v1886 = vunpack.c.l.b16 %v1656
          %v1887 = vunpack.c.h.b16 %v1656
          %v1888 = vunpack.c.l.b16 %v1657
          %v1889 = vunpack.c.h.b16 %v1657
          %v1890 = vunpack.c.l.b16 %v1658
          %v1891 = vunpack.c.h.b16 %v1658
          %v1892 = vunpack.c.l.b16 %v1659
          %v1893 = vunpack.c.h.b16 %v1659
          %v1894 = vunpack.c.l.b16 %v1660
          %v1895 = vunpack.c.h.b16 %v1660
          %v1896 = vunpack.c.l.b16 %v1661
          %v1897 = vunpack.c.h.b16 %v1661
          %v1898 = vunpack.c.l.b16 %v1662
          %v1899 = vunpack.c.h.b16 %v1662
          %v1900 = vunpack.c.l.b16 %v1663
          %v1901 = vunpack.c.h.b16 %v1663
          %v1902 = vunpack.c.l.b16 %v1664
          %v1903 = vunpack.c.h.b16 %v1664
          %v1904 = vunpack.c.l.b16 %v1665
          %v1905 = vunpack.c.h.b16 %v1665
          %v1906 = vunpack.c.l.b16 %v1666
          %v1907 = vunpack.c.h.b16 %v1666
          %v1908 = vunpack.c.l.b16 %v1667
          %v1909 = vunpack.c.h.b16 %v1667
          %v1910 = vunpack.c.l.b16 %v1668
          %v1911 = vunpack.c.h.b16 %v1668
          %v1912 = vunpack.c.l.b16 %v1669
          %v1913 = vunpack.c.h.b16 %v1669
          %v1914 = vunpack.c.l.b16 %v1670
          %v1915 = vunpack.c.h.b16 %v1670
          %v1916 = vunpack.c.l.b16 %v1671
          %v1917 = vunpack.c.h.b16 %v1671
          %v1918 = vunpack.c.l.b16 %v1672
          %v1919 = vunpack.c.h.b16 %v1672
          %v1920 = vunpack.c.l.b16 %v1673
          %v1921 = vunpack.c.h.b16 %v1673
          %v1922 = vunpack.c.l.b16 %v1674
          %v1923 = vunpack.c.h.b16 %v1674
          %v1924 = vunpack.c.l.b16 %v1675
          %v1925 = vunpack.c.h.b16 %v1675
          %v1926 = vunpack.c.l.b16 %v1676
          %v1927 = vunpack.c.h.b16 %v1676
          %v1928 = vunpack.c.l.b16 %v1677
          %v1929 = vunpack.c.h.b16 %v1677
          %v1930 = vunpack.c.l.b16 %v1678
          %v1931 = vunpack.c.h.b16 %v1678
          %v1932 = vunpack.c.l.b16 %v1679
          %v1933 = vunpack.c.h.b16 %v1679
          %v1934 = vunpack.c.l.b16 %v1680
          %v1935 = vunpack.c.h.b16 %v1680
          %v1936 = vunpack.c.l.b16 %v1681
          %v1937 = vunpack.c.h.b16 %v1681
          %v1938 = vpack.c.b16 %v1814, %v1810
          %v1939 = vpack.c.b16 %v1815, %v1811
          %v1940 = vpack.c.b16 %v1816, %v1812
          %v1941 = vpack.c.b16 %v1817, %v1813
          %v1942 = vpack.c.b16 %v1822, %v1818
          %v1943 = vpack.c.b16 %v1823, %v1819
          %v1944 = vpack.c.b16 %v1824, %v1820
          %v1945 = vpack.c.b16 %v1825, %v1821
          %v1946 = vpack.c.b16 %v1830, %v1826
          %v1947 = vpack.c.b16 %v1831, %v1827
          %v1948 = vpack.c.b16 %v1832, %v1828
          %v1949 = vpack.c.b16 %v1833, %v1829
          %v1950 = vpack.c.b16 %v1838, %v1834
          %v1951 = vpack.c.b16 %v1839, %v1835
          %v1952 = vpack.c.b16 %v1840, %v1836
          %v1953 = vpack.c.b16 %v1841, %v1837
          %v1954 = vpack.c.b16 %v1846, %v1842
          %v1955 = vpack.c.b16 %v1847, %v1843
          %v1956 = vpack.c.b16 %v1848, %v1844
          %v1957 = vpack.c.b16 %v1849, %v1845
          %v1958 = vpack.c.b16 %v1854, %v1850
          %v1959 = vpack.c.b16 %v1855, %v1851
          %v1960 = vpack.c.b16 %v1856, %v1852
          %v1961 = vpack.c.b16 %v1857, %v1853
          %v1962 = vpack.c.b16 %v1862, %v1858
          %v1963 = vpack.c.b16 %v1863, %v1859
          %v1964 = vpack.c.b16 %v1864, %v1860
          %v1965 = vpack.c.b16 %v1865, %v1861
          %v1966 = vpack.c.b16 %v1870, %v1866
          %v1967 = vpack.c.b16 %v1871, %v1867
          %v1968 = vpack.c.b16 %v1872, %v1868
          %v1969 = vpack.c.b16 %v1873, %v1869
          %v1970 = vpack.c.b16 %v1878, %v1874
          %v1971 = vpack.c.b16 %v1879, %v1875
          %v1972 = vpack.c.b16 %v1880, %v1876
          %v1973 = vpack.c.b16 %v1881, %v1877
          %v1974 = vpack.c.b16 %v1886, %v1882
          %v1975 = vpack.c.b16 %v1887, %v1883
          %v1976 = vpack.c.b16 %v1888, %v1884
          %v1977 = vpack.c.b16 %v1889, %v1885
          %v1978 = vpack.c.b16 %v1894, %v1890
          %v1979 = vpack.c.b16 %v1895, %v1891
          %v1980 = vpack.c.b16 %v1896, %v1892
          %v1981 = vpack.c.b16 %v1897, %v1893
          %v1982 = vpack.c.b16 %v1902, %v1898
          %v1983 = vpack.c.b16 %v1903, %v1899
          %v1984 = vpack.c.b16 %v1904, %v1900
          %v1985 = vpack.c.b16 %v1905, %v1901
          %v1986 = vpack.c.b16 %v1910, %v1906
          %v1987 = vpack.c.b16 %v1911, %v1907
          %v1988 = vpack.c.b16 %v1912, %v1908
          %v1989 = vpack.c.b16 %v1913, %v1909
          %v1990 = vpack.c.b16 %v1918, %v1914
          %v1991 = vpack.c.b16 %v1919, %v1915
          %v1992 = vpack.c.b16 %v1920, %v1916
          %v1993 = vpack.c.b16 %v1921, %v1917
          %v1994 = vpack.c.b16 %v1926, %v1922
          %v1995 = vpack.c.b16 %v1927, %v1923
          %v1996 = vpack.c.b16 %v1928, %v1924
          %v1997 = vpack.c.b16 %v1929, %v1925
          %v1998 = vpack.c.b16 %v1934, %v1930
          %v1999 = vpack.c.b16 %v1935, %v1931
          %v2000 = vpack.c.b16 %v1936, %v1932
          %v2001 = vpack.c.b16 %v1937, %v1933
          %v2130 = vunpack.c.l.b16 %v1682
          %v2131 = vunpack.c.l.b16 %v1683
          %v2132 = vunpack.c.l.b16 %v1684
          %v2133 = vunpack.c.l.b16 %v1685
          %v2134 = vunpack.c.l.b16 %v1686
          %v2135 = vunpack.c.l.b16 %v1687
          %v2136 = vunpack.c.l.b16 %v1688
          %v2137 = vunpack.c.l.b16 %v1689
          %v2138 = vunpack.c.l.b16 %v1690
          %v2139 = vunpack.c.l.b16 %v1691
          %v2140 = vunpack.c.l.b16 %v1692
          %v2141 = vunpack.c.l.b16 %v1693
          %v2142 = vunpack.c.l.b16 %v1694
          %v2143 = vunpack.c.l.b16 %v1695
          %v2144 = vunpack.c.l.b16 %v1696
          %v2145 = vunpack.c.l.b16 %v1697
          %v2146 = vunpack.c.l.b16 %v1698
          %v2147 = vunpack.c.l.b16 %v1699
          %v2148 = vunpack.c.l.b16 %v1700
          %v2149 = vunpack.c.l.b16 %v1701
          %v2150 = vunpack.c.l.b16 %v1702
          %v2151 = vunpack.c.l.b16 %v1703
          %v2152 = vunpack.c.l.b16 %v1704
          %v2153 = vunpack.c.l.b16 %v1705
          %v2154 = vunpack.c.l.b16 %v1706
          %v2155 = vunpack.c.l.b16 %v1707
          %v2156 = vunpack.c.l.b16 %v1708
          %v2157 = vunpack.c.l.b16 %v1709
          %v2158 = vunpack.c.l.b16 %v1710
          %v2159 = vunpack.c.l.b16 %v1711
          %v2160 = vunpack.c.l.b16 %v1712
          %v2161 = vunpack.c.l.b16 %v1713
          %v2162 = vunpack.c.l.b16 %v1714
          %v2163 = vunpack.c.l.b16 %v1715
          %v2164 = vunpack.c.l.b16 %v1716
          %v2165 = vunpack.c.l.b16 %v1717
          %v2166 = vunpack.c.l.b16 %v1718
          %v2167 = vunpack.c.l.b16 %v1719
          %v2168 = vunpack.c.l.b16 %v1720
          %v2169 = vunpack.c.l.b16 %v1721
          %v2170 = vunpack.c.l.b16 %v1722
          %v2171 = vunpack.c.l.b16 %v1723
          %v2172 = vunpack.c.l.b16 %v1724
          %v2173 = vunpack.c.l.b16 %v1725
          %v2174 = vunpack.c.l.b16 %v1726
          %v2175 = vunpack.c.l.b16 %v1727
          %v2176 = vunpack.c.l.b16 %v1728
          %v2177 = vunpack.c.l.b16 %v1729
          %v2178 = vunpack.c.l.b16 %v1730
          %v2179 = vunpack.c.l.b16 %v1731
          %v2180 = vunpack.c.l.b16 %v1732
          %v2181 = vunpack.c.l.b16 %v1733
          %v2182 = vunpack.c.l.b16 %v1734
          %v2183 = vunpack.c.l.b16 %v1735
          %v2184 = vunpack.c.l.b16 %v1736
          %v2185 = vunpack.c.l.b16 %v1737
          %v2186 = vunpack.c.l.b16 %v1738
          %v2187 = vunpack.c.l.b16 %v1739
          %v2188 = vunpack.c.l.b16 %v1740
          %v2189 = vunpack.c.l.b16 %v1741
          %v2190 = vunpack.c.l.b16 %v1742
          %v2191 = vunpack.c.l.b16 %v1743
          %v2192 = vunpack.c.l.b16 %v1744
          %v2193 = vunpack.c.l.b16 %v1745
          %v2194 = vpack.c.b16 %v2131, %v2130
          %v2195 = vpack.c.b16 %v2133, %v2132
          %v2196 = vpack.c.b16 %v2135, %v2134
          %v2197 = vpack.c.b16 %v2137, %v2136
          %v2198 = vpack.c.b16 %v2139, %v2138
          %v2199 = vpack.c.b16 %v2141, %v2140
          %v2200 = vpack.c.b16 %v2143, %v2142
          %v2201 = vpack.c.b16 %v2145, %v2144
          %v2202 = vpack.c.b16 %v2147, %v2146
          %v2203 = vpack.c.b16 %v2149, %v2148
          %v2204 = vpack.c.b16 %v2151, %v2150
          %v2205 = vpack.c.b16 %v2153, %v2152
          %v2206 = vpack.c.b16 %v2155, %v2154
          %v2207 = vpack.c.b16 %v2157, %v2156
          %v2208 = vpack.c.b16 %v2159, %v2158
          %v2209 = vpack.c.b16 %v2161, %v2160
          %v2210 = vpack.c.b16 %v2163, %v2162
          %v2211 = vpack.c.b16 %v2165, %v2164
          %v2212 = vpack.c.b16 %v2167, %v2166
          %v2213 = vpack.c.b16 %v2169, %v2168
          %v2214 = vpack.c.b16 %v2171, %v2170
          %v2215 = vpack.c.b16 %v2173, %v2172
          %v2216 = vpack.c.b16 %v2175, %v2174
          %v2217 = vpack.c.b16 %v2177, %v2176
          %v2218 = vpack.c.b16 %v2179, %v2178
          %v2219 = vpack.c.b16 %v2181, %v2180
          %v2220 = vpack.c.b16 %v2183, %v2182
          %v2221 = vpack.c.b16 %v2185, %v2184
          %v2222 = vpack.c.b16 %v2187, %v2186
          %v2223 = vpack.c.b16 %v2189, %v2188
          %v2224 = vpack.c.b16 %v2191, %v2190
          %v2225 = vpack.c.b16 %v2193, %v2192
          %2258 = vmatpush.bf16.msra.mxu0 %v2201
          %2259 = vmatpush.bf16.msra.mxu0 %v2200
          %2260 = vmatpush.bf16.msra.mxu0 %v2199
          %2261 = vmatpush.bf16.msra.mxu0 %v2198
          %2262 = vmatpush.bf16.msra.mxu0 %v2197
          %2263 = vmatpush.bf16.msra.mxu0 %v2196
          %2264 = vmatpush.bf16.msra.mxu0 %v2195
          %2265 = vmatpush.bf16.msra.mxu0 %v2194
          %2266 = vmatmul.bf16.gmra.mxu0 %v1938
          %v2267 = vpop.f32.mrf.mxu0
          %v2268 = vadd.f32 0.0, %v2267
          %v2269 = vpop.f32.mrf.mxu0
          %v2270 = vadd.f32 0.0, %v2269
          %2271 = vmatmul.bf16.gmra.mxu0 %v1942
          %v2272 = vpop.f32.mrf.mxu0
          %v2273 = vadd.f32 0.0, %v2272
          %v2274 = vpop.f32.mrf.mxu0
          %v2275 = vadd.f32 0.0, %v2274
          %2276 = vmatmul.bf16.gmra.mxu0 %v1946
          %v2277 = vpop.f32.mrf.mxu0
          %v2278 = vadd.f32 0.0, %v2277
          %v2279 = vpop.f32.mrf.mxu0
          %v2280 = vadd.f32 0.0, %v2279
          %2281 = vmatmul.bf16.gmra.mxu0 %v1950
          %v2282 = vpop.f32.mrf.mxu0
          %v2283 = vadd.f32 0.0, %v2282
          %v2284 = vpop.f32.mrf.mxu0
          %v2285 = vadd.f32 0.0, %v2284
          %2286 = vmatmul.bf16.gmra.mxu0 %v1954
          %v2287 = vpop.f32.mrf.mxu0
          %v2288 = vadd.f32 0.0, %v2287
          %v2289 = vpop.f32.mrf.mxu0
          %v2290 = vadd.f32 0.0, %v2289
          %2291 = vmatmul.bf16.gmra.mxu0 %v1958
          %v2292 = vpop.f32.mrf.mxu0
          %v2293 = vadd.f32 0.0, %v2292
          %v2294 = vpop.f32.mrf.mxu0
          %v2295 = vadd.f32 0.0, %v2294
          %2296 = vmatmul.bf16.gmra.mxu0 %v1962
          %v2297 = vpop.f32.mrf.mxu0
          %v2298 = vadd.f32 0.0, %v2297
          %v2299 = vpop.f32.mrf.mxu0
          %v2300 = vadd.f32 0.0, %v2299
          %2301 = vmatmul.bf16.gmra.mxu0 %v1966
          %v2302 = vpop.f32.mrf.mxu0
          %v2303 = vadd.f32 0.0, %v2302
          %v2304 = vpop.f32.mrf.mxu0
          %v2305 = vadd.f32 0.0, %v2304
          %2306 = vmatmul.bf16.gmra.mxu0 %v1970
          %v2307 = vpop.f32.mrf.mxu0
          %v2308 = vadd.f32 0.0, %v2307
          %v2309 = vpop.f32.mrf.mxu0
          %v2310 = vadd.f32 0.0, %v2309
          %2311 = vmatmul.bf16.gmra.mxu0 %v1974
          %v2312 = vpop.f32.mrf.mxu0
          %v2313 = vadd.f32 0.0, %v2312
          %v2314 = vpop.f32.mrf.mxu0
          %v2315 = vadd.f32 0.0, %v2314
          %2316 = vmatmul.bf16.gmra.mxu0 %v1978
          %v2317 = vpop.f32.mrf.mxu0
          %v2318 = vadd.f32 0.0, %v2317
          %v2319 = vpop.f32.mrf.mxu0
          %v2320 = vadd.f32 0.0, %v2319
          %2321 = vmatmul.bf16.gmra.mxu0 %v1982
          %v2322 = vpop.f32.mrf.mxu0
          %v2323 = vadd.f32 0.0, %v2322
          %v2324 = vpop.f32.mrf.mxu0
          %v2325 = vadd.f32 0.0, %v2324
          %2326 = vmatmul.bf16.gmra.mxu0 %v1986
          %v2327 = vpop.f32.mrf.mxu0
          %v2328 = vadd.f32 0.0, %v2327
          %v2329 = vpop.f32.mrf.mxu0
          %v2330 = vadd.f32 0.0, %v2329
          %2331 = vmatmul.bf16.gmra.mxu0 %v1990
          %v2332 = vpop.f32.mrf.mxu0
          %v2333 = vadd.f32 0.0, %v2332
          %v2334 = vpop.f32.mrf.mxu0
          %v2335 = vadd.f32 0.0, %v2334
          %2336 = vmatmul.bf16.gmra.mxu0 %v1994
          %v2337 = vpop.f32.mrf.mxu0
          %v2338 = vadd.f32 0.0, %v2337
          %v2339 = vpop.f32.mrf.mxu0
          %v2340 = vadd.f32 0.0, %v2339
          %2341 = vmatmul.bf16.gmra.mxu0 %v1998
          %v2342 = vpop.f32.mrf.mxu0
          %v2343 = vadd.f32 0.0, %v2342
          %v2344 = vpop.f32.mrf.mxu0
          %v2345 = vadd.f32 0.0, %v2344
          %2346 = vdwg.mxu0
          %2347 = vmatpush.bf16.msra.mxu0 %v2209
          %2348 = vmatpush.bf16.msra.mxu0 %v2208
          %2349 = vmatpush.bf16.msra.mxu0 %v2207
          %2350 = vmatpush.bf16.msra.mxu0 %v2206
          %2351 = vmatpush.bf16.msra.mxu0 %v2205
          %2352 = vmatpush.bf16.msra.mxu0 %v2204
          %2353 = vmatpush.bf16.msra.mxu0 %v2203
          %2354 = vmatpush.bf16.msra.mxu0 %v2202
          %2355 = vmatmul.bf16.gmra.mxu0 %v1939
          %v2356 = vpop.f32.mrf.mxu0
          %v2357 = vadd.f32 %v2268, %v2356
          %v2358 = vpop.f32.mrf.mxu0
          %v2359 = vadd.f32 %v2270, %v2358
          %2360 = vmatmul.bf16.gmra.mxu0 %v1943
          %v2361 = vpop.f32.mrf.mxu0
          %v2362 = vadd.f32 %v2273, %v2361
          %v2363 = vpop.f32.mrf.mxu0
          %v2364 = vadd.f32 %v2275, %v2363
          %2365 = vmatmul.bf16.gmra.mxu0 %v1947
          %v2366 = vpop.f32.mrf.mxu0
          %v2367 = vadd.f32 %v2278, %v2366
          %v2368 = vpop.f32.mrf.mxu0
          %v2369 = vadd.f32 %v2280, %v2368
          %2370 = vmatmul.bf16.gmra.mxu0 %v1951
          %v2371 = vpop.f32.mrf.mxu0
          %v2372 = vadd.f32 %v2283, %v2371
          %v2373 = vpop.f32.mrf.mxu0
          %v2374 = vadd.f32 %v2285, %v2373
          %2375 = vmatmul.bf16.gmra.mxu0 %v1955
          %v2376 = vpop.f32.mrf.mxu0
          %v2377 = vadd.f32 %v2288, %v2376
          %v2378 = vpop.f32.mrf.mxu0
          %v2379 = vadd.f32 %v2290, %v2378
          %2380 = vmatmul.bf16.gmra.mxu0 %v1959
          %v2381 = vpop.f32.mrf.mxu0
          %v2382 = vadd.f32 %v2293, %v2381
          %v2383 = vpop.f32.mrf.mxu0
          %v2384 = vadd.f32 %v2295, %v2383
          %2385 = vmatmul.bf16.gmra.mxu0 %v1963
          %v2386 = vpop.f32.mrf.mxu0
          %v2387 = vadd.f32 %v2298, %v2386
          %v2388 = vpop.f32.mrf.mxu0
          %v2389 = vadd.f32 %v2300, %v2388
          %2390 = vmatmul.bf16.gmra.mxu0 %v1967
          %v2391 = vpop.f32.mrf.mxu0
          %v2392 = vadd.f32 %v2303, %v2391
          %v2393 = vpop.f32.mrf.mxu0
          %v2394 = vadd.f32 %v2305, %v2393
          %2395 = vmatmul.bf16.gmra.mxu0 %v1971
          %v2396 = vpop.f32.mrf.mxu0
          %v2397 = vadd.f32 %v2308, %v2396
          %v2398 = vpop.f32.mrf.mxu0
          %v2399 = vadd.f32 %v2310, %v2398
          %2400 = vmatmul.bf16.gmra.mxu0 %v1975
          %v2401 = vpop.f32.mrf.mxu0
          %v2402 = vadd.f32 %v2313, %v2401
          %v2403 = vpop.f32.mrf.mxu0
          %v2404 = vadd.f32 %v2315, %v2403
          %2405 = vmatmul.bf16.gmra.mxu0 %v1979
          %v2406 = vpop.f32.mrf.mxu0
          %v2407 = vadd.f32 %v2318, %v2406
          %v2408 = vpop.f32.mrf.mxu0
          %v2409 = vadd.f32 %v2320, %v2408
          %2410 = vmatmul.bf16.gmra.mxu0 %v1983
          %v2411 = vpop.f32.mrf.mxu0
          %v2412 = vadd.f32 %v2323, %v2411
          %v2413 = vpop.f32.mrf.mxu0
          %v2414 = vadd.f32 %v2325, %v2413
          %2415 = vmatmul.bf16.gmra.mxu0 %v1987
          %v2416 = vpop.f32.mrf.mxu0
          %v2417 = vadd.f32 %v2328, %v2416
          %v2418 = vpop.f32.mrf.mxu0
          %v2419 = vadd.f32 %v2330, %v2418
          %2420 = vmatmul.bf16.gmra.mxu0 %v1991
          %v2421 = vpop.f32.mrf.mxu0
          %v2422 = vadd.f32 %v2333, %v2421
          %v2423 = vpop.f32.mrf.mxu0
          %v2424 = vadd.f32 %v2335, %v2423
          %2425 = vmatmul.bf16.gmra.mxu0 %v1995
          %v2426 = vpop.f32.mrf.mxu0
          %v2427 = vadd.f32 %v2338, %v2426
          %v2428 = vpop.f32.mrf.mxu0
          %v2429 = vadd.f32 %v2340, %v2428
          %2430 = vmatmul.bf16.gmra.mxu0 %v1999
          %v2431 = vpop.f32.mrf.mxu0
          %v2432 = vadd.f32 %v2343, %v2431
          %v2433 = vpop.f32.mrf.mxu0
          %v2434 = vadd.f32 %v2345, %v2433
          %2435 = vdwg.mxu0
          %2436 = vmatpush.bf16.msra.mxu0 %v2217
          %2437 = vmatpush.bf16.msra.mxu0 %v2216
          %2438 = vmatpush.bf16.msra.mxu0 %v2215
          %2439 = vmatpush.bf16.msra.mxu0 %v2214
          %2440 = vmatpush.bf16.msra.mxu0 %v2213
          %2441 = vmatpush.bf16.msra.mxu0 %v2212
          %2442 = vmatpush.bf16.msra.mxu0 %v2211
          %2443 = vmatpush.bf16.msra.mxu0 %v2210
          %2444 = vmatmul.bf16.gmra.mxu0 %v1940
          %v2445 = vpop.f32.mrf.mxu0
          %v2446 = vadd.f32 %v2357, %v2445
          %v2447 = vpop.f32.mrf.mxu0
          %v2448 = vadd.f32 %v2359, %v2447
          %2449 = vmatmul.bf16.gmra.mxu0 %v1944
          %v2450 = vpop.f32.mrf.mxu0
          %v2451 = vadd.f32 %v2362, %v2450
          %v2452 = vpop.f32.mrf.mxu0
          %v2453 = vadd.f32 %v2364, %v2452
          %2454 = vmatmul.bf16.gmra.mxu0 %v1948
          %v2455 = vpop.f32.mrf.mxu0
          %v2456 = vadd.f32 %v2367, %v2455
          %v2457 = vpop.f32.mrf.mxu0
          %v2458 = vadd.f32 %v2369, %v2457
          %2459 = vmatmul.bf16.gmra.mxu0 %v1952
          %v2460 = vpop.f32.mrf.mxu0
          %v2461 = vadd.f32 %v2372, %v2460
          %v2462 = vpop.f32.mrf.mxu0
          %v2463 = vadd.f32 %v2374, %v2462
          %2464 = vmatmul.bf16.gmra.mxu0 %v1956
          %v2465 = vpop.f32.mrf.mxu0
          %v2466 = vadd.f32 %v2377, %v2465
          %v2467 = vpop.f32.mrf.mxu0
          %v2468 = vadd.f32 %v2379, %v2467
          %2469 = vmatmul.bf16.gmra.mxu0 %v1960
          %v2470 = vpop.f32.mrf.mxu0
          %v2471 = vadd.f32 %v2382, %v2470
          %v2472 = vpop.f32.mrf.mxu0
          %v2473 = vadd.f32 %v2384, %v2472
          %2474 = vmatmul.bf16.gmra.mxu0 %v1964
          %v2475 = vpop.f32.mrf.mxu0
          %v2476 = vadd.f32 %v2387, %v2475
          %v2477 = vpop.f32.mrf.mxu0
          %v2478 = vadd.f32 %v2389, %v2477
          %2479 = vmatmul.bf16.gmra.mxu0 %v1968
          %v2480 = vpop.f32.mrf.mxu0
          %v2481 = vadd.f32 %v2392, %v2480
          %v2482 = vpop.f32.mrf.mxu0
          %v2483 = vadd.f32 %v2394, %v2482
          %2484 = vmatmul.bf16.gmra.mxu0 %v1972
          %v2485 = vpop.f32.mrf.mxu0
          %v2486 = vadd.f32 %v2397, %v2485
          %v2487 = vpop.f32.mrf.mxu0
          %v2488 = vadd.f32 %v2399, %v2487
          %2489 = vmatmul.bf16.gmra.mxu0 %v1976
          %v2490 = vpop.f32.mrf.mxu0
          %v2491 = vadd.f32 %v2402, %v2490
          %v2492 = vpop.f32.mrf.mxu0
          %v2493 = vadd.f32 %v2404, %v2492
          %2494 = vmatmul.bf16.gmra.mxu0 %v1980
          %v2495 = vpop.f32.mrf.mxu0
          %v2496 = vadd.f32 %v2407, %v2495
          %v2497 = vpop.f32.mrf.mxu0
          %v2498 = vadd.f32 %v2409, %v2497
          %2499 = vmatmul.bf16.gmra.mxu0 %v1984
          %v2500 = vpop.f32.mrf.mxu0
          %v2501 = vadd.f32 %v2412, %v2500
          %v2502 = vpop.f32.mrf.mxu0
          %v2503 = vadd.f32 %v2414, %v2502
          %2504 = vmatmul.bf16.gmra.mxu0 %v1988
          %v2505 = vpop.f32.mrf.mxu0
          %v2506 = vadd.f32 %v2417, %v2505
          %v2507 = vpop.f32.mrf.mxu0
          %v2508 = vadd.f32 %v2419, %v2507
          %2509 = vmatmul.bf16.gmra.mxu0 %v1992
          %v2510 = vpop.f32.mrf.mxu0
          %v2511 = vadd.f32 %v2422, %v2510
          %v2512 = vpop.f32.mrf.mxu0
          %v2513 = vadd.f32 %v2424, %v2512
          %2514 = vmatmul.bf16.gmra.mxu0 %v1996
          %v2515 = vpop.f32.mrf.mxu0
          %v2516 = vadd.f32 %v2427, %v2515
          %v2517 = vpop.f32.mrf.mxu0
          %v2518 = vadd.f32 %v2429, %v2517
          %2519 = vmatmul.bf16.gmra.mxu0 %v2000
          %v2520 = vpop.f32.mrf.mxu0
          %v2521 = vadd.f32 %v2432, %v2520
          %v2522 = vpop.f32.mrf.mxu0
          %v2523 = vadd.f32 %v2434, %v2522
          %2524 = vdwg.mxu0
          %2525 = vmatpush.bf16.msra.mxu0 %v2225
          %2526 = vmatpush.bf16.msra.mxu0 %v2224
          %2527 = vmatpush.bf16.msra.mxu0 %v2223
          %2528 = vmatpush.bf16.msra.mxu0 %v2222
          %2529 = vmatpush.bf16.msra.mxu0 %v2221
          %2530 = vmatpush.bf16.msra.mxu0 %v2220
          %2531 = vmatpush.bf16.msra.mxu0 %v2219
          %2532 = vmatpush.bf16.msra.mxu0 %v2218
          %2533 = vmatmul.bf16.gmra.mxu0 %v1941
          %v2534 = vpop.f32.mrf.mxu0
          %v2535 = vadd.f32 %v2446, %v2534
          %v2536 = vpop.f32.mrf.mxu0
          %v2537 = vadd.f32 %v2448, %v2536
          %2538 = vmatmul.bf16.gmra.mxu0 %v1945
          %v2539 = vpop.f32.mrf.mxu0
          %v2540 = vadd.f32 %v2451, %v2539
          %v2541 = vpop.f32.mrf.mxu0
          %v2542 = vadd.f32 %v2453, %v2541
          %2543 = vmatmul.bf16.gmra.mxu0 %v1949
          %v2544 = vpop.f32.mrf.mxu0
          %v2545 = vadd.f32 %v2456, %v2544
          %v2546 = vpop.f32.mrf.mxu0
          %v2547 = vadd.f32 %v2458, %v2546
          %2548 = vmatmul.bf16.gmra.mxu0 %v1953
          %v2549 = vpop.f32.mrf.mxu0
          %v2550 = vadd.f32 %v2461, %v2549
          %v2551 = vpop.f32.mrf.mxu0
          %v2552 = vadd.f32 %v2463, %v2551
          %2553 = vmatmul.bf16.gmra.mxu0 %v1957
          %v2554 = vpop.f32.mrf.mxu0
          %v2555 = vadd.f32 %v2466, %v2554
          %v2556 = vpop.f32.mrf.mxu0
          %v2557 = vadd.f32 %v2468, %v2556
          %2558 = vmatmul.bf16.gmra.mxu0 %v1961
          %v2559 = vpop.f32.mrf.mxu0
          %v2560 = vadd.f32 %v2471, %v2559
          %v2561 = vpop.f32.mrf.mxu0
          %v2562 = vadd.f32 %v2473, %v2561
          %2563 = vmatmul.bf16.gmra.mxu0 %v1965
          %v2564 = vpop.f32.mrf.mxu0
          %v2565 = vadd.f32 %v2476, %v2564
          %v2566 = vpop.f32.mrf.mxu0
          %v2567 = vadd.f32 %v2478, %v2566
          %2568 = vmatmul.bf16.gmra.mxu0 %v1969
          %v2569 = vpop.f32.mrf.mxu0
          %v2570 = vadd.f32 %v2481, %v2569
          %v2571 = vpop.f32.mrf.mxu0
          %v2572 = vadd.f32 %v2483, %v2571
          %2573 = vmatmul.bf16.gmra.mxu0 %v1973
          %v2574 = vpop.f32.mrf.mxu0
          %v2575 = vadd.f32 %v2486, %v2574
          %v2576 = vpop.f32.mrf.mxu0
          %v2577 = vadd.f32 %v2488, %v2576
          %2578 = vmatmul.bf16.gmra.mxu0 %v1977
          %v2579 = vpop.f32.mrf.mxu0
          %v2580 = vadd.f32 %v2491, %v2579
          %v2581 = vpop.f32.mrf.mxu0
          %v2582 = vadd.f32 %v2493, %v2581
          %2583 = vmatmul.bf16.gmra.mxu0 %v1981
          %v2584 = vpop.f32.mrf.mxu0
          %v2585 = vadd.f32 %v2496, %v2584
          %v2586 = vpop.f32.mrf.mxu0
          %v2587 = vadd.f32 %v2498, %v2586
          %2588 = vmatmul.bf16.gmra.mxu0 %v1985
          %v2589 = vpop.f32.mrf.mxu0
          %v2590 = vadd.f32 %v2501, %v2589
          %v2591 = vpop.f32.mrf.mxu0
          %v2592 = vadd.f32 %v2503, %v2591
          %2593 = vmatmul.bf16.gmra.mxu0 %v1989
          %v2594 = vpop.f32.mrf.mxu0
          %v2595 = vadd.f32 %v2506, %v2594
          %v2596 = vpop.f32.mrf.mxu0
          %v2597 = vadd.f32 %v2508, %v2596
          %2598 = vmatmul.bf16.gmra.mxu0 %v1993
          %v2599 = vpop.f32.mrf.mxu0
          %v2600 = vadd.f32 %v2511, %v2599
          %v2601 = vpop.f32.mrf.mxu0
          %v2602 = vadd.f32 %v2513, %v2601
          %2603 = vmatmul.bf16.gmra.mxu0 %v1997
          %v2604 = vpop.f32.mrf.mxu0
          %v2605 = vadd.f32 %v2516, %v2604
          %v2606 = vpop.f32.mrf.mxu0
          %v2607 = vadd.f32 %v2518, %v2606
          %2608 = vmatmul.bf16.gmra.mxu0 %v2001
          %v2609 = vpop.f32.mrf.mxu0
          %v2610 = vadd.f32 %v2521, %v2609
          %v2611 = vpop.f32.mrf.mxu0
          %v2612 = vadd.f32 %v2523, %v2611
          %2613 = vdwg.mxu0
          %v2614 = vld [vmem:[%s2] sm:$0xff]
          %v2615 = vld [vmem:[%s2 + $0x8] sm:$0xff]
          %v2616 = vld [vmem:[%s2 + $0x10] sm:$0xff]
          %v2617 = vld [vmem:[%s2 + $0x18] sm:$0xff]
          %v2618 = vld [vmem:[%s2 + $0x20] sm:$0xff]
          %v2619 = vld [vmem:[%s2 + $0x28] sm:$0xff]
          %v2620 = vld [vmem:[%s2 + $0x30] sm:$0xff]
          %v2621 = vld [vmem:[%s2 + $0x38] sm:$0xff]
          %v2622 = vld [vmem:[%s2 + $0x40] sm:$0xff]
          %v2623 = vld [vmem:[%s2 + $0x48] sm:$0xff]
          %v2624 = vld [vmem:[%s2 + $0x50] sm:$0xff]
          %v2625 = vld [vmem:[%s2 + $0x58] sm:$0xff]
          %v2626 = vld [vmem:[%s2 + $0x60] sm:$0xff]
          %v2627 = vld [vmem:[%s2 + $0x68] sm:$0xff]
          %v2628 = vld [vmem:[%s2 + $0x70] sm:$0xff]
          %v2629 = vld [vmem:[%s2 + $0x78] sm:$0xff]
          %v2630 = vld [vmem:[%s2 + $0x80] sm:$0xff]
          %v2631 = vld [vmem:[%s2 + $0x88] sm:$0xff]
          %v2632 = vld [vmem:[%s2 + $0x90] sm:$0xff]
          %v2633 = vld [vmem:[%s2 + $0x98] sm:$0xff]
          %v2634 = vld [vmem:[%s2 + $0xa0] sm:$0xff]
          %v2635 = vld [vmem:[%s2 + $0xa8] sm:$0xff]
          %v2636 = vld [vmem:[%s2 + $0xb0] sm:$0xff]
          %v2637 = vld [vmem:[%s2 + $0xb8] sm:$0xff]
          %v2638 = vld [vmem:[%s2 + $0xc0] sm:$0xff]
          %v2639 = vld [vmem:[%s2 + $0xc8] sm:$0xff]
          %v2640 = vld [vmem:[%s2 + $0xd0] sm:$0xff]
          %v2641 = vld [vmem:[%s2 + $0xd8] sm:$0xff]
          %v2642 = vld [vmem:[%s2 + $0xe0] sm:$0xff]
          %v2643 = vld [vmem:[%s2 + $0xe8] sm:$0xff]
          %v2644 = vld [vmem:[%s2 + $0xf0] sm:$0xff]
          %v2645 = vld [vmem:[%s2 + $0xf8] sm:$0x7f]
          %v2646 = vld [vmem:[#allocation2] sm:$0xff]
          %v2647 = vld [vmem:[#allocation2 + $0x8] sm:$0xff]
          %v2648 = vld [vmem:[#allocation2 + $0x10] sm:$0xff]
          %v2649 = vld [vmem:[#allocation2 + $0x18] sm:$0xff]
          %v2650 = vld [vmem:[#allocation2 + $0x20] sm:$0xff]
          %v2651 = vld [vmem:[#allocation2 + $0x28] sm:$0xff]
          %v2652 = vld [vmem:[#allocation2 + $0x30] sm:$0xff]
          %v2653 = vld [vmem:[#allocation2 + $0x38] sm:$0xff]
          %v2654 = vld [vmem:[#allocation2 + $0x40] sm:$0xff]
          %v2655 = vld [vmem:[#allocation2 + $0x48] sm:$0xff]
          %v2656 = vld [vmem:[#allocation2 + $0x50] sm:$0xff]
          %v2657 = vld [vmem:[#allocation2 + $0x58] sm:$0xff]
          %v2658 = vld [vmem:[#allocation2 + $0x60] sm:$0xff]
          %v2659 = vld [vmem:[#allocation2 + $0x68] sm:$0xff]
          %v2660 = vld [vmem:[#allocation2 + $0x70] sm:$0xff]
          %v2661 = vld [vmem:[#allocation2 + $0x78] sm:$0xff]
          %v2662 = vld [vmem:[#allocation2 + $0x80] sm:$0xff]
          %v2663 = vld [vmem:[#allocation2 + $0x88] sm:$0xff]
          %v2664 = vld [vmem:[#allocation2 + $0x90] sm:$0xff]
          %v2665 = vld [vmem:[#allocation2 + $0x98] sm:$0xff]
          %v2666 = vld [vmem:[#allocation2 + $0xa0] sm:$0xff]
          %v2667 = vld [vmem:[#allocation2 + $0xa8] sm:$0xff]
          %v2668 = vld [vmem:[#allocation2 + $0xb0] sm:$0xff]
          %v2669 = vld [vmem:[#allocation2 + $0xb8] sm:$0xff]
          %v2670 = vld [vmem:[#allocation2 + $0xc0] sm:$0xff]
          %v2671 = vld [vmem:[#allocation2 + $0xc8] sm:$0xff]
          %v2672 = vld [vmem:[#allocation2 + $0xd0] sm:$0xff]
          %v2673 = vld [vmem:[#allocation2 + $0xd8] sm:$0xff]
          %v2674 = vld [vmem:[#allocation2 + $0xe0] sm:$0xff]
          %v2675 = vld [vmem:[#allocation2 + $0xe8] sm:$0xff]
          %v2676 = vld [vmem:[#allocation2 + $0xf0] sm:$0xff]
          %v2677 = vld [vmem:[#allocation2 + $0xf8] sm:$0x7f]
          %v2678 = vadd.f32 %v2614, %v2646
          %v2679 = vadd.f32 %v2615, %v2647
          %v2680 = vadd.f32 %v2616, %v2648
          %v2681 = vadd.f32 %v2617, %v2649
          %v2682 = vadd.f32 %v2618, %v2650
          %v2683 = vadd.f32 %v2619, %v2651
          %v2684 = vadd.f32 %v2620, %v2652
          %v2685 = vadd.f32 %v2621, %v2653
          %v2686 = vadd.f32 %v2622, %v2654
          %v2687 = vadd.f32 %v2623, %v2655
          %v2688 = vadd.f32 %v2624, %v2656
          %v2689 = vadd.f32 %v2625, %v2657
          %v2690 = vadd.f32 %v2626, %v2658
          %v2691 = vadd.f32 %v2627, %v2659
          %v2692 = vadd.f32 %v2628, %v2660
          %v2693 = vadd.f32 %v2629, %v2661
          %v2694 = vadd.f32 %v2630, %v2662
          %v2695 = vadd.f32 %v2631, %v2663
          %v2696 = vadd.f32 %v2632, %v2664
          %v2697 = vadd.f32 %v2633, %v2665
          %v2698 = vadd.f32 %v2634, %v2666
          %v2699 = vadd.f32 %v2635, %v2667
          %v2700 = vadd.f32 %v2636, %v2668
          %v2701 = vadd.f32 %v2637, %v2669
          %v2702 = vadd.f32 %v2638, %v2670
          %v2703 = vadd.f32 %v2639, %v2671
          %v2704 = vadd.f32 %v2640, %v2672
          %v2705 = vadd.f32 %v2641, %v2673
          %v2706 = vadd.f32 %v2642, %v2674
          %v2707 = vadd.f32 %v2643, %v2675
          %v2708 = vadd.f32 %v2644, %v2676
          %v2709 = vadd.f32 %v2645, %v2677
          %v2710 = vld [vmem:[#allocation2 + $0x1] sm:$0xff]
          %v2711 = vld [vmem:[#allocation2 + $0x9] sm:$0xff]
          %v2712 = vld [vmem:[#allocation2 + $0x11] sm:$0xff]
          %v2713 = vld [vmem:[#allocation2 + $0x19] sm:$0xff]
          %v2714 = vld [vmem:[#allocation2 + $0x21] sm:$0xff]
          %v2715 = vld [vmem:[#allocation2 + $0x29] sm:$0xff]
          %v2716 = vld [vmem:[#allocation2 + $0x31] sm:$0xff]
          %v2717 = vld [vmem:[#allocation2 + $0x39] sm:$0xff]
          %v2718 = vld [vmem:[#allocation2 + $0x41] sm:$0xff]
          %v2719 = vld [vmem:[#allocation2 + $0x49] sm:$0xff]
          %v2720 = vld [vmem:[#allocation2 + $0x51] sm:$0xff]
          %v2721 = vld [vmem:[#allocation2 + $0x59] sm:$0xff]
          %v2722 = vld [vmem:[#allocation2 + $0x61] sm:$0xff]
          %v2723 = vld [vmem:[#allocation2 + $0x69] sm:$0xff]
          %v2724 = vld [vmem:[#allocation2 + $0x71] sm:$0xff]
          %v2725 = vld [vmem:[#allocation2 + $0x79] sm:$0xff]
          %v2726 = vld [vmem:[#allocation2 + $0x81] sm:$0xff]
          %v2727 = vld [vmem:[#allocation2 + $0x89] sm:$0xff]
          %v2728 = vld [vmem:[#allocation2 + $0x91] sm:$0xff]
          %v2729 = vld [vmem:[#allocation2 + $0x99] sm:$0xff]
          %v2730 = vld [vmem:[#allocation2 + $0xa1] sm:$0xff]
          %v2731 = vld [vmem:[#allocation2 + $0xa9] sm:$0xff]
          %v2732 = vld [vmem:[#allocation2 + $0xb1] sm:$0xff]
          %v2733 = vld [vmem:[#allocation2 + $0xb9] sm:$0xff]
          %v2734 = vld [vmem:[#allocation2 + $0xc1] sm:$0xff]
          %v2735 = vld [vmem:[#allocation2 + $0xc9] sm:$0xff]
          %v2736 = vld [vmem:[#allocation2 + $0xd1] sm:$0xff]
          %v2737 = vld [vmem:[#allocation2 + $0xd9] sm:$0xff]
          %v2738 = vld [vmem:[#allocation2 + $0xe1] sm:$0xff]
          %v2739 = vld [vmem:[#allocation2 + $0xe9] sm:$0xff]
          %v2740 = vld [vmem:[#allocation2 + $0xf1] sm:$0xff]
          %v2741 = vld [vmem:[#allocation2 + $0xf9] sm:$0x7f]
          %2774 = vrot.lane.b32.xlu0 %v2710, 112
          %v2775 = vpop.permute.xlu0 %2774
          %2776 = vrot.lane.b32.xlu0 %v2711, 112
          %v2777 = vpop.permute.xlu0 %2776
          %2778 = vrot.lane.b32.xlu0 %v2712, 112
          %v2779 = vpop.permute.xlu0 %2778
          %2780 = vrot.lane.b32.xlu0 %v2713, 112
          %v2781 = vpop.permute.xlu0 %2780
          %2782 = vrot.lane.b32.xlu0 %v2714, 112
          %v2783 = vpop.permute.xlu0 %2782
          %2784 = vrot.lane.b32.xlu0 %v2715, 112
          %v2785 = vpop.permute.xlu0 %2784
          %2786 = vrot.lane.b32.xlu0 %v2716, 112
          %v2787 = vpop.permute.xlu0 %2786
          %2788 = vrot.lane.b32.xlu0 %v2717, 112
          %v2789 = vpop.permute.xlu0 %2788
          %2790 = vrot.lane.b32.xlu0 %v2718, 112
          %v2791 = vpop.permute.xlu0 %2790
          %2792 = vrot.lane.b32.xlu0 %v2719, 112
          %v2793 = vpop.permute.xlu0 %2792
          %2794 = vrot.lane.b32.xlu0 %v2720, 112
          %v2795 = vpop.permute.xlu0 %2794
          %2796 = vrot.lane.b32.xlu0 %v2721, 112
          %v2797 = vpop.permute.xlu0 %2796
          %2798 = vrot.lane.b32.xlu0 %v2722, 112
          %v2799 = vpop.permute.xlu0 %2798
          %2800 = vrot.lane.b32.xlu0 %v2723, 112
          %v2801 = vpop.permute.xlu0 %2800
          %2802 = vrot.lane.b32.xlu0 %v2724, 112
          %v2803 = vpop.permute.xlu0 %2802
          %2804 = vrot.lane.b32.xlu0 %v2725, 112
          %v2805 = vpop.permute.xlu0 %2804
          %2806 = vrot.lane.b32.xlu0 %v2726, 112
          %v2807 = vpop.permute.xlu0 %2806
          %2808 = vrot.lane.b32.xlu0 %v2727, 112
          %v2809 = vpop.permute.xlu0 %2808
          %2810 = vrot.lane.b32.xlu0 %v2728, 112
          %v2811 = vpop.permute.xlu0 %2810
          %2812 = vrot.lane.b32.xlu0 %v2729, 112
          %v2813 = vpop.permute.xlu0 %2812
          %2814 = vrot.lane.b32.xlu0 %v2730, 112
          %v2815 = vpop.permute.xlu0 %2814
          %2816 = vrot.lane.b32.xlu0 %v2731, 112
          %v2817 = vpop.permute.xlu0 %2816
          %2818 = vrot.lane.b32.xlu0 %v2732, 112
          %v2819 = vpop.permute.xlu0 %2818
          %2820 = vrot.lane.b32.xlu0 %v2733, 112
          %v2821 = vpop.permute.xlu0 %2820
          %2822 = vrot.lane.b32.xlu0 %v2734, 112
          %v2823 = vpop.permute.xlu0 %2822
          %2824 = vrot.lane.b32.xlu0 %v2735, 112
          %v2825 = vpop.permute.xlu0 %2824
          %2826 = vrot.lane.b32.xlu0 %v2736, 112
          %v2827 = vpop.permute.xlu0 %2826
          %2828 = vrot.lane.b32.xlu0 %v2737, 112
          %v2829 = vpop.permute.xlu0 %2828
          %2830 = vrot.lane.b32.xlu0 %v2738, 112
          %v2831 = vpop.permute.xlu0 %2830
          %2832 = vrot.lane.b32.xlu0 %v2739, 112
          %v2833 = vpop.permute.xlu0 %2832
          %2834 = vrot.lane.b32.xlu0 %v2740, 112
          %v2835 = vpop.permute.xlu0 %2834
          %2836 = vrot.lane.b32.xlu0 %v2741, 112
          %v2837 = vpop.permute.xlu0 %2836
          %v2870 = vadd.f32 %v2678, %v2775
          %v2871 = vadd.f32 %v2679, %v2777
          %v2872 = vadd.f32 %v2680, %v2779
          %v2873 = vadd.f32 %v2681, %v2781
          %v2874 = vadd.f32 %v2682, %v2783
          %v2875 = vadd.f32 %v2683, %v2785
          %v2876 = vadd.f32 %v2684, %v2787
          %v2877 = vadd.f32 %v2685, %v2789
          %v2878 = vadd.f32 %v2686, %v2791
          %v2879 = vadd.f32 %v2687, %v2793
          %v2880 = vadd.f32 %v2688, %v2795
          %v2881 = vadd.f32 %v2689, %v2797
          %v2882 = vadd.f32 %v2690, %v2799
          %v2883 = vadd.f32 %v2691, %v2801
          %v2884 = vadd.f32 %v2692, %v2803
          %v2885 = vadd.f32 %v2693, %v2805
          %v2886 = vadd.f32 %v2694, %v2807
          %v2887 = vadd.f32 %v2695, %v2809
          %v2888 = vadd.f32 %v2696, %v2811
          %v2889 = vadd.f32 %v2697, %v2813
          %v2890 = vadd.f32 %v2698, %v2815
          %v2891 = vadd.f32 %v2699, %v2817
          %v2892 = vadd.f32 %v2700, %v2819
          %v2893 = vadd.f32 %v2701, %v2821
          %v2894 = vadd.f32 %v2702, %v2823
          %v2895 = vadd.f32 %v2703, %v2825
          %v2896 = vadd.f32 %v2704, %v2827
          %v2897 = vadd.f32 %v2705, %v2829
          %v2898 = vadd.f32 %v2706, %v2831
          %v2899 = vadd.f32 %v2707, %v2833
          %v2900 = vadd.f32 %v2708, %v2835
          %v2901 = vadd.f32 %v2709, %v2837
          %v2902 = vadd.f32 %v2870, %v2535
          %v2903 = vadd.f32 %v2871, %v2537
          %v2904 = vadd.f32 %v2872, %v2540
          %v2905 = vadd.f32 %v2873, %v2542
          %v2906 = vadd.f32 %v2874, %v2545
          %v2907 = vadd.f32 %v2875, %v2547
          %v2908 = vadd.f32 %v2876, %v2550
          %v2909 = vadd.f32 %v2877, %v2552
          %v2910 = vadd.f32 %v2878, %v2555
          %v2911 = vadd.f32 %v2879, %v2557
          %v2912 = vadd.f32 %v2880, %v2560
          %v2913 = vadd.f32 %v2881, %v2562
          %v2914 = vadd.f32 %v2882, %v2565
          %v2915 = vadd.f32 %v2883, %v2567
          %v2916 = vadd.f32 %v2884, %v2570
          %v2917 = vadd.f32 %v2885, %v2572
          %v2918 = vadd.f32 %v2886, %v2575
          %v2919 = vadd.f32 %v2887, %v2577
          %v2920 = vadd.f32 %v2888, %v2580
          %v2921 = vadd.f32 %v2889, %v2582
          %v2922 = vadd.f32 %v2890, %v2585
          %v2923 = vadd.f32 %v2891, %v2587
          %v2924 = vadd.f32 %v2892, %v2590
          %v2925 = vadd.f32 %v2893, %v2592
          %v2926 = vadd.f32 %v2894, %v2595
          %v2927 = vadd.f32 %v2895, %v2597
          %v2928 = vadd.f32 %v2896, %v2600
          %v2929 = vadd.f32 %v2897, %v2602
          %v2930 = vadd.f32 %v2898, %v2605
          %v2931 = vadd.f32 %v2899, %v2607
          %v2932 = vadd.f32 %v2900, %v2610
          %v2933 = vadd.f32 %v2901, %v2612
          %v2934 = vmax.f32 %v2902, 0.0
          %v2935 = vmax.f32 %v2903, 0.0
          %v2936 = vmax.f32 %v2904, 0.0
          %v2937 = vmax.f32 %v2905, 0.0
          %v2938 = vmax.f32 %v2906, 0.0
          %v2939 = vmax.f32 %v2907, 0.0
          %v2940 = vmax.f32 %v2908, 0.0
          %v2941 = vmax.f32 %v2909, 0.0
          %v2942 = vmax.f32 %v2910, 0.0
          %v2943 = vmax.f32 %v2911, 0.0
          %v2944 = vmax.f32 %v2912, 0.0
          %v2945 = vmax.f32 %v2913, 0.0
          %v2946 = vmax.f32 %v2914, 0.0
          %v2947 = vmax.f32 %v2915, 0.0
          %v2948 = vmax.f32 %v2916, 0.0
          %v2949 = vmax.f32 %v2917, 0.0
          %v2950 = vmax.f32 %v2918, 0.0
          %v2951 = vmax.f32 %v2919, 0.0
          %v2952 = vmax.f32 %v2920, 0.0
          %v2953 = vmax.f32 %v2921, 0.0
          %v2954 = vmax.f32 %v2922, 0.0
          %v2955 = vmax.f32 %v2923, 0.0
          %v2956 = vmax.f32 %v2924, 0.0
          %v2957 = vmax.f32 %v2925, 0.0
          %v2958 = vmax.f32 %v2926, 0.0
          %v2959 = vmax.f32 %v2927, 0.0
          %v2960 = vmax.f32 %v2928, 0.0
          %v2961 = vmax.f32 %v2929, 0.0
          %v2962 = vmax.f32 %v2930, 0.0
          %v2963 = vmax.f32 %v2931, 0.0
          %v2964 = vmax.f32 %v2932, 0.0
          %v2965 = vmax.f32 %v2933, 0.0
          %vm2966 = vcmask 130048
          %2967 = vst.msk [vmem:[#allocation3] sm:$0xff] %vm2966, %v2934
          %2968 = vst.msk [vmem:[#allocation3 + $0x8] sm:$0xff] %vm2966, %v2935
          %2969 = vst.msk [vmem:[#allocation3 + $0x10] sm:$0xff] %vm2966, %v2936
          %2970 = vst.msk [vmem:[#allocation3 + $0x18] sm:$0xff] %vm2966, %v2937
          %2971 = vst.msk [vmem:[#allocation3 + $0x20] sm:$0xff] %vm2966, %v2938
          %2972 = vst.msk [vmem:[#allocation3 + $0x28] sm:$0xff] %vm2966, %v2939
          %2973 = vst.msk [vmem:[#allocation3 + $0x30] sm:$0xff] %vm2966, %v2940
          %2974 = vst.msk [vmem:[#allocation3 + $0x38] sm:$0xff] %vm2966, %v2941
          %2975 = vst.msk [vmem:[#allocation3 + $0x40] sm:$0xff] %vm2966, %v2942
          %2976 = vst.msk [vmem:[#allocation3 + $0x48] sm:$0xff] %vm2966, %v2943
          %2977 = vst.msk [vmem:[#allocation3 + $0x50] sm:$0xff] %vm2966, %v2944
          %2978 = vst.msk [vmem:[#allocation3 + $0x58] sm:$0xff] %vm2966, %v2945
          %2979 = vst.msk [vmem:[#allocation3 + $0x60] sm:$0xff] %vm2966, %v2946
          %2980 = vst.msk [vmem:[#allocation3 + $0x68] sm:$0xff] %vm2966, %v2947
          %2981 = vst.msk [vmem:[#allocation3 + $0x70] sm:$0xff] %vm2966, %v2948
          %2982 = vst.msk [vmem:[#allocation3 + $0x78] sm:$0xff] %vm2966, %v2949
          %2983 = vst.msk [vmem:[#allocation3 + $0x80] sm:$0xff] %vm2966, %v2950
          %2984 = vst.msk [vmem:[#allocation3 + $0x88] sm:$0xff] %vm2966, %v2951
          %2985 = vst.msk [vmem:[#allocation3 + $0x90] sm:$0xff] %vm2966, %v2952
          %2986 = vst.msk [vmem:[#allocation3 + $0x98] sm:$0xff] %vm2966, %v2953
          %2987 = vst.msk [vmem:[#allocation3 + $0xa0] sm:$0xff] %vm2966, %v2954
          %2988 = vst.msk [vmem:[#allocation3 + $0xa8] sm:$0xff] %vm2966, %v2955
          %2989 = vst.msk [vmem:[#allocation3 + $0xb0] sm:$0xff] %vm2966, %v2956
          %2990 = vst.msk [vmem:[#allocation3 + $0xb8] sm:$0xff] %vm2966, %v2957
          %2991 = vst.msk [vmem:[#allocation3 + $0xc0] sm:$0xff] %vm2966, %v2958
          %2992 = vst.msk [vmem:[#allocation3 + $0xc8] sm:$0xff] %vm2966, %v2959
          %2993 = vst.msk [vmem:[#allocation3 + $0xd0] sm:$0xff] %vm2966, %v2960
          %2994 = vst.msk [vmem:[#allocation3 + $0xd8] sm:$0xff] %vm2966, %v2961
          %2995 = vst.msk [vmem:[#allocation3 + $0xe0] sm:$0xff] %vm2966, %v2962
          %2996 = vst.msk [vmem:[#allocation3 + $0xe8] sm:$0xff] %vm2966, %v2963
          %2997 = vst.msk [vmem:[#allocation3 + $0xf0] sm:$0xff] %vm2966, %v2964
          %vm2998 = vcmask 129024
          %2999 = vst.msk [vmem:[#allocation3 + $0xf8] sm:$0x7f] %vm2998, %v2965
          %v3000 = vld [vmem:[#allocation3] sm:$0xff]
          %v3001 = vld [vmem:[#allocation3 + $0x8] sm:$0xff]
          %v3002 = vld [vmem:[#allocation3 + $0x10] sm:$0xff]
          %v3003 = vld [vmem:[#allocation3 + $0x18] sm:$0xff]
          %v3004 = vld [vmem:[#allocation3 + $0x20] sm:$0xff]
          %v3005 = vld [vmem:[#allocation3 + $0x28] sm:$0xff]
          %v3006 = vld [vmem:[#allocation3 + $0x30] sm:$0xff]
          %v3007 = vld [vmem:[#allocation3 + $0x38] sm:$0xff]
          %v3008 = vld [vmem:[#allocation3 + $0x40] sm:$0xff]
          %v3009 = vld [vmem:[#allocation3 + $0x48] sm:$0xff]
          %v3010 = vld [vmem:[#allocation3 + $0x50] sm:$0xff]
          %v3011 = vld [vmem:[#allocation3 + $0x58] sm:$0xff]
          %v3012 = vld [vmem:[#allocation3 + $0x60] sm:$0xff]
          %v3013 = vld [vmem:[#allocation3 + $0x68] sm:$0xff]
          %v3014 = vld [vmem:[#allocation3 + $0x70] sm:$0xff]
          %v3015 = vld [vmem:[#allocation3 + $0x78] sm:$0xff]
          %v3016 = vld [vmem:[#allocation3 + $0x80] sm:$0xff]
          %v3017 = vld [vmem:[#allocation3 + $0x88] sm:$0xff]
          %v3018 = vld [vmem:[#allocation3 + $0x90] sm:$0xff]
          %v3019 = vld [vmem:[#allocation3 + $0x98] sm:$0xff]
          %v3020 = vld [vmem:[#allocation3 + $0xa0] sm:$0xff]
          %v3021 = vld [vmem:[#allocation3 + $0xa8] sm:$0xff]
          %v3022 = vld [vmem:[#allocation3 + $0xb0] sm:$0xff]
          %v3023 = vld [vmem:[#allocation3 + $0xb8] sm:$0xff]
          %v3024 = vld [vmem:[#allocation3 + $0xc0] sm:$0xff]
          %v3025 = vld [vmem:[#allocation3 + $0xc8] sm:$0xff]
          %v3026 = vld [vmem:[#allocation3 + $0xd0] sm:$0xff]
          %v3027 = vld [vmem:[#allocation3 + $0xd8] sm:$0xff]
          %v3028 = vld [vmem:[#allocation3 + $0xe0] sm:$0xff]
          %v3029 = vld [vmem:[#allocation3 + $0xe8] sm:$0xff]
          %v3030 = vld [vmem:[#allocation3 + $0xf0] sm:$0xff]
          %v3031 = vld [vmem:[#allocation3 + $0xf8] sm:$0x7f]
          %v3032 = vld [vmem:[#allocation11] sm:$0xff]
          %v3033 = vld [vmem:[#allocation11 + $0x8] sm:$0xff]
          %v3035 = vsel %vm2966, %v3000, 0
          %v3038 = vsel %vm2966, %v3001, 0
          %v3041 = vsel %vm2966, %v3002, 0
          %v3044 = vsel %vm2966, %v3003, 0
          %v3047 = vsel %vm2966, %v3004, 0
          %v3050 = vsel %vm2966, %v3005, 0
          %v3053 = vsel %vm2966, %v3006, 0
          %v3056 = vsel %vm2966, %v3007, 0
          %v3059 = vsel %vm2966, %v3008, 0
          %v3062 = vsel %vm2966, %v3009, 0
          %v3065 = vsel %vm2966, %v3010, 0
          %v3068 = vsel %vm2966, %v3011, 0
          %v3071 = vsel %vm2966, %v3012, 0
          %v3074 = vsel %vm2966, %v3013, 0
          %v3077 = vsel %vm2966, %v3014, 0
          %v3080 = vsel %vm2966, %v3015, 0
          %v3083 = vsel %vm2966, %v3016, 0
          %v3086 = vsel %vm2966, %v3017, 0
          %v3089 = vsel %vm2966, %v3018, 0
          %v3092 = vsel %vm2966, %v3019, 0
          %v3095 = vsel %vm2966, %v3020, 0
          %v3098 = vsel %vm2966, %v3021, 0
          %v3101 = vsel %vm2966, %v3022, 0
          %v3104 = vsel %vm2966, %v3023, 0
          %v3107 = vsel %vm2966, %v3024, 0
          %v3110 = vsel %vm2966, %v3025, 0
          %v3113 = vsel %vm2966, %v3026, 0
          %v3116 = vsel %vm2966, %v3027, 0
          %v3119 = vsel %vm2966, %v3028, 0
          %v3122 = vsel %vm2966, %v3029, 0
          %v3125 = vsel %vm2966, %v3030, 0
          %v3128 = vsel %vm2966, %v3031, 0
          %3130 = vmatpush.msra.mxu0 0.0
          %3131 = vmatpush.msra.mxu0 0.0
          %3132 = vmatpush.msra.mxu0 0.0
          %3133 = vmatpush.msra.mxu0 0.0
          %3134 = vmatpush.msra.mxu0 0.0
          %3135 = vmatpush.msra.mxu0 0.0
          %3136 = vmatpush.msra.mxu0 0.0
          %3137 = vmatpush.msra.mxu0 0.0
          %3138 = vmatpush.msra.mxu0 0.0
          %3139 = vmatpush.msra.mxu0 0.0
          %3140 = vmatpush.msra.mxu0 0.0
          %3141 = vmatpush.msra.mxu0 0.0
          %3142 = vmatpush.msra.mxu0 0.0
          %3143 = vmatpush.msra.mxu0 0.0
          %3144 = vmatpush.msra.mxu0 %v3033
          %3145 = vmatpush.msra.mxu0 %v3032
          %3146 = vmatmul.f32.gmra.mxu0 %v3035
          %v3147 = vpop.f32.mrf.mxu0
          %v3148 = vadd.f32 0.0, %v3147
          %3149 = vmatmul.f32.gmra.mxu0 %v3038
          %v3150 = vpop.f32.mrf.mxu0
          %v3151 = vadd.f32 0.0, %v3150
          %3152 = vmatmul.f32.gmra.mxu0 %v3041
          %v3153 = vpop.f32.mrf.mxu0
          %v3154 = vadd.f32 0.0, %v3153
          %3155 = vmatmul.f32.gmra.mxu0 %v3044
          %v3156 = vpop.f32.mrf.mxu0
          %v3157 = vadd.f32 0.0, %v3156
          %3158 = vmatmul.f32.gmra.mxu0 %v3047
          %v3159 = vpop.f32.mrf.mxu0
          %v3160 = vadd.f32 0.0, %v3159
          %3161 = vmatmul.f32.gmra.mxu0 %v3050
          %v3162 = vpop.f32.mrf.mxu0
          %v3163 = vadd.f32 0.0, %v3162
          %3164 = vmatmul.f32.gmra.mxu0 %v3053
          %v3165 = vpop.f32.mrf.mxu0
          %v3166 = vadd.f32 0.0, %v3165
          %3167 = vmatmul.f32.gmra.mxu0 %v3056
          %v3168 = vpop.f32.mrf.mxu0
          %v3169 = vadd.f32 0.0, %v3168
          %3170 = vmatmul.f32.gmra.mxu0 %v3059
          %v3171 = vpop.f32.mrf.mxu0
          %v3172 = vadd.f32 0.0, %v3171
          %3173 = vmatmul.f32.gmra.mxu0 %v3062
          %v3174 = vpop.f32.mrf.mxu0
          %v3175 = vadd.f32 0.0, %v3174
          %3176 = vmatmul.f32.gmra.mxu0 %v3065
          %v3177 = vpop.f32.mrf.mxu0
          %v3178 = vadd.f32 0.0, %v3177
          %3179 = vmatmul.f32.gmra.mxu0 %v3068
          %v3180 = vpop.f32.mrf.mxu0
          %v3181 = vadd.f32 0.0, %v3180
          %3182 = vmatmul.f32.gmra.mxu0 %v3071
          %v3183 = vpop.f32.mrf.mxu0
          %v3184 = vadd.f32 0.0, %v3183
          %3185 = vmatmul.f32.gmra.mxu0 %v3074
          %v3186 = vpop.f32.mrf.mxu0
          %v3187 = vadd.f32 0.0, %v3186
          %3188 = vmatmul.f32.gmra.mxu0 %v3077
          %v3189 = vpop.f32.mrf.mxu0
          %v3190 = vadd.f32 0.0, %v3189
          %3191 = vmatmul.f32.gmra.mxu0 %v3080
          %v3192 = vpop.f32.mrf.mxu0
          %v3193 = vadd.f32 0.0, %v3192
          %3194 = vmatmul.f32.gmra.mxu0 %v3083
          %v3195 = vpop.f32.mrf.mxu0
          %v3196 = vadd.f32 0.0, %v3195
          %3197 = vmatmul.f32.gmra.mxu0 %v3086
          %v3198 = vpop.f32.mrf.mxu0
          %v3199 = vadd.f32 0.0, %v3198
          %3200 = vmatmul.f32.gmra.mxu0 %v3089
          %v3201 = vpop.f32.mrf.mxu0
          %v3202 = vadd.f32 0.0, %v3201
          %3203 = vmatmul.f32.gmra.mxu0 %v3092
          %v3204 = vpop.f32.mrf.mxu0
          %v3205 = vadd.f32 0.0, %v3204
          %3206 = vmatmul.f32.gmra.mxu0 %v3095
          %v3207 = vpop.f32.mrf.mxu0
          %v3208 = vadd.f32 0.0, %v3207
          %3209 = vmatmul.f32.gmra.mxu0 %v3098
          %v3210 = vpop.f32.mrf.mxu0
          %v3211 = vadd.f32 0.0, %v3210
          %3212 = vmatmul.f32.gmra.mxu0 %v3101
          %v3213 = vpop.f32.mrf.mxu0
          %v3214 = vadd.f32 0.0, %v3213
          %3215 = vmatmul.f32.gmra.mxu0 %v3104
          %v3216 = vpop.f32.mrf.mxu0
          %v3217 = vadd.f32 0.0, %v3216
          %3218 = vmatmul.f32.gmra.mxu0 %v3107
          %v3219 = vpop.f32.mrf.mxu0
          %v3220 = vadd.f32 0.0, %v3219
          %3221 = vmatmul.f32.gmra.mxu0 %v3110
          %v3222 = vpop.f32.mrf.mxu0
          %v3223 = vadd.f32 0.0, %v3222
          %3224 = vmatmul.f32.gmra.mxu0 %v3113
          %v3225 = vpop.f32.mrf.mxu0
          %v3226 = vadd.f32 0.0, %v3225
          %3227 = vmatmul.f32.gmra.mxu0 %v3116
          %v3228 = vpop.f32.mrf.mxu0
          %v3229 = vadd.f32 0.0, %v3228
          %3230 = vmatmul.f32.gmra.mxu0 %v3119
          %v3231 = vpop.f32.mrf.mxu0
          %v3232 = vadd.f32 0.0, %v3231
          %3233 = vmatmul.f32.gmra.mxu0 %v3122
          %v3234 = vpop.f32.mrf.mxu0
          %v3235 = vadd.f32 0.0, %v3234
          %3236 = vmatmul.f32.gmra.mxu0 %v3125
          %v3237 = vpop.f32.mrf.mxu0
          %v3238 = vadd.f32 0.0, %v3237
          %3239 = vmatmul.f32.gmra.mxu0 %v3128
          %v3240 = vpop.f32.mrf.mxu0
          %v3241 = vadd.f32 0.0, %v3240
          %3242 = vdwg.mxu0
          %vm3243 = vcmask 326656
          %3244 = vst.msk [vmem:[#allocation4] sm:$0xff] %vm3243, %v3148
          %3245 = vst.msk [vmem:[#allocation4 + $0x8] sm:$0xff] %vm3243, %v3151
          %3246 = vst.msk [vmem:[#allocation4 + $0x10] sm:$0xff] %vm3243, %v3154
          %3247 = vst.msk [vmem:[#allocation4 + $0x18] sm:$0xff] %vm3243, %v3157
          %3248 = vst.msk [vmem:[#allocation4 + $0x20] sm:$0xff] %vm3243, %v3160
          %3249 = vst.msk [vmem:[#allocation4 + $0x28] sm:$0xff] %vm3243, %v3163
          %3250 = vst.msk [vmem:[#allocation4 + $0x30] sm:$0xff] %vm3243, %v3166
          %3251 = vst.msk [vmem:[#allocation4 + $0x38] sm:$0xff] %vm3243, %v3169
          %3252 = vst.msk [vmem:[#allocation4 + $0x40] sm:$0xff] %vm3243, %v3172
          %3253 = vst.msk [vmem:[#allocation4 + $0x48] sm:$0xff] %vm3243, %v3175
          %3254 = vst.msk [vmem:[#allocation4 + $0x50] sm:$0xff] %vm3243, %v3178
          %3255 = vst.msk [vmem:[#allocation4 + $0x58] sm:$0xff] %vm3243, %v3181
          %3256 = vst.msk [vmem:[#allocation4 + $0x60] sm:$0xff] %vm3243, %v3184
          %3257 = vst.msk [vmem:[#allocation4 + $0x68] sm:$0xff] %vm3243, %v3187
          %3258 = vst.msk [vmem:[#allocation4 + $0x70] sm:$0xff] %vm3243, %v3190
          %3259 = vst.msk [vmem:[#allocation4 + $0x78] sm:$0xff] %vm3243, %v3193
          %3260 = vst.msk [vmem:[#allocation4 + $0x80] sm:$0xff] %vm3243, %v3196
          %3261 = vst.msk [vmem:[#allocation4 + $0x88] sm:$0xff] %vm3243, %v3199
          %3262 = vst.msk [vmem:[#allocation4 + $0x90] sm:$0xff] %vm3243, %v3202
          %3263 = vst.msk [vmem:[#allocation4 + $0x98] sm:$0xff] %vm3243, %v3205
          %3264 = vst.msk [vmem:[#allocation4 + $0xa0] sm:$0xff] %vm3243, %v3208
          %3265 = vst.msk [vmem:[#allocation4 + $0xa8] sm:$0xff] %vm3243, %v3211
          %3266 = vst.msk [vmem:[#allocation4 + $0xb0] sm:$0xff] %vm3243, %v3214
          %3267 = vst.msk [vmem:[#allocation4 + $0xb8] sm:$0xff] %vm3243, %v3217
          %3268 = vst.msk [vmem:[#allocation4 + $0xc0] sm:$0xff] %vm3243, %v3220
          %3269 = vst.msk [vmem:[#allocation4 + $0xc8] sm:$0xff] %vm3243, %v3223
          %3270 = vst.msk [vmem:[#allocation4 + $0xd0] sm:$0xff] %vm3243, %v3226
          %3271 = vst.msk [vmem:[#allocation4 + $0xd8] sm:$0xff] %vm3243, %v3229
          %3272 = vst.msk [vmem:[#allocation4 + $0xe0] sm:$0xff] %vm3243, %v3232
          %3273 = vst.msk [vmem:[#allocation4 + $0xe8] sm:$0xff] %vm3243, %v3235
          %3274 = vst.msk [vmem:[#allocation4 + $0xf0] sm:$0xff] %vm3243, %v3238
          %vm3275 = vcmask 325632
          %3276 = vst.msk [vmem:[#allocation4 + $0xf8] sm:$0x7f] %vm3275, %v3241
          %v3277 = vld [vmem:[#allocation4] sm:$0xff]
          %v3278 = vld [vmem:[#allocation4 + $0x8] sm:$0xff]
          %v3279 = vld [vmem:[#allocation4 + $0x10] sm:$0xff]
          %v3280 = vld [vmem:[#allocation4 + $0x18] sm:$0xff]
          %v3281 = vld [vmem:[#allocation4 + $0x20] sm:$0xff]
          %v3282 = vld [vmem:[#allocation4 + $0x28] sm:$0xff]
          %v3283 = vld [vmem:[#allocation4 + $0x30] sm:$0xff]
          %v3284 = vld [vmem:[#allocation4 + $0x38] sm:$0xff]
          %v3285 = vld [vmem:[#allocation4 + $0x40] sm:$0xff]
          %v3286 = vld [vmem:[#allocation4 + $0x48] sm:$0xff]
          %v3287 = vld [vmem:[#allocation4 + $0x50] sm:$0xff]
          %v3288 = vld [vmem:[#allocation4 + $0x58] sm:$0xff]
          %v3289 = vld [vmem:[#allocation4 + $0x60] sm:$0xff]
          %v3290 = vld [vmem:[#allocation4 + $0x68] sm:$0xff]
          %v3291 = vld [vmem:[#allocation4 + $0x70] sm:$0xff]
          %v3292 = vld [vmem:[#allocation4 + $0x78] sm:$0xff]
          %v3293 = vld [vmem:[#allocation4 + $0x80] sm:$0xff]
          %v3294 = vld [vmem:[#allocation4 + $0x88] sm:$0xff]
          %v3295 = vld [vmem:[#allocation4 + $0x90] sm:$0xff]
          %v3296 = vld [vmem:[#allocation4 + $0x98] sm:$0xff]
          %v3297 = vld [vmem:[#allocation4 + $0xa0] sm:$0xff]
          %v3298 = vld [vmem:[#allocation4 + $0xa8] sm:$0xff]
          %v3299 = vld [vmem:[#allocation4 + $0xb0] sm:$0xff]
          %v3300 = vld [vmem:[#allocation4 + $0xb8] sm:$0xff]
          %v3301 = vld [vmem:[#allocation4 + $0xc0] sm:$0xff]
          %v3302 = vld [vmem:[#allocation4 + $0xc8] sm:$0xff]
          %v3303 = vld [vmem:[#allocation4 + $0xd0] sm:$0xff]
          %v3304 = vld [vmem:[#allocation4 + $0xd8] sm:$0xff]
          %v3305 = vld [vmem:[#allocation4 + $0xe0] sm:$0xff]
          %v3306 = vld [vmem:[#allocation4 + $0xe8] sm:$0xff]
          %v3307 = vld [vmem:[#allocation4 + $0xf0] sm:$0x7f]
          %v3308 = vld [vmem:[#allocation4 + $0x2] sm:$0xff]
          %v3309 = vld [vmem:[#allocation4 + $0xa] sm:$0xff]
          %v3310 = vld [vmem:[#allocation4 + $0x12] sm:$0xff]
          %v3311 = vld [vmem:[#allocation4 + $0x1a] sm:$0xff]
          %v3312 = vld [vmem:[#allocation4 + $0x22] sm:$0xff]
          %v3313 = vld [vmem:[#allocation4 + $0x2a] sm:$0xff]
          %v3314 = vld [vmem:[#allocation4 + $0x32] sm:$0xff]
          %v3315 = vld [vmem:[#allocation4 + $0x3a] sm:$0xff]
          %v3316 = vld [vmem:[#allocation4 + $0x42] sm:$0xff]
          %v3317 = vld [vmem:[#allocation4 + $0x4a] sm:$0xff]
          %v3318 = vld [vmem:[#allocation4 + $0x52] sm:$0xff]
          %v3319 = vld [vmem:[#allocation4 + $0x5a] sm:$0xff]
          %v3320 = vld [vmem:[#allocation4 + $0x62] sm:$0xff]
          %v3321 = vld [vmem:[#allocation4 + $0x6a] sm:$0xff]
          %v3322 = vld [vmem:[#allocation4 + $0x72] sm:$0xff]
          %v3323 = vld [vmem:[#allocation4 + $0x7a] sm:$0xff]
          %v3324 = vld [vmem:[#allocation4 + $0x82] sm:$0xff]
          %v3325 = vld [vmem:[#allocation4 + $0x8a] sm:$0xff]
          %v3326 = vld [vmem:[#allocation4 + $0x92] sm:$0xff]
          %v3327 = vld [vmem:[#allocation4 + $0x9a] sm:$0xff]
          %v3328 = vld [vmem:[#allocation4 + $0xa2] sm:$0xff]
          %v3329 = vld [vmem:[#allocation4 + $0xaa] sm:$0xff]
          %v3330 = vld [vmem:[#allocation4 + $0xb2] sm:$0xff]
          %v3331 = vld [vmem:[#allocation4 + $0xba] sm:$0xff]
          %v3332 = vld [vmem:[#allocation4 + $0xc2] sm:$0xff]
          %v3333 = vld [vmem:[#allocation4 + $0xca] sm:$0xff]
          %v3334 = vld [vmem:[#allocation4 + $0xd2] sm:$0xff]
          %v3335 = vld [vmem:[#allocation4 + $0xda] sm:$0xff]
          %v3336 = vld [vmem:[#allocation4 + $0xe2] sm:$0xff]
          %v3337 = vld [vmem:[#allocation4 + $0xea] sm:$0xff]
          %v3338 = vld [vmem:[#allocation4 + $0xf2] sm:$0x7f]
          %3370 = vrot.lane.b32.xlu0 %v3308, 120
          %v3371 = vpop.permute.xlu0 %3370
          %3372 = vrot.lane.b32.xlu0 %v3309, 120
          %v3373 = vpop.permute.xlu0 %3372
          %3374 = vrot.lane.b32.xlu0 %v3310, 120
          %v3375 = vpop.permute.xlu0 %3374
          %3376 = vrot.lane.b32.xlu0 %v3311, 120
          %v3377 = vpop.permute.xlu0 %3376
          %3378 = vrot.lane.b32.xlu0 %v3312, 120
          %v3379 = vpop.permute.xlu0 %3378
          %3380 = vrot.lane.b32.xlu0 %v3313, 120
          %v3381 = vpop.permute.xlu0 %3380
          %3382 = vrot.lane.b32.xlu0 %v3314, 120
          %v3383 = vpop.permute.xlu0 %3382
          %3384 = vrot.lane.b32.xlu0 %v3315, 120
          %v3385 = vpop.permute.xlu0 %3384
          %3386 = vrot.lane.b32.xlu0 %v3316, 120
          %v3387 = vpop.permute.xlu0 %3386
          %3388 = vrot.lane.b32.xlu0 %v3317, 120
          %v3389 = vpop.permute.xlu0 %3388
          %3390 = vrot.lane.b32.xlu0 %v3318, 120
          %v3391 = vpop.permute.xlu0 %3390
          %3392 = vrot.lane.b32.xlu0 %v3319, 120
          %v3393 = vpop.permute.xlu0 %3392
          %3394 = vrot.lane.b32.xlu0 %v3320, 120
          %v3395 = vpop.permute.xlu0 %3394
          %3396 = vrot.lane.b32.xlu0 %v3321, 120
          %v3397 = vpop.permute.xlu0 %3396
          %3398 = vrot.lane.b32.xlu0 %v3322, 120
          %v3399 = vpop.permute.xlu0 %3398
          %3400 = vrot.lane.b32.xlu0 %v3323, 120
          %v3401 = vpop.permute.xlu0 %3400
          %3402 = vrot.lane.b32.xlu0 %v3324, 120
          %v3403 = vpop.permute.xlu0 %3402
          %3404 = vrot.lane.b32.xlu0 %v3325, 120
          %v3405 = vpop.permute.xlu0 %3404
          %3406 = vrot.lane.b32.xlu0 %v3326, 120
          %v3407 = vpop.permute.xlu0 %3406
          %3408 = vrot.lane.b32.xlu0 %v3327, 120
          %v3409 = vpop.permute.xlu0 %3408
          %3410 = vrot.lane.b32.xlu0 %v3328, 120
          %v3411 = vpop.permute.xlu0 %3410
          %3412 = vrot.lane.b32.xlu0 %v3329, 120
          %v3413 = vpop.permute.xlu0 %3412
          %3414 = vrot.lane.b32.xlu0 %v3330, 120
          %v3415 = vpop.permute.xlu0 %3414
          %3416 = vrot.lane.b32.xlu0 %v3331, 120
          %v3417 = vpop.permute.xlu0 %3416
          %3418 = vrot.lane.b32.xlu0 %v3332, 120
          %v3419 = vpop.permute.xlu0 %3418
          %3420 = vrot.lane.b32.xlu0 %v3333, 120
          %v3421 = vpop.permute.xlu0 %3420
          %3422 = vrot.lane.b32.xlu0 %v3334, 120
          %v3423 = vpop.permute.xlu0 %3422
          %3424 = vrot.lane.b32.xlu0 %v3335, 120
          %v3425 = vpop.permute.xlu0 %3424
          %3426 = vrot.lane.b32.xlu0 %v3336, 120
          %v3427 = vpop.permute.xlu0 %3426
          %3428 = vrot.lane.b32.xlu0 %v3337, 120
          %v3429 = vpop.permute.xlu0 %3428
          %3430 = vrot.lane.b32.xlu0 %v3338, 120
          %v3431 = vpop.permute.xlu0 %3430
          %v3463 = vadd.f32 %v3277, %v3371
          %v3464 = vadd.f32 %v3278, %v3373
          %v3465 = vadd.f32 %v3279, %v3375
          %v3466 = vadd.f32 %v3280, %v3377
          %v3467 = vadd.f32 %v3281, %v3379
          %v3468 = vadd.f32 %v3282, %v3381
          %v3469 = vadd.f32 %v3283, %v3383
          %v3470 = vadd.f32 %v3284, %v3385
          %v3471 = vadd.f32 %v3285, %v3387
          %v3472 = vadd.f32 %v3286, %v3389
          %v3473 = vadd.f32 %v3287, %v3391
          %v3474 = vadd.f32 %v3288, %v3393
          %v3475 = vadd.f32 %v3289, %v3395
          %v3476 = vadd.f32 %v3290, %v3397
          %v3477 = vadd.f32 %v3291, %v3399
          %v3478 = vadd.f32 %v3292, %v3401
          %v3479 = vadd.f32 %v3293, %v3403
          %v3480 = vadd.f32 %v3294, %v3405
          %v3481 = vadd.f32 %v3295, %v3407
          %v3482 = vadd.f32 %v3296, %v3409
          %v3483 = vadd.f32 %v3297, %v3411
          %v3484 = vadd.f32 %v3298, %v3413
          %v3485 = vadd.f32 %v3299, %v3415
          %v3486 = vadd.f32 %v3300, %v3417
          %v3487 = vadd.f32 %v3301, %v3419
          %v3488 = vadd.f32 %v3302, %v3421
          %v3489 = vadd.f32 %v3303, %v3423
          %v3490 = vadd.f32 %v3304, %v3425
          %v3491 = vadd.f32 %v3305, %v3427
          %v3492 = vadd.f32 %v3306, %v3429
          %v3493 = vadd.f32 %v3307, %v3431
          %v3494 = vld [vmem:[#allocation4 + $0x4] sm:$0xff]
          %v3495 = vld [vmem:[#allocation4 + $0xc] sm:$0xff]
          %v3496 = vld [vmem:[#allocation4 + $0x14] sm:$0xff]
          %v3497 = vld [vmem:[#allocation4 + $0x1c] sm:$0xff]
          %v3498 = vld [vmem:[#allocation4 + $0x24] sm:$0xff]
          %v3499 = vld [vmem:[#allocation4 + $0x2c] sm:$0xff]
          %v3500 = vld [vmem:[#allocation4 + $0x34] sm:$0xff]
          %v3501 = vld [vmem:[#allocation4 + $0x3c] sm:$0xff]
          %v3502 = vld [vmem:[#allocation4 + $0x44] sm:$0xff]
          %v3503 = vld [vmem:[#allocation4 + $0x4c] sm:$0xff]
          %v3504 = vld [vmem:[#allocation4 + $0x54] sm:$0xff]
          %v3505 = vld [vmem:[#allocation4 + $0x5c] sm:$0xff]
          %v3506 = vld [vmem:[#allocation4 + $0x64] sm:$0xff]
          %v3507 = vld [vmem:[#allocation4 + $0x6c] sm:$0xff]
          %v3508 = vld [vmem:[#allocation4 + $0x74] sm:$0xff]
          %v3509 = vld [vmem:[#allocation4 + $0x7c] sm:$0xff]
          %v3510 = vld [vmem:[#allocation4 + $0x84] sm:$0xff]
          %v3511 = vld [vmem:[#allocation4 + $0x8c] sm:$0xff]
          %v3512 = vld [vmem:[#allocation4 + $0x94] sm:$0xff]
          %v3513 = vld [vmem:[#allocation4 + $0x9c] sm:$0xff]
          %v3514 = vld [vmem:[#allocation4 + $0xa4] sm:$0xff]
          %v3515 = vld [vmem:[#allocation4 + $0xac] sm:$0xff]
          %v3516 = vld [vmem:[#allocation4 + $0xb4] sm:$0xff]
          %v3517 = vld [vmem:[#allocation4 + $0xbc] sm:$0xff]
          %v3518 = vld [vmem:[#allocation4 + $0xc4] sm:$0xff]
          %v3519 = vld [vmem:[#allocation4 + $0xcc] sm:$0xff]
          %v3520 = vld [vmem:[#allocation4 + $0xd4] sm:$0xff]
          %v3521 = vld [vmem:[#allocation4 + $0xdc] sm:$0xff]
          %v3522 = vld [vmem:[#allocation4 + $0xe4] sm:$0xff]
          %v3523 = vld [vmem:[#allocation4 + $0xec] sm:$0xff]
          %v3524 = vld [vmem:[#allocation4 + $0xf4] sm:$0x7f]
          %3556 = vrot.lane.b32.xlu0 %v3494, 112
          %v3557 = vpop.permute.xlu0 %3556
          %3558 = vrot.lane.b32.xlu0 %v3495, 112
          %v3559 = vpop.permute.xlu0 %3558
          %3560 = vrot.lane.b32.xlu0 %v3496, 112
          %v3561 = vpop.permute.xlu0 %3560
          %3562 = vrot.lane.b32.xlu0 %v3497, 112
          %v3563 = vpop.permute.xlu0 %3562
          %3564 = vrot.lane.b32.xlu0 %v3498, 112
          %v3565 = vpop.permute.xlu0 %3564
          %3566 = vrot.lane.b32.xlu0 %v3499, 112
          %v3567 = vpop.permute.xlu0 %3566
          %3568 = vrot.lane.b32.xlu0 %v3500, 112
          %v3569 = vpop.permute.xlu0 %3568
          %3570 = vrot.lane.b32.xlu0 %v3501, 112
          %v3571 = vpop.permute.xlu0 %3570
          %3572 = vrot.lane.b32.xlu0 %v3502, 112
          %v3573 = vpop.permute.xlu0 %3572
          %3574 = vrot.lane.b32.xlu0 %v3503, 112
          %v3575 = vpop.permute.xlu0 %3574
          %3576 = vrot.lane.b32.xlu0 %v3504, 112
          %v3577 = vpop.permute.xlu0 %3576
          %3578 = vrot.lane.b32.xlu0 %v3505, 112
          %v3579 = vpop.permute.xlu0 %3578
          %3580 = vrot.lane.b32.xlu0 %v3506, 112
          %v3581 = vpop.permute.xlu0 %3580
          %3582 = vrot.lane.b32.xlu0 %v3507, 112
          %v3583 = vpop.permute.xlu0 %3582
          %3584 = vrot.lane.b32.xlu0 %v3508, 112
          %v3585 = vpop.permute.xlu0 %3584
          %3586 = vrot.lane.b32.xlu0 %v3509, 112
          %v3587 = vpop.permute.xlu0 %3586
          %3588 = vrot.lane.b32.xlu0 %v3510, 112
          %v3589 = vpop.permute.xlu0 %3588
          %3590 = vrot.lane.b32.xlu0 %v3511, 112
          %v3591 = vpop.permute.xlu0 %3590
          %3592 = vrot.lane.b32.xlu0 %v3512, 112
          %v3593 = vpop.permute.xlu0 %3592
          %3594 = vrot.lane.b32.xlu0 %v3513, 112
          %v3595 = vpop.permute.xlu0 %3594
          %3596 = vrot.lane.b32.xlu0 %v3514, 112
          %v3597 = vpop.permute.xlu0 %3596
          %3598 = vrot.lane.b32.xlu0 %v3515, 112
          %v3599 = vpop.permute.xlu0 %3598
          %3600 = vrot.lane.b32.xlu0 %v3516, 112
          %v3601 = vpop.permute.xlu0 %3600
          %3602 = vrot.lane.b32.xlu0 %v3517, 112
          %v3603 = vpop.permute.xlu0 %3602
          %3604 = vrot.lane.b32.xlu0 %v3518, 112
          %v3605 = vpop.permute.xlu0 %3604
          %3606 = vrot.lane.b32.xlu0 %v3519, 112
          %v3607 = vpop.permute.xlu0 %3606
          %3608 = vrot.lane.b32.xlu0 %v3520, 112
          %v3609 = vpop.permute.xlu0 %3608
          %3610 = vrot.lane.b32.xlu0 %v3521, 112
          %v3611 = vpop.permute.xlu0 %3610
          %3612 = vrot.lane.b32.xlu0 %v3522, 112
          %v3613 = vpop.permute.xlu0 %3612
          %3614 = vrot.lane.b32.xlu0 %v3523, 112
          %v3615 = vpop.permute.xlu0 %3614
          %3616 = vrot.lane.b32.xlu0 %v3524, 112
          %v3617 = vpop.permute.xlu0 %3616
          %v3649 = vadd.f32 %v3463, %v3557
          %v3650 = vadd.f32 %v3464, %v3559
          %v3651 = vadd.f32 %v3465, %v3561
          %v3652 = vadd.f32 %v3466, %v3563
          %v3653 = vadd.f32 %v3467, %v3565
          %v3654 = vadd.f32 %v3468, %v3567
          %v3655 = vadd.f32 %v3469, %v3569
          %v3656 = vadd.f32 %v3470, %v3571
          %v3657 = vadd.f32 %v3471, %v3573
          %v3658 = vadd.f32 %v3472, %v3575
          %v3659 = vadd.f32 %v3473, %v3577
          %v3660 = vadd.f32 %v3474, %v3579
          %v3661 = vadd.f32 %v3475, %v3581
          %v3662 = vadd.f32 %v3476, %v3583
          %v3663 = vadd.f32 %v3477, %v3585
          %v3664 = vadd.f32 %v3478, %v3587
          %v3665 = vadd.f32 %v3479, %v3589
          %v3666 = vadd.f32 %v3480, %v3591
          %v3667 = vadd.f32 %v3481, %v3593
          %v3668 = vadd.f32 %v3482, %v3595
          %v3669 = vadd.f32 %v3483, %v3597
          %v3670 = vadd.f32 %v3484, %v3599
          %v3671 = vadd.f32 %v3485, %v3601
          %v3672 = vadd.f32 %v3486, %v3603
          %v3673 = vadd.f32 %v3487, %v3605
          %v3674 = vadd.f32 %v3488, %v3607
          %v3675 = vadd.f32 %v3489, %v3609
          %v3676 = vadd.f32 %v3490, %v3611
          %v3677 = vadd.f32 %v3491, %v3613
          %v3678 = vadd.f32 %v3492, %v3615
          %v3679 = vadd.f32 %v3493, %v3617
          %v3680 = vld [vmem:[#allocation4 + $0x6] sm:$0xff]
          %v3681 = vld [vmem:[#allocation4 + $0xe] sm:$0xff]
          %v3682 = vld [vmem:[#allocation4 + $0x16] sm:$0xff]
          %v3683 = vld [vmem:[#allocation4 + $0x1e] sm:$0xff]
          %v3684 = vld [vmem:[#allocation4 + $0x26] sm:$0xff]
          %v3685 = vld [vmem:[#allocation4 + $0x2e] sm:$0xff]
          %v3686 = vld [vmem:[#allocation4 + $0x36] sm:$0xff]
          %v3687 = vld [vmem:[#allocation4 + $0x3e] sm:$0xff]
          %v3688 = vld [vmem:[#allocation4 + $0x46] sm:$0xff]
          %v3689 = vld [vmem:[#allocation4 + $0x4e] sm:$0xff]
          %v3690 = vld [vmem:[#allocation4 + $0x56] sm:$0xff]
          %v3691 = vld [vmem:[#allocation4 + $0x5e] sm:$0xff]
          %v3692 = vld [vmem:[#allocation4 + $0x66] sm:$0xff]
          %v3693 = vld [vmem:[#allocation4 + $0x6e] sm:$0xff]
          %v3694 = vld [vmem:[#allocation4 + $0x76] sm:$0xff]
          %v3695 = vld [vmem:[#allocation4 + $0x7e] sm:$0xff]
          %v3696 = vld [vmem:[#allocation4 + $0x86] sm:$0xff]
          %v3697 = vld [vmem:[#allocation4 + $0x8e] sm:$0xff]
          %v3698 = vld [vmem:[#allocation4 + $0x96] sm:$0xff]
          %v3699 = vld [vmem:[#allocation4 + $0x9e] sm:$0xff]
          %v3700 = vld [vmem:[#allocation4 + $0xa6] sm:$0xff]
          %v3701 = vld [vmem:[#allocation4 + $0xae] sm:$0xff]
          %v3702 = vld [vmem:[#allocation4 + $0xb6] sm:$0xff]
          %v3703 = vld [vmem:[#allocation4 + $0xbe] sm:$0xff]
          %v3704 = vld [vmem:[#allocation4 + $0xc6] sm:$0xff]
          %v3705 = vld [vmem:[#allocation4 + $0xce] sm:$0xff]
          %v3706 = vld [vmem:[#allocation4 + $0xd6] sm:$0xff]
          %v3707 = vld [vmem:[#allocation4 + $0xde] sm:$0xff]
          %v3708 = vld [vmem:[#allocation4 + $0xe6] sm:$0xff]
          %v3709 = vld [vmem:[#allocation4 + $0xee] sm:$0xff]
          %v3710 = vld [vmem:[#allocation4 + $0xf6] sm:$0x7f]
          %3742 = vrot.lane.b32.xlu0 %v3680, 104
          %v3743 = vpop.permute.xlu0 %3742
          %3744 = vrot.lane.b32.xlu0 %v3681, 104
          %v3745 = vpop.permute.xlu0 %3744
          %3746 = vrot.lane.b32.xlu0 %v3682, 104
          %v3747 = vpop.permute.xlu0 %3746
          %3748 = vrot.lane.b32.xlu0 %v3683, 104
          %v3749 = vpop.permute.xlu0 %3748
          %3750 = vrot.lane.b32.xlu0 %v3684, 104
          %v3751 = vpop.permute.xlu0 %3750
          %3752 = vrot.lane.b32.xlu0 %v3685, 104
          %v3753 = vpop.permute.xlu0 %3752
          %3754 = vrot.lane.b32.xlu0 %v3686, 104
          %v3755 = vpop.permute.xlu0 %3754
          %3756 = vrot.lane.b32.xlu0 %v3687, 104
          %v3757 = vpop.permute.xlu0 %3756
          %3758 = vrot.lane.b32.xlu0 %v3688, 104
          %v3759 = vpop.permute.xlu0 %3758
          %3760 = vrot.lane.b32.xlu0 %v3689, 104
          %v3761 = vpop.permute.xlu0 %3760
          %3762 = vrot.lane.b32.xlu0 %v3690, 104
          %v3763 = vpop.permute.xlu0 %3762
          %3764 = vrot.lane.b32.xlu0 %v3691, 104
          %v3765 = vpop.permute.xlu0 %3764
          %3766 = vrot.lane.b32.xlu0 %v3692, 104
          %v3767 = vpop.permute.xlu0 %3766
          %3768 = vrot.lane.b32.xlu0 %v3693, 104
          %v3769 = vpop.permute.xlu0 %3768
          %3770 = vrot.lane.b32.xlu0 %v3694, 104
          %v3771 = vpop.permute.xlu0 %3770
          %3772 = vrot.lane.b32.xlu0 %v3695, 104
          %v3773 = vpop.permute.xlu0 %3772
          %3774 = vrot.lane.b32.xlu0 %v3696, 104
          %v3775 = vpop.permute.xlu0 %3774
          %3776 = vrot.lane.b32.xlu0 %v3697, 104
          %v3777 = vpop.permute.xlu0 %3776
          %3778 = vrot.lane.b32.xlu0 %v3698, 104
          %v3779 = vpop.permute.xlu0 %3778
          %3780 = vrot.lane.b32.xlu0 %v3699, 104
          %v3781 = vpop.permute.xlu0 %3780
          %3782 = vrot.lane.b32.xlu0 %v3700, 104
          %v3783 = vpop.permute.xlu0 %3782
          %3784 = vrot.lane.b32.xlu0 %v3701, 104
          %v3785 = vpop.permute.xlu0 %3784
          %3786 = vrot.lane.b32.xlu0 %v3702, 104
          %v3787 = vpop.permute.xlu0 %3786
          %3788 = vrot.lane.b32.xlu0 %v3703, 104
          %v3789 = vpop.permute.xlu0 %3788
          %3790 = vrot.lane.b32.xlu0 %v3704, 104
          %v3791 = vpop.permute.xlu0 %3790
          %3792 = vrot.lane.b32.xlu0 %v3705, 104
          %v3793 = vpop.permute.xlu0 %3792
          %3794 = vrot.lane.b32.xlu0 %v3706, 104
          %v3795 = vpop.permute.xlu0 %3794
          %3796 = vrot.lane.b32.xlu0 %v3707, 104
          %v3797 = vpop.permute.xlu0 %3796
          %3798 = vrot.lane.b32.xlu0 %v3708, 104
          %v3799 = vpop.permute.xlu0 %3798
          %3800 = vrot.lane.b32.xlu0 %v3709, 104
          %v3801 = vpop.permute.xlu0 %3800
          %3802 = vrot.lane.b32.xlu0 %v3710, 104
          %v3803 = vpop.permute.xlu0 %3802
          %v3835 = vadd.f32 %v3649, %v3743
          %v3836 = vadd.f32 %v3650, %v3745
          %v3837 = vadd.f32 %v3651, %v3747
          %v3838 = vadd.f32 %v3652, %v3749
          %v3839 = vadd.f32 %v3653, %v3751
          %v3840 = vadd.f32 %v3654, %v3753
          %v3841 = vadd.f32 %v3655, %v3755
          %v3842 = vadd.f32 %v3656, %v3757
          %v3843 = vadd.f32 %v3657, %v3759
          %v3844 = vadd.f32 %v3658, %v3761
          %v3845 = vadd.f32 %v3659, %v3763
          %v3846 = vadd.f32 %v3660, %v3765
          %v3847 = vadd.f32 %v3661, %v3767
          %v3848 = vadd.f32 %v3662, %v3769
          %v3849 = vadd.f32 %v3663, %v3771
          %v3850 = vadd.f32 %v3664, %v3773
          %v3851 = vadd.f32 %v3665, %v3775
          %v3852 = vadd.f32 %v3666, %v3777
          %v3853 = vadd.f32 %v3667, %v3779
          %v3854 = vadd.f32 %v3668, %v3781
          %v3855 = vadd.f32 %v3669, %v3783
          %v3856 = vadd.f32 %v3670, %v3785
          %v3857 = vadd.f32 %v3671, %v3787
          %v3858 = vadd.f32 %v3672, %v3789
          %v3859 = vadd.f32 %v3673, %v3791
          %v3860 = vadd.f32 %v3674, %v3793
          %v3861 = vadd.f32 %v3675, %v3795
          %v3862 = vadd.f32 %v3676, %v3797
          %v3863 = vadd.f32 %v3677, %v3799
          %v3864 = vadd.f32 %v3678, %v3801
          %v3865 = vadd.f32 %v3679, %v3803
          %v3866 = vld [vmem:[#allocation4 + $0xf0] sm:$0xff]
          %v3867 = vld [vmem:[#allocation4 + $0xf8] sm:$0x7f]
          %3899 = vrot.lane.b32.xlu0 %v3278, 96
          %v3900 = vpop.permute.xlu0 %3899
          %3901 = vrot.lane.b32.xlu0 %v3279, 96
          %v3902 = vpop.permute.xlu0 %3901
          %3903 = vrot.lane.b32.xlu0 %v3280, 96
          %v3904 = vpop.permute.xlu0 %3903
          %3905 = vrot.lane.b32.xlu0 %v3281, 96
          %v3906 = vpop.permute.xlu0 %3905
          %3907 = vrot.lane.b32.xlu0 %v3282, 96
          %v3908 = vpop.permute.xlu0 %3907
          %3909 = vrot.lane.b32.xlu0 %v3283, 96
          %v3910 = vpop.permute.xlu0 %3909
          %3911 = vrot.lane.b32.xlu0 %v3284, 96
          %v3912 = vpop.permute.xlu0 %3911
          %3913 = vrot.lane.b32.xlu0 %v3285, 96
          %v3914 = vpop.permute.xlu0 %3913
          %3915 = vrot.lane.b32.xlu0 %v3286, 96
          %v3916 = vpop.permute.xlu0 %3915
          %3917 = vrot.lane.b32.xlu0 %v3287, 96
          %v3918 = vpop.permute.xlu0 %3917
          %3919 = vrot.lane.b32.xlu0 %v3288, 96
          %v3920 = vpop.permute.xlu0 %3919
          %3921 = vrot.lane.b32.xlu0 %v3289, 96
          %v3922 = vpop.permute.xlu0 %3921
          %3923 = vrot.lane.b32.xlu0 %v3290, 96
          %v3924 = vpop.permute.xlu0 %3923
          %3925 = vrot.lane.b32.xlu0 %v3291, 96
          %v3926 = vpop.permute.xlu0 %3925
          %3927 = vrot.lane.b32.xlu0 %v3292, 96
          %v3928 = vpop.permute.xlu0 %3927
          %3929 = vrot.lane.b32.xlu0 %v3293, 96
          %v3930 = vpop.permute.xlu0 %3929
          %3931 = vrot.lane.b32.xlu0 %v3294, 96
          %v3932 = vpop.permute.xlu0 %3931
          %3933 = vrot.lane.b32.xlu0 %v3295, 96
          %v3934 = vpop.permute.xlu0 %3933
          %3935 = vrot.lane.b32.xlu0 %v3296, 96
          %v3936 = vpop.permute.xlu0 %3935
          %3937 = vrot.lane.b32.xlu0 %v3297, 96
          %v3938 = vpop.permute.xlu0 %3937
          %3939 = vrot.lane.b32.xlu0 %v3298, 96
          %v3940 = vpop.permute.xlu0 %3939
          %3941 = vrot.lane.b32.xlu0 %v3299, 96
          %v3942 = vpop.permute.xlu0 %3941
          %3943 = vrot.lane.b32.xlu0 %v3300, 96
          %v3944 = vpop.permute.xlu0 %3943
          %3945 = vrot.lane.b32.xlu0 %v3301, 96
          %v3946 = vpop.permute.xlu0 %3945
          %3947 = vrot.lane.b32.xlu0 %v3302, 96
          %v3948 = vpop.permute.xlu0 %3947
          %3949 = vrot.lane.b32.xlu0 %v3303, 96
          %v3950 = vpop.permute.xlu0 %3949
          %3951 = vrot.lane.b32.xlu0 %v3304, 96
          %v3952 = vpop.permute.xlu0 %3951
          %3953 = vrot.lane.b32.xlu0 %v3305, 96
          %v3954 = vpop.permute.xlu0 %3953
          %3955 = vrot.lane.b32.xlu0 %v3306, 96
          %v3956 = vpop.permute.xlu0 %3955
          %3957 = vrot.lane.b32.xlu0 %v3866, 96
          %v3958 = vpop.permute.xlu0 %3957
          %3959 = vrot.lane.b32.xlu0 %v3867, 96
          %v3960 = vpop.permute.xlu0 %3959
          %v3992 = vadd.f32 %v3835, %v3900
          %v3993 = vadd.f32 %v3836, %v3902
          %v3994 = vadd.f32 %v3837, %v3904
          %v3995 = vadd.f32 %v3838, %v3906
          %v3996 = vadd.f32 %v3839, %v3908
          %v3997 = vadd.f32 %v3840, %v3910
          %v3998 = vadd.f32 %v3841, %v3912
          %v3999 = vadd.f32 %v3842, %v3914
          %v4000 = vadd.f32 %v3843, %v3916
          %v4001 = vadd.f32 %v3844, %v3918
          %v4002 = vadd.f32 %v3845, %v3920
          %v4003 = vadd.f32 %v3846, %v3922
          %v4004 = vadd.f32 %v3847, %v3924
          %v4005 = vadd.f32 %v3848, %v3926
          %v4006 = vadd.f32 %v3849, %v3928
          %v4007 = vadd.f32 %v3850, %v3930
          %v4008 = vadd.f32 %v3851, %v3932
          %v4009 = vadd.f32 %v3852, %v3934
          %v4010 = vadd.f32 %v3853, %v3936
          %v4011 = vadd.f32 %v3854, %v3938
          %v4012 = vadd.f32 %v3855, %v3940
          %v4013 = vadd.f32 %v3856, %v3942
          %v4014 = vadd.f32 %v3857, %v3944
          %v4015 = vadd.f32 %v3858, %v3946
          %v4016 = vadd.f32 %v3859, %v3948
          %v4017 = vadd.f32 %v3860, %v3950
          %v4018 = vadd.f32 %v3861, %v3952
          %v4019 = vadd.f32 %v3862, %v3954
          %v4020 = vadd.f32 %v3863, %v3956
          %v4021 = vadd.f32 %v3864, %v3958
          %v4022 = vadd.f32 %v3865, %v3960
          %v4023 = vld [vmem:[#allocation12] sm:$0xff]
          %vm4024 = vcmask 64512
          %v4026 = vsel %vm4024, %v3992, 0
          %v4029 = vsel %vm4024, %v3993, 0
          %v4032 = vsel %vm4024, %v3994, 0
          %v4035 = vsel %vm4024, %v3995, 0
          %v4038 = vsel %vm4024, %v3996, 0
          %v4041 = vsel %vm4024, %v3997, 0
          %v4044 = vsel %vm4024, %v3998, 0
          %v4047 = vsel %vm4024, %v3999, 0
          %v4050 = vsel %vm4024, %v4000, 0
          %v4053 = vsel %vm4024, %v4001, 0
          %v4056 = vsel %vm4024, %v4002, 0
          %v4059 = vsel %vm4024, %v4003, 0
          %v4062 = vsel %vm4024, %v4004, 0
          %v4065 = vsel %vm4024, %v4005, 0
          %v4068 = vsel %vm4024, %v4006, 0
          %v4071 = vsel %vm4024, %v4007, 0
          %v4074 = vsel %vm4024, %v4008, 0
          %v4077 = vsel %vm4024, %v4009, 0
          %v4080 = vsel %vm4024, %v4010, 0
          %v4083 = vsel %vm4024, %v4011, 0
          %v4086 = vsel %vm4024, %v4012, 0
          %v4089 = vsel %vm4024, %v4013, 0
          %v4092 = vsel %vm4024, %v4014, 0
          %v4095 = vsel %vm4024, %v4015, 0
          %v4098 = vsel %vm4024, %v4016, 0
          %v4101 = vsel %vm4024, %v4017, 0
          %v4104 = vsel %vm4024, %v4018, 0
          %v4107 = vsel %vm4024, %v4019, 0
          %v4110 = vsel %vm4024, %v4020, 0
          %v4113 = vsel %vm4024, %v4021, 0
          %v4116 = vsel %vm4024, %v4022, 0
          %4118 = vmatpush.msra.mxu0 0.0
          %4119 = vmatpush.msra.mxu0 0.0
          %4120 = vmatpush.msra.mxu0 0.0
          %4121 = vmatpush.msra.mxu0 0.0
          %4122 = vmatpush.msra.mxu0 0.0
          %4123 = vmatpush.msra.mxu0 0.0
          %4124 = vmatpush.msra.mxu0 0.0
          %4125 = vmatpush.msra.mxu0 0.0
          %4126 = vmatpush.msra.mxu0 0.0
          %4127 = vmatpush.msra.mxu0 0.0
          %4128 = vmatpush.msra.mxu0 0.0
          %4129 = vmatpush.msra.mxu0 0.0
          %4130 = vmatpush.msra.mxu0 0.0
          %4131 = vmatpush.msra.mxu0 0.0
          %4132 = vmatpush.msra.mxu0 0.0
          %4133 = vmatpush.msra.mxu0 %v4023
          %4134 = vmatmul.f32.gmra.mxu0 %v4026
          %v4135 = vpop.f32.mrf.mxu0
          %v4136 = vadd.f32 0.0, %v4135
          %4137 = vmatmul.f32.gmra.mxu0 %v4029
          %v4138 = vpop.f32.mrf.mxu0
          %v4139 = vadd.f32 0.0, %v4138
          %4140 = vmatmul.f32.gmra.mxu0 %v4032
          %v4141 = vpop.f32.mrf.mxu0
          %v4142 = vadd.f32 0.0, %v4141
          %4143 = vmatmul.f32.gmra.mxu0 %v4035
          %v4144 = vpop.f32.mrf.mxu0
          %v4145 = vadd.f32 0.0, %v4144
          %4146 = vmatmul.f32.gmra.mxu0 %v4038
          %v4147 = vpop.f32.mrf.mxu0
          %v4148 = vadd.f32 0.0, %v4147
          %4149 = vmatmul.f32.gmra.mxu0 %v4041
          %v4150 = vpop.f32.mrf.mxu0
          %v4151 = vadd.f32 0.0, %v4150
          %4152 = vmatmul.f32.gmra.mxu0 %v4044
          %v4153 = vpop.f32.mrf.mxu0
          %v4154 = vadd.f32 0.0, %v4153
          %4155 = vmatmul.f32.gmra.mxu0 %v4047
          %v4156 = vpop.f32.mrf.mxu0
          %v4157 = vadd.f32 0.0, %v4156
          %4158 = vmatmul.f32.gmra.mxu0 %v4050
          %v4159 = vpop.f32.mrf.mxu0
          %v4160 = vadd.f32 0.0, %v4159
          %4161 = vmatmul.f32.gmra.mxu0 %v4053
          %v4162 = vpop.f32.mrf.mxu0
          %v4163 = vadd.f32 0.0, %v4162
          %4164 = vmatmul.f32.gmra.mxu0 %v4056
          %v4165 = vpop.f32.mrf.mxu0
          %v4166 = vadd.f32 0.0, %v4165
          %4167 = vmatmul.f32.gmra.mxu0 %v4059
          %v4168 = vpop.f32.mrf.mxu0
          %v4169 = vadd.f32 0.0, %v4168
          %4170 = vmatmul.f32.gmra.mxu0 %v4062
          %v4171 = vpop.f32.mrf.mxu0
          %v4172 = vadd.f32 0.0, %v4171
          %4173 = vmatmul.f32.gmra.mxu0 %v4065
          %v4174 = vpop.f32.mrf.mxu0
          %v4175 = vadd.f32 0.0, %v4174
          %4176 = vmatmul.f32.gmra.mxu0 %v4068
          %v4177 = vpop.f32.mrf.mxu0
          %v4178 = vadd.f32 0.0, %v4177
          %4179 = vmatmul.f32.gmra.mxu0 %v4071
          %v4180 = vpop.f32.mrf.mxu0
          %v4181 = vadd.f32 0.0, %v4180
          %4182 = vmatmul.f32.gmra.mxu0 %v4074
          %v4183 = vpop.f32.mrf.mxu0
          %v4184 = vadd.f32 0.0, %v4183
          %4185 = vmatmul.f32.gmra.mxu0 %v4077
          %v4186 = vpop.f32.mrf.mxu0
          %v4187 = vadd.f32 0.0, %v4186
          %4188 = vmatmul.f32.gmra.mxu0 %v4080
          %v4189 = vpop.f32.mrf.mxu0
          %v4190 = vadd.f32 0.0, %v4189
          %4191 = vmatmul.f32.gmra.mxu0 %v4083
          %v4192 = vpop.f32.mrf.mxu0
          %v4193 = vadd.f32 0.0, %v4192
          %4194 = vmatmul.f32.gmra.mxu0 %v4086
          %v4195 = vpop.f32.mrf.mxu0
          %v4196 = vadd.f32 0.0, %v4195
          %4197 = vmatmul.f32.gmra.mxu0 %v4089
          %v4198 = vpop.f32.mrf.mxu0
          %v4199 = vadd.f32 0.0, %v4198
          %4200 = vmatmul.f32.gmra.mxu0 %v4092
          %v4201 = vpop.f32.mrf.mxu0
          %v4202 = vadd.f32 0.0, %v4201
          %4203 = vmatmul.f32.gmra.mxu0 %v4095
          %v4204 = vpop.f32.mrf.mxu0
          %v4205 = vadd.f32 0.0, %v4204
          %4206 = vmatmul.f32.gmra.mxu0 %v4098
          %v4207 = vpop.f32.mrf.mxu0
          %v4208 = vadd.f32 0.0, %v4207
          %4209 = vmatmul.f32.gmra.mxu0 %v4101
          %v4210 = vpop.f32.mrf.mxu0
          %v4211 = vadd.f32 0.0, %v4210
          %4212 = vmatmul.f32.gmra.mxu0 %v4104
          %v4213 = vpop.f32.mrf.mxu0
          %v4214 = vadd.f32 0.0, %v4213
          %4215 = vmatmul.f32.gmra.mxu0 %v4107
          %v4216 = vpop.f32.mrf.mxu0
          %v4217 = vadd.f32 0.0, %v4216
          %4218 = vmatmul.f32.gmra.mxu0 %v4110
          %v4219 = vpop.f32.mrf.mxu0
          %v4220 = vadd.f32 0.0, %v4219
          %4221 = vmatmul.f32.gmra.mxu0 %v4113
          %v4222 = vpop.f32.mrf.mxu0
          %v4223 = vadd.f32 0.0, %v4222
          %4224 = vmatmul.f32.gmra.mxu0 %v4116
          %v4225 = vpop.f32.mrf.mxu0
          %v4226 = vadd.f32 0.0, %v4225
          %4227 = vdwg.mxu0
          %v4228 = vld [vmem:[#allocation14] sm:$0x1]
          %v4230 = vperm.slane %v4228, 0
          %v4232 = vadd.f32 %v4136, %v4230
          %v4233 = vadd.f32 %v4139, %v4230
          %v4234 = vadd.f32 %v4142, %v4230
          %v4235 = vadd.f32 %v4145, %v4230
          %v4236 = vadd.f32 %v4148, %v4230
          %v4237 = vadd.f32 %v4151, %v4230
          %v4238 = vadd.f32 %v4154, %v4230
          %v4239 = vadd.f32 %v4157, %v4230
          %v4240 = vadd.f32 %v4160, %v4230
          %v4241 = vadd.f32 %v4163, %v4230
          %v4242 = vadd.f32 %v4166, %v4230
          %v4243 = vadd.f32 %v4169, %v4230
          %v4244 = vadd.f32 %v4172, %v4230
          %v4245 = vadd.f32 %v4175, %v4230
          %v4246 = vadd.f32 %v4178, %v4230
          %v4247 = vadd.f32 %v4181, %v4230
          %v4248 = vadd.f32 %v4184, %v4230
          %v4249 = vadd.f32 %v4187, %v4230
          %v4250 = vadd.f32 %v4190, %v4230
          %v4251 = vadd.f32 %v4193, %v4230
          %v4252 = vadd.f32 %v4196, %v4230
          %v4253 = vadd.f32 %v4199, %v4230
          %v4254 = vadd.f32 %v4202, %v4230
          %v4255 = vadd.f32 %v4205, %v4230
          %v4256 = vadd.f32 %v4208, %v4230
          %v4257 = vadd.f32 %v4211, %v4230
          %v4258 = vadd.f32 %v4214, %v4230
          %v4259 = vadd.f32 %v4217, %v4230
          %v4260 = vadd.f32 %v4220, %v4230
          %v4261 = vadd.f32 %v4223, %v4230
          %v4262 = vadd.f32 %v4226, %v4230
          %v4263 = vpack.c.bf16 %v4232, %v4232
          %v4264 = vpack.c.bf16 %v4233, %v4233
          %v4265 = vpack.c.bf16 %v4234, %v4234
          %v4266 = vpack.c.bf16 %v4235, %v4235
          %v4267 = vpack.c.bf16 %v4236, %v4236
          %v4268 = vpack.c.bf16 %v4237, %v4237
          %v4269 = vpack.c.bf16 %v4238, %v4238
          %v4270 = vpack.c.bf16 %v4239, %v4239
          %v4271 = vpack.c.bf16 %v4240, %v4240
          %v4272 = vpack.c.bf16 %v4241, %v4241
          %v4273 = vpack.c.bf16 %v4242, %v4242
          %v4274 = vpack.c.bf16 %v4243, %v4243
          %v4275 = vpack.c.bf16 %v4244, %v4244
          %v4276 = vpack.c.bf16 %v4245, %v4245
          %v4277 = vpack.c.bf16 %v4246, %v4246
          %v4278 = vpack.c.bf16 %v4247, %v4247
          %v4279 = vpack.c.bf16 %v4248, %v4248
          %v4280 = vpack.c.bf16 %v4249, %v4249
          %v4281 = vpack.c.bf16 %v4250, %v4250
          %v4282 = vpack.c.bf16 %v4251, %v4251
          %v4283 = vpack.c.bf16 %v4252, %v4252
          %v4284 = vpack.c.bf16 %v4253, %v4253
          %v4285 = vpack.c.bf16 %v4254, %v4254
          %v4286 = vpack.c.bf16 %v4255, %v4255
          %v4287 = vpack.c.bf16 %v4256, %v4256
          %v4288 = vpack.c.bf16 %v4257, %v4257
          %v4289 = vpack.c.bf16 %v4258, %v4258
          %v4290 = vpack.c.bf16 %v4259, %v4259
          %v4291 = vpack.c.bf16 %v4260, %v4260
          %v4292 = vpack.c.bf16 %v4261, %v4261
          %v4293 = vpack.c.bf16 %v4262, %v4262
          %v4294 = vpack.c.bf16 %v4136, %v4136
          %v4295 = vpack.c.bf16 %v4139, %v4139
          %v4296 = vpack.c.bf16 %v4142, %v4142
          %v4297 = vpack.c.bf16 %v4145, %v4145
          %v4298 = vpack.c.bf16 %v4148, %v4148
          %v4299 = vpack.c.bf16 %v4151, %v4151
          %v4300 = vpack.c.bf16 %v4154, %v4154
          %v4301 = vpack.c.bf16 %v4157, %v4157
          %v4302 = vpack.c.bf16 %v4160, %v4160
          %v4303 = vpack.c.bf16 %v4163, %v4163
          %v4304 = vpack.c.bf16 %v4166, %v4166
          %v4305 = vpack.c.bf16 %v4169, %v4169
          %v4306 = vpack.c.bf16 %v4172, %v4172
          %v4307 = vpack.c.bf16 %v4175, %v4175
          %v4308 = vpack.c.bf16 %v4178, %v4178
          %v4309 = vpack.c.bf16 %v4181, %v4181
          %v4310 = vpack.c.bf16 %v4184, %v4184
          %v4311 = vpack.c.bf16 %v4187, %v4187
          %v4312 = vpack.c.bf16 %v4190, %v4190
          %v4313 = vpack.c.bf16 %v4193, %v4193
          %v4314 = vpack.c.bf16 %v4196, %v4196
          %v4315 = vpack.c.bf16 %v4199, %v4199
          %v4316 = vpack.c.bf16 %v4202, %v4202
          %v4317 = vpack.c.bf16 %v4205, %v4205
          %v4318 = vpack.c.bf16 %v4208, %v4208
          %v4319 = vpack.c.bf16 %v4211, %v4211
          %v4320 = vpack.c.bf16 %v4214, %v4214
          %v4321 = vpack.c.bf16 %v4217, %v4217
          %v4322 = vpack.c.bf16 %v4220, %v4220
          %v4323 = vpack.c.bf16 %v4223, %v4223
          %v4324 = vpack.c.bf16 %v4226, %v4226
          %v4356 = vunpack.c.l.b16 %v4263
          %v4357 = vunpack.c.l.b16 %v4264
          %v4358 = vunpack.c.l.b16 %v4265
          %v4359 = vunpack.c.l.b16 %v4266
          %v4360 = vunpack.c.l.b16 %v4267
          %v4361 = vunpack.c.l.b16 %v4268
          %v4362 = vunpack.c.l.b16 %v4269
          %v4363 = vunpack.c.l.b16 %v4270
          %v4364 = vunpack.c.l.b16 %v4271
          %v4365 = vunpack.c.l.b16 %v4272
          %v4366 = vunpack.c.l.b16 %v4273
          %v4367 = vunpack.c.l.b16 %v4274
          %v4368 = vunpack.c.l.b16 %v4275
          %v4369 = vunpack.c.l.b16 %v4276
          %v4370 = vunpack.c.l.b16 %v4277
          %v4371 = vunpack.c.l.b16 %v4278
          %v4372 = vunpack.c.l.b16 %v4279
          %v4373 = vunpack.c.l.b16 %v4280
          %v4374 = vunpack.c.l.b16 %v4281
          %v4375 = vunpack.c.l.b16 %v4282
          %v4376 = vunpack.c.l.b16 %v4283
          %v4377 = vunpack.c.l.b16 %v4284
          %v4378 = vunpack.c.l.b16 %v4285
          %v4379 = vunpack.c.l.b16 %v4286
          %v4380 = vunpack.c.l.b16 %v4287
          %v4381 = vunpack.c.l.b16 %v4288
          %v4382 = vunpack.c.l.b16 %v4289
          %v4383 = vunpack.c.l.b16 %v4290
          %v4384 = vunpack.c.l.b16 %v4291
          %v4385 = vunpack.c.l.b16 %v4292
          %v4386 = vunpack.c.l.b16 %v4293
          %v4387 = vpack.c.b16 %v4357, %v4356
          %v4388 = vpack.c.b16 %v4359, %v4358
          %v4389 = vpack.c.b16 %v4361, %v4360
          %v4390 = vpack.c.b16 %v4363, %v4362
          %v4391 = vpack.c.b16 %v4365, %v4364
          %v4392 = vpack.c.b16 %v4367, %v4366
          %v4393 = vpack.c.b16 %v4369, %v4368
          %v4394 = vpack.c.b16 %v4371, %v4370
          %v4395 = vpack.c.b16 %v4373, %v4372
          %v4396 = vpack.c.b16 %v4375, %v4374
          %v4397 = vpack.c.b16 %v4377, %v4376
          %v4398 = vpack.c.b16 %v4379, %v4378
          %v4399 = vpack.c.b16 %v4381, %v4380
          %v4400 = vpack.c.b16 %v4383, %v4382
          %v4401 = vpack.c.b16 %v4385, %v4384
          %v4402 = vpack.c.b16 %v4386, %v4386
          %4403 = vrot.lane.b32.xlu0 %v4387, 120
          %v4404 = vpop.permute.xlu0 %4403
          %4405 = vrot.lane.b32.xlu0 %v4388, 120
          %v4406 = vpop.permute.xlu0 %4405
          %4407 = vrot.lane.b32.xlu0 %v4389, 120
          %v4408 = vpop.permute.xlu0 %4407
          %4409 = vrot.lane.b32.xlu0 %v4390, 120
          %v4410 = vpop.permute.xlu0 %4409
          %4411 = vrot.lane.b32.xlu0 %v4391, 120
          %v4412 = vpop.permute.xlu0 %4411
          %4413 = vrot.lane.b32.xlu0 %v4392, 120
          %v4414 = vpop.permute.xlu0 %4413
          %4415 = vrot.lane.b32.xlu0 %v4393, 120
          %v4416 = vpop.permute.xlu0 %4415
          %4417 = vrot.lane.b32.xlu0 %v4394, 120
          %v4418 = vpop.permute.xlu0 %4417
          %4419 = vrot.lane.b32.xlu0 %v4395, 120
          %v4420 = vpop.permute.xlu0 %4419
          %4421 = vrot.lane.b32.xlu0 %v4396, 120
          %v4422 = vpop.permute.xlu0 %4421
          %4423 = vrot.lane.b32.xlu0 %v4397, 120
          %v4424 = vpop.permute.xlu0 %4423
          %4425 = vrot.lane.b32.xlu0 %v4398, 120
          %v4426 = vpop.permute.xlu0 %4425
          %4427 = vrot.lane.b32.xlu0 %v4399, 120
          %v4428 = vpop.permute.xlu0 %4427
          %4429 = vrot.lane.b32.xlu0 %v4400, 120
          %v4430 = vpop.permute.xlu0 %4429
          %4431 = vrot.lane.b32.xlu0 %v4401, 120
          %v4432 = vpop.permute.xlu0 %4431
          %4433 = vrot.lane.b32.xlu0 %v4402, 120
          %v4434 = vpop.permute.xlu0 %4433
          %vm4435 = vcmask 15360
          %v4437 = vsel %vm4435, %v4387, 0
          %v4440 = vsel %vm4435, %v4388, 0
          %v4443 = vsel %vm4435, %v4389, 0
          %v4446 = vsel %vm4435, %v4390, 0
          %v4449 = vsel %vm4435, %v4391, 0
          %v4452 = vsel %vm4435, %v4392, 0
          %v4455 = vsel %vm4435, %v4393, 0
          %v4458 = vsel %vm4435, %v4394, 0
          %v4461 = vsel %vm4435, %v4395, 0
          %v4464 = vsel %vm4435, %v4396, 0
          %v4467 = vsel %vm4435, %v4397, 0
          %v4470 = vsel %vm4435, %v4398, 0
          %v4473 = vsel %vm4435, %v4399, 0
          %v4476 = vsel %vm4435, %v4400, 0
          %v4479 = vsel %vm4435, %v4401, 0
          %v4482 = vsel %vm4435, %v4402, 0
          %v4485 = vsel %vm4435, %v4404, 0
          %v4488 = vsel %vm4435, %v4406, 0
          %v4491 = vsel %vm4435, %v4408, 0
          %v4494 = vsel %vm4435, %v4410, 0
          %v4497 = vsel %vm4435, %v4412, 0
          %v4500 = vsel %vm4435, %v4414, 0
          %v4503 = vsel %vm4435, %v4416, 0
          %v4506 = vsel %vm4435, %v4418, 0
          %v4509 = vsel %vm4435, %v4420, 0
          %v4512 = vsel %vm4435, %v4422, 0
          %v4515 = vsel %vm4435, %v4424, 0
          %v4518 = vsel %vm4435, %v4426, 0
          %v4521 = vsel %vm4435, %v4428, 0
          %v4524 = vsel %vm4435, %v4430, 0
          %v4527 = vsel %vm4435, %v4432, 0
          %v4530 = vsel %vm4435, %v4434, 0
          %4532 = vmatpush.bf16.xpose.msra.mxu0 %v4506
          %4533 = vmatpush.bf16.xpose.msra.mxu0 %v4503
          %4534 = vmatpush.bf16.xpose.msra.mxu0 %v4500
          %4535 = vmatpush.bf16.xpose.msra.mxu0 %v4497
          %4536 = vmatpush.bf16.xpose.msra.mxu0 %v4494
          %4537 = vmatpush.bf16.xpose.msra.mxu0 %v4491
          %4538 = vmatpush.bf16.xpose.msra.mxu0 %v4488
          %4539 = vmatpush.bf16.xpose.msra.mxu0 %v4485
          %4540 = vmatmul.bf16.gmra.mxu0 %v4437
          %v4541 = vpop.f32.mrf.mxu0
          %v4542 = vadd.f32 0.0, %v4541
          %v4543 = vpop.f32.mrf.mxu0
          %v4544 = vadd.f32 0.0, %v4543
          %4545 = vmatmul.bf16.gmra.mxu0 %v4440
          %v4546 = vpop.f32.mrf.mxu0
          %v4547 = vadd.f32 0.0, %v4546
          %v4548 = vpop.f32.mrf.mxu0
          %v4549 = vadd.f32 0.0, %v4548
          %4550 = vmatmul.bf16.gmra.mxu0 %v4443
          %v4551 = vpop.f32.mrf.mxu0
          %v4552 = vadd.f32 0.0, %v4551
          %v4553 = vpop.f32.mrf.mxu0
          %v4554 = vadd.f32 0.0, %v4553
          %4555 = vmatmul.bf16.gmra.mxu0 %v4446
          %v4556 = vpop.f32.mrf.mxu0
          %v4557 = vadd.f32 0.0, %v4556
          %v4558 = vpop.f32.mrf.mxu0
          %v4559 = vadd.f32 0.0, %v4558
          %4560 = vmatmul.bf16.gmra.mxu0 %v4449
          %v4561 = vpop.f32.mrf.mxu0
          %v4562 = vadd.f32 0.0, %v4561
          %v4563 = vpop.f32.mrf.mxu0
          %v4564 = vadd.f32 0.0, %v4563
          %4565 = vmatmul.bf16.gmra.mxu0 %v4452
          %v4566 = vpop.f32.mrf.mxu0
          %v4567 = vadd.f32 0.0, %v4566
          %v4568 = vpop.f32.mrf.mxu0
          %v4569 = vadd.f32 0.0, %v4568
          %4570 = vmatmul.bf16.gmra.mxu0 %v4455
          %v4571 = vpop.f32.mrf.mxu0
          %v4572 = vadd.f32 0.0, %v4571
          %v4573 = vpop.f32.mrf.mxu0
          %v4574 = vadd.f32 0.0, %v4573
          %4575 = vmatmul.bf16.gmra.mxu0 %v4458
          %v4576 = vpop.f32.mrf.mxu0
          %v4577 = vadd.f32 0.0, %v4576
          %v4578 = vpop.f32.mrf.mxu0
          %v4579 = vadd.f32 0.0, %v4578
          %4580 = vmatmul.bf16.gmra.mxu0 %v4461
          %v4581 = vpop.f32.mrf.mxu0
          %v4582 = vadd.f32 0.0, %v4581
          %v4583 = vpop.f32.mrf.mxu0
          %v4584 = vadd.f32 0.0, %v4583
          %4585 = vmatmul.bf16.gmra.mxu0 %v4464
          %v4586 = vpop.f32.mrf.mxu0
          %v4587 = vadd.f32 0.0, %v4586
          %v4588 = vpop.f32.mrf.mxu0
          %v4589 = vadd.f32 0.0, %v4588
          %4590 = vmatmul.bf16.gmra.mxu0 %v4467
          %v4591 = vpop.f32.mrf.mxu0
          %v4592 = vadd.f32 0.0, %v4591
          %v4593 = vpop.f32.mrf.mxu0
          %v4594 = vadd.f32 0.0, %v4593
          %4595 = vmatmul.bf16.gmra.mxu0 %v4470
          %v4596 = vpop.f32.mrf.mxu0
          %v4597 = vadd.f32 0.0, %v4596
          %v4598 = vpop.f32.mrf.mxu0
          %v4599 = vadd.f32 0.0, %v4598
          %4600 = vmatmul.bf16.gmra.mxu0 %v4473
          %v4601 = vpop.f32.mrf.mxu0
          %v4602 = vadd.f32 0.0, %v4601
          %v4603 = vpop.f32.mrf.mxu0
          %v4604 = vadd.f32 0.0, %v4603
          %4605 = vmatmul.bf16.gmra.mxu0 %v4476
          %v4606 = vpop.f32.mrf.mxu0
          %v4607 = vadd.f32 0.0, %v4606
          %v4608 = vpop.f32.mrf.mxu0
          %v4609 = vadd.f32 0.0, %v4608
          %4610 = vmatmul.bf16.gmra.mxu0 %v4479
          %v4611 = vpop.f32.mrf.mxu0
          %v4612 = vadd.f32 0.0, %v4611
          %v4613 = vpop.f32.mrf.mxu0
          %v4614 = vadd.f32 0.0, %v4613
          %4615 = vmatmul.bf16.gmra.mxu0 %v4482
          %v4616 = vpop.f32.mrf.mxu0
          %v4617 = vadd.f32 0.0, %v4616
          %v4618 = vpop.f32.mrf.mxu0
          %4619 = vdwg.mxu0
          %4620 = vmatpush.bf16.xpose.msra.mxu0 %v4530
          %4621 = vmatpush.bf16.xpose.msra.mxu0 %v4527
          %4622 = vmatpush.bf16.xpose.msra.mxu0 %v4524
          %4623 = vmatpush.bf16.xpose.msra.mxu0 %v4521
          %4624 = vmatpush.bf16.xpose.msra.mxu0 %v4518
          %4625 = vmatpush.bf16.xpose.msra.mxu0 %v4515
          %4626 = vmatpush.bf16.xpose.msra.mxu0 %v4512
          %4627 = vmatpush.bf16.xpose.msra.mxu0 %v4509
          %4628 = vmatmul.bf16.gmra.mxu0 %v4437
          %v4629 = vpop.f32.mrf.mxu0
          %v4630 = vadd.f32 0.0, %v4629
          %v4631 = vpop.f32.mrf.mxu0
          %v4632 = vadd.f32 0.0, %v4631
          %4633 = vmatmul.bf16.gmra.mxu0 %v4440
          %v4634 = vpop.f32.mrf.mxu0
          %v4635 = vadd.f32 0.0, %v4634
          %v4636 = vpop.f32.mrf.mxu0
          %v4637 = vadd.f32 0.0, %v4636
          %4638 = vmatmul.bf16.gmra.mxu0 %v4443
          %v4639 = vpop.f32.mrf.mxu0
          %v4640 = vadd.f32 0.0, %v4639
          %v4641 = vpop.f32.mrf.mxu0
          %v4642 = vadd.f32 0.0, %v4641
          %4643 = vmatmul.bf16.gmra.mxu0 %v4446
          %v4644 = vpop.f32.mrf.mxu0
          %v4645 = vadd.f32 0.0, %v4644
          %v4646 = vpop.f32.mrf.mxu0
          %v4647 = vadd.f32 0.0, %v4646
          %4648 = vmatmul.bf16.gmra.mxu0 %v4449
          %v4649 = vpop.f32.mrf.mxu0
          %v4650 = vadd.f32 0.0, %v4649
          %v4651 = vpop.f32.mrf.mxu0
          %v4652 = vadd.f32 0.0, %v4651
          %4653 = vmatmul.bf16.gmra.mxu0 %v4452
          %v4654 = vpop.f32.mrf.mxu0
          %v4655 = vadd.f32 0.0, %v4654
          %v4656 = vpop.f32.mrf.mxu0
          %v4657 = vadd.f32 0.0, %v4656
          %4658 = vmatmul.bf16.gmra.mxu0 %v4455
          %v4659 = vpop.f32.mrf.mxu0
          %v4660 = vadd.f32 0.0, %v4659
          %v4661 = vpop.f32.mrf.mxu0
          %v4662 = vadd.f32 0.0, %v4661
          %4663 = vmatmul.bf16.gmra.mxu0 %v4458
          %v4664 = vpop.f32.mrf.mxu0
          %v4665 = vadd.f32 0.0, %v4664
          %v4666 = vpop.f32.mrf.mxu0
          %v4667 = vadd.f32 0.0, %v4666
          %4668 = vmatmul.bf16.gmra.mxu0 %v4461
          %v4669 = vpop.f32.mrf.mxu0
          %v4670 = vadd.f32 0.0, %v4669
          %v4671 = vpop.f32.mrf.mxu0
          %v4672 = vadd.f32 0.0, %v4671
          %4673 = vmatmul.bf16.gmra.mxu0 %v4464
          %v4674 = vpop.f32.mrf.mxu0
          %v4675 = vadd.f32 0.0, %v4674
          %v4676 = vpop.f32.mrf.mxu0
          %v4677 = vadd.f32 0.0, %v4676
          %4678 = vmatmul.bf16.gmra.mxu0 %v4467
          %v4679 = vpop.f32.mrf.mxu0
          %v4680 = vadd.f32 0.0, %v4679
          %v4681 = vpop.f32.mrf.mxu0
          %v4682 = vadd.f32 0.0, %v4681
          %4683 = vmatmul.bf16.gmra.mxu0 %v4470
          %v4684 = vpop.f32.mrf.mxu0
          %v4685 = vadd.f32 0.0, %v4684
          %v4686 = vpop.f32.mrf.mxu0
          %v4687 = vadd.f32 0.0, %v4686
          %4688 = vmatmul.bf16.gmra.mxu0 %v4473
          %v4689 = vpop.f32.mrf.mxu0
          %v4690 = vadd.f32 0.0, %v4689
          %v4691 = vpop.f32.mrf.mxu0
          %v4692 = vadd.f32 0.0, %v4691
          %4693 = vmatmul.bf16.gmra.mxu0 %v4476
          %v4694 = vpop.f32.mrf.mxu0
          %v4695 = vadd.f32 0.0, %v4694
          %v4696 = vpop.f32.mrf.mxu0
          %v4697 = vadd.f32 0.0, %v4696
          %4698 = vmatmul.bf16.gmra.mxu0 %v4479
          %v4699 = vpop.f32.mrf.mxu0
          %v4700 = vadd.f32 0.0, %v4699
          %v4701 = vpop.f32.mrf.mxu0
          %v4702 = vadd.f32 0.0, %v4701
          %4703 = vmatmul.bf16.gmra.mxu0 %v4482
          %v4704 = vpop.f32.mrf.mxu0
          %v4705 = vadd.f32 0.0, %v4704
          %v4706 = vpop.f32.mrf.mxu0
          %4707 = vdwg.mxu0
          %vm4708 = vcmask 973824
          %v4709 = vsel %vm4708, %v4630, -inf
          %v4710 = vmax.f32 %v4542, %v4709
          %4711 = vmax.xlane.f32.xlu0 %v4710
          %v4712 = vpop.xlane.xlu0 %4711
          %v4713 = vsel %vm4708, %v4632, -inf
          %v4714 = vmax.f32 %v4544, %v4713
          %4715 = vmax.xlane.f32.xlu0 %v4714
          %v4716 = vpop.xlane.xlu0 %4715
          %v4717 = vsel %vm4708, %v4635, -inf
          %v4718 = vmax.f32 %v4547, %v4717
          %4719 = vmax.xlane.f32.xlu0 %v4718
          %v4720 = vpop.xlane.xlu0 %4719
          %v4721 = vsel %vm4708, %v4637, -inf
          %v4722 = vmax.f32 %v4549, %v4721
          %4723 = vmax.xlane.f32.xlu0 %v4722
          %v4724 = vpop.xlane.xlu0 %4723
          %v4725 = vsel %vm4708, %v4640, -inf
          %v4726 = vmax.f32 %v4552, %v4725
          %4727 = vmax.xlane.f32.xlu0 %v4726
          %v4728 = vpop.xlane.xlu0 %4727
          %v4729 = vsel %vm4708, %v4642, -inf
          %v4730 = vmax.f32 %v4554, %v4729
          %4731 = vmax.xlane.f32.xlu0 %v4730
          %v4732 = vpop.xlane.xlu0 %4731
          %v4733 = vsel %vm4708, %v4645, -inf
          %v4734 = vmax.f32 %v4557, %v4733
          %4735 = vmax.xlane.f32.xlu0 %v4734
          %v4736 = vpop.xlane.xlu0 %4735
          %v4737 = vsel %vm4708, %v4647, -inf
          %v4738 = vmax.f32 %v4559, %v4737
          %4739 = vmax.xlane.f32.xlu0 %v4738
          %v4740 = vpop.xlane.xlu0 %4739
          %v4741 = vsel %vm4708, %v4650, -inf
          %v4742 = vmax.f32 %v4562, %v4741
          %4743 = vmax.xlane.f32.xlu0 %v4742
          %v4744 = vpop.xlane.xlu0 %4743
          %v4745 = vsel %vm4708, %v4652, -inf
          %v4746 = vmax.f32 %v4564, %v4745
          %4747 = vmax.xlane.f32.xlu0 %v4746
          %v4748 = vpop.xlane.xlu0 %4747
          %v4749 = vsel %vm4708, %v4655, -inf
          %v4750 = vmax.f32 %v4567, %v4749
          %4751 = vmax.xlane.f32.xlu0 %v4750
          %v4752 = vpop.xlane.xlu0 %4751
          %v4753 = vsel %vm4708, %v4657, -inf
          %v4754 = vmax.f32 %v4569, %v4753
          %4755 = vmax.xlane.f32.xlu0 %v4754
          %v4756 = vpop.xlane.xlu0 %4755
          %v4757 = vsel %vm4708, %v4660, -inf
          %v4758 = vmax.f32 %v4572, %v4757
          %4759 = vmax.xlane.f32.xlu0 %v4758
          %v4760 = vpop.xlane.xlu0 %4759
          %v4761 = vsel %vm4708, %v4662, -inf
          %v4762 = vmax.f32 %v4574, %v4761
          %4763 = vmax.xlane.f32.xlu0 %v4762
          %v4764 = vpop.xlane.xlu0 %4763
          %v4765 = vsel %vm4708, %v4665, -inf
          %v4766 = vmax.f32 %v4577, %v4765
          %4767 = vmax.xlane.f32.xlu0 %v4766
          %v4768 = vpop.xlane.xlu0 %4767
          %v4769 = vsel %vm4708, %v4667, -inf
          %v4770 = vmax.f32 %v4579, %v4769
          %4771 = vmax.xlane.f32.xlu0 %v4770
          %v4772 = vpop.xlane.xlu0 %4771
          %v4773 = vsel %vm4708, %v4670, -inf
          %v4774 = vmax.f32 %v4582, %v4773
          %4775 = vmax.xlane.f32.xlu0 %v4774
          %v4776 = vpop.xlane.xlu0 %4775
          %v4777 = vsel %vm4708, %v4672, -inf
          %v4778 = vmax.f32 %v4584, %v4777
          %4779 = vmax.xlane.f32.xlu0 %v4778
          %v4780 = vpop.xlane.xlu0 %4779
          %v4781 = vsel %vm4708, %v4675, -inf
          %v4782 = vmax.f32 %v4587, %v4781
          %4783 = vmax.xlane.f32.xlu0 %v4782
          %v4784 = vpop.xlane.xlu0 %4783
          %v4785 = vsel %vm4708, %v4677, -inf
          %v4786 = vmax.f32 %v4589, %v4785
          %4787 = vmax.xlane.f32.xlu0 %v4786
          %v4788 = vpop.xlane.xlu0 %4787
          %v4789 = vsel %vm4708, %v4680, -inf
          %v4790 = vmax.f32 %v4592, %v4789
          %4791 = vmax.xlane.f32.xlu0 %v4790
          %v4792 = vpop.xlane.xlu0 %4791
          %v4793 = vsel %vm4708, %v4682, -inf
          %v4794 = vmax.f32 %v4594, %v4793
          %4795 = vmax.xlane.f32.xlu0 %v4794
          %v4796 = vpop.xlane.xlu0 %4795
          %v4797 = vsel %vm4708, %v4685, -inf
          %v4798 = vmax.f32 %v4597, %v4797
          %4799 = vmax.xlane.f32.xlu0 %v4798
          %v4800 = vpop.xlane.xlu0 %4799
          %v4801 = vsel %vm4708, %v4687, -inf
          %v4802 = vmax.f32 %v4599, %v4801
          %4803 = vmax.xlane.f32.xlu0 %v4802
          %v4804 = vpop.xlane.xlu0 %4803
          %v4805 = vsel %vm4708, %v4690, -inf
          %v4806 = vmax.f32 %v4602, %v4805
          %4807 = vmax.xlane.f32.xlu0 %v4806
          %v4808 = vpop.xlane.xlu0 %4807
          %v4809 = vsel %vm4708, %v4692, -inf
          %v4810 = vmax.f32 %v4604, %v4809
          %4811 = vmax.xlane.f32.xlu0 %v4810
          %v4812 = vpop.xlane.xlu0 %4811
          %v4813 = vsel %vm4708, %v4695, -inf
          %v4814 = vmax.f32 %v4607, %v4813
          %4815 = vmax.xlane.f32.xlu0 %v4814
          %v4816 = vpop.xlane.xlu0 %4815
          %v4817 = vsel %vm4708, %v4697, -inf
          %v4818 = vmax.f32 %v4609, %v4817
          %4819 = vmax.xlane.f32.xlu0 %v4818
          %v4820 = vpop.xlane.xlu0 %4819
          %v4821 = vsel %vm4708, %v4700, -inf
          %v4822 = vmax.f32 %v4612, %v4821
          %4823 = vmax.xlane.f32.xlu0 %v4822
          %v4824 = vpop.xlane.xlu0 %4823
          %v4825 = vsel %vm4708, %v4702, -inf
          %v4826 = vmax.f32 %v4614, %v4825
          %4827 = vmax.xlane.f32.xlu0 %v4826
          %v4828 = vpop.xlane.xlu0 %4827
          %vm4829 = vcmask 1046528
          %v4830 = vsel %vm4829, %v4617, -inf
          %vm4831 = vcmask 972800
          %v4832 = vsel %vm4831, %v4705, -inf
          %v4833 = vmax.f32 %v4830, %v4832
          %4834 = vmax.xlane.f32.xlu0 %v4833
          %v4835 = vpop.xlane.xlu0 %4834
          %v4836 = vsub.f32 %v4542, %v4712
          %v4837 = vsub.f32 %v4630, %v4712
          %v4838 = vsub.f32 %v4544, %v4716
          %v4839 = vsub.f32 %v4632, %v4716
          %v4840 = vsub.f32 %v4547, %v4720
          %v4841 = vsub.f32 %v4635, %v4720
          %v4842 = vsub.f32 %v4549, %v4724
          %v4843 = vsub.f32 %v4637, %v4724
          %v4844 = vsub.f32 %v4552, %v4728
          %v4845 = vsub.f32 %v4640, %v4728
          %v4846 = vsub.f32 %v4554, %v4732
          %v4847 = vsub.f32 %v4642, %v4732
          %v4848 = vsub.f32 %v4557, %v4736
          %v4849 = vsub.f32 %v4645, %v4736
          %v4850 = vsub.f32 %v4559, %v4740
          %v4851 = vsub.f32 %v4647, %v4740
          %v4852 = vsub.f32 %v4562, %v4744
          %v4853 = vsub.f32 %v4650, %v4744
          %v4854 = vsub.f32 %v4564, %v4748
          %v4855 = vsub.f32 %v4652, %v4748
          %v4856 = vsub.f32 %v4567, %v4752
          %v4857 = vsub.f32 %v4655, %v4752
          %v4858 = vsub.f32 %v4569, %v4756
          %v4859 = vsub.f32 %v4657, %v4756
          %v4860 = vsub.f32 %v4572, %v4760
          %v4861 = vsub.f32 %v4660, %v4760
          %v4862 = vsub.f32 %v4574, %v4764
          %v4863 = vsub.f32 %v4662, %v4764
          %v4864 = vsub.f32 %v4577, %v4768
          %v4865 = vsub.f32 %v4665, %v4768
          %v4866 = vsub.f32 %v4579, %v4772
          %v4867 = vsub.f32 %v4667, %v4772
          %v4868 = vsub.f32 %v4582, %v4776
          %v4869 = vsub.f32 %v4670, %v4776
          %v4870 = vsub.f32 %v4584, %v4780
          %v4871 = vsub.f32 %v4672, %v4780
          %v4872 = vsub.f32 %v4587, %v4784
          %v4873 = vsub.f32 %v4675, %v4784
          %v4874 = vsub.f32 %v4589, %v4788
          %v4875 = vsub.f32 %v4677, %v4788
          %v4876 = vsub.f32 %v4592, %v4792
          %v4877 = vsub.f32 %v4680, %v4792
          %v4878 = vsub.f32 %v4594, %v4796
          %v4879 = vsub.f32 %v4682, %v4796
          %v4880 = vsub.f32 %v4597, %v4800
          %v4881 = vsub.f32 %v4685, %v4800
          %v4882 = vsub.f32 %v4599, %v4804
          %v4883 = vsub.f32 %v4687, %v4804
          %v4884 = vsub.f32 %v4602, %v4808
          %v4885 = vsub.f32 %v4690, %v4808
          %v4886 = vsub.f32 %v4604, %v4812
          %v4887 = vsub.f32 %v4692, %v4812
          %v4888 = vsub.f32 %v4607, %v4816
          %v4889 = vsub.f32 %v4695, %v4816
          %v4890 = vsub.f32 %v4609, %v4820
          %v4891 = vsub.f32 %v4697, %v4820
          %v4892 = vsub.f32 %v4612, %v4824
          %v4893 = vsub.f32 %v4700, %v4824
          %v4894 = vsub.f32 %v4614, %v4828
          %v4895 = vsub.f32 %v4702, %v4828
          %v4896 = vsub.f32 %v4617, %v4835
          %v4897 = vsub.f32 %v4705, %v4835
          %v4898 = vmul.f32 %v4836, 1.442695
          %v4899 = vpow.pop %v4898
          %v4900 = vmul.f32 %v4837, 1.442695
          %v4901 = vpow.pop %v4900
          %v4902 = vmul.f32 %v4838, 1.442695
          %v4903 = vpow.pop %v4902
          %v4904 = vmul.f32 %v4839, 1.442695
          %v4905 = vpow.pop %v4904
          %v4906 = vmul.f32 %v4840, 1.442695
          %v4907 = vpow.pop %v4906
          %v4908 = vmul.f32 %v4841, 1.442695
          %v4909 = vpow.pop %v4908
          %v4910 = vmul.f32 %v4842, 1.442695
          %v4911 = vpow.pop %v4910
          %v4912 = vmul.f32 %v4843, 1.442695
          %v4913 = vpow.pop %v4912
          %v4914 = vmul.f32 %v4844, 1.442695
          %v4915 = vpow.pop %v4914
          %v4916 = vmul.f32 %v4845, 1.442695
          %v4917 = vpow.pop %v4916
          %v4918 = vmul.f32 %v4846, 1.442695
          %v4919 = vpow.pop %v4918
          %v4920 = vmul.f32 %v4847, 1.442695
          %v4921 = vpow.pop %v4920
          %v4922 = vmul.f32 %v4848, 1.442695
          %v4923 = vpow.pop %v4922
          %v4924 = vmul.f32 %v4849, 1.442695
          %v4925 = vpow.pop %v4924
          %v4926 = vmul.f32 %v4850, 1.442695
          %v4927 = vpow.pop %v4926
          %v4928 = vmul.f32 %v4851, 1.442695
          %v4929 = vpow.pop %v4928
          %v4930 = vmul.f32 %v4852, 1.442695
          %v4931 = vpow.pop %v4930
          %v4932 = vmul.f32 %v4853, 1.442695
          %v4933 = vpow.pop %v4932
          %v4934 = vmul.f32 %v4854, 1.442695
          %v4935 = vpow.pop %v4934
          %v4936 = vmul.f32 %v4855, 1.442695
          %v4937 = vpow.pop %v4936
          %v4938 = vmul.f32 %v4856, 1.442695
          %v4939 = vpow.pop %v4938
          %v4940 = vmul.f32 %v4857, 1.442695
          %v4941 = vpow.pop %v4940
          %v4942 = vmul.f32 %v4858, 1.442695
          %v4943 = vpow.pop %v4942
          %v4944 = vmul.f32 %v4859, 1.442695
          %v4945 = vpow.pop %v4944
          %v4946 = vmul.f32 %v4860, 1.442695
          %v4947 = vpow.pop %v4946
          %v4948 = vmul.f32 %v4861, 1.442695
          %v4949 = vpow.pop %v4948
          %v4950 = vmul.f32 %v4862, 1.442695
          %v4951 = vpow.pop %v4950
          %v4952 = vmul.f32 %v4863, 1.442695
          %v4953 = vpow.pop %v4952
          %v4954 = vmul.f32 %v4864, 1.442695
          %v4955 = vpow.pop %v4954
          %v4956 = vmul.f32 %v4865, 1.442695
          %v4957 = vpow.pop %v4956
          %v4958 = vmul.f32 %v4866, 1.442695
          %v4959 = vpow.pop %v4958
          %v4960 = vmul.f32 %v4867, 1.442695
          %v4961 = vpow.pop %v4960
          %v4962 = vmul.f32 %v4868, 1.442695
          %v4963 = vpow.pop %v4962
          %v4964 = vmul.f32 %v4869, 1.442695
          %v4965 = vpow.pop %v4964
          %v4966 = vmul.f32 %v4870, 1.442695
          %v4967 = vpow.pop %v4966
          %v4968 = vmul.f32 %v4871, 1.442695
          %v4969 = vpow.pop %v4968
          %v4970 = vmul.f32 %v4872, 1.442695
          %v4971 = vpow.pop %v4970
          %v4972 = vmul.f32 %v4873, 1.442695
          %v4973 = vpow.pop %v4972
          %v4974 = vmul.f32 %v4874, 1.442695
          %v4975 = vpow.pop %v4974
          %v4976 = vmul.f32 %v4875, 1.442695
          %v4977 = vpow.pop %v4976
          %v4978 = vmul.f32 %v4876, 1.442695
          %v4979 = vpow.pop %v4978
          %v4980 = vmul.f32 %v4877, 1.442695
          %v4981 = vpow.pop %v4980
          %v4982 = vmul.f32 %v4878, 1.442695
          %v4983 = vpow.pop %v4982
          %v4984 = vmul.f32 %v4879, 1.442695
          %v4985 = vpow.pop %v4984
          %v4986 = vmul.f32 %v4880, 1.442695
          %v4987 = vpow.pop %v4986
          %v4988 = vmul.f32 %v4881, 1.442695
          %v4989 = vpow.pop %v4988
          %v4990 = vmul.f32 %v4882, 1.442695
          %v4991 = vpow.pop %v4990
          %v4992 = vmul.f32 %v4883, 1.442695
          %v4993 = vpow.pop %v4992
          %v4994 = vmul.f32 %v4884, 1.442695
          %v4995 = vpow.pop %v4994
          %v4996 = vmul.f32 %v4885, 1.442695
          %v4997 = vpow.pop %v4996
          %v4998 = vmul.f32 %v4886, 1.442695
          %v4999 = vpow.pop %v4998
          %v5000 = vmul.f32 %v4887, 1.442695
          %v5001 = vpow.pop %v5000
          %v5002 = vmul.f32 %v4888, 1.442695
          %v5003 = vpow.pop %v5002
          %v5004 = vmul.f32 %v4889, 1.442695
          %v5005 = vpow.pop %v5004
          %v5006 = vmul.f32 %v4890, 1.442695
          %v5007 = vpow.pop %v5006
          %v5008 = vmul.f32 %v4891, 1.442695
          %v5009 = vpow.pop %v5008
          %v5010 = vmul.f32 %v4892, 1.442695
          %v5011 = vpow.pop %v5010
          %v5012 = vmul.f32 %v4893, 1.442695
          %v5013 = vpow.pop %v5012
          %v5014 = vmul.f32 %v4894, 1.442695
          %v5015 = vpow.pop %v5014
          %v5016 = vmul.f32 %v4895, 1.442695
          %v5017 = vpow.pop %v5016
          %v5018 = vmul.f32 %v4896, 1.442695
          %v5019 = vpow.pop %v5018
          %v5020 = vmul.f32 %v4897, 1.442695
          %v5021 = vpow.pop %v5020
          %v5022 = vsel %vm4708, %v4901, 0.0
          %v5023 = vadd.f32 %v4899, %v5022
          %5024 = vadd.xlane.f32.xlu0 %v5023
          %v5025 = vpop.xlane.xlu0 %5024
          %v5026 = vsel %vm4708, %v4905, 0.0
          %v5027 = vadd.f32 %v4903, %v5026
          %5028 = vadd.xlane.f32.xlu0 %v5027
          %v5029 = vpop.xlane.xlu0 %5028
          %v5030 = vsel %vm4708, %v4909, 0.0
          %v5031 = vadd.f32 %v4907, %v5030
          %5032 = vadd.xlane.f32.xlu0 %v5031
          %v5033 = vpop.xlane.xlu0 %5032
          %v5034 = vsel %vm4708, %v4913, 0.0
          %v5035 = vadd.f32 %v4911, %v5034
          %5036 = vadd.xlane.f32.xlu0 %v5035
          %v5037 = vpop.xlane.xlu0 %5036
          %v5038 = vsel %vm4708, %v4917, 0.0
          %v5039 = vadd.f32 %v4915, %v5038
          %5040 = vadd.xlane.f32.xlu0 %v5039
          %v5041 = vpop.xlane.xlu0 %5040
          %v5042 = vsel %vm4708, %v4921, 0.0
          %v5043 = vadd.f32 %v4919, %v5042
          %5044 = vadd.xlane.f32.xlu0 %v5043
          %v5045 = vpop.xlane.xlu0 %5044
          %v5046 = vsel %vm4708, %v4925, 0.0
          %v5047 = vadd.f32 %v4923, %v5046
          %5048 = vadd.xlane.f32.xlu0 %v5047
          %v5049 = vpop.xlane.xlu0 %5048
          %v5050 = vsel %vm4708, %v4929, 0.0
          %v5051 = vadd.f32 %v4927, %v5050
          %5052 = vadd.xlane.f32.xlu0 %v5051
          %v5053 = vpop.xlane.xlu0 %5052
          %v5054 = vsel %vm4708, %v4933, 0.0
          %v5055 = vadd.f32 %v4931, %v5054
          %5056 = vadd.xlane.f32.xlu0 %v5055
          %v5057 = vpop.xlane.xlu0 %5056
          %v5058 = vsel %vm4708, %v4937, 0.0
          %v5059 = vadd.f32 %v4935, %v5058
          %5060 = vadd.xlane.f32.xlu0 %v5059
          %v5061 = vpop.xlane.xlu0 %5060
          %v5062 = vsel %vm4708, %v4941, 0.0
          %v5063 = vadd.f32 %v4939, %v5062
          %5064 = vadd.xlane.f32.xlu0 %v5063
          %v5065 = vpop.xlane.xlu0 %5064
          %v5066 = vsel %vm4708, %v4945, 0.0
          %v5067 = vadd.f32 %v4943, %v5066
          %5068 = vadd.xlane.f32.xlu0 %v5067
          %v5069 = vpop.xlane.xlu0 %5068
          %v5070 = vsel %vm4708, %v4949, 0.0
          %v5071 = vadd.f32 %v4947, %v5070
          %5072 = vadd.xlane.f32.xlu0 %v5071
          %v5073 = vpop.xlane.xlu0 %5072
          %v5074 = vsel %vm4708, %v4953, 0.0
          %v5075 = vadd.f32 %v4951, %v5074
          %5076 = vadd.xlane.f32.xlu0 %v5075
          %v5077 = vpop.xlane.xlu0 %5076
          %v5078 = vsel %vm4708, %v4957, 0.0
          %v5079 = vadd.f32 %v4955, %v5078
          %5080 = vadd.xlane.f32.xlu0 %v5079
          %v5081 = vpop.xlane.xlu0 %5080
          %v5082 = vsel %vm4708, %v4961, 0.0
          %v5083 = vadd.f32 %v4959, %v5082
          %5084 = vadd.xlane.f32.xlu0 %v5083
          %v5085 = vpop.xlane.xlu0 %5084
          %v5086 = vsel %vm4708, %v4965, 0.0
          %v5087 = vadd.f32 %v4963, %v5086
          %5088 = vadd.xlane.f32.xlu0 %v5087
          %v5089 = vpop.xlane.xlu0 %5088
          %v5090 = vsel %vm4708, %v4969, 0.0
          %v5091 = vadd.f32 %v4967, %v5090
          %5092 = vadd.xlane.f32.xlu0 %v5091
          %v5093 = vpop.xlane.xlu0 %5092
          %v5094 = vsel %vm4708, %v4973, 0.0
          %v5095 = vadd.f32 %v4971, %v5094
          %5096 = vadd.xlane.f32.xlu0 %v5095
          %v5097 = vpop.xlane.xlu0 %5096
          %v5098 = vsel %vm4708, %v4977, 0.0
          %v5099 = vadd.f32 %v4975, %v5098
          %5100 = vadd.xlane.f32.xlu0 %v5099
          %v5101 = vpop.xlane.xlu0 %5100
          %v5102 = vsel %vm4708, %v4981, 0.0
          %v5103 = vadd.f32 %v4979, %v5102
          %5104 = vadd.xlane.f32.xlu0 %v5103
          %v5105 = vpop.xlane.xlu0 %5104
          %v5106 = vsel %vm4708, %v4985, 0.0
          %v5107 = vadd.f32 %v4983, %v5106
          %5108 = vadd.xlane.f32.xlu0 %v5107
          %v5109 = vpop.xlane.xlu0 %5108
          %v5110 = vsel %vm4708, %v4989, 0.0
          %v5111 = vadd.f32 %v4987, %v5110
          %5112 = vadd.xlane.f32.xlu0 %v5111
          %v5113 = vpop.xlane.xlu0 %5112
          %v5114 = vsel %vm4708, %v4993, 0.0
          %v5115 = vadd.f32 %v4991, %v5114
          %5116 = vadd.xlane.f32.xlu0 %v5115
          %v5117 = vpop.xlane.xlu0 %5116
          %v5118 = vsel %vm4708, %v4997, 0.0
          %v5119 = vadd.f32 %v4995, %v5118
          %5120 = vadd.xlane.f32.xlu0 %v5119
          %v5121 = vpop.xlane.xlu0 %5120
          %v5122 = vsel %vm4708, %v5001, 0.0
          %v5123 = vadd.f32 %v4999, %v5122
          %5124 = vadd.xlane.f32.xlu0 %v5123
          %v5125 = vpop.xlane.xlu0 %5124
          %v5126 = vsel %vm4708, %v5005, 0.0
          %v5127 = vadd.f32 %v5003, %v5126
          %5128 = vadd.xlane.f32.xlu0 %v5127
          %v5129 = vpop.xlane.xlu0 %5128
          %v5130 = vsel %vm4708, %v5009, 0.0
          %v5131 = vadd.f32 %v5007, %v5130
          %5132 = vadd.xlane.f32.xlu0 %v5131
          %v5133 = vpop.xlane.xlu0 %5132
          %v5134 = vsel %vm4708, %v5013, 0.0
          %v5135 = vadd.f32 %v5011, %v5134
          %5136 = vadd.xlane.f32.xlu0 %v5135
          %v5137 = vpop.xlane.xlu0 %5136
          %v5138 = vsel %vm4708, %v5017, 0.0
          %v5139 = vadd.f32 %v5015, %v5138
          %5140 = vadd.xlane.f32.xlu0 %v5139
          %v5141 = vpop.xlane.xlu0 %5140
          %v5142 = vsel %vm4829, %v5019, 0.0
          %v5143 = vsel %vm4831, %v5021, 0.0
          %v5144 = vadd.f32 %v5142, %v5143
          %5145 = vadd.xlane.f32.xlu0 %v5144
          %v5146 = vpop.xlane.xlu0 %5145
          %v5147 = vrcp.pop %v5025
          %v5148 = vrcp.pop %v5029
          %v5149 = vrcp.pop %v5033
          %v5150 = vrcp.pop %v5037
          %v5151 = vrcp.pop %v5041
          %v5152 = vrcp.pop %v5045
          %v5153 = vrcp.pop %v5049
          %v5154 = vrcp.pop %v5053
          %v5155 = vrcp.pop %v5057
          %v5156 = vrcp.pop %v5061
          %v5157 = vrcp.pop %v5065
          %v5158 = vrcp.pop %v5069
          %v5159 = vrcp.pop %v5073
          %v5160 = vrcp.pop %v5077
          %v5161 = vrcp.pop %v5081
          %v5162 = vrcp.pop %v5085
          %v5163 = vrcp.pop %v5089
          %v5164 = vrcp.pop %v5093
          %v5165 = vrcp.pop %v5097
          %v5166 = vrcp.pop %v5101
          %v5167 = vrcp.pop %v5105
          %v5168 = vrcp.pop %v5109
          %v5169 = vrcp.pop %v5113
          %v5170 = vrcp.pop %v5117
          %v5171 = vrcp.pop %v5121
          %v5172 = vrcp.pop %v5125
          %v5173 = vrcp.pop %v5129
          %v5174 = vrcp.pop %v5133
          %v5175 = vrcp.pop %v5137
          %v5176 = vrcp.pop %v5141
          %v5177 = vrcp.pop %v5146
          %v5178 = vpack.c.bf16 %v4903, %v4899
          %v5179 = vpack.c.bf16 %v4905, %v4901
          %v5180 = vpack.c.bf16 %v4911, %v4907
          %v5181 = vpack.c.bf16 %v4913, %v4909
          %v5182 = vpack.c.bf16 %v4919, %v4915
          %v5183 = vpack.c.bf16 %v4921, %v4917
          %v5184 = vpack.c.bf16 %v4927, %v4923
          %v5185 = vpack.c.bf16 %v4929, %v4925
          %v5186 = vpack.c.bf16 %v4935, %v4931
          %v5187 = vpack.c.bf16 %v4937, %v4933
          %v5188 = vpack.c.bf16 %v4943, %v4939
          %v5189 = vpack.c.bf16 %v4945, %v4941
          %v5190 = vpack.c.bf16 %v4951, %v4947
          %v5191 = vpack.c.bf16 %v4953, %v4949
          %v5192 = vpack.c.bf16 %v4959, %v4955
          %v5193 = vpack.c.bf16 %v4961, %v4957
          %v5194 = vpack.c.bf16 %v4967, %v4963
          %v5195 = vpack.c.bf16 %v4969, %v4965
          %v5196 = vpack.c.bf16 %v4975, %v4971
          %v5197 = vpack.c.bf16 %v4977, %v4973
          %v5198 = vpack.c.bf16 %v4983, %v4979
          %v5199 = vpack.c.bf16 %v4985, %v4981
          %v5200 = vpack.c.bf16 %v4991, %v4987
          %v5201 = vpack.c.bf16 %v4993, %v4989
          %v5202 = vpack.c.bf16 %v4999, %v4995
          %v5203 = vpack.c.bf16 %v5001, %v4997
          %v5204 = vpack.c.bf16 %v5007, %v5003
          %v5205 = vpack.c.bf16 %v5009, %v5005
          %v5206 = vpack.c.bf16 %v5015, %v5011
          %v5207 = vpack.c.bf16 %v5017, %v5013
          %v5208 = vpack.c.bf16 %v5019, %v5019
          %v5209 = vpack.c.bf16 %v5021, %v5021
          %v5241 = vunpack.c.l.b16 %v4294
          %v5242 = vunpack.c.l.b16 %v4295
          %v5243 = vunpack.c.l.b16 %v4296
          %v5244 = vunpack.c.l.b16 %v4297
          %v5245 = vunpack.c.l.b16 %v4298
          %v5246 = vunpack.c.l.b16 %v4299
          %v5247 = vunpack.c.l.b16 %v4300
          %v5248 = vunpack.c.l.b16 %v4301
          %v5249 = vunpack.c.l.b16 %v4302
          %v5250 = vunpack.c.l.b16 %v4303
          %v5251 = vunpack.c.l.b16 %v4304
          %v5252 = vunpack.c.l.b16 %v4305
          %v5253 = vunpack.c.l.b16 %v4306
          %v5254 = vunpack.c.l.b16 %v4307
          %v5255 = vunpack.c.l.b16 %v4308
          %v5256 = vunpack.c.l.b16 %v4309
          %v5257 = vunpack.c.l.b16 %v4310
          %v5258 = vunpack.c.l.b16 %v4311
          %v5259 = vunpack.c.l.b16 %v4312
          %v5260 = vunpack.c.l.b16 %v4313
          %v5261 = vunpack.c.l.b16 %v4314
          %v5262 = vunpack.c.l.b16 %v4315
          %v5263 = vunpack.c.l.b16 %v4316
          %v5264 = vunpack.c.l.b16 %v4317
          %v5265 = vunpack.c.l.b16 %v4318
          %v5266 = vunpack.c.l.b16 %v4319
          %v5267 = vunpack.c.l.b16 %v4320
          %v5268 = vunpack.c.l.b16 %v4321
          %v5269 = vunpack.c.l.b16 %v4322
          %v5270 = vunpack.c.l.b16 %v4323
          %v5271 = vunpack.c.l.b16 %v4324
          %v5272 = vpack.c.b16 %v5242, %v5241
          %v5273 = vpack.c.b16 %v5244, %v5243
          %v5274 = vpack.c.b16 %v5246, %v5245
          %v5275 = vpack.c.b16 %v5248, %v5247
          %v5276 = vpack.c.b16 %v5250, %v5249
          %v5277 = vpack.c.b16 %v5252, %v5251
          %v5278 = vpack.c.b16 %v5254, %v5253
          %v5279 = vpack.c.b16 %v5256, %v5255
          %v5280 = vpack.c.b16 %v5258, %v5257
          %v5281 = vpack.c.b16 %v5260, %v5259
          %v5282 = vpack.c.b16 %v5262, %v5261
          %v5283 = vpack.c.b16 %v5264, %v5263
          %v5284 = vpack.c.b16 %v5266, %v5265
          %v5285 = vpack.c.b16 %v5268, %v5267
          %v5286 = vpack.c.b16 %v5270, %v5269
          %v5287 = vpack.c.b16 %v5271, %v5271
          %5288 = vrot.lane.b32.xlu0 %v5272, 112
          %v5289 = vpop.permute.xlu0 %5288
          %5290 = vrot.lane.b32.xlu0 %v5273, 112
          %v5291 = vpop.permute.xlu0 %5290
          %5292 = vrot.lane.b32.xlu0 %v5274, 112
          %v5293 = vpop.permute.xlu0 %5292
          %5294 = vrot.lane.b32.xlu0 %v5275, 112
          %v5295 = vpop.permute.xlu0 %5294
          %5296 = vrot.lane.b32.xlu0 %v5276, 112
          %v5297 = vpop.permute.xlu0 %5296
          %5298 = vrot.lane.b32.xlu0 %v5277, 112
          %v5299 = vpop.permute.xlu0 %5298
          %5300 = vrot.lane.b32.xlu0 %v5278, 112
          %v5301 = vpop.permute.xlu0 %5300
          %5302 = vrot.lane.b32.xlu0 %v5279, 112
          %v5303 = vpop.permute.xlu0 %5302
          %5304 = vrot.lane.b32.xlu0 %v5280, 112
          %v5305 = vpop.permute.xlu0 %5304
          %5306 = vrot.lane.b32.xlu0 %v5281, 112
          %v5307 = vpop.permute.xlu0 %5306
          %5308 = vrot.lane.b32.xlu0 %v5282, 112
          %v5309 = vpop.permute.xlu0 %5308
          %5310 = vrot.lane.b32.xlu0 %v5283, 112
          %v5311 = vpop.permute.xlu0 %5310
          %5312 = vrot.lane.b32.xlu0 %v5284, 112
          %v5313 = vpop.permute.xlu0 %5312
          %5314 = vrot.lane.b32.xlu0 %v5285, 112
          %v5315 = vpop.permute.xlu0 %5314
          %5316 = vrot.lane.b32.xlu0 %v5286, 112
          %v5317 = vpop.permute.xlu0 %5316
          %5318 = vrot.lane.b32.xlu0 %v5287, 112
          %v5319 = vpop.permute.xlu0 %5318
          %v5336 = vsel %vm4708, %v5179, 0
          %v5339 = vsel %vm4708, %v5181, 0
          %v5342 = vsel %vm4708, %v5183, 0
          %v5345 = vsel %vm4708, %v5185, 0
          %v5348 = vsel %vm4708, %v5187, 0
          %v5351 = vsel %vm4708, %v5189, 0
          %v5354 = vsel %vm4708, %v5191, 0
          %v5357 = vsel %vm4708, %v5193, 0
          %v5360 = vsel %vm4708, %v5195, 0
          %v5363 = vsel %vm4708, %v5197, 0
          %v5366 = vsel %vm4708, %v5199, 0
          %v5369 = vsel %vm4708, %v5201, 0
          %v5372 = vsel %vm4708, %v5203, 0
          %v5375 = vsel %vm4708, %v5205, 0
          %v5378 = vsel %vm4708, %v5207, 0
          %v5381 = vsel %vm4708, %v5209, 0
          %vm5383 = vcmask 1042432
          %vm5384 = vcmask 1043456
          %v5385 = vsel %vm5383, 4294967295, 65535
          %v5386 = vsel %vm5384, %v5385, 0
          %v5388 = vand.u32 %v5319, %v5386
          %5390 = vmatpush.bf16.msra.mxu0 %v5303
          %5391 = vmatpush.bf16.msra.mxu0 %v5301
          %5392 = vmatpush.bf16.msra.mxu0 %v5299
          %5393 = vmatpush.bf16.msra.mxu0 %v5297
          %5394 = vmatpush.bf16.msra.mxu0 %v5295
          %5395 = vmatpush.bf16.msra.mxu0 %v5293
          %5396 = vmatpush.bf16.msra.mxu0 %v5291
          %5397 = vmatpush.bf16.msra.mxu0 %v5289
          %5398 = vmatmul.bf16.gmra.mxu0 %v5178
          %v5399 = vpop.f32.mrf.mxu0
          %v5400 = vadd.f32 0.0, %v5399
          %v5401 = vpop.f32.mrf.mxu0
          %v5402 = vadd.f32 0.0, %v5401
          %5403 = vmatmul.bf16.gmra.mxu0 %v5180
          %v5404 = vpop.f32.mrf.mxu0
          %v5405 = vadd.f32 0.0, %v5404
          %v5406 = vpop.f32.mrf.mxu0
          %v5407 = vadd.f32 0.0, %v5406
          %5408 = vmatmul.bf16.gmra.mxu0 %v5182
          %v5409 = vpop.f32.mrf.mxu0
          %v5410 = vadd.f32 0.0, %v5409
          %v5411 = vpop.f32.mrf.mxu0
          %v5412 = vadd.f32 0.0, %v5411
          %5413 = vmatmul.bf16.gmra.mxu0 %v5184
          %v5414 = vpop.f32.mrf.mxu0
          %v5415 = vadd.f32 0.0, %v5414
          %v5416 = vpop.f32.mrf.mxu0
          %v5417 = vadd.f32 0.0, %v5416
          %5418 = vmatmul.bf16.gmra.mxu0 %v5186
          %v5419 = vpop.f32.mrf.mxu0
          %v5420 = vadd.f32 0.0, %v5419
          %v5421 = vpop.f32.mrf.mxu0
          %v5422 = vadd.f32 0.0, %v5421
          %5423 = vmatmul.bf16.gmra.mxu0 %v5188
          %v5424 = vpop.f32.mrf.mxu0
          %v5425 = vadd.f32 0.0, %v5424
          %v5426 = vpop.f32.mrf.mxu0
          %v5427 = vadd.f32 0.0, %v5426
          %5428 = vmatmul.bf16.gmra.mxu0 %v5190
          %v5429 = vpop.f32.mrf.mxu0
          %v5430 = vadd.f32 0.0, %v5429
          %v5431 = vpop.f32.mrf.mxu0
          %v5432 = vadd.f32 0.0, %v5431
          %5433 = vmatmul.bf16.gmra.mxu0 %v5192
          %v5434 = vpop.f32.mrf.mxu0
          %v5435 = vadd.f32 0.0, %v5434
          %v5436 = vpop.f32.mrf.mxu0
          %v5437 = vadd.f32 0.0, %v5436
          %5438 = vmatmul.bf16.gmra.mxu0 %v5194
          %v5439 = vpop.f32.mrf.mxu0
          %v5440 = vadd.f32 0.0, %v5439
          %v5441 = vpop.f32.mrf.mxu0
          %v5442 = vadd.f32 0.0, %v5441
          %5443 = vmatmul.bf16.gmra.mxu0 %v5196
          %v5444 = vpop.f32.mrf.mxu0
          %v5445 = vadd.f32 0.0, %v5444
          %v5446 = vpop.f32.mrf.mxu0
          %v5447 = vadd.f32 0.0, %v5446
          %5448 = vmatmul.bf16.gmra.mxu0 %v5198
          %v5449 = vpop.f32.mrf.mxu0
          %v5450 = vadd.f32 0.0, %v5449
          %v5451 = vpop.f32.mrf.mxu0
          %v5452 = vadd.f32 0.0, %v5451
          %5453 = vmatmul.bf16.gmra.mxu0 %v5200
          %v5454 = vpop.f32.mrf.mxu0
          %v5455 = vadd.f32 0.0, %v5454
          %v5456 = vpop.f32.mrf.mxu0
          %v5457 = vadd.f32 0.0, %v5456
          %5458 = vmatmul.bf16.gmra.mxu0 %v5202
          %v5459 = vpop.f32.mrf.mxu0
          %v5460 = vadd.f32 0.0, %v5459
          %v5461 = vpop.f32.mrf.mxu0
          %v5462 = vadd.f32 0.0, %v5461
          %5463 = vmatmul.bf16.gmra.mxu0 %v5204
          %v5464 = vpop.f32.mrf.mxu0
          %v5465 = vadd.f32 0.0, %v5464
          %v5466 = vpop.f32.mrf.mxu0
          %v5467 = vadd.f32 0.0, %v5466
          %5468 = vmatmul.bf16.gmra.mxu0 %v5206
          %v5469 = vpop.f32.mrf.mxu0
          %v5470 = vadd.f32 0.0, %v5469
          %v5471 = vpop.f32.mrf.mxu0
          %v5472 = vadd.f32 0.0, %v5471
          %5473 = vmatmul.bf16.gmra.mxu0 %v5208
          %v5474 = vpop.f32.mrf.mxu0
          %v5475 = vadd.f32 0.0, %v5474
          %v5476 = vpop.f32.mrf.mxu0
          %5477 = vdwg.mxu0
          %5478 = vmatpush.bf16.msra.mxu0 %v5388
          %5479 = vmatpush.bf16.msra.mxu0 %v5317
          %5480 = vmatpush.bf16.msra.mxu0 %v5315
          %5481 = vmatpush.bf16.msra.mxu0 %v5313
          %5482 = vmatpush.bf16.msra.mxu0 %v5311
          %5483 = vmatpush.bf16.msra.mxu0 %v5309
          %5484 = vmatpush.bf16.msra.mxu0 %v5307
          %5485 = vmatpush.bf16.msra.mxu0 %v5305
          %5486 = vmatmul.bf16.gmra.mxu0 %v5336
          %v5487 = vpop.f32.mrf.mxu0
          %v5488 = vadd.f32 %v5400, %v5487
          %v5489 = vpop.f32.mrf.mxu0
          %v5490 = vadd.f32 %v5402, %v5489
          %5491 = vmatmul.bf16.gmra.mxu0 %v5339
          %v5492 = vpop.f32.mrf.mxu0
          %v5493 = vadd.f32 %v5405, %v5492
          %v5494 = vpop.f32.mrf.mxu0
          %v5495 = vadd.f32 %v5407, %v5494
          %5496 = vmatmul.bf16.gmra.mxu0 %v5342
          %v5497 = vpop.f32.mrf.mxu0
          %v5498 = vadd.f32 %v5410, %v5497
          %v5499 = vpop.f32.mrf.mxu0
          %v5500 = vadd.f32 %v5412, %v5499
          %5501 = vmatmul.bf16.gmra.mxu0 %v5345
          %v5502 = vpop.f32.mrf.mxu0
          %v5503 = vadd.f32 %v5415, %v5502
          %v5504 = vpop.f32.mrf.mxu0
          %v5505 = vadd.f32 %v5417, %v5504
          %5506 = vmatmul.bf16.gmra.mxu0 %v5348
          %v5507 = vpop.f32.mrf.mxu0
          %v5508 = vadd.f32 %v5420, %v5507
          %v5509 = vpop.f32.mrf.mxu0
          %v5510 = vadd.f32 %v5422, %v5509
          %5511 = vmatmul.bf16.gmra.mxu0 %v5351
          %v5512 = vpop.f32.mrf.mxu0
          %v5513 = vadd.f32 %v5425, %v5512
          %v5514 = vpop.f32.mrf.mxu0
          %v5515 = vadd.f32 %v5427, %v5514
          %5516 = vmatmul.bf16.gmra.mxu0 %v5354
          %v5517 = vpop.f32.mrf.mxu0
          %v5518 = vadd.f32 %v5430, %v5517
          %v5519 = vpop.f32.mrf.mxu0
          %v5520 = vadd.f32 %v5432, %v5519
          %5521 = vmatmul.bf16.gmra.mxu0 %v5357
          %v5522 = vpop.f32.mrf.mxu0
          %v5523 = vadd.f32 %v5435, %v5522
          %v5524 = vpop.f32.mrf.mxu0
          %v5525 = vadd.f32 %v5437, %v5524
          %5526 = vmatmul.bf16.gmra.mxu0 %v5360
          %v5527 = vpop.f32.mrf.mxu0
          %v5528 = vadd.f32 %v5440, %v5527
          %v5529 = vpop.f32.mrf.mxu0
          %v5530 = vadd.f32 %v5442, %v5529
          %5531 = vmatmul.bf16.gmra.mxu0 %v5363
          %v5532 = vpop.f32.mrf.mxu0
          %v5533 = vadd.f32 %v5445, %v5532
          %v5534 = vpop.f32.mrf.mxu0
          %v5535 = vadd.f32 %v5447, %v5534
          %5536 = vmatmul.bf16.gmra.mxu0 %v5366
          %v5537 = vpop.f32.mrf.mxu0
          %v5538 = vadd.f32 %v5450, %v5537
          %v5539 = vpop.f32.mrf.mxu0
          %v5540 = vadd.f32 %v5452, %v5539
          %5541 = vmatmul.bf16.gmra.mxu0 %v5369
          %v5542 = vpop.f32.mrf.mxu0
          %v5543 = vadd.f32 %v5455, %v5542
          %v5544 = vpop.f32.mrf.mxu0
          %v5545 = vadd.f32 %v5457, %v5544
          %5546 = vmatmul.bf16.gmra.mxu0 %v5372
          %v5547 = vpop.f32.mrf.mxu0
          %v5548 = vadd.f32 %v5460, %v5547
          %v5549 = vpop.f32.mrf.mxu0
          %v5550 = vadd.f32 %v5462, %v5549
          %5551 = vmatmul.bf16.gmra.mxu0 %v5375
          %v5552 = vpop.f32.mrf.mxu0
          %v5553 = vadd.f32 %v5465, %v5552
          %v5554 = vpop.f32.mrf.mxu0
          %v5555 = vadd.f32 %v5467, %v5554
          %5556 = vmatmul.bf16.gmra.mxu0 %v5378
          %v5557 = vpop.f32.mrf.mxu0
          %v5558 = vadd.f32 %v5470, %v5557
          %v5559 = vpop.f32.mrf.mxu0
          %v5560 = vadd.f32 %v5472, %v5559
          %5561 = vmatmul.bf16.gmra.mxu0 %v5381
          %v5562 = vpop.f32.mrf.mxu0
          %v5563 = vadd.f32 %v5475, %v5562
          %v5564 = vpop.f32.mrf.mxu0
          %5565 = vdwg.mxu0
          %v5566 = vmul.f32 %v5488, %v5147
          %v5567 = vmul.f32 %v5490, %v5148
          %v5568 = vmul.f32 %v5493, %v5149
          %v5569 = vmul.f32 %v5495, %v5150
          %v5570 = vmul.f32 %v5498, %v5151
          %v5571 = vmul.f32 %v5500, %v5152
          %v5572 = vmul.f32 %v5503, %v5153
          %v5573 = vmul.f32 %v5505, %v5154
          %v5574 = vmul.f32 %v5508, %v5155
          %v5575 = vmul.f32 %v5510, %v5156
          %v5576 = vmul.f32 %v5513, %v5157
          %v5577 = vmul.f32 %v5515, %v5158
          %v5578 = vmul.f32 %v5518, %v5159
          %v5579 = vmul.f32 %v5520, %v5160
          %v5580 = vmul.f32 %v5523, %v5161
          %v5581 = vmul.f32 %v5525, %v5162
          %v5582 = vmul.f32 %v5528, %v5163
          %v5583 = vmul.f32 %v5530, %v5164
          %v5584 = vmul.f32 %v5533, %v5165
          %v5585 = vmul.f32 %v5535, %v5166
          %v5586 = vmul.f32 %v5538, %v5167
          %v5587 = vmul.f32 %v5540, %v5168
          %v5588 = vmul.f32 %v5543, %v5169
          %v5589 = vmul.f32 %v5545, %v5170
          %v5590 = vmul.f32 %v5548, %v5171
          %v5591 = vmul.f32 %v5550, %v5172
          %v5592 = vmul.f32 %v5553, %v5173
          %v5593 = vmul.f32 %v5555, %v5174
          %v5594 = vmul.f32 %v5558, %v5175
          %v5595 = vmul.f32 %v5560, %v5176
          %v5596 = vmul.f32 %v5563, %v5177
          %v5597 = vadd.f32 %v5566, 0.0
          %v5598 = vadd.f32 %v5567, 0.0
          %v5599 = vadd.f32 %v5568, 0.0
          %v5600 = vadd.f32 %v5569, 0.0
          %v5601 = vadd.f32 %v5570, 0.0
          %v5602 = vadd.f32 %v5571, 0.0
          %v5603 = vadd.f32 %v5572, 0.0
          %v5604 = vadd.f32 %v5573, 0.0
          %v5605 = vadd.f32 %v5574, 0.0
          %v5606 = vadd.f32 %v5575, 0.0
          %v5607 = vadd.f32 %v5576, 0.0
          %v5608 = vadd.f32 %v5577, 0.0
          %v5609 = vadd.f32 %v5578, 0.0
          %v5610 = vadd.f32 %v5579, 0.0
          %v5611 = vadd.f32 %v5580, 0.0
          %v5612 = vadd.f32 %v5581, 0.0
          %v5613 = vadd.f32 %v5582, 0.0
          %v5614 = vadd.f32 %v5583, 0.0
          %v5615 = vadd.f32 %v5584, 0.0
          %v5616 = vadd.f32 %v5585, 0.0
          %v5617 = vadd.f32 %v5586, 0.0
          %v5618 = vadd.f32 %v5587, 0.0
          %v5619 = vadd.f32 %v5588, 0.0
          %v5620 = vadd.f32 %v5589, 0.0
          %v5621 = vadd.f32 %v5590, 0.0
          %v5622 = vadd.f32 %v5591, 0.0
          %v5623 = vadd.f32 %v5592, 0.0
          %v5624 = vadd.f32 %v5593, 0.0
          %v5625 = vadd.f32 %v5594, 0.0
          %v5626 = vadd.f32 %v5595, 0.0
          %v5627 = vadd.f32 %v5596, 0.0
          %5628 = vrot.lane.b32.xlu0 %v4387, 126
          %v5629 = vpop.permute.xlu0 %5628
          %5630 = vrot.lane.b32.xlu0 %v4388, 126
          %v5631 = vpop.permute.xlu0 %5630
          %5632 = vrot.lane.b32.xlu0 %v4389, 126
          %v5633 = vpop.permute.xlu0 %5632
          %5634 = vrot.lane.b32.xlu0 %v4390, 126
          %v5635 = vpop.permute.xlu0 %5634
          %5636 = vrot.lane.b32.xlu0 %v4391, 126
          %v5637 = vpop.permute.xlu0 %5636
          %5638 = vrot.lane.b32.xlu0 %v4392, 126
          %v5639 = vpop.permute.xlu0 %5638
          %5640 = vrot.lane.b32.xlu0 %v4393, 126
          %v5641 = vpop.permute.xlu0 %5640
          %5642 = vrot.lane.b32.xlu0 %v4394, 126
          %v5643 = vpop.permute.xlu0 %5642
          %5644 = vrot.lane.b32.xlu0 %v4395, 126
          %v5645 = vpop.permute.xlu0 %5644
          %5646 = vrot.lane.b32.xlu0 %v4396, 126
          %v5647 = vpop.permute.xlu0 %5646
          %5648 = vrot.lane.b32.xlu0 %v4397, 126
          %v5649 = vpop.permute.xlu0 %5648
          %5650 = vrot.lane.b32.xlu0 %v4398, 126
          %v5651 = vpop.permute.xlu0 %5650
          %5652 = vrot.lane.b32.xlu0 %v4399, 126
          %v5653 = vpop.permute.xlu0 %5652
          %5654 = vrot.lane.b32.xlu0 %v4400, 126
          %v5655 = vpop.permute.xlu0 %5654
          %5656 = vrot.lane.b32.xlu0 %v4401, 126
          %v5657 = vpop.permute.xlu0 %5656
          %5658 = vrot.lane.b32.xlu0 %v4402, 126
          %v5659 = vpop.permute.xlu0 %5658
          %5660 = vrot.lane.b32.xlu0 %v4387, 118
          %v5661 = vpop.permute.xlu0 %5660
          %5662 = vrot.lane.b32.xlu0 %v4388, 118
          %v5663 = vpop.permute.xlu0 %5662
          %5664 = vrot.lane.b32.xlu0 %v4389, 118
          %v5665 = vpop.permute.xlu0 %5664
          %5666 = vrot.lane.b32.xlu0 %v4390, 118
          %v5667 = vpop.permute.xlu0 %5666
          %5668 = vrot.lane.b32.xlu0 %v4391, 118
          %v5669 = vpop.permute.xlu0 %5668
          %5670 = vrot.lane.b32.xlu0 %v4392, 118
          %v5671 = vpop.permute.xlu0 %5670
          %5672 = vrot.lane.b32.xlu0 %v4393, 118
          %v5673 = vpop.permute.xlu0 %5672
          %5674 = vrot.lane.b32.xlu0 %v4394, 118
          %v5675 = vpop.permute.xlu0 %5674
          %5676 = vrot.lane.b32.xlu0 %v4395, 118
          %v5677 = vpop.permute.xlu0 %5676
          %5678 = vrot.lane.b32.xlu0 %v4396, 118
          %v5679 = vpop.permute.xlu0 %5678
          %5680 = vrot.lane.b32.xlu0 %v4397, 118
          %v5681 = vpop.permute.xlu0 %5680
          %5682 = vrot.lane.b32.xlu0 %v4398, 118
          %v5683 = vpop.permute.xlu0 %5682
          %5684 = vrot.lane.b32.xlu0 %v4399, 118
          %v5685 = vpop.permute.xlu0 %5684
          %5686 = vrot.lane.b32.xlu0 %v4400, 118
          %v5687 = vpop.permute.xlu0 %5686
          %5688 = vrot.lane.b32.xlu0 %v4401, 118
          %v5689 = vpop.permute.xlu0 %5688
          %5690 = vrot.lane.b32.xlu0 %v4402, 118
          %v5691 = vpop.permute.xlu0 %5690
          %v5693 = vsel %vm4435, %v5629, 0
          %v5696 = vsel %vm4435, %v5631, 0
          %v5699 = vsel %vm4435, %v5633, 0
          %v5702 = vsel %vm4435, %v5635, 0
          %v5705 = vsel %vm4435, %v5637, 0
          %v5708 = vsel %vm4435, %v5639, 0
          %v5711 = vsel %vm4435, %v5641, 0
          %v5714 = vsel %vm4435, %v5643, 0
          %v5717 = vsel %vm4435, %v5645, 0
          %v5720 = vsel %vm4435, %v5647, 0
          %v5723 = vsel %vm4435, %v5649, 0
          %v5726 = vsel %vm4435, %v5651, 0
          %v5729 = vsel %vm4435, %v5653, 0
          %v5732 = vsel %vm4435, %v5655, 0
          %v5735 = vsel %vm4435, %v5657, 0
          %v5738 = vsel %vm4435, %v5659, 0
          %v5741 = vsel %vm4435, %v5661, 0
          %v5744 = vsel %vm4435, %v5663, 0
          %v5747 = vsel %vm4435, %v5665, 0
          %v5750 = vsel %vm4435, %v5667, 0
          %v5753 = vsel %vm4435, %v5669, 0
          %v5756 = vsel %vm4435, %v5671, 0
          %v5759 = vsel %vm4435, %v5673, 0
          %v5762 = vsel %vm4435, %v5675, 0
          %v5765 = vsel %vm4435, %v5677, 0
          %v5768 = vsel %vm4435, %v5679, 0
          %v5771 = vsel %vm4435, %v5681, 0
          %v5774 = vsel %vm4435, %v5683, 0
          %v5777 = vsel %vm4435, %v5685, 0
          %v5780 = vsel %vm4435, %v5687, 0
          %v5783 = vsel %vm4435, %v5689, 0
          %v5786 = vsel %vm4435, %v5691, 0
          %5788 = vmatpush.bf16.xpose.msra.mxu0 %v5762
          %5789 = vmatpush.bf16.xpose.msra.mxu0 %v5759
          %5790 = vmatpush.bf16.xpose.msra.mxu0 %v5756
          %5791 = vmatpush.bf16.xpose.msra.mxu0 %v5753
          %5792 = vmatpush.bf16.xpose.msra.mxu0 %v5750
          %5793 = vmatpush.bf16.xpose.msra.mxu0 %v5747
          %5794 = vmatpush.bf16.xpose.msra.mxu0 %v5744
          %5795 = vmatpush.bf16.xpose.msra.mxu0 %v5741
          %5796 = vmatmul.bf16.gmra.mxu0 %v5693
          %v5797 = vpop.f32.mrf.mxu0
          %v5798 = vadd.f32 0.0, %v5797
          %v5799 = vpop.f32.mrf.mxu0
          %v5800 = vadd.f32 0.0, %v5799
          %5801 = vmatmul.bf16.gmra.mxu0 %v5696
          %v5802 = vpop.f32.mrf.mxu0
          %v5803 = vadd.f32 0.0, %v5802
          %v5804 = vpop.f32.mrf.mxu0
          %v5805 = vadd.f32 0.0, %v5804
          %5806 = vmatmul.bf16.gmra.mxu0 %v5699
          %v5807 = vpop.f32.mrf.mxu0
          %v5808 = vadd.f32 0.0, %v5807
          %v5809 = vpop.f32.mrf.mxu0
          %v5810 = vadd.f32 0.0, %v5809
          %5811 = vmatmul.bf16.gmra.mxu0 %v5702
          %v5812 = vpop.f32.mrf.mxu0
          %v5813 = vadd.f32 0.0, %v5812
          %v5814 = vpop.f32.mrf.mxu0
          %v5815 = vadd.f32 0.0, %v5814
          %5816 = vmatmul.bf16.gmra.mxu0 %v5705
          %v5817 = vpop.f32.mrf.mxu0
          %v5818 = vadd.f32 0.0, %v5817
          %v5819 = vpop.f32.mrf.mxu0
          %v5820 = vadd.f32 0.0, %v5819
          %5821 = vmatmul.bf16.gmra.mxu0 %v5708
          %v5822 = vpop.f32.mrf.mxu0
          %v5823 = vadd.f32 0.0, %v5822
          %v5824 = vpop.f32.mrf.mxu0
          %v5825 = vadd.f32 0.0, %v5824
          %5826 = vmatmul.bf16.gmra.mxu0 %v5711
          %v5827 = vpop.f32.mrf.mxu0
          %v5828 = vadd.f32 0.0, %v5827
          %v5829 = vpop.f32.mrf.mxu0
          %v5830 = vadd.f32 0.0, %v5829
          %5831 = vmatmul.bf16.gmra.mxu0 %v5714
          %v5832 = vpop.f32.mrf.mxu0
          %v5833 = vadd.f32 0.0, %v5832
          %v5834 = vpop.f32.mrf.mxu0
          %v5835 = vadd.f32 0.0, %v5834
          %5836 = vmatmul.bf16.gmra.mxu0 %v5717
          %v5837 = vpop.f32.mrf.mxu0
          %v5838 = vadd.f32 0.0, %v5837
          %v5839 = vpop.f32.mrf.mxu0
          %v5840 = vadd.f32 0.0, %v5839
          %5841 = vmatmul.bf16.gmra.mxu0 %v5720
          %v5842 = vpop.f32.mrf.mxu0
          %v5843 = vadd.f32 0.0, %v5842
          %v5844 = vpop.f32.mrf.mxu0
          %v5845 = vadd.f32 0.0, %v5844
          %5846 = vmatmul.bf16.gmra.mxu0 %v5723
          %v5847 = vpop.f32.mrf.mxu0
          %v5848 = vadd.f32 0.0, %v5847
          %v5849 = vpop.f32.mrf.mxu0
          %v5850 = vadd.f32 0.0, %v5849
          %5851 = vmatmul.bf16.gmra.mxu0 %v5726
          %v5852 = vpop.f32.mrf.mxu0
          %v5853 = vadd.f32 0.0, %v5852
          %v5854 = vpop.f32.mrf.mxu0
          %v5855 = vadd.f32 0.0, %v5854
          %5856 = vmatmul.bf16.gmra.mxu0 %v5729
          %v5857 = vpop.f32.mrf.mxu0
          %v5858 = vadd.f32 0.0, %v5857
          %v5859 = vpop.f32.mrf.mxu0
          %v5860 = vadd.f32 0.0, %v5859
          %5861 = vmatmul.bf16.gmra.mxu0 %v5732
          %v5862 = vpop.f32.mrf.mxu0
          %v5863 = vadd.f32 0.0, %v5862
          %v5864 = vpop.f32.mrf.mxu0
          %v5865 = vadd.f32 0.0, %v5864
          %5866 = vmatmul.bf16.gmra.mxu0 %v5735
          %v5867 = vpop.f32.mrf.mxu0
          %v5868 = vadd.f32 0.0, %v5867
          %v5869 = vpop.f32.mrf.mxu0
          %v5870 = vadd.f32 0.0, %v5869
          %5871 = vmatmul.bf16.gmra.mxu0 %v5738
          %v5872 = vpop.f32.mrf.mxu0
          %v5873 = vadd.f32 0.0, %v5872
          %v5874 = vpop.f32.mrf.mxu0
          %5875 = vdwg.mxu0
          %5876 = vmatpush.bf16.xpose.msra.mxu0 %v5786
          %5877 = vmatpush.bf16.xpose.msra.mxu0 %v5783
          %5878 = vmatpush.bf16.xpose.msra.mxu0 %v5780
          %5879 = vmatpush.bf16.xpose.msra.mxu0 %v5777
          %5880 = vmatpush.bf16.xpose.msra.mxu0 %v5774
          %5881 = vmatpush.bf16.xpose.msra.mxu0 %v5771
          %5882 = vmatpush.bf16.xpose.msra.mxu0 %v5768
          %5883 = vmatpush.bf16.xpose.msra.mxu0 %v5765
          %5884 = vmatmul.bf16.gmra.mxu0 %v5693
          %v5885 = vpop.f32.mrf.mxu0
          %v5886 = vadd.f32 0.0, %v5885
          %v5887 = vpop.f32.mrf.mxu0
          %v5888 = vadd.f32 0.0, %v5887
          %5889 = vmatmul.bf16.gmra.mxu0 %v5696
          %v5890 = vpop.f32.mrf.mxu0
          %v5891 = vadd.f32 0.0, %v5890
          %v5892 = vpop.f32.mrf.mxu0
          %v5893 = vadd.f32 0.0, %v5892
          %5894 = vmatmul.bf16.gmra.mxu0 %v5699
          %v5895 = vpop.f32.mrf.mxu0
          %v5896 = vadd.f32 0.0, %v5895
          %v5897 = vpop.f32.mrf.mxu0
          %v5898 = vadd.f32 0.0, %v5897
          %5899 = vmatmul.bf16.gmra.mxu0 %v5702
          %v5900 = vpop.f32.mrf.mxu0
          %v5901 = vadd.f32 0.0, %v5900
          %v5902 = vpop.f32.mrf.mxu0
          %v5903 = vadd.f32 0.0, %v5902
          %5904 = vmatmul.bf16.gmra.mxu0 %v5705
          %v5905 = vpop.f32.mrf.mxu0
          %v5906 = vadd.f32 0.0, %v5905
          %v5907 = vpop.f32.mrf.mxu0
          %v5908 = vadd.f32 0.0, %v5907
          %5909 = vmatmul.bf16.gmra.mxu0 %v5708
          %v5910 = vpop.f32.mrf.mxu0
          %v5911 = vadd.f32 0.0, %v5910
          %v5912 = vpop.f32.mrf.mxu0
          %v5913 = vadd.f32 0.0, %v5912
          %5914 = vmatmul.bf16.gmra.mxu0 %v5711
          %v5915 = vpop.f32.mrf.mxu0
          %v5916 = vadd.f32 0.0, %v5915
          %v5917 = vpop.f32.mrf.mxu0
          %v5918 = vadd.f32 0.0, %v5917
          %5919 = vmatmul.bf16.gmra.mxu0 %v5714
          %v5920 = vpop.f32.mrf.mxu0
          %v5921 = vadd.f32 0.0, %v5920
          %v5922 = vpop.f32.mrf.mxu0
          %v5923 = vadd.f32 0.0, %v5922
          %5924 = vmatmul.bf16.gmra.mxu0 %v5717
          %v5925 = vpop.f32.mrf.mxu0
          %v5926 = vadd.f32 0.0, %v5925
          %v5927 = vpop.f32.mrf.mxu0
          %v5928 = vadd.f32 0.0, %v5927
          %5929 = vmatmul.bf16.gmra.mxu0 %v5720
          %v5930 = vpop.f32.mrf.mxu0
          %v5931 = vadd.f32 0.0, %v5930
          %v5932 = vpop.f32.mrf.mxu0
          %v5933 = vadd.f32 0.0, %v5932
          %5934 = vmatmul.bf16.gmra.mxu0 %v5723
          %v5935 = vpop.f32.mrf.mxu0
          %v5936 = vadd.f32 0.0, %v5935
          %v5937 = vpop.f32.mrf.mxu0
          %v5938 = vadd.f32 0.0, %v5937
          %5939 = vmatmul.bf16.gmra.mxu0 %v5726
          %v5940 = vpop.f32.mrf.mxu0
          %v5941 = vadd.f32 0.0, %v5940
          %v5942 = vpop.f32.mrf.mxu0
          %v5943 = vadd.f32 0.0, %v5942
          %5944 = vmatmul.bf16.gmra.mxu0 %v5729
          %v5945 = vpop.f32.mrf.mxu0
          %v5946 = vadd.f32 0.0, %v5945
          %v5947 = vpop.f32.mrf.mxu0
          %v5948 = vadd.f32 0.0, %v5947
          %5949 = vmatmul.bf16.gmra.mxu0 %v5732
          %v5950 = vpop.f32.mrf.mxu0
          %v5951 = vadd.f32 0.0, %v5950
          %v5952 = vpop.f32.mrf.mxu0
          %v5953 = vadd.f32 0.0, %v5952
          %5954 = vmatmul.bf16.gmra.mxu0 %v5735
          %v5955 = vpop.f32.mrf.mxu0
          %v5956 = vadd.f32 0.0, %v5955
          %v5957 = vpop.f32.mrf.mxu0
          %v5958 = vadd.f32 0.0, %v5957
          %5959 = vmatmul.bf16.gmra.mxu0 %v5738
          %v5960 = vpop.f32.mrf.mxu0
          %v5961 = vadd.f32 0.0, %v5960
          %v5962 = vpop.f32.mrf.mxu0
          %5963 = vdwg.mxu0
          %v5964 = vsel %vm4708, %v5886, -inf
          %v5965 = vmax.f32 %v5798, %v5964
          %5966 = vmax.xlane.f32.xlu0 %v5965
          %v5967 = vpop.xlane.xlu0 %5966
          %v5968 = vsel %vm4708, %v5888, -inf
          %v5969 = vmax.f32 %v5800, %v5968
          %5970 = vmax.xlane.f32.xlu0 %v5969
          %v5971 = vpop.xlane.xlu0 %5970
          %v5972 = vsel %vm4708, %v5891, -inf
          %v5973 = vmax.f32 %v5803, %v5972
          %5974 = vmax.xlane.f32.xlu0 %v5973
          %v5975 = vpop.xlane.xlu0 %5974
          %v5976 = vsel %vm4708, %v5893, -inf
          %v5977 = vmax.f32 %v5805, %v5976
          %5978 = vmax.xlane.f32.xlu0 %v5977
          %v5979 = vpop.xlane.xlu0 %5978
          %v5980 = vsel %vm4708, %v5896, -inf
          %v5981 = vmax.f32 %v5808, %v5980
          %5982 = vmax.xlane.f32.xlu0 %v5981
          %v5983 = vpop.xlane.xlu0 %5982
          %v5984 = vsel %vm4708, %v5898, -inf
          %v5985 = vmax.f32 %v5810, %v5984
          %5986 = vmax.xlane.f32.xlu0 %v5985
          %v5987 = vpop.xlane.xlu0 %5986
          %v5988 = vsel %vm4708, %v5901, -inf
          %v5989 = vmax.f32 %v5813, %v5988
          %5990 = vmax.xlane.f32.xlu0 %v5989
          %v5991 = vpop.xlane.xlu0 %5990
          %v5992 = vsel %vm4708, %v5903, -inf
          %v5993 = vmax.f32 %v5815, %v5992
          %5994 = vmax.xlane.f32.xlu0 %v5993
          %v5995 = vpop.xlane.xlu0 %5994
          %v5996 = vsel %vm4708, %v5906, -inf
          %v5997 = vmax.f32 %v5818, %v5996
          %5998 = vmax.xlane.f32.xlu0 %v5997
          %v5999 = vpop.xlane.xlu0 %5998
          %v6000 = vsel %vm4708, %v5908, -inf
          %v6001 = vmax.f32 %v5820, %v6000
          %6002 = vmax.xlane.f32.xlu0 %v6001
          %v6003 = vpop.xlane.xlu0 %6002
          %v6004 = vsel %vm4708, %v5911, -inf
          %v6005 = vmax.f32 %v5823, %v6004
          %6006 = vmax.xlane.f32.xlu0 %v6005
          %v6007 = vpop.xlane.xlu0 %6006
          %v6008 = vsel %vm4708, %v5913, -inf
          %v6009 = vmax.f32 %v5825, %v6008
          %6010 = vmax.xlane.f32.xlu0 %v6009
          %v6011 = vpop.xlane.xlu0 %6010
          %v6012 = vsel %vm4708, %v5916, -inf
          %v6013 = vmax.f32 %v5828, %v6012
          %6014 = vmax.xlane.f32.xlu0 %v6013
          %v6015 = vpop.xlane.xlu0 %6014
          %v6016 = vsel %vm4708, %v5918, -inf
          %v6017 = vmax.f32 %v5830, %v6016
          %6018 = vmax.xlane.f32.xlu0 %v6017
          %v6019 = vpop.xlane.xlu0 %6018
          %v6020 = vsel %vm4708, %v5921, -inf
          %v6021 = vmax.f32 %v5833, %v6020
          %6022 = vmax.xlane.f32.xlu0 %v6021
          %v6023 = vpop.xlane.xlu0 %6022
          %v6024 = vsel %vm4708, %v5923, -inf
          %v6025 = vmax.f32 %v5835, %v6024
          %6026 = vmax.xlane.f32.xlu0 %v6025
          %v6027 = vpop.xlane.xlu0 %6026
          %v6028 = vsel %vm4708, %v5926, -inf
          %v6029 = vmax.f32 %v5838, %v6028
          %6030 = vmax.xlane.f32.xlu0 %v6029
          %v6031 = vpop.xlane.xlu0 %6030
          %v6032 = vsel %vm4708, %v5928, -inf
          %v6033 = vmax.f32 %v5840, %v6032
          %6034 = vmax.xlane.f32.xlu0 %v6033
          %v6035 = vpop.xlane.xlu0 %6034
          %v6036 = vsel %vm4708, %v5931, -inf
          %v6037 = vmax.f32 %v5843, %v6036
          %6038 = vmax.xlane.f32.xlu0 %v6037
          %v6039 = vpop.xlane.xlu0 %6038
          %v6040 = vsel %vm4708, %v5933, -inf
          %v6041 = vmax.f32 %v5845, %v6040
          %6042 = vmax.xlane.f32.xlu0 %v6041
          %v6043 = vpop.xlane.xlu0 %6042
          %v6044 = vsel %vm4708, %v5936, -inf
          %v6045 = vmax.f32 %v5848, %v6044
          %6046 = vmax.xlane.f32.xlu0 %v6045
          %v6047 = vpop.xlane.xlu0 %6046
          %v6048 = vsel %vm4708, %v5938, -inf
          %v6049 = vmax.f32 %v5850, %v6048
          %6050 = vmax.xlane.f32.xlu0 %v6049
          %v6051 = vpop.xlane.xlu0 %6050
          %v6052 = vsel %vm4708, %v5941, -inf
          %v6053 = vmax.f32 %v5853, %v6052
          %6054 = vmax.xlane.f32.xlu0 %v6053
          %v6055 = vpop.xlane.xlu0 %6054
          %v6056 = vsel %vm4708, %v5943, -inf
          %v6057 = vmax.f32 %v5855, %v6056
          %6058 = vmax.xlane.f32.xlu0 %v6057
          %v6059 = vpop.xlane.xlu0 %6058
          %v6060 = vsel %vm4708, %v5946, -inf
          %v6061 = vmax.f32 %v5858, %v6060
          %6062 = vmax.xlane.f32.xlu0 %v6061
          %v6063 = vpop.xlane.xlu0 %6062
          %v6064 = vsel %vm4708, %v5948, -inf
          %v6065 = vmax.f32 %v5860, %v6064
          %6066 = vmax.xlane.f32.xlu0 %v6065
          %v6067 = vpop.xlane.xlu0 %6066
          %v6068 = vsel %vm4708, %v5951, -inf
          %v6069 = vmax.f32 %v5863, %v6068
          %6070 = vmax.xlane.f32.xlu0 %v6069
          %v6071 = vpop.xlane.xlu0 %6070
          %v6072 = vsel %vm4708, %v5953, -inf
          %v6073 = vmax.f32 %v5865, %v6072
          %6074 = vmax.xlane.f32.xlu0 %v6073
          %v6075 = vpop.xlane.xlu0 %6074
          %v6076 = vsel %vm4708, %v5956, -inf
          %v6077 = vmax.f32 %v5868, %v6076
          %6078 = vmax.xlane.f32.xlu0 %v6077
          %v6079 = vpop.xlane.xlu0 %6078
          %v6080 = vsel %vm4708, %v5958, -inf
          %v6081 = vmax.f32 %v5870, %v6080
          %6082 = vmax.xlane.f32.xlu0 %v6081
          %v6083 = vpop.xlane.xlu0 %6082
          %v6084 = vsel %vm4829, %v5873, -inf
          %v6085 = vsel %vm4831, %v5961, -inf
          %v6086 = vmax.f32 %v6084, %v6085
          %6087 = vmax.xlane.f32.xlu0 %v6086
          %v6088 = vpop.xlane.xlu0 %6087
          %v6089 = vsub.f32 %v5798, %v5967
          %v6090 = vsub.f32 %v5886, %v5967
          %v6091 = vsub.f32 %v5800, %v5971
          %v6092 = vsub.f32 %v5888, %v5971
          %v6093 = vsub.f32 %v5803, %v5975
          %v6094 = vsub.f32 %v5891, %v5975
          %v6095 = vsub.f32 %v5805, %v5979
          %v6096 = vsub.f32 %v5893, %v5979
          %v6097 = vsub.f32 %v5808, %v5983
          %v6098 = vsub.f32 %v5896, %v5983
          %v6099 = vsub.f32 %v5810, %v5987
          %v6100 = vsub.f32 %v5898, %v5987
          %v6101 = vsub.f32 %v5813, %v5991
          %v6102 = vsub.f32 %v5901, %v5991
          %v6103 = vsub.f32 %v5815, %v5995
          %v6104 = vsub.f32 %v5903, %v5995
          %v6105 = vsub.f32 %v5818, %v5999
          %v6106 = vsub.f32 %v5906, %v5999
          %v6107 = vsub.f32 %v5820, %v6003
          %v6108 = vsub.f32 %v5908, %v6003
          %v6109 = vsub.f32 %v5823, %v6007
          %v6110 = vsub.f32 %v5911, %v6007
          %v6111 = vsub.f32 %v5825, %v6011
          %v6112 = vsub.f32 %v5913, %v6011
          %v6113 = vsub.f32 %v5828, %v6015
          %v6114 = vsub.f32 %v5916, %v6015
          %v6115 = vsub.f32 %v5830, %v6019
          %v6116 = vsub.f32 %v5918, %v6019
          %v6117 = vsub.f32 %v5833, %v6023
          %v6118 = vsub.f32 %v5921, %v6023
          %v6119 = vsub.f32 %v5835, %v6027
          %v6120 = vsub.f32 %v5923, %v6027
          %v6121 = vsub.f32 %v5838, %v6031
          %v6122 = vsub.f32 %v5926, %v6031
          %v6123 = vsub.f32 %v5840, %v6035
          %v6124 = vsub.f32 %v5928, %v6035
          %v6125 = vsub.f32 %v5843, %v6039
          %v6126 = vsub.f32 %v5931, %v6039
          %v6127 = vsub.f32 %v5845, %v6043
          %v6128 = vsub.f32 %v5933, %v6043
          %v6129 = vsub.f32 %v5848, %v6047
          %v6130 = vsub.f32 %v5936, %v6047
          %v6131 = vsub.f32 %v5850, %v6051
          %v6132 = vsub.f32 %v5938, %v6051
          %v6133 = vsub.f32 %v5853, %v6055
          %v6134 = vsub.f32 %v5941, %v6055
          %v6135 = vsub.f32 %v5855, %v6059
          %v6136 = vsub.f32 %v5943, %v6059
          %v6137 = vsub.f32 %v5858, %v6063
          %v6138 = vsub.f32 %v5946, %v6063
          %v6139 = vsub.f32 %v5860, %v6067
          %v6140 = vsub.f32 %v5948, %v6067
          %v6141 = vsub.f32 %v5863, %v6071
          %v6142 = vsub.f32 %v5951, %v6071
          %v6143 = vsub.f32 %v5865, %v6075
          %v6144 = vsub.f32 %v5953, %v6075
          %v6145 = vsub.f32 %v5868, %v6079
          %v6146 = vsub.f32 %v5956, %v6079
          %v6147 = vsub.f32 %v5870, %v6083
          %v6148 = vsub.f32 %v5958, %v6083
          %v6149 = vsub.f32 %v5873, %v6088
          %v6150 = vsub.f32 %v5961, %v6088
          %v6151 = vmul.f32 %v6089, 1.442695
          %v6152 = vpow.pop %v6151
          %v6153 = vmul.f32 %v6090, 1.442695
          %v6154 = vpow.pop %v6153
          %v6155 = vmul.f32 %v6091, 1.442695
          %v6156 = vpow.pop %v6155
          %v6157 = vmul.f32 %v6092, 1.442695
          %v6158 = vpow.pop %v6157
          %v6159 = vmul.f32 %v6093, 1.442695
          %v6160 = vpow.pop %v6159
          %v6161 = vmul.f32 %v6094, 1.442695
          %v6162 = vpow.pop %v6161
          %v6163 = vmul.f32 %v6095, 1.442695
          %v6164 = vpow.pop %v6163
          %v6165 = vmul.f32 %v6096, 1.442695
          %v6166 = vpow.pop %v6165
          %v6167 = vmul.f32 %v6097, 1.442695
          %v6168 = vpow.pop %v6167
          %v6169 = vmul.f32 %v6098, 1.442695
          %v6170 = vpow.pop %v6169
          %v6171 = vmul.f32 %v6099, 1.442695
          %v6172 = vpow.pop %v6171
          %v6173 = vmul.f32 %v6100, 1.442695
          %v6174 = vpow.pop %v6173
          %v6175 = vmul.f32 %v6101, 1.442695
          %v6176 = vpow.pop %v6175
          %v6177 = vmul.f32 %v6102, 1.442695
          %v6178 = vpow.pop %v6177
          %v6179 = vmul.f32 %v6103, 1.442695
          %v6180 = vpow.pop %v6179
          %v6181 = vmul.f32 %v6104, 1.442695
          %v6182 = vpow.pop %v6181
          %v6183 = vmul.f32 %v6105, 1.442695
          %v6184 = vpow.pop %v6183
          %v6185 = vmul.f32 %v6106, 1.442695
          %v6186 = vpow.pop %v6185
          %v6187 = vmul.f32 %v6107, 1.442695
          %v6188 = vpow.pop %v6187
          %v6189 = vmul.f32 %v6108, 1.442695
          %v6190 = vpow.pop %v6189
          %v6191 = vmul.f32 %v6109, 1.442695
          %v6192 = vpow.pop %v6191
          %v6193 = vmul.f32 %v6110, 1.442695
          %v6194 = vpow.pop %v6193
          %v6195 = vmul.f32 %v6111, 1.442695
          %v6196 = vpow.pop %v6195
          %v6197 = vmul.f32 %v6112, 1.442695
          %v6198 = vpow.pop %v6197
          %v6199 = vmul.f32 %v6113, 1.442695
          %v6200 = vpow.pop %v6199
          %v6201 = vmul.f32 %v6114, 1.442695
          %v6202 = vpow.pop %v6201
          %v6203 = vmul.f32 %v6115, 1.442695
          %v6204 = vpow.pop %v6203
          %v6205 = vmul.f32 %v6116, 1.442695
          %v6206 = vpow.pop %v6205
          %v6207 = vmul.f32 %v6117, 1.442695
          %v6208 = vpow.pop %v6207
          %v6209 = vmul.f32 %v6118, 1.442695
          %v6210 = vpow.pop %v6209
          %v6211 = vmul.f32 %v6119, 1.442695
          %v6212 = vpow.pop %v6211
          %v6213 = vmul.f32 %v6120, 1.442695
          %v6214 = vpow.pop %v6213
          %v6215 = vmul.f32 %v6121, 1.442695
          %v6216 = vpow.pop %v6215
          %v6217 = vmul.f32 %v6122, 1.442695
          %v6218 = vpow.pop %v6217
          %v6219 = vmul.f32 %v6123, 1.442695
          %v6220 = vpow.pop %v6219
          %v6221 = vmul.f32 %v6124, 1.442695
          %v6222 = vpow.pop %v6221
          %v6223 = vmul.f32 %v6125, 1.442695
          %v6224 = vpow.pop %v6223
          %v6225 = vmul.f32 %v6126, 1.442695
          %v6226 = vpow.pop %v6225
          %v6227 = vmul.f32 %v6127, 1.442695
          %v6228 = vpow.pop %v6227
          %v6229 = vmul.f32 %v6128, 1.442695
          %v6230 = vpow.pop %v6229
          %v6231 = vmul.f32 %v6129, 1.442695
          %v6232 = vpow.pop %v6231
          %v6233 = vmul.f32 %v6130, 1.442695
          %v6234 = vpow.pop %v6233
          %v6235 = vmul.f32 %v6131, 1.442695
          %v6236 = vpow.pop %v6235
          %v6237 = vmul.f32 %v6132, 1.442695
          %v6238 = vpow.pop %v6237
          %v6239 = vmul.f32 %v6133, 1.442695
          %v6240 = vpow.pop %v6239
          %v6241 = vmul.f32 %v6134, 1.442695
          %v6242 = vpow.pop %v6241
          %v6243 = vmul.f32 %v6135, 1.442695
          %v6244 = vpow.pop %v6243
          %v6245 = vmul.f32 %v6136, 1.442695
          %v6246 = vpow.pop %v6245
          %v6247 = vmul.f32 %v6137, 1.442695
          %v6248 = vpow.pop %v6247
          %v6249 = vmul.f32 %v6138, 1.442695
          %v6250 = vpow.pop %v6249
          %v6251 = vmul.f32 %v6139, 1.442695
          %v6252 = vpow.pop %v6251
          %v6253 = vmul.f32 %v6140, 1.442695
          %v6254 = vpow.pop %v6253
          %v6255 = vmul.f32 %v6141, 1.442695
          %v6256 = vpow.pop %v6255
          %v6257 = vmul.f32 %v6142, 1.442695
          %v6258 = vpow.pop %v6257
          %v6259 = vmul.f32 %v6143, 1.442695
          %v6260 = vpow.pop %v6259
          %v6261 = vmul.f32 %v6144, 1.442695
          %v6262 = vpow.pop %v6261
          %v6263 = vmul.f32 %v6145, 1.442695
          %v6264 = vpow.pop %v6263
          %v6265 = vmul.f32 %v6146, 1.442695
          %v6266 = vpow.pop %v6265
          %v6267 = vmul.f32 %v6147, 1.442695
          %v6268 = vpow.pop %v6267
          %v6269 = vmul.f32 %v6148, 1.442695
          %v6270 = vpow.pop %v6269
          %v6271 = vmul.f32 %v6149, 1.442695
          %v6272 = vpow.pop %v6271
          %v6273 = vmul.f32 %v6150, 1.442695
          %v6274 = vpow.pop %v6273
          %v6275 = vsel %vm4708, %v6154, 0.0
          %v6276 = vadd.f32 %v6152, %v6275
          %6277 = vadd.xlane.f32.xlu0 %v6276
          %v6278 = vpop.xlane.xlu0 %6277
          %v6279 = vsel %vm4708, %v6158, 0.0
          %v6280 = vadd.f32 %v6156, %v6279
          %6281 = vadd.xlane.f32.xlu0 %v6280
          %v6282 = vpop.xlane.xlu0 %6281
          %v6283 = vsel %vm4708, %v6162, 0.0
          %v6284 = vadd.f32 %v6160, %v6283
          %6285 = vadd.xlane.f32.xlu0 %v6284
          %v6286 = vpop.xlane.xlu0 %6285
          %v6287 = vsel %vm4708, %v6166, 0.0
          %v6288 = vadd.f32 %v6164, %v6287
          %6289 = vadd.xlane.f32.xlu0 %v6288
          %v6290 = vpop.xlane.xlu0 %6289
          %v6291 = vsel %vm4708, %v6170, 0.0
          %v6292 = vadd.f32 %v6168, %v6291
          %6293 = vadd.xlane.f32.xlu0 %v6292
          %v6294 = vpop.xlane.xlu0 %6293
          %v6295 = vsel %vm4708, %v6174, 0.0
          %v6296 = vadd.f32 %v6172, %v6295
          %6297 = vadd.xlane.f32.xlu0 %v6296
          %v6298 = vpop.xlane.xlu0 %6297
          %v6299 = vsel %vm4708, %v6178, 0.0
          %v6300 = vadd.f32 %v6176, %v6299
          %6301 = vadd.xlane.f32.xlu0 %v6300
          %v6302 = vpop.xlane.xlu0 %6301
          %v6303 = vsel %vm4708, %v6182, 0.0
          %v6304 = vadd.f32 %v6180, %v6303
          %6305 = vadd.xlane.f32.xlu0 %v6304
          %v6306 = vpop.xlane.xlu0 %6305
          %v6307 = vsel %vm4708, %v6186, 0.0
          %v6308 = vadd.f32 %v6184, %v6307
          %6309 = vadd.xlane.f32.xlu0 %v6308
          %v6310 = vpop.xlane.xlu0 %6309
          %v6311 = vsel %vm4708, %v6190, 0.0
          %v6312 = vadd.f32 %v6188, %v6311
          %6313 = vadd.xlane.f32.xlu0 %v6312
          %v6314 = vpop.xlane.xlu0 %6313
          %v6315 = vsel %vm4708, %v6194, 0.0
          %v6316 = vadd.f32 %v6192, %v6315
          %6317 = vadd.xlane.f32.xlu0 %v6316
          %v6318 = vpop.xlane.xlu0 %6317
          %v6319 = vsel %vm4708, %v6198, 0.0
          %v6320 = vadd.f32 %v6196, %v6319
          %6321 = vadd.xlane.f32.xlu0 %v6320
          %v6322 = vpop.xlane.xlu0 %6321
          %v6323 = vsel %vm4708, %v6202, 0.0
          %v6324 = vadd.f32 %v6200, %v6323
          %6325 = vadd.xlane.f32.xlu0 %v6324
          %v6326 = vpop.xlane.xlu0 %6325
          %v6327 = vsel %vm4708, %v6206, 0.0
          %v6328 = vadd.f32 %v6204, %v6327
          %6329 = vadd.xlane.f32.xlu0 %v6328
          %v6330 = vpop.xlane.xlu0 %6329
          %v6331 = vsel %vm4708, %v6210, 0.0
          %v6332 = vadd.f32 %v6208, %v6331
          %6333 = vadd.xlane.f32.xlu0 %v6332
          %v6334 = vpop.xlane.xlu0 %6333
          %v6335 = vsel %vm4708, %v6214, 0.0
          %v6336 = vadd.f32 %v6212, %v6335
          %6337 = vadd.xlane.f32.xlu0 %v6336
          %v6338 = vpop.xlane.xlu0 %6337
          %v6339 = vsel %vm4708, %v6218, 0.0
          %v6340 = vadd.f32 %v6216, %v6339
          %6341 = vadd.xlane.f32.xlu0 %v6340
          %v6342 = vpop.xlane.xlu0 %6341
          %v6343 = vsel %vm4708, %v6222, 0.0
          %v6344 = vadd.f32 %v6220, %v6343
          %6345 = vadd.xlane.f32.xlu0 %v6344
          %v6346 = vpop.xlane.xlu0 %6345
          %v6347 = vsel %vm4708, %v6226, 0.0
          %v6348 = vadd.f32 %v6224, %v6347
          %6349 = vadd.xlane.f32.xlu0 %v6348
          %v6350 = vpop.xlane.xlu0 %6349
          %v6351 = vsel %vm4708, %v6230, 0.0
          %v6352 = vadd.f32 %v6228, %v6351
          %6353 = vadd.xlane.f32.xlu0 %v6352
          %v6354 = vpop.xlane.xlu0 %6353
          %v6355 = vsel %vm4708, %v6234, 0.0
          %v6356 = vadd.f32 %v6232, %v6355
          %6357 = vadd.xlane.f32.xlu0 %v6356
          %v6358 = vpop.xlane.xlu0 %6357
          %v6359 = vsel %vm4708, %v6238, 0.0
          %v6360 = vadd.f32 %v6236, %v6359
          %6361 = vadd.xlane.f32.xlu0 %v6360
          %v6362 = vpop.xlane.xlu0 %6361
          %v6363 = vsel %vm4708, %v6242, 0.0
          %v6364 = vadd.f32 %v6240, %v6363
          %6365 = vadd.xlane.f32.xlu0 %v6364
          %v6366 = vpop.xlane.xlu0 %6365
          %v6367 = vsel %vm4708, %v6246, 0.0
          %v6368 = vadd.f32 %v6244, %v6367
          %6369 = vadd.xlane.f32.xlu0 %v6368
          %v6370 = vpop.xlane.xlu0 %6369
          %v6371 = vsel %vm4708, %v6250, 0.0
          %v6372 = vadd.f32 %v6248, %v6371
          %6373 = vadd.xlane.f32.xlu0 %v6372
          %v6374 = vpop.xlane.xlu0 %6373
          %v6375 = vsel %vm4708, %v6254, 0.0
          %v6376 = vadd.f32 %v6252, %v6375
          %6377 = vadd.xlane.f32.xlu0 %v6376
          %v6378 = vpop.xlane.xlu0 %6377
          %v6379 = vsel %vm4708, %v6258, 0.0
          %v6380 = vadd.f32 %v6256, %v6379
          %6381 = vadd.xlane.f32.xlu0 %v6380
          %v6382 = vpop.xlane.xlu0 %6381
          %v6383 = vsel %vm4708, %v6262, 0.0
          %v6384 = vadd.f32 %v6260, %v6383
          %6385 = vadd.xlane.f32.xlu0 %v6384
          %v6386 = vpop.xlane.xlu0 %6385
          %v6387 = vsel %vm4708, %v6266, 0.0
          %v6388 = vadd.f32 %v6264, %v6387
          %6389 = vadd.xlane.f32.xlu0 %v6388
          %v6390 = vpop.xlane.xlu0 %6389
          %v6391 = vsel %vm4708, %v6270, 0.0
          %v6392 = vadd.f32 %v6268, %v6391
          %6393 = vadd.xlane.f32.xlu0 %v6392
          %v6394 = vpop.xlane.xlu0 %6393
          %v6395 = vsel %vm4829, %v6272, 0.0
          %v6396 = vsel %vm4831, %v6274, 0.0
          %v6397 = vadd.f32 %v6395, %v6396
          %6398 = vadd.xlane.f32.xlu0 %v6397
          %v6399 = vpop.xlane.xlu0 %6398
          %v6400 = vrcp.pop %v6278
          %v6401 = vrcp.pop %v6282
          %v6402 = vrcp.pop %v6286
          %v6403 = vrcp.pop %v6290
          %v6404 = vrcp.pop %v6294
          %v6405 = vrcp.pop %v6298
          %v6406 = vrcp.pop %v6302
          %v6407 = vrcp.pop %v6306
          %v6408 = vrcp.pop %v6310
          %v6409 = vrcp.pop %v6314
          %v6410 = vrcp.pop %v6318
          %v6411 = vrcp.pop %v6322
          %v6412 = vrcp.pop %v6326
          %v6413 = vrcp.pop %v6330
          %v6414 = vrcp.pop %v6334
          %v6415 = vrcp.pop %v6338
          %v6416 = vrcp.pop %v6342
          %v6417 = vrcp.pop %v6346
          %v6418 = vrcp.pop %v6350
          %v6419 = vrcp.pop %v6354
          %v6420 = vrcp.pop %v6358
          %v6421 = vrcp.pop %v6362
          %v6422 = vrcp.pop %v6366
          %v6423 = vrcp.pop %v6370
          %v6424 = vrcp.pop %v6374
          %v6425 = vrcp.pop %v6378
          %v6426 = vrcp.pop %v6382
          %v6427 = vrcp.pop %v6386
          %v6428 = vrcp.pop %v6390
          %v6429 = vrcp.pop %v6394
          %v6430 = vrcp.pop %v6399
          %v6431 = vpack.c.bf16 %v6156, %v6152
          %v6432 = vpack.c.bf16 %v6158, %v6154
          %v6433 = vpack.c.bf16 %v6164, %v6160
          %v6434 = vpack.c.bf16 %v6166, %v6162
          %v6435 = vpack.c.bf16 %v6172, %v6168
          %v6436 = vpack.c.bf16 %v6174, %v6170
          %v6437 = vpack.c.bf16 %v6180, %v6176
          %v6438 = vpack.c.bf16 %v6182, %v6178
          %v6439 = vpack.c.bf16 %v6188, %v6184
          %v6440 = vpack.c.bf16 %v6190, %v6186
          %v6441 = vpack.c.bf16 %v6196, %v6192
          %v6442 = vpack.c.bf16 %v6198, %v6194
          %v6443 = vpack.c.bf16 %v6204, %v6200
          %v6444 = vpack.c.bf16 %v6206, %v6202
          %v6445 = vpack.c.bf16 %v6212, %v6208
          %v6446 = vpack.c.bf16 %v6214, %v6210
          %v6447 = vpack.c.bf16 %v6220, %v6216
          %v6448 = vpack.c.bf16 %v6222, %v6218
          %v6449 = vpack.c.bf16 %v6228, %v6224
          %v6450 = vpack.c.bf16 %v6230, %v6226
          %v6451 = vpack.c.bf16 %v6236, %v6232
          %v6452 = vpack.c.bf16 %v6238, %v6234
          %v6453 = vpack.c.bf16 %v6244, %v6240
          %v6454 = vpack.c.bf16 %v6246, %v6242
          %v6455 = vpack.c.bf16 %v6252, %v6248
          %v6456 = vpack.c.bf16 %v6254, %v6250
          %v6457 = vpack.c.bf16 %v6260, %v6256
          %v6458 = vpack.c.bf16 %v6262, %v6258
          %v6459 = vpack.c.bf16 %v6268, %v6264
          %v6460 = vpack.c.bf16 %v6270, %v6266
          %v6461 = vpack.c.bf16 %v6272, %v6272
          %v6462 = vpack.c.bf16 %v6274, %v6274
          %6463 = vrot.lane.b32.xlu0 %v5272, 104
          %v6464 = vpop.permute.xlu0 %6463
          %6465 = vrot.lane.b32.xlu0 %v5273, 104
          %v6466 = vpop.permute.xlu0 %6465
          %6467 = vrot.lane.b32.xlu0 %v5274, 104
          %v6468 = vpop.permute.xlu0 %6467
          %6469 = vrot.lane.b32.xlu0 %v5275, 104
          %v6470 = vpop.permute.xlu0 %6469
          %6471 = vrot.lane.b32.xlu0 %v5276, 104
          %v6472 = vpop.permute.xlu0 %6471
          %6473 = vrot.lane.b32.xlu0 %v5277, 104
          %v6474 = vpop.permute.xlu0 %6473
          %6475 = vrot.lane.b32.xlu0 %v5278, 104
          %v6476 = vpop.permute.xlu0 %6475
          %6477 = vrot.lane.b32.xlu0 %v5279, 104
          %v6478 = vpop.permute.xlu0 %6477
          %6479 = vrot.lane.b32.xlu0 %v5280, 104
          %v6480 = vpop.permute.xlu0 %6479
          %6481 = vrot.lane.b32.xlu0 %v5281, 104
          %v6482 = vpop.permute.xlu0 %6481
          %6483 = vrot.lane.b32.xlu0 %v5282, 104
          %v6484 = vpop.permute.xlu0 %6483
          %6485 = vrot.lane.b32.xlu0 %v5283, 104
          %v6486 = vpop.permute.xlu0 %6485
          %6487 = vrot.lane.b32.xlu0 %v5284, 104
          %v6488 = vpop.permute.xlu0 %6487
          %6489 = vrot.lane.b32.xlu0 %v5285, 104
          %v6490 = vpop.permute.xlu0 %6489
          %6491 = vrot.lane.b32.xlu0 %v5286, 104
          %v6492 = vpop.permute.xlu0 %6491
          %6493 = vrot.lane.b32.xlu0 %v5287, 104
          %v6494 = vpop.permute.xlu0 %6493
          %v6511 = vsel %vm4708, %v6432, 0
          %v6514 = vsel %vm4708, %v6434, 0
          %v6517 = vsel %vm4708, %v6436, 0
          %v6520 = vsel %vm4708, %v6438, 0
          %v6523 = vsel %vm4708, %v6440, 0
          %v6526 = vsel %vm4708, %v6442, 0
          %v6529 = vsel %vm4708, %v6444, 0
          %v6532 = vsel %vm4708, %v6446, 0
          %v6535 = vsel %vm4708, %v6448, 0
          %v6538 = vsel %vm4708, %v6450, 0
          %v6541 = vsel %vm4708, %v6452, 0
          %v6544 = vsel %vm4708, %v6454, 0
          %v6547 = vsel %vm4708, %v6456, 0
          %v6550 = vsel %vm4708, %v6458, 0
          %v6553 = vsel %vm4708, %v6460, 0
          %v6556 = vsel %vm4708, %v6462, 0
          %v6559 = vand.u32 %v6494, %v5386
          %6561 = vmatpush.bf16.msra.mxu0 %v6478
          %6562 = vmatpush.bf16.msra.mxu0 %v6476
          %6563 = vmatpush.bf16.msra.mxu0 %v6474
          %6564 = vmatpush.bf16.msra.mxu0 %v6472
          %6565 = vmatpush.bf16.msra.mxu0 %v6470
          %6566 = vmatpush.bf16.msra.mxu0 %v6468
          %6567 = vmatpush.bf16.msra.mxu0 %v6466
          %6568 = vmatpush.bf16.msra.mxu0 %v6464
          %6569 = vmatmul.bf16.gmra.mxu0 %v6431
          %v6570 = vpop.f32.mrf.mxu0
          %v6571 = vadd.f32 0.0, %v6570
          %v6572 = vpop.f32.mrf.mxu0
          %v6573 = vadd.f32 0.0, %v6572
          %6574 = vmatmul.bf16.gmra.mxu0 %v6433
          %v6575 = vpop.f32.mrf.mxu0
          %v6576 = vadd.f32 0.0, %v6575
          %v6577 = vpop.f32.mrf.mxu0
          %v6578 = vadd.f32 0.0, %v6577
          %6579 = vmatmul.bf16.gmra.mxu0 %v6435
          %v6580 = vpop.f32.mrf.mxu0
          %v6581 = vadd.f32 0.0, %v6580
          %v6582 = vpop.f32.mrf.mxu0
          %v6583 = vadd.f32 0.0, %v6582
          %6584 = vmatmul.bf16.gmra.mxu0 %v6437
          %v6585 = vpop.f32.mrf.mxu0
          %v6586 = vadd.f32 0.0, %v6585
          %v6587 = vpop.f32.mrf.mxu0
          %v6588 = vadd.f32 0.0, %v6587
          %6589 = vmatmul.bf16.gmra.mxu0 %v6439
          %v6590 = vpop.f32.mrf.mxu0
          %v6591 = vadd.f32 0.0, %v6590
          %v6592 = vpop.f32.mrf.mxu0
          %v6593 = vadd.f32 0.0, %v6592
          %6594 = vmatmul.bf16.gmra.mxu0 %v6441
          %v6595 = vpop.f32.mrf.mxu0
          %v6596 = vadd.f32 0.0, %v6595
          %v6597 = vpop.f32.mrf.mxu0
          %v6598 = vadd.f32 0.0, %v6597
          %6599 = vmatmul.bf16.gmra.mxu0 %v6443
          %v6600 = vpop.f32.mrf.mxu0
          %v6601 = vadd.f32 0.0, %v6600
          %v6602 = vpop.f32.mrf.mxu0
          %v6603 = vadd.f32 0.0, %v6602
          %6604 = vmatmul.bf16.gmra.mxu0 %v6445
          %v6605 = vpop.f32.mrf.mxu0
          %v6606 = vadd.f32 0.0, %v6605
          %v6607 = vpop.f32.mrf.mxu0
          %v6608 = vadd.f32 0.0, %v6607
          %6609 = vmatmul.bf16.gmra.mxu0 %v6447
          %v6610 = vpop.f32.mrf.mxu0
          %v6611 = vadd.f32 0.0, %v6610
          %v6612 = vpop.f32.mrf.mxu0
          %v6613 = vadd.f32 0.0, %v6612
          %6614 = vmatmul.bf16.gmra.mxu0 %v6449
          %v6615 = vpop.f32.mrf.mxu0
          %v6616 = vadd.f32 0.0, %v6615
          %v6617 = vpop.f32.mrf.mxu0
          %v6618 = vadd.f32 0.0, %v6617
          %6619 = vmatmul.bf16.gmra.mxu0 %v6451
          %v6620 = vpop.f32.mrf.mxu0
          %v6621 = vadd.f32 0.0, %v6620
          %v6622 = vpop.f32.mrf.mxu0
          %v6623 = vadd.f32 0.0, %v6622
          %6624 = vmatmul.bf16.gmra.mxu0 %v6453
          %v6625 = vpop.f32.mrf.mxu0
          %v6626 = vadd.f32 0.0, %v6625
          %v6627 = vpop.f32.mrf.mxu0
          %v6628 = vadd.f32 0.0, %v6627
          %6629 = vmatmul.bf16.gmra.mxu0 %v6455
          %v6630 = vpop.f32.mrf.mxu0
          %v6631 = vadd.f32 0.0, %v6630
          %v6632 = vpop.f32.mrf.mxu0
          %v6633 = vadd.f32 0.0, %v6632
          %6634 = vmatmul.bf16.gmra.mxu0 %v6457
          %v6635 = vpop.f32.mrf.mxu0
          %v6636 = vadd.f32 0.0, %v6635
          %v6637 = vpop.f32.mrf.mxu0
          %v6638 = vadd.f32 0.0, %v6637
          %6639 = vmatmul.bf16.gmra.mxu0 %v6459
          %v6640 = vpop.f32.mrf.mxu0
          %v6641 = vadd.f32 0.0, %v6640
          %v6642 = vpop.f32.mrf.mxu0
          %v6643 = vadd.f32 0.0, %v6642
          %6644 = vmatmul.bf16.gmra.mxu0 %v6461
          %v6645 = vpop.f32.mrf.mxu0
          %v6646 = vadd.f32 0.0, %v6645
          %v6647 = vpop.f32.mrf.mxu0
          %6648 = vdwg.mxu0
          %6649 = vmatpush.bf16.msra.mxu0 %v6559
          %6650 = vmatpush.bf16.msra.mxu0 %v6492
          %6651 = vmatpush.bf16.msra.mxu0 %v6490
          %6652 = vmatpush.bf16.msra.mxu0 %v6488
          %6653 = vmatpush.bf16.msra.mxu0 %v6486
          %6654 = vmatpush.bf16.msra.mxu0 %v6484
          %6655 = vmatpush.bf16.msra.mxu0 %v6482
          %6656 = vmatpush.bf16.msra.mxu0 %v6480
          %6657 = vmatmul.bf16.gmra.mxu0 %v6511
          %v6658 = vpop.f32.mrf.mxu0
          %v6659 = vadd.f32 %v6571, %v6658
          %v6660 = vpop.f32.mrf.mxu0
          %v6661 = vadd.f32 %v6573, %v6660
          %6662 = vmatmul.bf16.gmra.mxu0 %v6514
          %v6663 = vpop.f32.mrf.mxu0
          %v6664 = vadd.f32 %v6576, %v6663
          %v6665 = vpop.f32.mrf.mxu0
          %v6666 = vadd.f32 %v6578, %v6665
          %6667 = vmatmul.bf16.gmra.mxu0 %v6517
          %v6668 = vpop.f32.mrf.mxu0
          %v6669 = vadd.f32 %v6581, %v6668
          %v6670 = vpop.f32.mrf.mxu0
          %v6671 = vadd.f32 %v6583, %v6670
          %6672 = vmatmul.bf16.gmra.mxu0 %v6520
          %v6673 = vpop.f32.mrf.mxu0
          %v6674 = vadd.f32 %v6586, %v6673
          %v6675 = vpop.f32.mrf.mxu0
          %v6676 = vadd.f32 %v6588, %v6675
          %6677 = vmatmul.bf16.gmra.mxu0 %v6523
          %v6678 = vpop.f32.mrf.mxu0
          %v6679 = vadd.f32 %v6591, %v6678
          %v6680 = vpop.f32.mrf.mxu0
          %v6681 = vadd.f32 %v6593, %v6680
          %6682 = vmatmul.bf16.gmra.mxu0 %v6526
          %v6683 = vpop.f32.mrf.mxu0
          %v6684 = vadd.f32 %v6596, %v6683
          %v6685 = vpop.f32.mrf.mxu0
          %v6686 = vadd.f32 %v6598, %v6685
          %6687 = vmatmul.bf16.gmra.mxu0 %v6529
          %v6688 = vpop.f32.mrf.mxu0
          %v6689 = vadd.f32 %v6601, %v6688
          %v6690 = vpop.f32.mrf.mxu0
          %v6691 = vadd.f32 %v6603, %v6690
          %6692 = vmatmul.bf16.gmra.mxu0 %v6532
          %v6693 = vpop.f32.mrf.mxu0
          %v6694 = vadd.f32 %v6606, %v6693
          %v6695 = vpop.f32.mrf.mxu0
          %v6696 = vadd.f32 %v6608, %v6695
          %6697 = vmatmul.bf16.gmra.mxu0 %v6535
          %v6698 = vpop.f32.mrf.mxu0
          %v6699 = vadd.f32 %v6611, %v6698
          %v6700 = vpop.f32.mrf.mxu0
          %v6701 = vadd.f32 %v6613, %v6700
          %6702 = vmatmul.bf16.gmra.mxu0 %v6538
          %v6703 = vpop.f32.mrf.mxu0
          %v6704 = vadd.f32 %v6616, %v6703
          %v6705 = vpop.f32.mrf.mxu0
          %v6706 = vadd.f32 %v6618, %v6705
          %6707 = vmatmul.bf16.gmra.mxu0 %v6541
          %v6708 = vpop.f32.mrf.mxu0
          %v6709 = vadd.f32 %v6621, %v6708
          %v6710 = vpop.f32.mrf.mxu0
          %v6711 = vadd.f32 %v6623, %v6710
          %6712 = vmatmul.bf16.gmra.mxu0 %v6544
          %v6713 = vpop.f32.mrf.mxu0
          %v6714 = vadd.f32 %v6626, %v6713
          %v6715 = vpop.f32.mrf.mxu0
          %v6716 = vadd.f32 %v6628, %v6715
          %6717 = vmatmul.bf16.gmra.mxu0 %v6547
          %v6718 = vpop.f32.mrf.mxu0
          %v6719 = vadd.f32 %v6631, %v6718
          %v6720 = vpop.f32.mrf.mxu0
          %v6721 = vadd.f32 %v6633, %v6720
          %6722 = vmatmul.bf16.gmra.mxu0 %v6550
          %v6723 = vpop.f32.mrf.mxu0
          %v6724 = vadd.f32 %v6636, %v6723
          %v6725 = vpop.f32.mrf.mxu0
          %v6726 = vadd.f32 %v6638, %v6725
          %6727 = vmatmul.bf16.gmra.mxu0 %v6553
          %v6728 = vpop.f32.mrf.mxu0
          %v6729 = vadd.f32 %v6641, %v6728
          %v6730 = vpop.f32.mrf.mxu0
          %v6731 = vadd.f32 %v6643, %v6730
          %6732 = vmatmul.bf16.gmra.mxu0 %v6556
          %v6733 = vpop.f32.mrf.mxu0
          %v6734 = vadd.f32 %v6646, %v6733
          %v6735 = vpop.f32.mrf.mxu0
          %6736 = vdwg.mxu0
          %v6737 = vmul.f32 %v6659, %v6400
          %v6738 = vmul.f32 %v6661, %v6401
          %v6739 = vmul.f32 %v6664, %v6402
          %v6740 = vmul.f32 %v6666, %v6403
          %v6741 = vmul.f32 %v6669, %v6404
          %v6742 = vmul.f32 %v6671, %v6405
          %v6743 = vmul.f32 %v6674, %v6406
          %v6744 = vmul.f32 %v6676, %v6407
          %v6745 = vmul.f32 %v6679, %v6408
          %v6746 = vmul.f32 %v6681, %v6409
          %v6747 = vmul.f32 %v6684, %v6410
          %v6748 = vmul.f32 %v6686, %v6411
          %v6749 = vmul.f32 %v6689, %v6412
          %v6750 = vmul.f32 %v6691, %v6413
          %v6751 = vmul.f32 %v6694, %v6414
          %v6752 = vmul.f32 %v6696, %v6415
          %v6753 = vmul.f32 %v6699, %v6416
          %v6754 = vmul.f32 %v6701, %v6417
          %v6755 = vmul.f32 %v6704, %v6418
          %v6756 = vmul.f32 %v6706, %v6419
          %v6757 = vmul.f32 %v6709, %v6420
          %v6758 = vmul.f32 %v6711, %v6421
          %v6759 = vmul.f32 %v6714, %v6422
          %v6760 = vmul.f32 %v6716, %v6423
          %v6761 = vmul.f32 %v6719, %v6424
          %v6762 = vmul.f32 %v6721, %v6425
          %v6763 = vmul.f32 %v6724, %v6426
          %v6764 = vmul.f32 %v6726, %v6427
          %v6765 = vmul.f32 %v6729, %v6428
          %v6766 = vmul.f32 %v6731, %v6429
          %v6767 = vmul.f32 %v6734, %v6430
          %v6768 = vadd.f32 %v5597, %v6737
          %v6769 = vadd.f32 %v5598, %v6738
          %v6770 = vadd.f32 %v5599, %v6739
          %v6771 = vadd.f32 %v5600, %v6740
          %v6772 = vadd.f32 %v5601, %v6741
          %v6773 = vadd.f32 %v5602, %v6742
          %v6774 = vadd.f32 %v5603, %v6743
          %v6775 = vadd.f32 %v5604, %v6744
          %v6776 = vadd.f32 %v5605, %v6745
          %v6777 = vadd.f32 %v5606, %v6746
          %v6778 = vadd.f32 %v5607, %v6747
          %v6779 = vadd.f32 %v5608, %v6748
          %v6780 = vadd.f32 %v5609, %v6749
          %v6781 = vadd.f32 %v5610, %v6750
          %v6782 = vadd.f32 %v5611, %v6751
          %v6783 = vadd.f32 %v5612, %v6752
          %v6784 = vadd.f32 %v5613, %v6753
          %v6785 = vadd.f32 %v5614, %v6754
          %v6786 = vadd.f32 %v5615, %v6755
          %v6787 = vadd.f32 %v5616, %v6756
          %v6788 = vadd.f32 %v5617, %v6757
          %v6789 = vadd.f32 %v5618, %v6758
          %v6790 = vadd.f32 %v5619, %v6759
          %v6791 = vadd.f32 %v5620, %v6760
          %v6792 = vadd.f32 %v5621, %v6761
          %v6793 = vadd.f32 %v5622, %v6762
          %v6794 = vadd.f32 %v5623, %v6763
          %v6795 = vadd.f32 %v5624, %v6764
          %v6796 = vadd.f32 %v5625, %v6765
          %v6797 = vadd.f32 %v5626, %v6766
          %v6798 = vadd.f32 %v5627, %v6767
          %6799 = vrot.lane.b32.xlu0 %v4387, 124
          %v6800 = vpop.permute.xlu0 %6799
          %6801 = vrot.lane.b32.xlu0 %v4388, 124
          %v6802 = vpop.permute.xlu0 %6801
          %6803 = vrot.lane.b32.xlu0 %v4389, 124
          %v6804 = vpop.permute.xlu0 %6803
          %6805 = vrot.lane.b32.xlu0 %v4390, 124
          %v6806 = vpop.permute.xlu0 %6805
          %6807 = vrot.lane.b32.xlu0 %v4391, 124
          %v6808 = vpop.permute.xlu0 %6807
          %6809 = vrot.lane.b32.xlu0 %v4392, 124
          %v6810 = vpop.permute.xlu0 %6809
          %6811 = vrot.lane.b32.xlu0 %v4393, 124
          %v6812 = vpop.permute.xlu0 %6811
          %6813 = vrot.lane.b32.xlu0 %v4394, 124
          %v6814 = vpop.permute.xlu0 %6813
          %6815 = vrot.lane.b32.xlu0 %v4395, 124
          %v6816 = vpop.permute.xlu0 %6815
          %6817 = vrot.lane.b32.xlu0 %v4396, 124
          %v6818 = vpop.permute.xlu0 %6817
          %6819 = vrot.lane.b32.xlu0 %v4397, 124
          %v6820 = vpop.permute.xlu0 %6819
          %6821 = vrot.lane.b32.xlu0 %v4398, 124
          %v6822 = vpop.permute.xlu0 %6821
          %6823 = vrot.lane.b32.xlu0 %v4399, 124
          %v6824 = vpop.permute.xlu0 %6823
          %6825 = vrot.lane.b32.xlu0 %v4400, 124
          %v6826 = vpop.permute.xlu0 %6825
          %6827 = vrot.lane.b32.xlu0 %v4401, 124
          %v6828 = vpop.permute.xlu0 %6827
          %6829 = vrot.lane.b32.xlu0 %v4402, 124
          %v6830 = vpop.permute.xlu0 %6829
          %6831 = vrot.lane.b32.xlu0 %v4387, 116
          %v6832 = vpop.permute.xlu0 %6831
          %6833 = vrot.lane.b32.xlu0 %v4388, 116
          %v6834 = vpop.permute.xlu0 %6833
          %6835 = vrot.lane.b32.xlu0 %v4389, 116
          %v6836 = vpop.permute.xlu0 %6835
          %6837 = vrot.lane.b32.xlu0 %v4390, 116
          %v6838 = vpop.permute.xlu0 %6837
          %6839 = vrot.lane.b32.xlu0 %v4391, 116
          %v6840 = vpop.permute.xlu0 %6839
          %6841 = vrot.lane.b32.xlu0 %v4392, 116
          %v6842 = vpop.permute.xlu0 %6841
          %6843 = vrot.lane.b32.xlu0 %v4393, 116
          %v6844 = vpop.permute.xlu0 %6843
          %6845 = vrot.lane.b32.xlu0 %v4394, 116
          %v6846 = vpop.permute.xlu0 %6845
          %6847 = vrot.lane.b32.xlu0 %v4395, 116
          %v6848 = vpop.permute.xlu0 %6847
          %6849 = vrot.lane.b32.xlu0 %v4396, 116
          %v6850 = vpop.permute.xlu0 %6849
          %6851 = vrot.lane.b32.xlu0 %v4397, 116
          %v6852 = vpop.permute.xlu0 %6851
          %6853 = vrot.lane.b32.xlu0 %v4398, 116
          %v6854 = vpop.permute.xlu0 %6853
          %6855 = vrot.lane.b32.xlu0 %v4399, 116
          %v6856 = vpop.permute.xlu0 %6855
          %6857 = vrot.lane.b32.xlu0 %v4400, 116
          %v6858 = vpop.permute.xlu0 %6857
          %6859 = vrot.lane.b32.xlu0 %v4401, 116
          %v6860 = vpop.permute.xlu0 %6859
          %6861 = vrot.lane.b32.xlu0 %v4402, 116
          %v6862 = vpop.permute.xlu0 %6861
          %v6864 = vsel %vm4435, %v6800, 0
          %v6867 = vsel %vm4435, %v6802, 0
          %v6870 = vsel %vm4435, %v6804, 0
          %v6873 = vsel %vm4435, %v6806, 0
          %v6876 = vsel %vm4435, %v6808, 0
          %v6879 = vsel %vm4435, %v6810, 0
          %v6882 = vsel %vm4435, %v6812, 0
          %v6885 = vsel %vm4435, %v6814, 0
          %v6888 = vsel %vm4435, %v6816, 0
          %v6891 = vsel %vm4435, %v6818, 0
          %v6894 = vsel %vm4435, %v6820, 0
          %v6897 = vsel %vm4435, %v6822, 0
          %v6900 = vsel %vm4435, %v6824, 0
          %v6903 = vsel %vm4435, %v6826, 0
          %v6906 = vsel %vm4435, %v6828, 0
          %v6909 = vsel %vm4435, %v6830, 0
          %v6912 = vsel %vm4435, %v6832, 0
          %v6915 = vsel %vm4435, %v6834, 0
          %v6918 = vsel %vm4435, %v6836, 0
          %v6921 = vsel %vm4435, %v6838, 0
          %v6924 = vsel %vm4435, %v6840, 0
          %v6927 = vsel %vm4435, %v6842, 0
          %v6930 = vsel %vm4435, %v6844, 0
          %v6933 = vsel %vm4435, %v6846, 0
          %v6936 = vsel %vm4435, %v6848, 0
          %v6939 = vsel %vm4435, %v6850, 0
          %v6942 = vsel %vm4435, %v6852, 0
          %v6945 = vsel %vm4435, %v6854, 0
          %v6948 = vsel %vm4435, %v6856, 0
          %v6951 = vsel %vm4435, %v6858, 0
          %v6954 = vsel %vm4435, %v6860, 0
          %v6957 = vsel %vm4435, %v6862, 0
          %6959 = vmatpush.bf16.xpose.msra.mxu0 %v6933
          %6960 = vmatpush.bf16.xpose.msra.mxu0 %v6930
          %6961 = vmatpush.bf16.xpose.msra.mxu0 %v6927
          %6962 = vmatpush.bf16.xpose.msra.mxu0 %v6924
          %6963 = vmatpush.bf16.xpose.msra.mxu0 %v6921
          %6964 = vmatpush.bf16.xpose.msra.mxu0 %v6918
          %6965 = vmatpush.bf16.xpose.msra.mxu0 %v6915
          %6966 = vmatpush.bf16.xpose.msra.mxu0 %v6912
          %6967 = vmatmul.bf16.gmra.mxu0 %v6864
          %v6968 = vpop.f32.mrf.mxu0
          %v6969 = vadd.f32 0.0, %v6968
          %v6970 = vpop.f32.mrf.mxu0
          %v6971 = vadd.f32 0.0, %v6970
          %6972 = vmatmul.bf16.gmra.mxu0 %v6867
          %v6973 = vpop.f32.mrf.mxu0
          %v6974 = vadd.f32 0.0, %v6973
          %v6975 = vpop.f32.mrf.mxu0
          %v6976 = vadd.f32 0.0, %v6975
          %6977 = vmatmul.bf16.gmra.mxu0 %v6870
          %v6978 = vpop.f32.mrf.mxu0
          %v6979 = vadd.f32 0.0, %v6978
          %v6980 = vpop.f32.mrf.mxu0
          %v6981 = vadd.f32 0.0, %v6980
          %6982 = vmatmul.bf16.gmra.mxu0 %v6873
          %v6983 = vpop.f32.mrf.mxu0
          %v6984 = vadd.f32 0.0, %v6983
          %v6985 = vpop.f32.mrf.mxu0
          %v6986 = vadd.f32 0.0, %v6985
          %6987 = vmatmul.bf16.gmra.mxu0 %v6876
          %v6988 = vpop.f32.mrf.mxu0
          %v6989 = vadd.f32 0.0, %v6988
          %v6990 = vpop.f32.mrf.mxu0
          %v6991 = vadd.f32 0.0, %v6990
          %6992 = vmatmul.bf16.gmra.mxu0 %v6879
          %v6993 = vpop.f32.mrf.mxu0
          %v6994 = vadd.f32 0.0, %v6993
          %v6995 = vpop.f32.mrf.mxu0
          %v6996 = vadd.f32 0.0, %v6995
          %6997 = vmatmul.bf16.gmra.mxu0 %v6882
          %v6998 = vpop.f32.mrf.mxu0
          %v6999 = vadd.f32 0.0, %v6998
          %v7000 = vpop.f32.mrf.mxu0
          %v7001 = vadd.f32 0.0, %v7000
          %7002 = vmatmul.bf16.gmra.mxu0 %v6885
          %v7003 = vpop.f32.mrf.mxu0
          %v7004 = vadd.f32 0.0, %v7003
          %v7005 = vpop.f32.mrf.mxu0
          %v7006 = vadd.f32 0.0, %v7005
          %7007 = vmatmul.bf16.gmra.mxu0 %v6888
          %v7008 = vpop.f32.mrf.mxu0
          %v7009 = vadd.f32 0.0, %v7008
          %v7010 = vpop.f32.mrf.mxu0
          %v7011 = vadd.f32 0.0, %v7010
          %7012 = vmatmul.bf16.gmra.mxu0 %v6891
          %v7013 = vpop.f32.mrf.mxu0
          %v7014 = vadd.f32 0.0, %v7013
          %v7015 = vpop.f32.mrf.mxu0
          %v7016 = vadd.f32 0.0, %v7015
          %7017 = vmatmul.bf16.gmra.mxu0 %v6894
          %v7018 = vpop.f32.mrf.mxu0
          %v7019 = vadd.f32 0.0, %v7018
          %v7020 = vpop.f32.mrf.mxu0
          %v7021 = vadd.f32 0.0, %v7020
          %7022 = vmatmul.bf16.gmra.mxu0 %v6897
          %v7023 = vpop.f32.mrf.mxu0
          %v7024 = vadd.f32 0.0, %v7023
          %v7025 = vpop.f32.mrf.mxu0
          %v7026 = vadd.f32 0.0, %v7025
          %7027 = vmatmul.bf16.gmra.mxu0 %v6900
          %v7028 = vpop.f32.mrf.mxu0
          %v7029 = vadd.f32 0.0, %v7028
          %v7030 = vpop.f32.mrf.mxu0
          %v7031 = vadd.f32 0.0, %v7030
          %7032 = vmatmul.bf16.gmra.mxu0 %v6903
          %v7033 = vpop.f32.mrf.mxu0
          %v7034 = vadd.f32 0.0, %v7033
          %v7035 = vpop.f32.mrf.mxu0
          %v7036 = vadd.f32 0.0, %v7035
          %7037 = vmatmul.bf16.gmra.mxu0 %v6906
          %v7038 = vpop.f32.mrf.mxu0
          %v7039 = vadd.f32 0.0, %v7038
          %v7040 = vpop.f32.mrf.mxu0
          %v7041 = vadd.f32 0.0, %v7040
          %7042 = vmatmul.bf16.gmra.mxu0 %v6909
          %v7043 = vpop.f32.mrf.mxu0
          %v7044 = vadd.f32 0.0, %v7043
          %v7045 = vpop.f32.mrf.mxu0
          %7046 = vdwg.mxu0
          %7047 = vmatpush.bf16.xpose.msra.mxu0 %v6957
          %7048 = vmatpush.bf16.xpose.msra.mxu0 %v6954
          %7049 = vmatpush.bf16.xpose.msra.mxu0 %v6951
          %7050 = vmatpush.bf16.xpose.msra.mxu0 %v6948
          %7051 = vmatpush.bf16.xpose.msra.mxu0 %v6945
          %7052 = vmatpush.bf16.xpose.msra.mxu0 %v6942
          %7053 = vmatpush.bf16.xpose.msra.mxu0 %v6939
          %7054 = vmatpush.bf16.xpose.msra.mxu0 %v6936
          %7055 = vmatmul.bf16.gmra.mxu0 %v6864
          %v7056 = vpop.f32.mrf.mxu0
          %v7057 = vadd.f32 0.0, %v7056
          %v7058 = vpop.f32.mrf.mxu0
          %v7059 = vadd.f32 0.0, %v7058
          %7060 = vmatmul.bf16.gmra.mxu0 %v6867
          %v7061 = vpop.f32.mrf.mxu0
          %v7062 = vadd.f32 0.0, %v7061
          %v7063 = vpop.f32.mrf.mxu0
          %v7064 = vadd.f32 0.0, %v7063
          %7065 = vmatmul.bf16.gmra.mxu0 %v6870
          %v7066 = vpop.f32.mrf.mxu0
          %v7067 = vadd.f32 0.0, %v7066
          %v7068 = vpop.f32.mrf.mxu0
          %v7069 = vadd.f32 0.0, %v7068
          %7070 = vmatmul.bf16.gmra.mxu0 %v6873
          %v7071 = vpop.f32.mrf.mxu0
          %v7072 = vadd.f32 0.0, %v7071
          %v7073 = vpop.f32.mrf.mxu0
          %v7074 = vadd.f32 0.0, %v7073
          %7075 = vmatmul.bf16.gmra.mxu0 %v6876
          %v7076 = vpop.f32.mrf.mxu0
          %v7077 = vadd.f32 0.0, %v7076
          %v7078 = vpop.f32.mrf.mxu0
          %v7079 = vadd.f32 0.0, %v7078
          %7080 = vmatmul.bf16.gmra.mxu0 %v6879
          %v7081 = vpop.f32.mrf.mxu0
          %v7082 = vadd.f32 0.0, %v7081
          %v7083 = vpop.f32.mrf.mxu0
          %v7084 = vadd.f32 0.0, %v7083
          %7085 = vmatmul.bf16.gmra.mxu0 %v6882
          %v7086 = vpop.f32.mrf.mxu0
          %v7087 = vadd.f32 0.0, %v7086
          %v7088 = vpop.f32.mrf.mxu0
          %v7089 = vadd.f32 0.0, %v7088
          %7090 = vmatmul.bf16.gmra.mxu0 %v6885
          %v7091 = vpop.f32.mrf.mxu0
          %v7092 = vadd.f32 0.0, %v7091
          %v7093 = vpop.f32.mrf.mxu0
          %v7094 = vadd.f32 0.0, %v7093
          %7095 = vmatmul.bf16.gmra.mxu0 %v6888
          %v7096 = vpop.f32.mrf.mxu0
          %v7097 = vadd.f32 0.0, %v7096
          %v7098 = vpop.f32.mrf.mxu0
          %v7099 = vadd.f32 0.0, %v7098
          %7100 = vmatmul.bf16.gmra.mxu0 %v6891
          %v7101 = vpop.f32.mrf.mxu0
          %v7102 = vadd.f32 0.0, %v7101
          %v7103 = vpop.f32.mrf.mxu0
          %v7104 = vadd.f32 0.0, %v7103
          %7105 = vmatmul.bf16.gmra.mxu0 %v6894
          %v7106 = vpop.f32.mrf.mxu0
          %v7107 = vadd.f32 0.0, %v7106
          %v7108 = vpop.f32.mrf.mxu0
          %v7109 = vadd.f32 0.0, %v7108
          %7110 = vmatmul.bf16.gmra.mxu0 %v6897
          %v7111 = vpop.f32.mrf.mxu0
          %v7112 = vadd.f32 0.0, %v7111
          %v7113 = vpop.f32.mrf.mxu0
          %v7114 = vadd.f32 0.0, %v7113
          %7115 = vmatmul.bf16.gmra.mxu0 %v6900
          %v7116 = vpop.f32.mrf.mxu0
          %v7117 = vadd.f32 0.0, %v7116
          %v7118 = vpop.f32.mrf.mxu0
          %v7119 = vadd.f32 0.0, %v7118
          %7120 = vmatmul.bf16.gmra.mxu0 %v6903
          %v7121 = vpop.f32.mrf.mxu0
          %v7122 = vadd.f32 0.0, %v7121
          %v7123 = vpop.f32.mrf.mxu0
          %v7124 = vadd.f32 0.0, %v7123
          %7125 = vmatmul.bf16.gmra.mxu0 %v6906
          %v7126 = vpop.f32.mrf.mxu0
          %v7127 = vadd.f32 0.0, %v7126
          %v7128 = vpop.f32.mrf.mxu0
          %v7129 = vadd.f32 0.0, %v7128
          %7130 = vmatmul.bf16.gmra.mxu0 %v6909
          %v7131 = vpop.f32.mrf.mxu0
          %v7132 = vadd.f32 0.0, %v7131
          %v7133 = vpop.f32.mrf.mxu0
          %7134 = vdwg.mxu0
          %v7135 = vsel %vm4708, %v7057, -inf
          %v7136 = vmax.f32 %v6969, %v7135
          %7137 = vmax.xlane.f32.xlu0 %v7136
          %v7138 = vpop.xlane.xlu0 %7137
          %v7139 = vsel %vm4708, %v7059, -inf
          %v7140 = vmax.f32 %v6971, %v7139
          %7141 = vmax.xlane.f32.xlu0 %v7140
          %v7142 = vpop.xlane.xlu0 %7141
          %v7143 = vsel %vm4708, %v7062, -inf
          %v7144 = vmax.f32 %v6974, %v7143
          %7145 = vmax.xlane.f32.xlu0 %v7144
          %v7146 = vpop.xlane.xlu0 %7145
          %v7147 = vsel %vm4708, %v7064, -inf
          %v7148 = vmax.f32 %v6976, %v7147
          %7149 = vmax.xlane.f32.xlu0 %v7148
          %v7150 = vpop.xlane.xlu0 %7149
          %v7151 = vsel %vm4708, %v7067, -inf
          %v7152 = vmax.f32 %v6979, %v7151
          %7153 = vmax.xlane.f32.xlu0 %v7152
          %v7154 = vpop.xlane.xlu0 %7153
          %v7155 = vsel %vm4708, %v7069, -inf
          %v7156 = vmax.f32 %v6981, %v7155
          %7157 = vmax.xlane.f32.xlu0 %v7156
          %v7158 = vpop.xlane.xlu0 %7157
          %v7159 = vsel %vm4708, %v7072, -inf
          %v7160 = vmax.f32 %v6984, %v7159
          %7161 = vmax.xlane.f32.xlu0 %v7160
          %v7162 = vpop.xlane.xlu0 %7161
          %v7163 = vsel %vm4708, %v7074, -inf
          %v7164 = vmax.f32 %v6986, %v7163
          %7165 = vmax.xlane.f32.xlu0 %v7164
          %v7166 = vpop.xlane.xlu0 %7165
          %v7167 = vsel %vm4708, %v7077, -inf
          %v7168 = vmax.f32 %v6989, %v7167
          %7169 = vmax.xlane.f32.xlu0 %v7168
          %v7170 = vpop.xlane.xlu0 %7169
          %v7171 = vsel %vm4708, %v7079, -inf
          %v7172 = vmax.f32 %v6991, %v7171
          %7173 = vmax.xlane.f32.xlu0 %v7172
          %v7174 = vpop.xlane.xlu0 %7173
          %v7175 = vsel %vm4708, %v7082, -inf
          %v7176 = vmax.f32 %v6994, %v7175
          %7177 = vmax.xlane.f32.xlu0 %v7176
          %v7178 = vpop.xlane.xlu0 %7177
          %v7179 = vsel %vm4708, %v7084, -inf
          %v7180 = vmax.f32 %v6996, %v7179
          %7181 = vmax.xlane.f32.xlu0 %v7180
          %v7182 = vpop.xlane.xlu0 %7181
          %v7183 = vsel %vm4708, %v7087, -inf
          %v7184 = vmax.f32 %v6999, %v7183
          %7185 = vmax.xlane.f32.xlu0 %v7184
          %v7186 = vpop.xlane.xlu0 %7185
          %v7187 = vsel %vm4708, %v7089, -inf
          %v7188 = vmax.f32 %v7001, %v7187
          %7189 = vmax.xlane.f32.xlu0 %v7188
          %v7190 = vpop.xlane.xlu0 %7189
          %v7191 = vsel %vm4708, %v7092, -inf
          %v7192 = vmax.f32 %v7004, %v7191
          %7193 = vmax.xlane.f32.xlu0 %v7192
          %v7194 = vpop.xlane.xlu0 %7193
          %v7195 = vsel %vm4708, %v7094, -inf
          %v7196 = vmax.f32 %v7006, %v7195
          %7197 = vmax.xlane.f32.xlu0 %v7196
          %v7198 = vpop.xlane.xlu0 %7197
          %v7199 = vsel %vm4708, %v7097, -inf
          %v7200 = vmax.f32 %v7009, %v7199
          %7201 = vmax.xlane.f32.xlu0 %v7200
          %v7202 = vpop.xlane.xlu0 %7201
          %v7203 = vsel %vm4708, %v7099, -inf
          %v7204 = vmax.f32 %v7011, %v7203
          %7205 = vmax.xlane.f32.xlu0 %v7204
          %v7206 = vpop.xlane.xlu0 %7205
          %v7207 = vsel %vm4708, %v7102, -inf
          %v7208 = vmax.f32 %v7014, %v7207
          %7209 = vmax.xlane.f32.xlu0 %v7208
          %v7210 = vpop.xlane.xlu0 %7209
          %v7211 = vsel %vm4708, %v7104, -inf
          %v7212 = vmax.f32 %v7016, %v7211
          %7213 = vmax.xlane.f32.xlu0 %v7212
          %v7214 = vpop.xlane.xlu0 %7213
          %v7215 = vsel %vm4708, %v7107, -inf
          %v7216 = vmax.f32 %v7019, %v7215
          %7217 = vmax.xlane.f32.xlu0 %v7216
          %v7218 = vpop.xlane.xlu0 %7217
          %v7219 = vsel %vm4708, %v7109, -inf
          %v7220 = vmax.f32 %v7021, %v7219
          %7221 = vmax.xlane.f32.xlu0 %v7220
          %v7222 = vpop.xlane.xlu0 %7221
          %v7223 = vsel %vm4708, %v7112, -inf
          %v7224 = vmax.f32 %v7024, %v7223
          %7225 = vmax.xlane.f32.xlu0 %v7224
          %v7226 = vpop.xlane.xlu0 %7225
          %v7227 = vsel %vm4708, %v7114, -inf
          %v7228 = vmax.f32 %v7026, %v7227
          %7229 = vmax.xlane.f32.xlu0 %v7228
          %v7230 = vpop.xlane.xlu0 %7229
          %v7231 = vsel %vm4708, %v7117, -inf
          %v7232 = vmax.f32 %v7029, %v7231
          %7233 = vmax.xlane.f32.xlu0 %v7232
          %v7234 = vpop.xlane.xlu0 %7233
          %v7235 = vsel %vm4708, %v7119, -inf
          %v7236 = vmax.f32 %v7031, %v7235
          %7237 = vmax.xlane.f32.xlu0 %v7236
          %v7238 = vpop.xlane.xlu0 %7237
          %v7239 = vsel %vm4708, %v7122, -inf
          %v7240 = vmax.f32 %v7034, %v7239
          %7241 = vmax.xlane.f32.xlu0 %v7240
          %v7242 = vpop.xlane.xlu0 %7241
          %v7243 = vsel %vm4708, %v7124, -inf
          %v7244 = vmax.f32 %v7036, %v7243
          %7245 = vmax.xlane.f32.xlu0 %v7244
          %v7246 = vpop.xlane.xlu0 %7245
          %v7247 = vsel %vm4708, %v7127, -inf
          %v7248 = vmax.f32 %v7039, %v7247
          %7249 = vmax.xlane.f32.xlu0 %v7248
          %v7250 = vpop.xlane.xlu0 %7249
          %v7251 = vsel %vm4708, %v7129, -inf
          %v7252 = vmax.f32 %v7041, %v7251
          %7253 = vmax.xlane.f32.xlu0 %v7252
          %v7254 = vpop.xlane.xlu0 %7253
          %v7255 = vsel %vm4829, %v7044, -inf
          %v7256 = vsel %vm4831, %v7132, -inf
          %v7257 = vmax.f32 %v7255, %v7256
          %7258 = vmax.xlane.f32.xlu0 %v7257
          %v7259 = vpop.xlane.xlu0 %7258
          %v7260 = vsub.f32 %v6969, %v7138
          %v7261 = vsub.f32 %v7057, %v7138
          %v7262 = vsub.f32 %v6971, %v7142
          %v7263 = vsub.f32 %v7059, %v7142
          %v7264 = vsub.f32 %v6974, %v7146
          %v7265 = vsub.f32 %v7062, %v7146
          %v7266 = vsub.f32 %v6976, %v7150
          %v7267 = vsub.f32 %v7064, %v7150
          %v7268 = vsub.f32 %v6979, %v7154
          %v7269 = vsub.f32 %v7067, %v7154
          %v7270 = vsub.f32 %v6981, %v7158
          %v7271 = vsub.f32 %v7069, %v7158
          %v7272 = vsub.f32 %v6984, %v7162
          %v7273 = vsub.f32 %v7072, %v7162
          %v7274 = vsub.f32 %v6986, %v7166
          %v7275 = vsub.f32 %v7074, %v7166
          %v7276 = vsub.f32 %v6989, %v7170
          %v7277 = vsub.f32 %v7077, %v7170
          %v7278 = vsub.f32 %v6991, %v7174
          %v7279 = vsub.f32 %v7079, %v7174
          %v7280 = vsub.f32 %v6994, %v7178
          %v7281 = vsub.f32 %v7082, %v7178
          %v7282 = vsub.f32 %v6996, %v7182
          %v7283 = vsub.f32 %v7084, %v7182
          %v7284 = vsub.f32 %v6999, %v7186
          %v7285 = vsub.f32 %v7087, %v7186
          %v7286 = vsub.f32 %v7001, %v7190
          %v7287 = vsub.f32 %v7089, %v7190
          %v7288 = vsub.f32 %v7004, %v7194
          %v7289 = vsub.f32 %v7092, %v7194
          %v7290 = vsub.f32 %v7006, %v7198
          %v7291 = vsub.f32 %v7094, %v7198
          %v7292 = vsub.f32 %v7009, %v7202
          %v7293 = vsub.f32 %v7097, %v7202
          %v7294 = vsub.f32 %v7011, %v7206
          %v7295 = vsub.f32 %v7099, %v7206
          %v7296 = vsub.f32 %v7014, %v7210
          %v7297 = vsub.f32 %v7102, %v7210
          %v7298 = vsub.f32 %v7016, %v7214
          %v7299 = vsub.f32 %v7104, %v7214
          %v7300 = vsub.f32 %v7019, %v7218
          %v7301 = vsub.f32 %v7107, %v7218
          %v7302 = vsub.f32 %v7021, %v7222
          %v7303 = vsub.f32 %v7109, %v7222
          %v7304 = vsub.f32 %v7024, %v7226
          %v7305 = vsub.f32 %v7112, %v7226
          %v7306 = vsub.f32 %v7026, %v7230
          %v7307 = vsub.f32 %v7114, %v7230
          %v7308 = vsub.f32 %v7029, %v7234
          %v7309 = vsub.f32 %v7117, %v7234
          %v7310 = vsub.f32 %v7031, %v7238
          %v7311 = vsub.f32 %v7119, %v7238
          %v7312 = vsub.f32 %v7034, %v7242
          %v7313 = vsub.f32 %v7122, %v7242
          %v7314 = vsub.f32 %v7036, %v7246
          %v7315 = vsub.f32 %v7124, %v7246
          %v7316 = vsub.f32 %v7039, %v7250
          %v7317 = vsub.f32 %v7127, %v7250
          %v7318 = vsub.f32 %v7041, %v7254
          %v7319 = vsub.f32 %v7129, %v7254
          %v7320 = vsub.f32 %v7044, %v7259
          %v7321 = vsub.f32 %v7132, %v7259
          %v7322 = vmul.f32 %v7260, 1.442695
          %v7323 = vpow.pop %v7322
          %v7324 = vmul.f32 %v7261, 1.442695
          %v7325 = vpow.pop %v7324
          %v7326 = vmul.f32 %v7262, 1.442695
          %v7327 = vpow.pop %v7326
          %v7328 = vmul.f32 %v7263, 1.442695
          %v7329 = vpow.pop %v7328
          %v7330 = vmul.f32 %v7264, 1.442695
          %v7331 = vpow.pop %v7330
          %v7332 = vmul.f32 %v7265, 1.442695
          %v7333 = vpow.pop %v7332
          %v7334 = vmul.f32 %v7266, 1.442695
          %v7335 = vpow.pop %v7334
          %v7336 = vmul.f32 %v7267, 1.442695
          %v7337 = vpow.pop %v7336
          %v7338 = vmul.f32 %v7268, 1.442695
          %v7339 = vpow.pop %v7338
          %v7340 = vmul.f32 %v7269, 1.442695
          %v7341 = vpow.pop %v7340
          %v7342 = vmul.f32 %v7270, 1.442695
          %v7343 = vpow.pop %v7342
          %v7344 = vmul.f32 %v7271, 1.442695
          %v7345 = vpow.pop %v7344
          %v7346 = vmul.f32 %v7272, 1.442695
          %v7347 = vpow.pop %v7346
          %v7348 = vmul.f32 %v7273, 1.442695
          %v7349 = vpow.pop %v7348
          %v7350 = vmul.f32 %v7274, 1.442695
          %v7351 = vpow.pop %v7350
          %v7352 = vmul.f32 %v7275, 1.442695
          %v7353 = vpow.pop %v7352
          %v7354 = vmul.f32 %v7276, 1.442695
          %v7355 = vpow.pop %v7354
          %v7356 = vmul.f32 %v7277, 1.442695
          %v7357 = vpow.pop %v7356
          %v7358 = vmul.f32 %v7278, 1.442695
          %v7359 = vpow.pop %v7358
          %v7360 = vmul.f32 %v7279, 1.442695
          %v7361 = vpow.pop %v7360
          %v7362 = vmul.f32 %v7280, 1.442695
          %v7363 = vpow.pop %v7362
          %v7364 = vmul.f32 %v7281, 1.442695
          %v7365 = vpow.pop %v7364
          %v7366 = vmul.f32 %v7282, 1.442695
          %v7367 = vpow.pop %v7366
          %v7368 = vmul.f32 %v7283, 1.442695
          %v7369 = vpow.pop %v7368
          %v7370 = vmul.f32 %v7284, 1.442695
          %v7371 = vpow.pop %v7370
          %v7372 = vmul.f32 %v7285, 1.442695
          %v7373 = vpow.pop %v7372
          %v7374 = vmul.f32 %v7286, 1.442695
          %v7375 = vpow.pop %v7374
          %v7376 = vmul.f32 %v7287, 1.442695
          %v7377 = vpow.pop %v7376
          %v7378 = vmul.f32 %v7288, 1.442695
          %v7379 = vpow.pop %v7378
          %v7380 = vmul.f32 %v7289, 1.442695
          %v7381 = vpow.pop %v7380
          %v7382 = vmul.f32 %v7290, 1.442695
          %v7383 = vpow.pop %v7382
          %v7384 = vmul.f32 %v7291, 1.442695
          %v7385 = vpow.pop %v7384
          %v7386 = vmul.f32 %v7292, 1.442695
          %v7387 = vpow.pop %v7386
          %v7388 = vmul.f32 %v7293, 1.442695
          %v7389 = vpow.pop %v7388
          %v7390 = vmul.f32 %v7294, 1.442695
          %v7391 = vpow.pop %v7390
          %v7392 = vmul.f32 %v7295, 1.442695
          %v7393 = vpow.pop %v7392
          %v7394 = vmul.f32 %v7296, 1.442695
          %v7395 = vpow.pop %v7394
          %v7396 = vmul.f32 %v7297, 1.442695
          %v7397 = vpow.pop %v7396
          %v7398 = vmul.f32 %v7298, 1.442695
          %v7399 = vpow.pop %v7398
          %v7400 = vmul.f32 %v7299, 1.442695
          %v7401 = vpow.pop %v7400
          %v7402 = vmul.f32 %v7300, 1.442695
          %v7403 = vpow.pop %v7402
          %v7404 = vmul.f32 %v7301, 1.442695
          %v7405 = vpow.pop %v7404
          %v7406 = vmul.f32 %v7302, 1.442695
          %v7407 = vpow.pop %v7406
          %v7408 = vmul.f32 %v7303, 1.442695
          %v7409 = vpow.pop %v7408
          %v7410 = vmul.f32 %v7304, 1.442695
          %v7411 = vpow.pop %v7410
          %v7412 = vmul.f32 %v7305, 1.442695
          %v7413 = vpow.pop %v7412
          %v7414 = vmul.f32 %v7306, 1.442695
          %v7415 = vpow.pop %v7414
          %v7416 = vmul.f32 %v7307, 1.442695
          %v7417 = vpow.pop %v7416
          %v7418 = vmul.f32 %v7308, 1.442695
          %v7419 = vpow.pop %v7418
          %v7420 = vmul.f32 %v7309, 1.442695
          %v7421 = vpow.pop %v7420
          %v7422 = vmul.f32 %v7310, 1.442695
          %v7423 = vpow.pop %v7422
          %v7424 = vmul.f32 %v7311, 1.442695
          %v7425 = vpow.pop %v7424
          %v7426 = vmul.f32 %v7312, 1.442695
          %v7427 = vpow.pop %v7426
          %v7428 = vmul.f32 %v7313, 1.442695
          %v7429 = vpow.pop %v7428
          %v7430 = vmul.f32 %v7314, 1.442695
          %v7431 = vpow.pop %v7430
          %v7432 = vmul.f32 %v7315, 1.442695
          %v7433 = vpow.pop %v7432
          %v7434 = vmul.f32 %v7316, 1.442695
          %v7435 = vpow.pop %v7434
          %v7436 = vmul.f32 %v7317, 1.442695
          %v7437 = vpow.pop %v7436
          %v7438 = vmul.f32 %v7318, 1.442695
          %v7439 = vpow.pop %v7438
          %v7440 = vmul.f32 %v7319, 1.442695
          %v7441 = vpow.pop %v7440
          %v7442 = vmul.f32 %v7320, 1.442695
          %v7443 = vpow.pop %v7442
          %v7444 = vmul.f32 %v7321, 1.442695
          %v7445 = vpow.pop %v7444
          %v7446 = vsel %vm4708, %v7325, 0.0
          %v7447 = vadd.f32 %v7323, %v7446
          %7448 = vadd.xlane.f32.xlu0 %v7447
          %v7449 = vpop.xlane.xlu0 %7448
          %v7450 = vsel %vm4708, %v7329, 0.0
          %v7451 = vadd.f32 %v7327, %v7450
          %7452 = vadd.xlane.f32.xlu0 %v7451
          %v7453 = vpop.xlane.xlu0 %7452
          %v7454 = vsel %vm4708, %v7333, 0.0
          %v7455 = vadd.f32 %v7331, %v7454
          %7456 = vadd.xlane.f32.xlu0 %v7455
          %v7457 = vpop.xlane.xlu0 %7456
          %v7458 = vsel %vm4708, %v7337, 0.0
          %v7459 = vadd.f32 %v7335, %v7458
          %7460 = vadd.xlane.f32.xlu0 %v7459
          %v7461 = vpop.xlane.xlu0 %7460
          %v7462 = vsel %vm4708, %v7341, 0.0
          %v7463 = vadd.f32 %v7339, %v7462
          %7464 = vadd.xlane.f32.xlu0 %v7463
          %v7465 = vpop.xlane.xlu0 %7464
          %v7466 = vsel %vm4708, %v7345, 0.0
          %v7467 = vadd.f32 %v7343, %v7466
          %7468 = vadd.xlane.f32.xlu0 %v7467
          %v7469 = vpop.xlane.xlu0 %7468
          %v7470 = vsel %vm4708, %v7349, 0.0
          %v7471 = vadd.f32 %v7347, %v7470
          %7472 = vadd.xlane.f32.xlu0 %v7471
          %v7473 = vpop.xlane.xlu0 %7472
          %v7474 = vsel %vm4708, %v7353, 0.0
          %v7475 = vadd.f32 %v7351, %v7474
          %7476 = vadd.xlane.f32.xlu0 %v7475
          %v7477 = vpop.xlane.xlu0 %7476
          %v7478 = vsel %vm4708, %v7357, 0.0
          %v7479 = vadd.f32 %v7355, %v7478
          %7480 = vadd.xlane.f32.xlu0 %v7479
          %v7481 = vpop.xlane.xlu0 %7480
          %v7482 = vsel %vm4708, %v7361, 0.0
          %v7483 = vadd.f32 %v7359, %v7482
          %7484 = vadd.xlane.f32.xlu0 %v7483
          %v7485 = vpop.xlane.xlu0 %7484
          %v7486 = vsel %vm4708, %v7365, 0.0
          %v7487 = vadd.f32 %v7363, %v7486
          %7488 = vadd.xlane.f32.xlu0 %v7487
          %v7489 = vpop.xlane.xlu0 %7488
          %v7490 = vsel %vm4708, %v7369, 0.0
          %v7491 = vadd.f32 %v7367, %v7490
          %7492 = vadd.xlane.f32.xlu0 %v7491
          %v7493 = vpop.xlane.xlu0 %7492
          %v7494 = vsel %vm4708, %v7373, 0.0
          %v7495 = vadd.f32 %v7371, %v7494
          %7496 = vadd.xlane.f32.xlu0 %v7495
          %v7497 = vpop.xlane.xlu0 %7496
          %v7498 = vsel %vm4708, %v7377, 0.0
          %v7499 = vadd.f32 %v7375, %v7498
          %7500 = vadd.xlane.f32.xlu0 %v7499
          %v7501 = vpop.xlane.xlu0 %7500
          %v7502 = vsel %vm4708, %v7381, 0.0
          %v7503 = vadd.f32 %v7379, %v7502
          %7504 = vadd.xlane.f32.xlu0 %v7503
          %v7505 = vpop.xlane.xlu0 %7504
          %v7506 = vsel %vm4708, %v7385, 0.0
          %v7507 = vadd.f32 %v7383, %v7506
          %7508 = vadd.xlane.f32.xlu0 %v7507
          %v7509 = vpop.xlane.xlu0 %7508
          %v7510 = vsel %vm4708, %v7389, 0.0
          %v7511 = vadd.f32 %v7387, %v7510
          %7512 = vadd.xlane.f32.xlu0 %v7511
          %v7513 = vpop.xlane.xlu0 %7512
          %v7514 = vsel %vm4708, %v7393, 0.0
          %v7515 = vadd.f32 %v7391, %v7514
          %7516 = vadd.xlane.f32.xlu0 %v7515
          %v7517 = vpop.xlane.xlu0 %7516
          %v7518 = vsel %vm4708, %v7397, 0.0
          %v7519 = vadd.f32 %v7395, %v7518
          %7520 = vadd.xlane.f32.xlu0 %v7519
          %v7521 = vpop.xlane.xlu0 %7520
          %v7522 = vsel %vm4708, %v7401, 0.0
          %v7523 = vadd.f32 %v7399, %v7522
          %7524 = vadd.xlane.f32.xlu0 %v7523
          %v7525 = vpop.xlane.xlu0 %7524
          %v7526 = vsel %vm4708, %v7405, 0.0
          %v7527 = vadd.f32 %v7403, %v7526
          %7528 = vadd.xlane.f32.xlu0 %v7527
          %v7529 = vpop.xlane.xlu0 %7528
          %v7530 = vsel %vm4708, %v7409, 0.0
          %v7531 = vadd.f32 %v7407, %v7530
          %7532 = vadd.xlane.f32.xlu0 %v7531
          %v7533 = vpop.xlane.xlu0 %7532
          %v7534 = vsel %vm4708, %v7413, 0.0
          %v7535 = vadd.f32 %v7411, %v7534
          %7536 = vadd.xlane.f32.xlu0 %v7535
          %v7537 = vpop.xlane.xlu0 %7536
          %v7538 = vsel %vm4708, %v7417, 0.0
          %v7539 = vadd.f32 %v7415, %v7538
          %7540 = vadd.xlane.f32.xlu0 %v7539
          %v7541 = vpop.xlane.xlu0 %7540
          %v7542 = vsel %vm4708, %v7421, 0.0
          %v7543 = vadd.f32 %v7419, %v7542
          %7544 = vadd.xlane.f32.xlu0 %v7543
          %v7545 = vpop.xlane.xlu0 %7544
          %v7546 = vsel %vm4708, %v7425, 0.0
          %v7547 = vadd.f32 %v7423, %v7546
          %7548 = vadd.xlane.f32.xlu0 %v7547
          %v7549 = vpop.xlane.xlu0 %7548
          %v7550 = vsel %vm4708, %v7429, 0.0
          %v7551 = vadd.f32 %v7427, %v7550
          %7552 = vadd.xlane.f32.xlu0 %v7551
          %v7553 = vpop.xlane.xlu0 %7552
          %v7554 = vsel %vm4708, %v7433, 0.0
          %v7555 = vadd.f32 %v7431, %v7554
          %7556 = vadd.xlane.f32.xlu0 %v7555
          %v7557 = vpop.xlane.xlu0 %7556
          %v7558 = vsel %vm4708, %v7437, 0.0
          %v7559 = vadd.f32 %v7435, %v7558
          %7560 = vadd.xlane.f32.xlu0 %v7559
          %v7561 = vpop.xlane.xlu0 %7560
          %v7562 = vsel %vm4708, %v7441, 0.0
          %v7563 = vadd.f32 %v7439, %v7562
          %7564 = vadd.xlane.f32.xlu0 %v7563
          %v7565 = vpop.xlane.xlu0 %7564
          %v7566 = vsel %vm4829, %v7443, 0.0
          %v7567 = vsel %vm4831, %v7445, 0.0
          %v7568 = vadd.f32 %v7566, %v7567
          %7569 = vadd.xlane.f32.xlu0 %v7568
          %v7570 = vpop.xlane.xlu0 %7569
          %v7571 = vrcp.pop %v7449
          %v7572 = vrcp.pop %v7453
          %v7573 = vrcp.pop %v7457
          %v7574 = vrcp.pop %v7461
          %v7575 = vrcp.pop %v7465
          %v7576 = vrcp.pop %v7469
          %v7577 = vrcp.pop %v7473
          %v7578 = vrcp.pop %v7477
          %v7579 = vrcp.pop %v7481
          %v7580 = vrcp.pop %v7485
          %v7581 = vrcp.pop %v7489
          %v7582 = vrcp.pop %v7493
          %v7583 = vrcp.pop %v7497
          %v7584 = vrcp.pop %v7501
          %v7585 = vrcp.pop %v7505
          %v7586 = vrcp.pop %v7509
          %v7587 = vrcp.pop %v7513
          %v7588 = vrcp.pop %v7517
          %v7589 = vrcp.pop %v7521
          %v7590 = vrcp.pop %v7525
          %v7591 = vrcp.pop %v7529
          %v7592 = vrcp.pop %v7533
          %v7593 = vrcp.pop %v7537
          %v7594 = vrcp.pop %v7541
          %v7595 = vrcp.pop %v7545
          %v7596 = vrcp.pop %v7549
          %v7597 = vrcp.pop %v7553
          %v7598 = vrcp.pop %v7557
          %v7599 = vrcp.pop %v7561
          %v7600 = vrcp.pop %v7565
          %v7601 = vrcp.pop %v7570
          %v7602 = vpack.c.bf16 %v7327, %v7323
          %v7603 = vpack.c.bf16 %v7329, %v7325
          %v7604 = vpack.c.bf16 %v7335, %v7331
          %v7605 = vpack.c.bf16 %v7337, %v7333
          %v7606 = vpack.c.bf16 %v7343, %v7339
          %v7607 = vpack.c.bf16 %v7345, %v7341
          %v7608 = vpack.c.bf16 %v7351, %v7347
          %v7609 = vpack.c.bf16 %v7353, %v7349
          %v7610 = vpack.c.bf16 %v7359, %v7355
          %v7611 = vpack.c.bf16 %v7361, %v7357
          %v7612 = vpack.c.bf16 %v7367, %v7363
          %v7613 = vpack.c.bf16 %v7369, %v7365
          %v7614 = vpack.c.bf16 %v7375, %v7371
          %v7615 = vpack.c.bf16 %v7377, %v7373
          %v7616 = vpack.c.bf16 %v7383, %v7379
          %v7617 = vpack.c.bf16 %v7385, %v7381
          %v7618 = vpack.c.bf16 %v7391, %v7387
          %v7619 = vpack.c.bf16 %v7393, %v7389
          %v7620 = vpack.c.bf16 %v7399, %v7395
          %v7621 = vpack.c.bf16 %v7401, %v7397
          %v7622 = vpack.c.bf16 %v7407, %v7403
          %v7623 = vpack.c.bf16 %v7409, %v7405
          %v7624 = vpack.c.bf16 %v7415, %v7411
          %v7625 = vpack.c.bf16 %v7417, %v7413
          %v7626 = vpack.c.bf16 %v7423, %v7419
          %v7627 = vpack.c.bf16 %v7425, %v7421
          %v7628 = vpack.c.bf16 %v7431, %v7427
          %v7629 = vpack.c.bf16 %v7433, %v7429
          %v7630 = vpack.c.bf16 %v7439, %v7435
          %v7631 = vpack.c.bf16 %v7441, %v7437
          %v7632 = vpack.c.bf16 %v7443, %v7443
          %v7633 = vpack.c.bf16 %v7445, %v7445
          %7634 = vrot.lane.b32.xlu0 %v5272, 96
          %v7635 = vpop.permute.xlu0 %7634
          %7636 = vrot.lane.b32.xlu0 %v5273, 96
          %v7637 = vpop.permute.xlu0 %7636
          %7638 = vrot.lane.b32.xlu0 %v5274, 96
          %v7639 = vpop.permute.xlu0 %7638
          %7640 = vrot.lane.b32.xlu0 %v5275, 96
          %v7641 = vpop.permute.xlu0 %7640
          %7642 = vrot.lane.b32.xlu0 %v5276, 96
          %v7643 = vpop.permute.xlu0 %7642
          %7644 = vrot.lane.b32.xlu0 %v5277, 96
          %v7645 = vpop.permute.xlu0 %7644
          %7646 = vrot.lane.b32.xlu0 %v5278, 96
          %v7647 = vpop.permute.xlu0 %7646
          %7648 = vrot.lane.b32.xlu0 %v5279, 96
          %v7649 = vpop.permute.xlu0 %7648
          %7650 = vrot.lane.b32.xlu0 %v5280, 96
          %v7651 = vpop.permute.xlu0 %7650
          %7652 = vrot.lane.b32.xlu0 %v5281, 96
          %v7653 = vpop.permute.xlu0 %7652
          %7654 = vrot.lane.b32.xlu0 %v5282, 96
          %v7655 = vpop.permute.xlu0 %7654
          %7656 = vrot.lane.b32.xlu0 %v5283, 96
          %v7657 = vpop.permute.xlu0 %7656
          %7658 = vrot.lane.b32.xlu0 %v5284, 96
          %v7659 = vpop.permute.xlu0 %7658
          %7660 = vrot.lane.b32.xlu0 %v5285, 96
          %v7661 = vpop.permute.xlu0 %7660
          %7662 = vrot.lane.b32.xlu0 %v5286, 96
          %v7663 = vpop.permute.xlu0 %7662
          %7664 = vrot.lane.b32.xlu0 %v5287, 96
          %v7665 = vpop.permute.xlu0 %7664
          %v7682 = vsel %vm4708, %v7603, 0
          %v7685 = vsel %vm4708, %v7605, 0
          %v7688 = vsel %vm4708, %v7607, 0
          %v7691 = vsel %vm4708, %v7609, 0
          %v7694 = vsel %vm4708, %v7611, 0
          %v7697 = vsel %vm4708, %v7613, 0
          %v7700 = vsel %vm4708, %v7615, 0
          %v7703 = vsel %vm4708, %v7617, 0
          %v7706 = vsel %vm4708, %v7619, 0
          %v7709 = vsel %vm4708, %v7621, 0
          %v7712 = vsel %vm4708, %v7623, 0
          %v7715 = vsel %vm4708, %v7625, 0
          %v7718 = vsel %vm4708, %v7627, 0
          %v7721 = vsel %vm4708, %v7629, 0
          %v7724 = vsel %vm4708, %v7631, 0
          %v7727 = vsel %vm4708, %v7633, 0
          %v7730 = vand.u32 %v7665, %v5386
          %7732 = vmatpush.bf16.msra.mxu0 %v7649
          %7733 = vmatpush.bf16.msra.mxu0 %v7647
          %7734 = vmatpush.bf16.msra.mxu0 %v7645
          %7735 = vmatpush.bf16.msra.mxu0 %v7643
          %7736 = vmatpush.bf16.msra.mxu0 %v7641
          %7737 = vmatpush.bf16.msra.mxu0 %v7639
          %7738 = vmatpush.bf16.msra.mxu0 %v7637
          %7739 = vmatpush.bf16.msra.mxu0 %v7635
          %7740 = vmatmul.bf16.gmra.mxu0 %v7602
          %v7741 = vpop.f32.mrf.mxu0
          %v7742 = vadd.f32 0.0, %v7741
          %v7743 = vpop.f32.mrf.mxu0
          %v7744 = vadd.f32 0.0, %v7743
          %7745 = vmatmul.bf16.gmra.mxu0 %v7604
          %v7746 = vpop.f32.mrf.mxu0
          %v7747 = vadd.f32 0.0, %v7746
          %v7748 = vpop.f32.mrf.mxu0
          %v7749 = vadd.f32 0.0, %v7748
          %7750 = vmatmul.bf16.gmra.mxu0 %v7606
          %v7751 = vpop.f32.mrf.mxu0
          %v7752 = vadd.f32 0.0, %v7751
          %v7753 = vpop.f32.mrf.mxu0
          %v7754 = vadd.f32 0.0, %v7753
          %7755 = vmatmul.bf16.gmra.mxu0 %v7608
          %v7756 = vpop.f32.mrf.mxu0
          %v7757 = vadd.f32 0.0, %v7756
          %v7758 = vpop.f32.mrf.mxu0
          %v7759 = vadd.f32 0.0, %v7758
          %7760 = vmatmul.bf16.gmra.mxu0 %v7610
          %v7761 = vpop.f32.mrf.mxu0
          %v7762 = vadd.f32 0.0, %v7761
          %v7763 = vpop.f32.mrf.mxu0
          %v7764 = vadd.f32 0.0, %v7763
          %7765 = vmatmul.bf16.gmra.mxu0 %v7612
          %v7766 = vpop.f32.mrf.mxu0
          %v7767 = vadd.f32 0.0, %v7766
          %v7768 = vpop.f32.mrf.mxu0
          %v7769 = vadd.f32 0.0, %v7768
          %7770 = vmatmul.bf16.gmra.mxu0 %v7614
          %v7771 = vpop.f32.mrf.mxu0
          %v7772 = vadd.f32 0.0, %v7771
          %v7773 = vpop.f32.mrf.mxu0
          %v7774 = vadd.f32 0.0, %v7773
          %7775 = vmatmul.bf16.gmra.mxu0 %v7616
          %v7776 = vpop.f32.mrf.mxu0
          %v7777 = vadd.f32 0.0, %v7776
          %v7778 = vpop.f32.mrf.mxu0
          %v7779 = vadd.f32 0.0, %v7778
          %7780 = vmatmul.bf16.gmra.mxu0 %v7618
          %v7781 = vpop.f32.mrf.mxu0
          %v7782 = vadd.f32 0.0, %v7781
          %v7783 = vpop.f32.mrf.mxu0
          %v7784 = vadd.f32 0.0, %v7783
          %7785 = vmatmul.bf16.gmra.mxu0 %v7620
          %v7786 = vpop.f32.mrf.mxu0
          %v7787 = vadd.f32 0.0, %v7786
          %v7788 = vpop.f32.mrf.mxu0
          %v7789 = vadd.f32 0.0, %v7788
          %7790 = vmatmul.bf16.gmra.mxu0 %v7622
          %v7791 = vpop.f32.mrf.mxu0
          %v7792 = vadd.f32 0.0, %v7791
          %v7793 = vpop.f32.mrf.mxu0
          %v7794 = vadd.f32 0.0, %v7793
          %7795 = vmatmul.bf16.gmra.mxu0 %v7624
          %v7796 = vpop.f32.mrf.mxu0
          %v7797 = vadd.f32 0.0, %v7796
          %v7798 = vpop.f32.mrf.mxu0
          %v7799 = vadd.f32 0.0, %v7798
          %7800 = vmatmul.bf16.gmra.mxu0 %v7626
          %v7801 = vpop.f32.mrf.mxu0
          %v7802 = vadd.f32 0.0, %v7801
          %v7803 = vpop.f32.mrf.mxu0
          %v7804 = vadd.f32 0.0, %v7803
          %7805 = vmatmul.bf16.gmra.mxu0 %v7628
          %v7806 = vpop.f32.mrf.mxu0
          %v7807 = vadd.f32 0.0, %v7806
          %v7808 = vpop.f32.mrf.mxu0
          %v7809 = vadd.f32 0.0, %v7808
          %7810 = vmatmul.bf16.gmra.mxu0 %v7630
          %v7811 = vpop.f32.mrf.mxu0
          %v7812 = vadd.f32 0.0, %v7811
          %v7813 = vpop.f32.mrf.mxu0
          %v7814 = vadd.f32 0.0, %v7813
          %7815 = vmatmul.bf16.gmra.mxu0 %v7632
          %v7816 = vpop.f32.mrf.mxu0
          %v7817 = vadd.f32 0.0, %v7816
          %v7818 = vpop.f32.mrf.mxu0
          %7819 = vdwg.mxu0
          %7820 = vmatpush.bf16.msra.mxu0 %v7730
          %7821 = vmatpush.bf16.msra.mxu0 %v7663
          %7822 = vmatpush.bf16.msra.mxu0 %v7661
          %7823 = vmatpush.bf16.msra.mxu0 %v7659
          %7824 = vmatpush.bf16.msra.mxu0 %v7657
          %7825 = vmatpush.bf16.msra.mxu0 %v7655
          %7826 = vmatpush.bf16.msra.mxu0 %v7653
          %7827 = vmatpush.bf16.msra.mxu0 %v7651
          %7828 = vmatmul.bf16.gmra.mxu0 %v7682
          %v7829 = vpop.f32.mrf.mxu0
          %v7830 = vadd.f32 %v7742, %v7829
          %v7831 = vpop.f32.mrf.mxu0
          %v7832 = vadd.f32 %v7744, %v7831
          %7833 = vmatmul.bf16.gmra.mxu0 %v7685
          %v7834 = vpop.f32.mrf.mxu0
          %v7835 = vadd.f32 %v7747, %v7834
          %v7836 = vpop.f32.mrf.mxu0
          %v7837 = vadd.f32 %v7749, %v7836
          %7838 = vmatmul.bf16.gmra.mxu0 %v7688
          %v7839 = vpop.f32.mrf.mxu0
          %v7840 = vadd.f32 %v7752, %v7839
          %v7841 = vpop.f32.mrf.mxu0
          %v7842 = vadd.f32 %v7754, %v7841
          %7843 = vmatmul.bf16.gmra.mxu0 %v7691
          %v7844 = vpop.f32.mrf.mxu0
          %v7845 = vadd.f32 %v7757, %v7844
          %v7846 = vpop.f32.mrf.mxu0
          %v7847 = vadd.f32 %v7759, %v7846
          %7848 = vmatmul.bf16.gmra.mxu0 %v7694
          %v7849 = vpop.f32.mrf.mxu0
          %v7850 = vadd.f32 %v7762, %v7849
          %v7851 = vpop.f32.mrf.mxu0
          %v7852 = vadd.f32 %v7764, %v7851
          %7853 = vmatmul.bf16.gmra.mxu0 %v7697
          %v7854 = vpop.f32.mrf.mxu0
          %v7855 = vadd.f32 %v7767, %v7854
          %v7856 = vpop.f32.mrf.mxu0
          %v7857 = vadd.f32 %v7769, %v7856
          %7858 = vmatmul.bf16.gmra.mxu0 %v7700
          %v7859 = vpop.f32.mrf.mxu0
          %v7860 = vadd.f32 %v7772, %v7859
          %v7861 = vpop.f32.mrf.mxu0
          %v7862 = vadd.f32 %v7774, %v7861
          %7863 = vmatmul.bf16.gmra.mxu0 %v7703
          %v7864 = vpop.f32.mrf.mxu0
          %v7865 = vadd.f32 %v7777, %v7864
          %v7866 = vpop.f32.mrf.mxu0
          %v7867 = vadd.f32 %v7779, %v7866
          %7868 = vmatmul.bf16.gmra.mxu0 %v7706
          %v7869 = vpop.f32.mrf.mxu0
          %v7870 = vadd.f32 %v7782, %v7869
          %v7871 = vpop.f32.mrf.mxu0
          %v7872 = vadd.f32 %v7784, %v7871
          %7873 = vmatmul.bf16.gmra.mxu0 %v7709
          %v7874 = vpop.f32.mrf.mxu0
          %v7875 = vadd.f32 %v7787, %v7874
          %v7876 = vpop.f32.mrf.mxu0
          %v7877 = vadd.f32 %v7789, %v7876
          %7878 = vmatmul.bf16.gmra.mxu0 %v7712
          %v7879 = vpop.f32.mrf.mxu0
          %v7880 = vadd.f32 %v7792, %v7879
          %v7881 = vpop.f32.mrf.mxu0
          %v7882 = vadd.f32 %v7794, %v7881
          %7883 = vmatmul.bf16.gmra.mxu0 %v7715
          %v7884 = vpop.f32.mrf.mxu0
          %v7885 = vadd.f32 %v7797, %v7884
          %v7886 = vpop.f32.mrf.mxu0
          %v7887 = vadd.f32 %v7799, %v7886
          %7888 = vmatmul.bf16.gmra.mxu0 %v7718
          %v7889 = vpop.f32.mrf.mxu0
          %v7890 = vadd.f32 %v7802, %v7889
          %v7891 = vpop.f32.mrf.mxu0
          %v7892 = vadd.f32 %v7804, %v7891
          %7893 = vmatmul.bf16.gmra.mxu0 %v7721
          %v7894 = vpop.f32.mrf.mxu0
          %v7895 = vadd.f32 %v7807, %v7894
          %v7896 = vpop.f32.mrf.mxu0
          %v7897 = vadd.f32 %v7809, %v7896
          %7898 = vmatmul.bf16.gmra.mxu0 %v7724
          %v7899 = vpop.f32.mrf.mxu0
          %v7900 = vadd.f32 %v7812, %v7899
          %v7901 = vpop.f32.mrf.mxu0
          %v7902 = vadd.f32 %v7814, %v7901
          %7903 = vmatmul.bf16.gmra.mxu0 %v7727
          %v7904 = vpop.f32.mrf.mxu0
          %v7905 = vadd.f32 %v7817, %v7904
          %v7906 = vpop.f32.mrf.mxu0
          %7907 = vdwg.mxu0
          %v7908 = vmul.f32 %v7830, %v7571
          %v7909 = vmul.f32 %v7832, %v7572
          %v7910 = vmul.f32 %v7835, %v7573
          %v7911 = vmul.f32 %v7837, %v7574
          %v7912 = vmul.f32 %v7840, %v7575
          %v7913 = vmul.f32 %v7842, %v7576
          %v7914 = vmul.f32 %v7845, %v7577
          %v7915 = vmul.f32 %v7847, %v7578
          %v7916 = vmul.f32 %v7850, %v7579
          %v7917 = vmul.f32 %v7852, %v7580
          %v7918 = vmul.f32 %v7855, %v7581
          %v7919 = vmul.f32 %v7857, %v7582
          %v7920 = vmul.f32 %v7860, %v7583
          %v7921 = vmul.f32 %v7862, %v7584
          %v7922 = vmul.f32 %v7865, %v7585
          %v7923 = vmul.f32 %v7867, %v7586
          %v7924 = vmul.f32 %v7870, %v7587
          %v7925 = vmul.f32 %v7872, %v7588
          %v7926 = vmul.f32 %v7875, %v7589
          %v7927 = vmul.f32 %v7877, %v7590
          %v7928 = vmul.f32 %v7880, %v7591
          %v7929 = vmul.f32 %v7882, %v7592
          %v7930 = vmul.f32 %v7885, %v7593
          %v7931 = vmul.f32 %v7887, %v7594
          %v7932 = vmul.f32 %v7890, %v7595
          %v7933 = vmul.f32 %v7892, %v7596
          %v7934 = vmul.f32 %v7895, %v7597
          %v7935 = vmul.f32 %v7897, %v7598
          %v7936 = vmul.f32 %v7900, %v7599
          %v7937 = vmul.f32 %v7902, %v7600
          %v7938 = vmul.f32 %v7905, %v7601
          %v7939 = vadd.f32 %v6768, %v7908
          %v7940 = vadd.f32 %v6769, %v7909
          %v7941 = vadd.f32 %v6770, %v7910
          %v7942 = vadd.f32 %v6771, %v7911
          %v7943 = vadd.f32 %v6772, %v7912
          %v7944 = vadd.f32 %v6773, %v7913
          %v7945 = vadd.f32 %v6774, %v7914
          %v7946 = vadd.f32 %v6775, %v7915
          %v7947 = vadd.f32 %v6776, %v7916
          %v7948 = vadd.f32 %v6777, %v7917
          %v7949 = vadd.f32 %v6778, %v7918
          %v7950 = vadd.f32 %v6779, %v7919
          %v7951 = vadd.f32 %v6780, %v7920
          %v7952 = vadd.f32 %v6781, %v7921
          %v7953 = vadd.f32 %v6782, %v7922
          %v7954 = vadd.f32 %v6783, %v7923
          %v7955 = vadd.f32 %v6784, %v7924
          %v7956 = vadd.f32 %v6785, %v7925
          %v7957 = vadd.f32 %v6786, %v7926
          %v7958 = vadd.f32 %v6787, %v7927
          %v7959 = vadd.f32 %v6788, %v7928
          %v7960 = vadd.f32 %v6789, %v7929
          %v7961 = vadd.f32 %v6790, %v7930
          %v7962 = vadd.f32 %v6791, %v7931
          %v7963 = vadd.f32 %v6792, %v7932
          %v7964 = vadd.f32 %v6793, %v7933
          %v7965 = vadd.f32 %v6794, %v7934
          %v7966 = vadd.f32 %v6795, %v7935
          %v7967 = vadd.f32 %v6796, %v7936
          %v7968 = vadd.f32 %v6797, %v7937
          %v7969 = vadd.f32 %v6798, %v7938
          %7970 = vrot.lane.b32.xlu0 %v4387, 122
          %v7971 = vpop.permute.xlu0 %7970
          %7972 = vrot.lane.b32.xlu0 %v4388, 122
          %v7973 = vpop.permute.xlu0 %7972
          %7974 = vrot.lane.b32.xlu0 %v4389, 122
          %v7975 = vpop.permute.xlu0 %7974
          %7976 = vrot.lane.b32.xlu0 %v4390, 122
          %v7977 = vpop.permute.xlu0 %7976
          %7978 = vrot.lane.b32.xlu0 %v4391, 122
          %v7979 = vpop.permute.xlu0 %7978
          %7980 = vrot.lane.b32.xlu0 %v4392, 122
          %v7981 = vpop.permute.xlu0 %7980
          %7982 = vrot.lane.b32.xlu0 %v4393, 122
          %v7983 = vpop.permute.xlu0 %7982
          %7984 = vrot.lane.b32.xlu0 %v4394, 122
          %v7985 = vpop.permute.xlu0 %7984
          %7986 = vrot.lane.b32.xlu0 %v4395, 122
          %v7987 = vpop.permute.xlu0 %7986
          %7988 = vrot.lane.b32.xlu0 %v4396, 122
          %v7989 = vpop.permute.xlu0 %7988
          %7990 = vrot.lane.b32.xlu0 %v4397, 122
          %v7991 = vpop.permute.xlu0 %7990
          %7992 = vrot.lane.b32.xlu0 %v4398, 122
          %v7993 = vpop.permute.xlu0 %7992
          %7994 = vrot.lane.b32.xlu0 %v4399, 122
          %v7995 = vpop.permute.xlu0 %7994
          %7996 = vrot.lane.b32.xlu0 %v4400, 122
          %v7997 = vpop.permute.xlu0 %7996
          %7998 = vrot.lane.b32.xlu0 %v4401, 122
          %v7999 = vpop.permute.xlu0 %7998
          %8000 = vrot.lane.b32.xlu0 %v4402, 122
          %v8001 = vpop.permute.xlu0 %8000
          %8002 = vrot.lane.b32.xlu0 %v4387, 114
          %v8003 = vpop.permute.xlu0 %8002
          %8004 = vrot.lane.b32.xlu0 %v4388, 114
          %v8005 = vpop.permute.xlu0 %8004
          %8006 = vrot.lane.b32.xlu0 %v4389, 114
          %v8007 = vpop.permute.xlu0 %8006
          %8008 = vrot.lane.b32.xlu0 %v4390, 114
          %v8009 = vpop.permute.xlu0 %8008
          %8010 = vrot.lane.b32.xlu0 %v4391, 114
          %v8011 = vpop.permute.xlu0 %8010
          %8012 = vrot.lane.b32.xlu0 %v4392, 114
          %v8013 = vpop.permute.xlu0 %8012
          %8014 = vrot.lane.b32.xlu0 %v4393, 114
          %v8015 = vpop.permute.xlu0 %8014
          %8016 = vrot.lane.b32.xlu0 %v4394, 114
          %v8017 = vpop.permute.xlu0 %8016
          %8018 = vrot.lane.b32.xlu0 %v4395, 114
          %v8019 = vpop.permute.xlu0 %8018
          %8020 = vrot.lane.b32.xlu0 %v4396, 114
          %v8021 = vpop.permute.xlu0 %8020
          %8022 = vrot.lane.b32.xlu0 %v4397, 114
          %v8023 = vpop.permute.xlu0 %8022
          %8024 = vrot.lane.b32.xlu0 %v4398, 114
          %v8025 = vpop.permute.xlu0 %8024
          %8026 = vrot.lane.b32.xlu0 %v4399, 114
          %v8027 = vpop.permute.xlu0 %8026
          %8028 = vrot.lane.b32.xlu0 %v4400, 114
          %v8029 = vpop.permute.xlu0 %8028
          %8030 = vrot.lane.b32.xlu0 %v4401, 114
          %v8031 = vpop.permute.xlu0 %8030
          %8032 = vrot.lane.b32.xlu0 %v4402, 114
          %v8033 = vpop.permute.xlu0 %8032
          %v8035 = vsel %vm4435, %v7971, 0
          %v8038 = vsel %vm4435, %v7973, 0
          %v8041 = vsel %vm4435, %v7975, 0
          %v8044 = vsel %vm4435, %v7977, 0
          %v8047 = vsel %vm4435, %v7979, 0
          %v8050 = vsel %vm4435, %v7981, 0
          %v8053 = vsel %vm4435, %v7983, 0
          %v8056 = vsel %vm4435, %v7985, 0
          %v8059 = vsel %vm4435, %v7987, 0
          %v8062 = vsel %vm4435, %v7989, 0
          %v8065 = vsel %vm4435, %v7991, 0
          %v8068 = vsel %vm4435, %v7993, 0
          %v8071 = vsel %vm4435, %v7995, 0
          %v8074 = vsel %vm4435, %v7997, 0
          %v8077 = vsel %vm4435, %v7999, 0
          %v8080 = vsel %vm4435, %v8001, 0
          %v8083 = vsel %vm4435, %v8003, 0
          %v8086 = vsel %vm4435, %v8005, 0
          %v8089 = vsel %vm4435, %v8007, 0
          %v8092 = vsel %vm4435, %v8009, 0
          %v8095 = vsel %vm4435, %v8011, 0
          %v8098 = vsel %vm4435, %v8013, 0
          %v8101 = vsel %vm4435, %v8015, 0
          %v8104 = vsel %vm4435, %v8017, 0
          %v8107 = vsel %vm4435, %v8019, 0
          %v8110 = vsel %vm4435, %v8021, 0
          %v8113 = vsel %vm4435, %v8023, 0
          %v8116 = vsel %vm4435, %v8025, 0
          %v8119 = vsel %vm4435, %v8027, 0
          %v8122 = vsel %vm4435, %v8029, 0
          %v8125 = vsel %vm4435, %v8031, 0
          %v8128 = vsel %vm4435, %v8033, 0
          %8130 = vmatpush.bf16.xpose.msra.mxu0 %v8104
          %8131 = vmatpush.bf16.xpose.msra.mxu0 %v8101
          %8132 = vmatpush.bf16.xpose.msra.mxu0 %v8098
          %8133 = vmatpush.bf16.xpose.msra.mxu0 %v8095
          %8134 = vmatpush.bf16.xpose.msra.mxu0 %v8092
          %8135 = vmatpush.bf16.xpose.msra.mxu0 %v8089
          %8136 = vmatpush.bf16.xpose.msra.mxu0 %v8086
          %8137 = vmatpush.bf16.xpose.msra.mxu0 %v8083
          %8138 = vmatmul.bf16.gmra.mxu0 %v8035
          %v8139 = vpop.f32.mrf.mxu0
          %v8140 = vadd.f32 0.0, %v8139
          %v8141 = vpop.f32.mrf.mxu0
          %v8142 = vadd.f32 0.0, %v8141
          %8143 = vmatmul.bf16.gmra.mxu0 %v8038
          %v8144 = vpop.f32.mrf.mxu0
          %v8145 = vadd.f32 0.0, %v8144
          %v8146 = vpop.f32.mrf.mxu0
          %v8147 = vadd.f32 0.0, %v8146
          %8148 = vmatmul.bf16.gmra.mxu0 %v8041
          %v8149 = vpop.f32.mrf.mxu0
          %v8150 = vadd.f32 0.0, %v8149
          %v8151 = vpop.f32.mrf.mxu0
          %v8152 = vadd.f32 0.0, %v8151
          %8153 = vmatmul.bf16.gmra.mxu0 %v8044
          %v8154 = vpop.f32.mrf.mxu0
          %v8155 = vadd.f32 0.0, %v8154
          %v8156 = vpop.f32.mrf.mxu0
          %v8157 = vadd.f32 0.0, %v8156
          %8158 = vmatmul.bf16.gmra.mxu0 %v8047
          %v8159 = vpop.f32.mrf.mxu0
          %v8160 = vadd.f32 0.0, %v8159
          %v8161 = vpop.f32.mrf.mxu0
          %v8162 = vadd.f32 0.0, %v8161
          %8163 = vmatmul.bf16.gmra.mxu0 %v8050
          %v8164 = vpop.f32.mrf.mxu0
          %v8165 = vadd.f32 0.0, %v8164
          %v8166 = vpop.f32.mrf.mxu0
          %v8167 = vadd.f32 0.0, %v8166
          %8168 = vmatmul.bf16.gmra.mxu0 %v8053
          %v8169 = vpop.f32.mrf.mxu0
          %v8170 = vadd.f32 0.0, %v8169
          %v8171 = vpop.f32.mrf.mxu0
          %v8172 = vadd.f32 0.0, %v8171
          %8173 = vmatmul.bf16.gmra.mxu0 %v8056
          %v8174 = vpop.f32.mrf.mxu0
          %v8175 = vadd.f32 0.0, %v8174
          %v8176 = vpop.f32.mrf.mxu0
          %v8177 = vadd.f32 0.0, %v8176
          %8178 = vmatmul.bf16.gmra.mxu0 %v8059
          %v8179 = vpop.f32.mrf.mxu0
          %v8180 = vadd.f32 0.0, %v8179
          %v8181 = vpop.f32.mrf.mxu0
          %v8182 = vadd.f32 0.0, %v8181
          %8183 = vmatmul.bf16.gmra.mxu0 %v8062
          %v8184 = vpop.f32.mrf.mxu0
          %v8185 = vadd.f32 0.0, %v8184
          %v8186 = vpop.f32.mrf.mxu0
          %v8187 = vadd.f32 0.0, %v8186
          %8188 = vmatmul.bf16.gmra.mxu0 %v8065
          %v8189 = vpop.f32.mrf.mxu0
          %v8190 = vadd.f32 0.0, %v8189
          %v8191 = vpop.f32.mrf.mxu0
          %v8192 = vadd.f32 0.0, %v8191
          %8193 = vmatmul.bf16.gmra.mxu0 %v8068
          %v8194 = vpop.f32.mrf.mxu0
          %v8195 = vadd.f32 0.0, %v8194
          %v8196 = vpop.f32.mrf.mxu0
          %v8197 = vadd.f32 0.0, %v8196
          %8198 = vmatmul.bf16.gmra.mxu0 %v8071
          %v8199 = vpop.f32.mrf.mxu0
          %v8200 = vadd.f32 0.0, %v8199
          %v8201 = vpop.f32.mrf.mxu0
          %v8202 = vadd.f32 0.0, %v8201
          %8203 = vmatmul.bf16.gmra.mxu0 %v8074
          %v8204 = vpop.f32.mrf.mxu0
          %v8205 = vadd.f32 0.0, %v8204
          %v8206 = vpop.f32.mrf.mxu0
          %v8207 = vadd.f32 0.0, %v8206
          %8208 = vmatmul.bf16.gmra.mxu0 %v8077
          %v8209 = vpop.f32.mrf.mxu0
          %v8210 = vadd.f32 0.0, %v8209
          %v8211 = vpop.f32.mrf.mxu0
          %v8212 = vadd.f32 0.0, %v8211
          %8213 = vmatmul.bf16.gmra.mxu0 %v8080
          %v8214 = vpop.f32.mrf.mxu0
          %v8215 = vadd.f32 0.0, %v8214
          %v8216 = vpop.f32.mrf.mxu0
          %8217 = vdwg.mxu0
          %8218 = vmatpush.bf16.xpose.msra.mxu0 %v8128
          %8219 = vmatpush.bf16.xpose.msra.mxu0 %v8125
          %8220 = vmatpush.bf16.xpose.msra.mxu0 %v8122
          %8221 = vmatpush.bf16.xpose.msra.mxu0 %v8119
          %8222 = vmatpush.bf16.xpose.msra.mxu0 %v8116
          %8223 = vmatpush.bf16.xpose.msra.mxu0 %v8113
          %8224 = vmatpush.bf16.xpose.msra.mxu0 %v8110
          %8225 = vmatpush.bf16.xpose.msra.mxu0 %v8107
          %8226 = vmatmul.bf16.gmra.mxu0 %v8035
          %v8227 = vpop.f32.mrf.mxu0
          %v8228 = vadd.f32 0.0, %v8227
          %v8229 = vpop.f32.mrf.mxu0
          %v8230 = vadd.f32 0.0, %v8229
          %8231 = vmatmul.bf16.gmra.mxu0 %v8038
          %v8232 = vpop.f32.mrf.mxu0
          %v8233 = vadd.f32 0.0, %v8232
          %v8234 = vpop.f32.mrf.mxu0
          %v8235 = vadd.f32 0.0, %v8234
          %8236 = vmatmul.bf16.gmra.mxu0 %v8041
          %v8237 = vpop.f32.mrf.mxu0
          %v8238 = vadd.f32 0.0, %v8237
          %v8239 = vpop.f32.mrf.mxu0
          %v8240 = vadd.f32 0.0, %v8239
          %8241 = vmatmul.bf16.gmra.mxu0 %v8044
          %v8242 = vpop.f32.mrf.mxu0
          %v8243 = vadd.f32 0.0, %v8242
          %v8244 = vpop.f32.mrf.mxu0
          %v8245 = vadd.f32 0.0, %v8244
          %8246 = vmatmul.bf16.gmra.mxu0 %v8047
          %v8247 = vpop.f32.mrf.mxu0
          %v8248 = vadd.f32 0.0, %v8247
          %v8249 = vpop.f32.mrf.mxu0
          %v8250 = vadd.f32 0.0, %v8249
          %8251 = vmatmul.bf16.gmra.mxu0 %v8050
          %v8252 = vpop.f32.mrf.mxu0
          %v8253 = vadd.f32 0.0, %v8252
          %v8254 = vpop.f32.mrf.mxu0
          %v8255 = vadd.f32 0.0, %v8254
          %8256 = vmatmul.bf16.gmra.mxu0 %v8053
          %v8257 = vpop.f32.mrf.mxu0
          %v8258 = vadd.f32 0.0, %v8257
          %v8259 = vpop.f32.mrf.mxu0
          %v8260 = vadd.f32 0.0, %v8259
          %8261 = vmatmul.bf16.gmra.mxu0 %v8056
          %v8262 = vpop.f32.mrf.mxu0
          %v8263 = vadd.f32 0.0, %v8262
          %v8264 = vpop.f32.mrf.mxu0
          %v8265 = vadd.f32 0.0, %v8264
          %8266 = vmatmul.bf16.gmra.mxu0 %v8059
          %v8267 = vpop.f32.mrf.mxu0
          %v8268 = vadd.f32 0.0, %v8267
          %v8269 = vpop.f32.mrf.mxu0
          %v8270 = vadd.f32 0.0, %v8269
          %8271 = vmatmul.bf16.gmra.mxu0 %v8062
          %v8272 = vpop.f32.mrf.mxu0
          %v8273 = vadd.f32 0.0, %v8272
          %v8274 = vpop.f32.mrf.mxu0
          %v8275 = vadd.f32 0.0, %v8274
          %8276 = vmatmul.bf16.gmra.mxu0 %v8065
          %v8277 = vpop.f32.mrf.mxu0
          %v8278 = vadd.f32 0.0, %v8277
          %v8279 = vpop.f32.mrf.mxu0
          %v8280 = vadd.f32 0.0, %v8279
          %8281 = vmatmul.bf16.gmra.mxu0 %v8068
          %v8282 = vpop.f32.mrf.mxu0
          %v8283 = vadd.f32 0.0, %v8282
          %v8284 = vpop.f32.mrf.mxu0
          %v8285 = vadd.f32 0.0, %v8284
          %8286 = vmatmul.bf16.gmra.mxu0 %v8071
          %v8287 = vpop.f32.mrf.mxu0
          %v8288 = vadd.f32 0.0, %v8287
          %v8289 = vpop.f32.mrf.mxu0
          %v8290 = vadd.f32 0.0, %v8289
          %8291 = vmatmul.bf16.gmra.mxu0 %v8074
          %v8292 = vpop.f32.mrf.mxu0
          %v8293 = vadd.f32 0.0, %v8292
          %v8294 = vpop.f32.mrf.mxu0
          %v8295 = vadd.f32 0.0, %v8294
          %8296 = vmatmul.bf16.gmra.mxu0 %v8077
          %v8297 = vpop.f32.mrf.mxu0
          %v8298 = vadd.f32 0.0, %v8297
          %v8299 = vpop.f32.mrf.mxu0
          %v8300 = vadd.f32 0.0, %v8299
          %8301 = vmatmul.bf16.gmra.mxu0 %v8080
          %v8302 = vpop.f32.mrf.mxu0
          %v8303 = vadd.f32 0.0, %v8302
          %v8304 = vpop.f32.mrf.mxu0
          %8305 = vdwg.mxu0
          %v8306 = vsel %vm4708, %v8228, -inf
          %v8307 = vmax.f32 %v8140, %v8306
          %8308 = vmax.xlane.f32.xlu0 %v8307
          %v8309 = vpop.xlane.xlu0 %8308
          %v8310 = vsel %vm4708, %v8230, -inf
          %v8311 = vmax.f32 %v8142, %v8310
          %8312 = vmax.xlane.f32.xlu0 %v8311
          %v8313 = vpop.xlane.xlu0 %8312
          %v8314 = vsel %vm4708, %v8233, -inf
          %v8315 = vmax.f32 %v8145, %v8314
          %8316 = vmax.xlane.f32.xlu0 %v8315
          %v8317 = vpop.xlane.xlu0 %8316
          %v8318 = vsel %vm4708, %v8235, -inf
          %v8319 = vmax.f32 %v8147, %v8318
          %8320 = vmax.xlane.f32.xlu0 %v8319
          %v8321 = vpop.xlane.xlu0 %8320
          %v8322 = vsel %vm4708, %v8238, -inf
          %v8323 = vmax.f32 %v8150, %v8322
          %8324 = vmax.xlane.f32.xlu0 %v8323
          %v8325 = vpop.xlane.xlu0 %8324
          %v8326 = vsel %vm4708, %v8240, -inf
          %v8327 = vmax.f32 %v8152, %v8326
          %8328 = vmax.xlane.f32.xlu0 %v8327
          %v8329 = vpop.xlane.xlu0 %8328
          %v8330 = vsel %vm4708, %v8243, -inf
          %v8331 = vmax.f32 %v8155, %v8330
          %8332 = vmax.xlane.f32.xlu0 %v8331
          %v8333 = vpop.xlane.xlu0 %8332
          %v8334 = vsel %vm4708, %v8245, -inf
          %v8335 = vmax.f32 %v8157, %v8334
          %8336 = vmax.xlane.f32.xlu0 %v8335
          %v8337 = vpop.xlane.xlu0 %8336
          %v8338 = vsel %vm4708, %v8248, -inf
          %v8339 = vmax.f32 %v8160, %v8338
          %8340 = vmax.xlane.f32.xlu0 %v8339
          %v8341 = vpop.xlane.xlu0 %8340
          %v8342 = vsel %vm4708, %v8250, -inf
          %v8343 = vmax.f32 %v8162, %v8342
          %8344 = vmax.xlane.f32.xlu0 %v8343
          %v8345 = vpop.xlane.xlu0 %8344
          %v8346 = vsel %vm4708, %v8253, -inf
          %v8347 = vmax.f32 %v8165, %v8346
          %8348 = vmax.xlane.f32.xlu0 %v8347
          %v8349 = vpop.xlane.xlu0 %8348
          %v8350 = vsel %vm4708, %v8255, -inf
          %v8351 = vmax.f32 %v8167, %v8350
          %8352 = vmax.xlane.f32.xlu0 %v8351
          %v8353 = vpop.xlane.xlu0 %8352
          %v8354 = vsel %vm4708, %v8258, -inf
          %v8355 = vmax.f32 %v8170, %v8354
          %8356 = vmax.xlane.f32.xlu0 %v8355
          %v8357 = vpop.xlane.xlu0 %8356
          %v8358 = vsel %vm4708, %v8260, -inf
          %v8359 = vmax.f32 %v8172, %v8358
          %8360 = vmax.xlane.f32.xlu0 %v8359
          %v8361 = vpop.xlane.xlu0 %8360
          %v8362 = vsel %vm4708, %v8263, -inf
          %v8363 = vmax.f32 %v8175, %v8362
          %8364 = vmax.xlane.f32.xlu0 %v8363
          %v8365 = vpop.xlane.xlu0 %8364
          %v8366 = vsel %vm4708, %v8265, -inf
          %v8367 = vmax.f32 %v8177, %v8366
          %8368 = vmax.xlane.f32.xlu0 %v8367
          %v8369 = vpop.xlane.xlu0 %8368
          %v8370 = vsel %vm4708, %v8268, -inf
          %v8371 = vmax.f32 %v8180, %v8370
          %8372 = vmax.xlane.f32.xlu0 %v8371
          %v8373 = vpop.xlane.xlu0 %8372
          %v8374 = vsel %vm4708, %v8270, -inf
          %v8375 = vmax.f32 %v8182, %v8374
          %8376 = vmax.xlane.f32.xlu0 %v8375
          %v8377 = vpop.xlane.xlu0 %8376
          %v8378 = vsel %vm4708, %v8273, -inf
          %v8379 = vmax.f32 %v8185, %v8378
          %8380 = vmax.xlane.f32.xlu0 %v8379
          %v8381 = vpop.xlane.xlu0 %8380
          %v8382 = vsel %vm4708, %v8275, -inf
          %v8383 = vmax.f32 %v8187, %v8382
          %8384 = vmax.xlane.f32.xlu0 %v8383
          %v8385 = vpop.xlane.xlu0 %8384
          %v8386 = vsel %vm4708, %v8278, -inf
          %v8387 = vmax.f32 %v8190, %v8386
          %8388 = vmax.xlane.f32.xlu0 %v8387
          %v8389 = vpop.xlane.xlu0 %8388
          %v8390 = vsel %vm4708, %v8280, -inf
          %v8391 = vmax.f32 %v8192, %v8390
          %8392 = vmax.xlane.f32.xlu0 %v8391
          %v8393 = vpop.xlane.xlu0 %8392
          %v8394 = vsel %vm4708, %v8283, -inf
          %v8395 = vmax.f32 %v8195, %v8394
          %8396 = vmax.xlane.f32.xlu0 %v8395
          %v8397 = vpop.xlane.xlu0 %8396
          %v8398 = vsel %vm4708, %v8285, -inf
          %v8399 = vmax.f32 %v8197, %v8398
          %8400 = vmax.xlane.f32.xlu0 %v8399
          %v8401 = vpop.xlane.xlu0 %8400
          %v8402 = vsel %vm4708, %v8288, -inf
          %v8403 = vmax.f32 %v8200, %v8402
          %8404 = vmax.xlane.f32.xlu0 %v8403
          %v8405 = vpop.xlane.xlu0 %8404
          %v8406 = vsel %vm4708, %v8290, -inf
          %v8407 = vmax.f32 %v8202, %v8406
          %8408 = vmax.xlane.f32.xlu0 %v8407
          %v8409 = vpop.xlane.xlu0 %8408
          %v8410 = vsel %vm4708, %v8293, -inf
          %v8411 = vmax.f32 %v8205, %v8410
          %8412 = vmax.xlane.f32.xlu0 %v8411
          %v8413 = vpop.xlane.xlu0 %8412
          %v8414 = vsel %vm4708, %v8295, -inf
          %v8415 = vmax.f32 %v8207, %v8414
          %8416 = vmax.xlane.f32.xlu0 %v8415
          %v8417 = vpop.xlane.xlu0 %8416
          %v8418 = vsel %vm4708, %v8298, -inf
          %v8419 = vmax.f32 %v8210, %v8418
          %8420 = vmax.xlane.f32.xlu0 %v8419
          %v8421 = vpop.xlane.xlu0 %8420
          %v8422 = vsel %vm4708, %v8300, -inf
          %v8423 = vmax.f32 %v8212, %v8422
          %8424 = vmax.xlane.f32.xlu0 %v8423
          %v8425 = vpop.xlane.xlu0 %8424
          %v8426 = vsel %vm4829, %v8215, -inf
          %v8427 = vsel %vm4831, %v8303, -inf
          %v8428 = vmax.f32 %v8426, %v8427
          %8429 = vmax.xlane.f32.xlu0 %v8428
          %v8430 = vpop.xlane.xlu0 %8429
          %v8431 = vsub.f32 %v8140, %v8309
          %v8432 = vsub.f32 %v8228, %v8309
          %v8433 = vsub.f32 %v8142, %v8313
          %v8434 = vsub.f32 %v8230, %v8313
          %v8435 = vsub.f32 %v8145, %v8317
          %v8436 = vsub.f32 %v8233, %v8317
          %v8437 = vsub.f32 %v8147, %v8321
          %v8438 = vsub.f32 %v8235, %v8321
          %v8439 = vsub.f32 %v8150, %v8325
          %v8440 = vsub.f32 %v8238, %v8325
          %v8441 = vsub.f32 %v8152, %v8329
          %v8442 = vsub.f32 %v8240, %v8329
          %v8443 = vsub.f32 %v8155, %v8333
          %v8444 = vsub.f32 %v8243, %v8333
          %v8445 = vsub.f32 %v8157, %v8337
          %v8446 = vsub.f32 %v8245, %v8337
          %v8447 = vsub.f32 %v8160, %v8341
          %v8448 = vsub.f32 %v8248, %v8341
          %v8449 = vsub.f32 %v8162, %v8345
          %v8450 = vsub.f32 %v8250, %v8345
          %v8451 = vsub.f32 %v8165, %v8349
          %v8452 = vsub.f32 %v8253, %v8349
          %v8453 = vsub.f32 %v8167, %v8353
          %v8454 = vsub.f32 %v8255, %v8353
          %v8455 = vsub.f32 %v8170, %v8357
          %v8456 = vsub.f32 %v8258, %v8357
          %v8457 = vsub.f32 %v8172, %v8361
          %v8458 = vsub.f32 %v8260, %v8361
          %v8459 = vsub.f32 %v8175, %v8365
          %v8460 = vsub.f32 %v8263, %v8365
          %v8461 = vsub.f32 %v8177, %v8369
          %v8462 = vsub.f32 %v8265, %v8369
          %v8463 = vsub.f32 %v8180, %v8373
          %v8464 = vsub.f32 %v8268, %v8373
          %v8465 = vsub.f32 %v8182, %v8377
          %v8466 = vsub.f32 %v8270, %v8377
          %v8467 = vsub.f32 %v8185, %v8381
          %v8468 = vsub.f32 %v8273, %v8381
          %v8469 = vsub.f32 %v8187, %v8385
          %v8470 = vsub.f32 %v8275, %v8385
          %v8471 = vsub.f32 %v8190, %v8389
          %v8472 = vsub.f32 %v8278, %v8389
          %v8473 = vsub.f32 %v8192, %v8393
          %v8474 = vsub.f32 %v8280, %v8393
          %v8475 = vsub.f32 %v8195, %v8397
          %v8476 = vsub.f32 %v8283, %v8397
          %v8477 = vsub.f32 %v8197, %v8401
          %v8478 = vsub.f32 %v8285, %v8401
          %v8479 = vsub.f32 %v8200, %v8405
          %v8480 = vsub.f32 %v8288, %v8405
          %v8481 = vsub.f32 %v8202, %v8409
          %v8482 = vsub.f32 %v8290, %v8409
          %v8483 = vsub.f32 %v8205, %v8413
          %v8484 = vsub.f32 %v8293, %v8413
          %v8485 = vsub.f32 %v8207, %v8417
          %v8486 = vsub.f32 %v8295, %v8417
          %v8487 = vsub.f32 %v8210, %v8421
          %v8488 = vsub.f32 %v8298, %v8421
          %v8489 = vsub.f32 %v8212, %v8425
          %v8490 = vsub.f32 %v8300, %v8425
          %v8491 = vsub.f32 %v8215, %v8430
          %v8492 = vsub.f32 %v8303, %v8430
          %v8493 = vmul.f32 %v8431, 1.442695
          %v8494 = vpow.pop %v8493
          %v8495 = vmul.f32 %v8432, 1.442695
          %v8496 = vpow.pop %v8495
          %v8497 = vmul.f32 %v8433, 1.442695
          %v8498 = vpow.pop %v8497
          %v8499 = vmul.f32 %v8434, 1.442695
          %v8500 = vpow.pop %v8499
          %v8501 = vmul.f32 %v8435, 1.442695
          %v8502 = vpow.pop %v8501
          %v8503 = vmul.f32 %v8436, 1.442695
          %v8504 = vpow.pop %v8503
          %v8505 = vmul.f32 %v8437, 1.442695
          %v8506 = vpow.pop %v8505
          %v8507 = vmul.f32 %v8438, 1.442695
          %v8508 = vpow.pop %v8507
          %v8509 = vmul.f32 %v8439, 1.442695
          %v8510 = vpow.pop %v8509
          %v8511 = vmul.f32 %v8440, 1.442695
          %v8512 = vpow.pop %v8511
          %v8513 = vmul.f32 %v8441, 1.442695
          %v8514 = vpow.pop %v8513
          %v8515 = vmul.f32 %v8442, 1.442695
          %v8516 = vpow.pop %v8515
          %v8517 = vmul.f32 %v8443, 1.442695
          %v8518 = vpow.pop %v8517
          %v8519 = vmul.f32 %v8444, 1.442695
          %v8520 = vpow.pop %v8519
          %v8521 = vmul.f32 %v8445, 1.442695
          %v8522 = vpow.pop %v8521
          %v8523 = vmul.f32 %v8446, 1.442695
          %v8524 = vpow.pop %v8523
          %v8525 = vmul.f32 %v8447, 1.442695
          %v8526 = vpow.pop %v8525
          %v8527 = vmul.f32 %v8448, 1.442695
          %v8528 = vpow.pop %v8527
          %v8529 = vmul.f32 %v8449, 1.442695
          %v8530 = vpow.pop %v8529
          %v8531 = vmul.f32 %v8450, 1.442695
          %v8532 = vpow.pop %v8531
          %v8533 = vmul.f32 %v8451, 1.442695
          %v8534 = vpow.pop %v8533
          %v8535 = vmul.f32 %v8452, 1.442695
          %v8536 = vpow.pop %v8535
          %v8537 = vmul.f32 %v8453, 1.442695
          %v8538 = vpow.pop %v8537
          %v8539 = vmul.f32 %v8454, 1.442695
          %v8540 = vpow.pop %v8539
          %v8541 = vmul.f32 %v8455, 1.442695
          %v8542 = vpow.pop %v8541
          %v8543 = vmul.f32 %v8456, 1.442695
          %v8544 = vpow.pop %v8543
          %v8545 = vmul.f32 %v8457, 1.442695
          %v8546 = vpow.pop %v8545
          %v8547 = vmul.f32 %v8458, 1.442695
          %v8548 = vpow.pop %v8547
          %v8549 = vmul.f32 %v8459, 1.442695
          %v8550 = vpow.pop %v8549
          %v8551 = vmul.f32 %v8460, 1.442695
          %v8552 = vpow.pop %v8551
          %v8553 = vmul.f32 %v8461, 1.442695
          %v8554 = vpow.pop %v8553
          %v8555 = vmul.f32 %v8462, 1.442695
          %v8556 = vpow.pop %v8555
          %v8557 = vmul.f32 %v8463, 1.442695
          %v8558 = vpow.pop %v8557
          %v8559 = vmul.f32 %v8464, 1.442695
          %v8560 = vpow.pop %v8559
          %v8561 = vmul.f32 %v8465, 1.442695
          %v8562 = vpow.pop %v8561
          %v8563 = vmul.f32 %v8466, 1.442695
          %v8564 = vpow.pop %v8563
          %v8565 = vmul.f32 %v8467, 1.442695
          %v8566 = vpow.pop %v8565
          %v8567 = vmul.f32 %v8468, 1.442695
          %v8568 = vpow.pop %v8567
          %v8569 = vmul.f32 %v8469, 1.442695
          %v8570 = vpow.pop %v8569
          %v8571 = vmul.f32 %v8470, 1.442695
          %v8572 = vpow.pop %v8571
          %v8573 = vmul.f32 %v8471, 1.442695
          %v8574 = vpow.pop %v8573
          %v8575 = vmul.f32 %v8472, 1.442695
          %v8576 = vpow.pop %v8575
          %v8577 = vmul.f32 %v8473, 1.442695
          %v8578 = vpow.pop %v8577
          %v8579 = vmul.f32 %v8474, 1.442695
          %v8580 = vpow.pop %v8579
          %v8581 = vmul.f32 %v8475, 1.442695
          %v8582 = vpow.pop %v8581
          %v8583 = vmul.f32 %v8476, 1.442695
          %v8584 = vpow.pop %v8583
          %v8585 = vmul.f32 %v8477, 1.442695
          %v8586 = vpow.pop %v8585
          %v8587 = vmul.f32 %v8478, 1.442695
          %v8588 = vpow.pop %v8587
          %v8589 = vmul.f32 %v8479, 1.442695
          %v8590 = vpow.pop %v8589
          %v8591 = vmul.f32 %v8480, 1.442695
          %v8592 = vpow.pop %v8591
          %v8593 = vmul.f32 %v8481, 1.442695
          %v8594 = vpow.pop %v8593
          %v8595 = vmul.f32 %v8482, 1.442695
          %v8596 = vpow.pop %v8595
          %v8597 = vmul.f32 %v8483, 1.442695
          %v8598 = vpow.pop %v8597
          %v8599 = vmul.f32 %v8484, 1.442695
          %v8600 = vpow.pop %v8599
          %v8601 = vmul.f32 %v8485, 1.442695
          %v8602 = vpow.pop %v8601
          %v8603 = vmul.f32 %v8486, 1.442695
          %v8604 = vpow.pop %v8603
          %v8605 = vmul.f32 %v8487, 1.442695
          %v8606 = vpow.pop %v8605
          %v8607 = vmul.f32 %v8488, 1.442695
          %v8608 = vpow.pop %v8607
          %v8609 = vmul.f32 %v8489, 1.442695
          %v8610 = vpow.pop %v8609
          %v8611 = vmul.f32 %v8490, 1.442695
          %v8612 = vpow.pop %v8611
          %v8613 = vmul.f32 %v8491, 1.442695
          %v8614 = vpow.pop %v8613
          %v8615 = vmul.f32 %v8492, 1.442695
          %v8616 = vpow.pop %v8615
          %v8617 = vsel %vm4708, %v8496, 0.0
          %v8618 = vadd.f32 %v8494, %v8617
          %8619 = vadd.xlane.f32.xlu0 %v8618
          %v8620 = vpop.xlane.xlu0 %8619
          %v8621 = vsel %vm4708, %v8500, 0.0
          %v8622 = vadd.f32 %v8498, %v8621
          %8623 = vadd.xlane.f32.xlu0 %v8622
          %v8624 = vpop.xlane.xlu0 %8623
          %v8625 = vsel %vm4708, %v8504, 0.0
          %v8626 = vadd.f32 %v8502, %v8625
          %8627 = vadd.xlane.f32.xlu0 %v8626
          %v8628 = vpop.xlane.xlu0 %8627
          %v8629 = vsel %vm4708, %v8508, 0.0
          %v8630 = vadd.f32 %v8506, %v8629
          %8631 = vadd.xlane.f32.xlu0 %v8630
          %v8632 = vpop.xlane.xlu0 %8631
          %v8633 = vsel %vm4708, %v8512, 0.0
          %v8634 = vadd.f32 %v8510, %v8633
          %8635 = vadd.xlane.f32.xlu0 %v8634
          %v8636 = vpop.xlane.xlu0 %8635
          %v8637 = vsel %vm4708, %v8516, 0.0
          %v8638 = vadd.f32 %v8514, %v8637
          %8639 = vadd.xlane.f32.xlu0 %v8638
          %v8640 = vpop.xlane.xlu0 %8639
          %v8641 = vsel %vm4708, %v8520, 0.0
          %v8642 = vadd.f32 %v8518, %v8641
          %8643 = vadd.xlane.f32.xlu0 %v8642
          %v8644 = vpop.xlane.xlu0 %8643
          %v8645 = vsel %vm4708, %v8524, 0.0
          %v8646 = vadd.f32 %v8522, %v8645
          %8647 = vadd.xlane.f32.xlu0 %v8646
          %v8648 = vpop.xlane.xlu0 %8647
          %v8649 = vsel %vm4708, %v8528, 0.0
          %v8650 = vadd.f32 %v8526, %v8649
          %8651 = vadd.xlane.f32.xlu0 %v8650
          %v8652 = vpop.xlane.xlu0 %8651
          %v8653 = vsel %vm4708, %v8532, 0.0
          %v8654 = vadd.f32 %v8530, %v8653
          %8655 = vadd.xlane.f32.xlu0 %v8654
          %v8656 = vpop.xlane.xlu0 %8655
          %v8657 = vsel %vm4708, %v8536, 0.0
          %v8658 = vadd.f32 %v8534, %v8657
          %8659 = vadd.xlane.f32.xlu0 %v8658
          %v8660 = vpop.xlane.xlu0 %8659
          %v8661 = vsel %vm4708, %v8540, 0.0
          %v8662 = vadd.f32 %v8538, %v8661
          %8663 = vadd.xlane.f32.xlu0 %v8662
          %v8664 = vpop.xlane.xlu0 %8663
          %v8665 = vsel %vm4708, %v8544, 0.0
          %v8666 = vadd.f32 %v8542, %v8665
          %8667 = vadd.xlane.f32.xlu0 %v8666
          %v8668 = vpop.xlane.xlu0 %8667
          %v8669 = vsel %vm4708, %v8548, 0.0
          %v8670 = vadd.f32 %v8546, %v8669
          %8671 = vadd.xlane.f32.xlu0 %v8670
          %v8672 = vpop.xlane.xlu0 %8671
          %v8673 = vsel %vm4708, %v8552, 0.0
          %v8674 = vadd.f32 %v8550, %v8673
          %8675 = vadd.xlane.f32.xlu0 %v8674
          %v8676 = vpop.xlane.xlu0 %8675
          %v8677 = vsel %vm4708, %v8556, 0.0
          %v8678 = vadd.f32 %v8554, %v8677
          %8679 = vadd.xlane.f32.xlu0 %v8678
          %v8680 = vpop.xlane.xlu0 %8679
          %v8681 = vsel %vm4708, %v8560, 0.0
          %v8682 = vadd.f32 %v8558, %v8681
          %8683 = vadd.xlane.f32.xlu0 %v8682
          %v8684 = vpop.xlane.xlu0 %8683
          %v8685 = vsel %vm4708, %v8564, 0.0
          %v8686 = vadd.f32 %v8562, %v8685
          %8687 = vadd.xlane.f32.xlu0 %v8686
          %v8688 = vpop.xlane.xlu0 %8687
          %v8689 = vsel %vm4708, %v8568, 0.0
          %v8690 = vadd.f32 %v8566, %v8689
          %8691 = vadd.xlane.f32.xlu0 %v8690
          %v8692 = vpop.xlane.xlu0 %8691
          %v8693 = vsel %vm4708, %v8572, 0.0
          %v8694 = vadd.f32 %v8570, %v8693
          %8695 = vadd.xlane.f32.xlu0 %v8694
          %v8696 = vpop.xlane.xlu0 %8695
          %v8697 = vsel %vm4708, %v8576, 0.0
          %v8698 = vadd.f32 %v8574, %v8697
          %8699 = vadd.xlane.f32.xlu0 %v8698
          %v8700 = vpop.xlane.xlu0 %8699
          %v8701 = vsel %vm4708, %v8580, 0.0
          %v8702 = vadd.f32 %v8578, %v8701
          %8703 = vadd.xlane.f32.xlu0 %v8702
          %v8704 = vpop.xlane.xlu0 %8703
          %v8705 = vsel %vm4708, %v8584, 0.0
          %v8706 = vadd.f32 %v8582, %v8705
          %8707 = vadd.xlane.f32.xlu0 %v8706
          %v8708 = vpop.xlane.xlu0 %8707
          %v8709 = vsel %vm4708, %v8588, 0.0
          %v8710 = vadd.f32 %v8586, %v8709
          %8711 = vadd.xlane.f32.xlu0 %v8710
          %v8712 = vpop.xlane.xlu0 %8711
          %v8713 = vsel %vm4708, %v8592, 0.0
          %v8714 = vadd.f32 %v8590, %v8713
          %8715 = vadd.xlane.f32.xlu0 %v8714
          %v8716 = vpop.xlane.xlu0 %8715
          %v8717 = vsel %vm4708, %v8596, 0.0
          %v8718 = vadd.f32 %v8594, %v8717
          %8719 = vadd.xlane.f32.xlu0 %v8718
          %v8720 = vpop.xlane.xlu0 %8719
          %v8721 = vsel %vm4708, %v8600, 0.0
          %v8722 = vadd.f32 %v8598, %v8721
          %8723 = vadd.xlane.f32.xlu0 %v8722
          %v8724 = vpop.xlane.xlu0 %8723
          %v8725 = vsel %vm4708, %v8604, 0.0
          %v8726 = vadd.f32 %v8602, %v8725
          %8727 = vadd.xlane.f32.xlu0 %v8726
          %v8728 = vpop.xlane.xlu0 %8727
          %v8729 = vsel %vm4708, %v8608, 0.0
          %v8730 = vadd.f32 %v8606, %v8729
          %8731 = vadd.xlane.f32.xlu0 %v8730
          %v8732 = vpop.xlane.xlu0 %8731
          %v8733 = vsel %vm4708, %v8612, 0.0
          %v8734 = vadd.f32 %v8610, %v8733
          %8735 = vadd.xlane.f32.xlu0 %v8734
          %v8736 = vpop.xlane.xlu0 %8735
          %v8737 = vsel %vm4829, %v8614, 0.0
          %v8738 = vsel %vm4831, %v8616, 0.0
          %v8739 = vadd.f32 %v8737, %v8738
          %8740 = vadd.xlane.f32.xlu0 %v8739
          %v8741 = vpop.xlane.xlu0 %8740
          %v8742 = vrcp.pop %v8620
          %v8743 = vrcp.pop %v8624
          %v8744 = vrcp.pop %v8628
          %v8745 = vrcp.pop %v8632
          %v8746 = vrcp.pop %v8636
          %v8747 = vrcp.pop %v8640
          %v8748 = vrcp.pop %v8644
          %v8749 = vrcp.pop %v8648
          %v8750 = vrcp.pop %v8652
          %v8751 = vrcp.pop %v8656
          %v8752 = vrcp.pop %v8660
          %v8753 = vrcp.pop %v8664
          %v8754 = vrcp.pop %v8668
          %v8755 = vrcp.pop %v8672
          %v8756 = vrcp.pop %v8676
          %v8757 = vrcp.pop %v8680
          %v8758 = vrcp.pop %v8684
          %v8759 = vrcp.pop %v8688
          %v8760 = vrcp.pop %v8692
          %v8761 = vrcp.pop %v8696
          %v8762 = vrcp.pop %v8700
          %v8763 = vrcp.pop %v8704
          %v8764 = vrcp.pop %v8708
          %v8765 = vrcp.pop %v8712
          %v8766 = vrcp.pop %v8716
          %v8767 = vrcp.pop %v8720
          %v8768 = vrcp.pop %v8724
          %v8769 = vrcp.pop %v8728
          %v8770 = vrcp.pop %v8732
          %v8771 = vrcp.pop %v8736
          %v8772 = vrcp.pop %v8741
          %v8773 = vpack.c.bf16 %v8498, %v8494
          %v8774 = vpack.c.bf16 %v8500, %v8496
          %v8775 = vpack.c.bf16 %v8506, %v8502
          %v8776 = vpack.c.bf16 %v8508, %v8504
          %v8777 = vpack.c.bf16 %v8514, %v8510
          %v8778 = vpack.c.bf16 %v8516, %v8512
          %v8779 = vpack.c.bf16 %v8522, %v8518
          %v8780 = vpack.c.bf16 %v8524, %v8520
          %v8781 = vpack.c.bf16 %v8530, %v8526
          %v8782 = vpack.c.bf16 %v8532, %v8528
          %v8783 = vpack.c.bf16 %v8538, %v8534
          %v8784 = vpack.c.bf16 %v8540, %v8536
          %v8785 = vpack.c.bf16 %v8546, %v8542
          %v8786 = vpack.c.bf16 %v8548, %v8544
          %v8787 = vpack.c.bf16 %v8554, %v8550
          %v8788 = vpack.c.bf16 %v8556, %v8552
          %v8789 = vpack.c.bf16 %v8562, %v8558
          %v8790 = vpack.c.bf16 %v8564, %v8560
          %v8791 = vpack.c.bf16 %v8570, %v8566
          %v8792 = vpack.c.bf16 %v8572, %v8568
          %v8793 = vpack.c.bf16 %v8578, %v8574
          %v8794 = vpack.c.bf16 %v8580, %v8576
          %v8795 = vpack.c.bf16 %v8586, %v8582
          %v8796 = vpack.c.bf16 %v8588, %v8584
          %v8797 = vpack.c.bf16 %v8594, %v8590
          %v8798 = vpack.c.bf16 %v8596, %v8592
          %v8799 = vpack.c.bf16 %v8602, %v8598
          %v8800 = vpack.c.bf16 %v8604, %v8600
          %v8801 = vpack.c.bf16 %v8610, %v8606
          %v8802 = vpack.c.bf16 %v8612, %v8608
          %v8803 = vpack.c.bf16 %v8614, %v8614
          %v8804 = vpack.c.bf16 %v8616, %v8616
          %8805 = vrot.lane.b32.xlu0 %v5272, 88
          %v8806 = vpop.permute.xlu0 %8805
          %8807 = vrot.lane.b32.xlu0 %v5273, 88
          %v8808 = vpop.permute.xlu0 %8807
          %8809 = vrot.lane.b32.xlu0 %v5274, 88
          %v8810 = vpop.permute.xlu0 %8809
          %8811 = vrot.lane.b32.xlu0 %v5275, 88
          %v8812 = vpop.permute.xlu0 %8811
          %8813 = vrot.lane.b32.xlu0 %v5276, 88
          %v8814 = vpop.permute.xlu0 %8813
          %8815 = vrot.lane.b32.xlu0 %v5277, 88
          %v8816 = vpop.permute.xlu0 %8815
          %8817 = vrot.lane.b32.xlu0 %v5278, 88
          %v8818 = vpop.permute.xlu0 %8817
          %8819 = vrot.lane.b32.xlu0 %v5279, 88
          %v8820 = vpop.permute.xlu0 %8819
          %8821 = vrot.lane.b32.xlu0 %v5280, 88
          %v8822 = vpop.permute.xlu0 %8821
          %8823 = vrot.lane.b32.xlu0 %v5281, 88
          %v8824 = vpop.permute.xlu0 %8823
          %8825 = vrot.lane.b32.xlu0 %v5282, 88
          %v8826 = vpop.permute.xlu0 %8825
          %8827 = vrot.lane.b32.xlu0 %v5283, 88
          %v8828 = vpop.permute.xlu0 %8827
          %8829 = vrot.lane.b32.xlu0 %v5284, 88
          %v8830 = vpop.permute.xlu0 %8829
          %8831 = vrot.lane.b32.xlu0 %v5285, 88
          %v8832 = vpop.permute.xlu0 %8831
          %8833 = vrot.lane.b32.xlu0 %v5286, 88
          %v8834 = vpop.permute.xlu0 %8833
          %8835 = vrot.lane.b32.xlu0 %v5287, 88
          %v8836 = vpop.permute.xlu0 %8835
          %v8853 = vsel %vm4708, %v8774, 0
          %v8856 = vsel %vm4708, %v8776, 0
          %v8859 = vsel %vm4708, %v8778, 0
          %v8862 = vsel %vm4708, %v8780, 0
          %v8865 = vsel %vm4708, %v8782, 0
          %v8868 = vsel %vm4708, %v8784, 0
          %v8871 = vsel %vm4708, %v8786, 0
          %v8874 = vsel %vm4708, %v8788, 0
          %v8877 = vsel %vm4708, %v8790, 0
          %v8880 = vsel %vm4708, %v8792, 0
          %v8883 = vsel %vm4708, %v8794, 0
          %v8886 = vsel %vm4708, %v8796, 0
          %v8889 = vsel %vm4708, %v8798, 0
          %v8892 = vsel %vm4708, %v8800, 0
          %v8895 = vsel %vm4708, %v8802, 0
          %v8898 = vsel %vm4708, %v8804, 0
          %v8901 = vand.u32 %v8836, %v5386
          %8903 = vmatpush.bf16.msra.mxu0 %v8820
          %8904 = vmatpush.bf16.msra.mxu0 %v8818
          %8905 = vmatpush.bf16.msra.mxu0 %v8816
          %8906 = vmatpush.bf16.msra.mxu0 %v8814
          %8907 = vmatpush.bf16.msra.mxu0 %v8812
          %8908 = vmatpush.bf16.msra.mxu0 %v8810
          %8909 = vmatpush.bf16.msra.mxu0 %v8808
          %8910 = vmatpush.bf16.msra.mxu0 %v8806
          %8911 = vmatmul.bf16.gmra.mxu0 %v8773
          %v8912 = vpop.f32.mrf.mxu0
          %v8913 = vadd.f32 0.0, %v8912
          %v8914 = vpop.f32.mrf.mxu0
          %v8915 = vadd.f32 0.0, %v8914
          %8916 = vmatmul.bf16.gmra.mxu0 %v8775
          %v8917 = vpop.f32.mrf.mxu0
          %v8918 = vadd.f32 0.0, %v8917
          %v8919 = vpop.f32.mrf.mxu0
          %v8920 = vadd.f32 0.0, %v8919
          %8921 = vmatmul.bf16.gmra.mxu0 %v8777
          %v8922 = vpop.f32.mrf.mxu0
          %v8923 = vadd.f32 0.0, %v8922
          %v8924 = vpop.f32.mrf.mxu0
          %v8925 = vadd.f32 0.0, %v8924
          %8926 = vmatmul.bf16.gmra.mxu0 %v8779
          %v8927 = vpop.f32.mrf.mxu0
          %v8928 = vadd.f32 0.0, %v8927
          %v8929 = vpop.f32.mrf.mxu0
          %v8930 = vadd.f32 0.0, %v8929
          %8931 = vmatmul.bf16.gmra.mxu0 %v8781
          %v8932 = vpop.f32.mrf.mxu0
          %v8933 = vadd.f32 0.0, %v8932
          %v8934 = vpop.f32.mrf.mxu0
          %v8935 = vadd.f32 0.0, %v8934
          %8936 = vmatmul.bf16.gmra.mxu0 %v8783
          %v8937 = vpop.f32.mrf.mxu0
          %v8938 = vadd.f32 0.0, %v8937
          %v8939 = vpop.f32.mrf.mxu0
          %v8940 = vadd.f32 0.0, %v8939
          %8941 = vmatmul.bf16.gmra.mxu0 %v8785
          %v8942 = vpop.f32.mrf.mxu0
          %v8943 = vadd.f32 0.0, %v8942
          %v8944 = vpop.f32.mrf.mxu0
          %v8945 = vadd.f32 0.0, %v8944
          %8946 = vmatmul.bf16.gmra.mxu0 %v8787
          %v8947 = vpop.f32.mrf.mxu0
          %v8948 = vadd.f32 0.0, %v8947
          %v8949 = vpop.f32.mrf.mxu0
          %v8950 = vadd.f32 0.0, %v8949
          %8951 = vmatmul.bf16.gmra.mxu0 %v8789
          %v8952 = vpop.f32.mrf.mxu0
          %v8953 = vadd.f32 0.0, %v8952
          %v8954 = vpop.f32.mrf.mxu0
          %v8955 = vadd.f32 0.0, %v8954
          %8956 = vmatmul.bf16.gmra.mxu0 %v8791
          %v8957 = vpop.f32.mrf.mxu0
          %v8958 = vadd.f32 0.0, %v8957
          %v8959 = vpop.f32.mrf.mxu0
          %v8960 = vadd.f32 0.0, %v8959
          %8961 = vmatmul.bf16.gmra.mxu0 %v8793
          %v8962 = vpop.f32.mrf.mxu0
          %v8963 = vadd.f32 0.0, %v8962
          %v8964 = vpop.f32.mrf.mxu0
          %v8965 = vadd.f32 0.0, %v8964
          %8966 = vmatmul.bf16.gmra.mxu0 %v8795
          %v8967 = vpop.f32.mrf.mxu0
          %v8968 = vadd.f32 0.0, %v8967
          %v8969 = vpop.f32.mrf.mxu0
          %v8970 = vadd.f32 0.0, %v8969
          %8971 = vmatmul.bf16.gmra.mxu0 %v8797
          %v8972 = vpop.f32.mrf.mxu0
          %v8973 = vadd.f32 0.0, %v8972
          %v8974 = vpop.f32.mrf.mxu0
          %v8975 = vadd.f32 0.0, %v8974
          %8976 = vmatmul.bf16.gmra.mxu0 %v8799
          %v8977 = vpop.f32.mrf.mxu0
          %v8978 = vadd.f32 0.0, %v8977
          %v8979 = vpop.f32.mrf.mxu0
          %v8980 = vadd.f32 0.0, %v8979
          %8981 = vmatmul.bf16.gmra.mxu0 %v8801
          %v8982 = vpop.f32.mrf.mxu0
          %v8983 = vadd.f32 0.0, %v8982
          %v8984 = vpop.f32.mrf.mxu0
          %v8985 = vadd.f32 0.0, %v8984
          %8986 = vmatmul.bf16.gmra.mxu0 %v8803
          %v8987 = vpop.f32.mrf.mxu0
          %v8988 = vadd.f32 0.0, %v8987
          %v8989 = vpop.f32.mrf.mxu0
          %8990 = vdwg.mxu0
          %8991 = vmatpush.bf16.msra.mxu0 %v8901
          %8992 = vmatpush.bf16.msra.mxu0 %v8834
          %8993 = vmatpush.bf16.msra.mxu0 %v8832
          %8994 = vmatpush.bf16.msra.mxu0 %v8830
          %8995 = vmatpush.bf16.msra.mxu0 %v8828
          %8996 = vmatpush.bf16.msra.mxu0 %v8826
          %8997 = vmatpush.bf16.msra.mxu0 %v8824
          %8998 = vmatpush.bf16.msra.mxu0 %v8822
          %8999 = vmatmul.bf16.gmra.mxu0 %v8853
          %v9000 = vpop.f32.mrf.mxu0
          %v9001 = vadd.f32 %v8913, %v9000
          %v9002 = vpop.f32.mrf.mxu0
          %v9003 = vadd.f32 %v8915, %v9002
          %9004 = vmatmul.bf16.gmra.mxu0 %v8856
          %v9005 = vpop.f32.mrf.mxu0
          %v9006 = vadd.f32 %v8918, %v9005
          %v9007 = vpop.f32.mrf.mxu0
          %v9008 = vadd.f32 %v8920, %v9007
          %9009 = vmatmul.bf16.gmra.mxu0 %v8859
          %v9010 = vpop.f32.mrf.mxu0
          %v9011 = vadd.f32 %v8923, %v9010
          %v9012 = vpop.f32.mrf.mxu0
          %v9013 = vadd.f32 %v8925, %v9012
          %9014 = vmatmul.bf16.gmra.mxu0 %v8862
          %v9015 = vpop.f32.mrf.mxu0
          %v9016 = vadd.f32 %v8928, %v9015
          %v9017 = vpop.f32.mrf.mxu0
          %v9018 = vadd.f32 %v8930, %v9017
          %9019 = vmatmul.bf16.gmra.mxu0 %v8865
          %v9020 = vpop.f32.mrf.mxu0
          %v9021 = vadd.f32 %v8933, %v9020
          %v9022 = vpop.f32.mrf.mxu0
          %v9023 = vadd.f32 %v8935, %v9022
          %9024 = vmatmul.bf16.gmra.mxu0 %v8868
          %v9025 = vpop.f32.mrf.mxu0
          %v9026 = vadd.f32 %v8938, %v9025
          %v9027 = vpop.f32.mrf.mxu0
          %v9028 = vadd.f32 %v8940, %v9027
          %9029 = vmatmul.bf16.gmra.mxu0 %v8871
          %v9030 = vpop.f32.mrf.mxu0
          %v9031 = vadd.f32 %v8943, %v9030
          %v9032 = vpop.f32.mrf.mxu0
          %v9033 = vadd.f32 %v8945, %v9032
          %9034 = vmatmul.bf16.gmra.mxu0 %v8874
          %v9035 = vpop.f32.mrf.mxu0
          %v9036 = vadd.f32 %v8948, %v9035
          %v9037 = vpop.f32.mrf.mxu0
          %v9038 = vadd.f32 %v8950, %v9037
          %9039 = vmatmul.bf16.gmra.mxu0 %v8877
          %v9040 = vpop.f32.mrf.mxu0
          %v9041 = vadd.f32 %v8953, %v9040
          %v9042 = vpop.f32.mrf.mxu0
          %v9043 = vadd.f32 %v8955, %v9042
          %9044 = vmatmul.bf16.gmra.mxu0 %v8880
          %v9045 = vpop.f32.mrf.mxu0
          %v9046 = vadd.f32 %v8958, %v9045
          %v9047 = vpop.f32.mrf.mxu0
          %v9048 = vadd.f32 %v8960, %v9047
          %9049 = vmatmul.bf16.gmra.mxu0 %v8883
          %v9050 = vpop.f32.mrf.mxu0
          %v9051 = vadd.f32 %v8963, %v9050
          %v9052 = vpop.f32.mrf.mxu0
          %v9053 = vadd.f32 %v8965, %v9052
          %9054 = vmatmul.bf16.gmra.mxu0 %v8886
          %v9055 = vpop.f32.mrf.mxu0
          %v9056 = vadd.f32 %v8968, %v9055
          %v9057 = vpop.f32.mrf.mxu0
          %v9058 = vadd.f32 %v8970, %v9057
          %9059 = vmatmul.bf16.gmra.mxu0 %v8889
          %v9060 = vpop.f32.mrf.mxu0
          %v9061 = vadd.f32 %v8973, %v9060
          %v9062 = vpop.f32.mrf.mxu0
          %v9063 = vadd.f32 %v8975, %v9062
          %9064 = vmatmul.bf16.gmra.mxu0 %v8892
          %v9065 = vpop.f32.mrf.mxu0
          %v9066 = vadd.f32 %v8978, %v9065
          %v9067 = vpop.f32.mrf.mxu0
          %v9068 = vadd.f32 %v8980, %v9067
          %9069 = vmatmul.bf16.gmra.mxu0 %v8895
          %v9070 = vpop.f32.mrf.mxu0
          %v9071 = vadd.f32 %v8983, %v9070
          %v9072 = vpop.f32.mrf.mxu0
          %v9073 = vadd.f32 %v8985, %v9072
          %9074 = vmatmul.bf16.gmra.mxu0 %v8898
          %v9075 = vpop.f32.mrf.mxu0
          %v9076 = vadd.f32 %v8988, %v9075
          %v9077 = vpop.f32.mrf.mxu0
          %9078 = vdwg.mxu0
          %v9079 = vmul.f32 %v9001, %v8742
          %v9080 = vmul.f32 %v9003, %v8743
          %v9081 = vmul.f32 %v9006, %v8744
          %v9082 = vmul.f32 %v9008, %v8745
          %v9083 = vmul.f32 %v9011, %v8746
          %v9084 = vmul.f32 %v9013, %v8747
          %v9085 = vmul.f32 %v9016, %v8748
          %v9086 = vmul.f32 %v9018, %v8749
          %v9087 = vmul.f32 %v9021, %v8750
          %v9088 = vmul.f32 %v9023, %v8751
          %v9089 = vmul.f32 %v9026, %v8752
          %v9090 = vmul.f32 %v9028, %v8753
          %v9091 = vmul.f32 %v9031, %v8754
          %v9092 = vmul.f32 %v9033, %v8755
          %v9093 = vmul.f32 %v9036, %v8756
          %v9094 = vmul.f32 %v9038, %v8757
          %v9095 = vmul.f32 %v9041, %v8758
          %v9096 = vmul.f32 %v9043, %v8759
          %v9097 = vmul.f32 %v9046, %v8760
          %v9098 = vmul.f32 %v9048, %v8761
          %v9099 = vmul.f32 %v9051, %v8762
          %v9100 = vmul.f32 %v9053, %v8763
          %v9101 = vmul.f32 %v9056, %v8764
          %v9102 = vmul.f32 %v9058, %v8765
          %v9103 = vmul.f32 %v9061, %v8766
          %v9104 = vmul.f32 %v9063, %v8767
          %v9105 = vmul.f32 %v9066, %v8768
          %v9106 = vmul.f32 %v9068, %v8769
          %v9107 = vmul.f32 %v9071, %v8770
          %v9108 = vmul.f32 %v9073, %v8771
          %v9109 = vmul.f32 %v9076, %v8772
          %v9110 = vadd.f32 %v7939, %v9079
          %v9111 = vadd.f32 %v7940, %v9080
          %v9112 = vadd.f32 %v7941, %v9081
          %v9113 = vadd.f32 %v7942, %v9082
          %v9114 = vadd.f32 %v7943, %v9083
          %v9115 = vadd.f32 %v7944, %v9084
          %v9116 = vadd.f32 %v7945, %v9085
          %v9117 = vadd.f32 %v7946, %v9086
          %v9118 = vadd.f32 %v7947, %v9087
          %v9119 = vadd.f32 %v7948, %v9088
          %v9120 = vadd.f32 %v7949, %v9089
          %v9121 = vadd.f32 %v7950, %v9090
          %v9122 = vadd.f32 %v7951, %v9091
          %v9123 = vadd.f32 %v7952, %v9092
          %v9124 = vadd.f32 %v7953, %v9093
          %v9125 = vadd.f32 %v7954, %v9094
          %v9126 = vadd.f32 %v7955, %v9095
          %v9127 = vadd.f32 %v7956, %v9096
          %v9128 = vadd.f32 %v7957, %v9097
          %v9129 = vadd.f32 %v7958, %v9098
          %v9130 = vadd.f32 %v7959, %v9099
          %v9131 = vadd.f32 %v7960, %v9100
          %v9132 = vadd.f32 %v7961, %v9101
          %v9133 = vadd.f32 %v7962, %v9102
          %v9134 = vadd.f32 %v7963, %v9103
          %v9135 = vadd.f32 %v7964, %v9104
          %v9136 = vadd.f32 %v7965, %v9105
          %v9137 = vadd.f32 %v7966, %v9106
          %v9138 = vadd.f32 %v7967, %v9107
          %v9139 = vadd.f32 %v7968, %v9108
          %v9140 = vadd.f32 %v7969, %v9109
          %v9141 = vld [vmem:[#allocation14] sm:$0x1]
          %v9143 = vperm.slane %v9141, 0
          %9144 = vrot.lane.b32.xlu0 %v9143, 112
          %v9145 = vpop.permute.xlu0 %9144
          %v9147 = vadd.f32 %v9110, %v9145
          %v9148 = vadd.f32 %v9111, %v9145
          %v9149 = vadd.f32 %v9112, %v9145
          %v9150 = vadd.f32 %v9113, %v9145
          %v9151 = vadd.f32 %v9114, %v9145
          %v9152 = vadd.f32 %v9115, %v9145
          %v9153 = vadd.f32 %v9116, %v9145
          %v9154 = vadd.f32 %v9117, %v9145
          %v9155 = vadd.f32 %v9118, %v9145
          %v9156 = vadd.f32 %v9119, %v9145
          %v9157 = vadd.f32 %v9120, %v9145
          %v9158 = vadd.f32 %v9121, %v9145
          %v9159 = vadd.f32 %v9122, %v9145
          %v9160 = vadd.f32 %v9123, %v9145
          %v9161 = vadd.f32 %v9124, %v9145
          %v9162 = vadd.f32 %v9125, %v9145
          %v9163 = vadd.f32 %v9126, %v9145
          %v9164 = vadd.f32 %v9127, %v9145
          %v9165 = vadd.f32 %v9128, %v9145
          %v9166 = vadd.f32 %v9129, %v9145
          %v9167 = vadd.f32 %v9130, %v9145
          %v9168 = vadd.f32 %v9131, %v9145
          %v9169 = vadd.f32 %v9132, %v9145
          %v9170 = vadd.f32 %v9133, %v9145
          %v9171 = vadd.f32 %v9134, %v9145
          %v9172 = vadd.f32 %v9135, %v9145
          %v9173 = vadd.f32 %v9136, %v9145
          %v9174 = vadd.f32 %v9137, %v9145
          %v9175 = vadd.f32 %v9138, %v9145
          %v9176 = vadd.f32 %v9139, %v9145
          %v9177 = vadd.f32 %v9140, %v9145
          %v9179 = vsel %vm4024, %v577, 0
          %v9182 = vsel %vm4024, %v9147, 0
          %v9185 = vsel %vm4024, %v9148, 0
          %v9188 = vsel %vm4024, %v9149, 0
          %v9191 = vsel %vm4024, %v9150, 0
          %v9194 = vsel %vm4024, %v9151, 0
          %v9197 = vsel %vm4024, %v9152, 0
          %v9200 = vsel %vm4024, %v9153, 0
          %v9203 = vsel %vm4024, %v9154, 0
          %v9206 = vsel %vm4024, %v9155, 0
          %v9209 = vsel %vm4024, %v9156, 0
          %v9212 = vsel %vm4024, %v9157, 0
          %v9215 = vsel %vm4024, %v9158, 0
          %v9218 = vsel %vm4024, %v9159, 0
          %v9221 = vsel %vm4024, %v9160, 0
          %v9224 = vsel %vm4024, %v9161, 0
          %v9227 = vsel %vm4024, %v9162, 0
          %v9230 = vsel %vm4024, %v9163, 0
          %v9233 = vsel %vm4024, %v9164, 0
          %v9236 = vsel %vm4024, %v9165, 0
          %v9239 = vsel %vm4024, %v9166, 0
          %v9242 = vsel %vm4024, %v9167, 0
          %v9245 = vsel %vm4024, %v9168, 0
          %v9248 = vsel %vm4024, %v9169, 0
          %v9251 = vsel %vm4024, %v9170, 0
          %v9254 = vsel %vm4024, %v9171, 0
          %v9257 = vsel %vm4024, %v9172, 0
          %v9260 = vsel %vm4024, %v9173, 0
          %v9263 = vsel %vm4024, %v9174, 0
          %v9266 = vsel %vm4024, %v9175, 0
          %v9269 = vsel %vm4024, %v9176, 0
          %v9272 = vsel %vm4024, %v9177, 0
          %9274 = vmatpush.xpose.msra.mxu0 %v9227
          %9275 = vmatpush.xpose.msra.mxu0 %v9224
          %9276 = vmatpush.xpose.msra.mxu0 %v9221
          %9277 = vmatpush.xpose.msra.mxu0 %v9218
          %9278 = vmatpush.xpose.msra.mxu0 %v9215
          %9279 = vmatpush.xpose.msra.mxu0 %v9212
          %9280 = vmatpush.xpose.msra.mxu0 %v9209
          %9281 = vmatpush.xpose.msra.mxu0 %v9206
          %9282 = vmatpush.xpose.msra.mxu0 %v9203
          %9283 = vmatpush.xpose.msra.mxu0 %v9200
          %9284 = vmatpush.xpose.msra.mxu0 %v9197
          %9285 = vmatpush.xpose.msra.mxu0 %v9194
          %9286 = vmatpush.xpose.msra.mxu0 %v9191
          %9287 = vmatpush.xpose.msra.mxu0 %v9188
          %9288 = vmatpush.xpose.msra.mxu0 %v9185
          %9289 = vmatpush.xpose.msra.mxu0 %v9182
          %9290 = vmatmul.f32.gmra.mxu0 %v9179
          %v9291 = vpop.f32.mrf.mxu0
          %v9292 = vadd.f32 0.0, %v9291
          %9293 = vdwg.mxu0
          %9294 = vmatpush.xpose.msra.mxu0 0.0
          %9295 = vmatpush.xpose.msra.mxu0 %v9272
          %9296 = vmatpush.xpose.msra.mxu0 %v9269
          %9297 = vmatpush.xpose.msra.mxu0 %v9266
          %9298 = vmatpush.xpose.msra.mxu0 %v9263
          %9299 = vmatpush.xpose.msra.mxu0 %v9260
          %9300 = vmatpush.xpose.msra.mxu0 %v9257
          %9301 = vmatpush.xpose.msra.mxu0 %v9254
          %9302 = vmatpush.xpose.msra.mxu0 %v9251
          %9303 = vmatpush.xpose.msra.mxu0 %v9248
          %9304 = vmatpush.xpose.msra.mxu0 %v9245
          %9305 = vmatpush.xpose.msra.mxu0 %v9242
          %9306 = vmatpush.xpose.msra.mxu0 %v9239
          %9307 = vmatpush.xpose.msra.mxu0 %v9236
          %9308 = vmatpush.xpose.msra.mxu0 %v9233
          %9309 = vmatpush.xpose.msra.mxu0 %v9230
          %9310 = vmatmul.f32.gmra.mxu0 %v9179
          %v9311 = vpop.f32.mrf.mxu0
          %v9312 = vadd.f32 0.0, %v9311
          %9313 = vdwg.mxu0
          %s9314 = smul.u32 %s579, 2
          %s9315 = smul.addr %s9314, 8
          %s9316 = scalar_lea.vmem [#allocation5], %s9315
          %9317 = vst [vmem:[%s9316] sm:$0xff] %v9292
          %9318 = vst.msk [vmem:[%s9316 + $0x8] sm:$0xff] %vm4708, %v9312
        $region105: #{tpu_custom_call.1} parent=67 // loop_footer
          %s583 = sadd.s32 1, %s579
        $region106: #{tpu_custom_call.1} parent=67 // loop_footer_branch
          %578 = sbr.rel target = $region102
        $region107: #{tpu_custom_call.1} parent=67 // loop_exit
          _
        %v9319 = vld [vmem:[#allocation5] ss:$8 sm:$0x3]
        %s9320 = scalar_lea.vmem [#allocation5], 16
        %v9321 = vld [vmem:[%s9320] ss:$8 sm:$0x3]
        %s9322 = scalar_lea.vmem [#allocation5], 32
        %v9323 = vld [vmem:[%s9322] ss:$8 sm:$0x3]
        %s9324 = scalar_lea.vmem [#allocation5], 48
        %v9325 = vld [vmem:[%s9324] ss:$8 sm:$0x3]
        %s9326 = scalar_lea.vmem [#allocation5], 64
        %v9327 = vld [vmem:[%s9326] ss:$8 sm:$0x3]
        %s9328 = scalar_lea.vmem [#allocation5], 80
        %v9329 = vld [vmem:[%s9328] ss:$8 sm:$0x3]
        %s9330 = scalar_lea.vmem [#allocation5], 96
        %v9331 = vld [vmem:[%s9330] ss:$8 sm:$0x3]
        %s9332 = scalar_lea.vmem [#allocation5], 112
        %v9333 = vld [vmem:[%s9332] ss:$8 sm:$0x3]
        %v9342 = vperm.slane %v9319, 0
        %v9343 = vperm.slane %v9319, 1
        %v9344 = vperm.slane %v9321, 0
        %v9345 = vperm.slane %v9321, 1
        %v9346 = vperm.slane %v9323, 0
        %v9347 = vperm.slane %v9323, 1
        %v9348 = vperm.slane %v9325, 0
        %v9349 = vperm.slane %v9325, 1
        %v9350 = vperm.slane %v9327, 0
        %v9351 = vperm.slane %v9327, 1
        %v9352 = vperm.slane %v9329, 0
        %v9353 = vperm.slane %v9329, 1
        %v9354 = vperm.slane %v9331, 0
        %v9355 = vperm.slane %v9331, 1
        %v9356 = vperm.slane %v9333, 0
        %v9357 = vperm.slane %v9333, 1
        %v9374 = vpack.c.bf16 %v9342, %v9342
        %v9375 = vpack.c.bf16 %v9343, %v9343
        %v9376 = vpack.c.bf16 %v9344, %v9344
        %v9377 = vpack.c.bf16 %v9345, %v9345
        %v9378 = vpack.c.bf16 %v9346, %v9346
        %v9379 = vpack.c.bf16 %v9347, %v9347
        %v9380 = vpack.c.bf16 %v9348, %v9348
        %v9381 = vpack.c.bf16 %v9349, %v9349
        %v9382 = vpack.c.bf16 %v9350, %v9350
        %v9383 = vpack.c.bf16 %v9351, %v9351
        %v9384 = vpack.c.bf16 %v9352, %v9352
        %v9385 = vpack.c.bf16 %v9353, %v9353
        %v9386 = vpack.c.bf16 %v9354, %v9354
        %v9387 = vpack.c.bf16 %v9355, %v9355
        %v9388 = vpack.c.bf16 %v9356, %v9356
        %v9389 = vpack.c.bf16 %v9357, %v9357
        %v9390 = vld [vmem:[%s8] sm:$0xf]
        %v9391 = vld [vmem:[%s8 + $0x4] sm:$0xf]
        %v9392 = vld [vmem:[%s8 + $0x8] sm:$0xf]
        %v9393 = vld [vmem:[%s8 + $0xc] sm:$0xf]
        %v9394 = vld [vmem:[%s8 + $0x10] sm:$0xf]
        %v9395 = vld [vmem:[%s8 + $0x14] sm:$0xf]
        %v9396 = vld [vmem:[%s8 + $0x18] sm:$0xf]
        %v9397 = vld [vmem:[%s8 + $0x1c] sm:$0xf]
        %v9398 = vld [vmem:[%s8 + $0x20] sm:$0xf]
        %v9399 = vld [vmem:[%s8 + $0x24] sm:$0xf]
        %v9400 = vld [vmem:[%s8 + $0x28] sm:$0xf]
        %v9401 = vld [vmem:[%s8 + $0x2c] sm:$0xf]
        %v9402 = vld [vmem:[%s8 + $0x30] sm:$0xf]
        %v9403 = vld [vmem:[%s8 + $0x34] sm:$0xf]
        %v9404 = vld [vmem:[%s8 + $0x38] sm:$0xf]
        %v9405 = vld [vmem:[%s8 + $0x3c] sm:$0xf]
        %v9406 = vld [vmem:[%s8 + $0x40] sm:$0xf]
        %v9407 = vld [vmem:[%s8 + $0x44] sm:$0xf]
        %v9408 = vld [vmem:[%s8 + $0x48] sm:$0xf]
        %v9409 = vld [vmem:[%s8 + $0x4c] sm:$0xf]
        %v9410 = vld [vmem:[%s8 + $0x50] sm:$0xf]
        %v9411 = vld [vmem:[%s8 + $0x54] sm:$0xf]
        %v9412 = vld [vmem:[%s8 + $0x58] sm:$0xf]
        %v9413 = vld [vmem:[%s8 + $0x5c] sm:$0xf]
        %v9414 = vld [vmem:[%s8 + $0x60] sm:$0xf]
        %v9415 = vld [vmem:[%s8 + $0x64] sm:$0xf]
        %v9416 = vld [vmem:[%s8 + $0x68] sm:$0xf]
        %v9417 = vld [vmem:[%s8 + $0x6c] sm:$0xf]
        %v9418 = vld [vmem:[%s8 + $0x70] sm:$0xf]
        %v9419 = vld [vmem:[%s8 + $0x74] sm:$0xf]
        %v9420 = vld [vmem:[%s8 + $0x78] sm:$0xf]
        %s9421 = scalar_lea.vmem [#allocation5], 1
        %v9422 = vld [vmem:[%s9421] ss:$8 sm:$0x3]
        %s9423 = scalar_lea.vmem [#allocation5], 17
        %v9424 = vld [vmem:[%s9423] ss:$8 sm:$0x3]
        %s9425 = scalar_lea.vmem [#allocation5], 33
        %v9426 = vld [vmem:[%s9425] ss:$8 sm:$0x3]
        %s9427 = scalar_lea.vmem [#allocation5], 49
        %v9428 = vld [vmem:[%s9427] ss:$8 sm:$0x3]
        %s9429 = scalar_lea.vmem [#allocation5], 65
        %v9430 = vld [vmem:[%s9429] ss:$8 sm:$0x3]
        %s9431 = scalar_lea.vmem [#allocation5], 81
        %v9432 = vld [vmem:[%s9431] ss:$8 sm:$0x3]
        %s9433 = scalar_lea.vmem [#allocation5], 97
        %v9434 = vld [vmem:[%s9433] ss:$8 sm:$0x3]
        %s9435 = scalar_lea.vmem [#allocation5], 113
        %v9436 = vld [vmem:[%s9435] ss:$8 sm:$0x3]
        %v9445 = vperm.slane %v9422, 0
        %v9446 = vperm.slane %v9422, 1
        %v9447 = vperm.slane %v9424, 0
        %v9448 = vperm.slane %v9424, 1
        %v9449 = vperm.slane %v9426, 0
        %v9450 = vperm.slane %v9426, 1
        %v9451 = vperm.slane %v9428, 0
        %v9452 = vperm.slane %v9428, 1
        %v9453 = vperm.slane %v9430, 0
        %v9454 = vperm.slane %v9430, 1
        %v9455 = vperm.slane %v9432, 0
        %v9456 = vperm.slane %v9432, 1
        %v9457 = vperm.slane %v9434, 0
        %v9458 = vperm.slane %v9434, 1
        %v9459 = vperm.slane %v9436, 0
        %v9460 = vperm.slane %v9436, 1
        %v9477 = vpack.c.bf16 %v9445, %v9445
        %v9478 = vpack.c.bf16 %v9446, %v9446
        %v9479 = vpack.c.bf16 %v9447, %v9447
        %v9480 = vpack.c.bf16 %v9448, %v9448
        %v9481 = vpack.c.bf16 %v9449, %v9449
        %v9482 = vpack.c.bf16 %v9450, %v9450
        %v9483 = vpack.c.bf16 %v9451, %v9451
        %v9484 = vpack.c.bf16 %v9452, %v9452
        %v9485 = vpack.c.bf16 %v9453, %v9453
        %v9486 = vpack.c.bf16 %v9454, %v9454
        %v9487 = vpack.c.bf16 %v9455, %v9455
        %v9488 = vpack.c.bf16 %v9456, %v9456
        %v9489 = vpack.c.bf16 %v9457, %v9457
        %v9490 = vpack.c.bf16 %v9458, %v9458
        %v9491 = vpack.c.bf16 %v9459, %v9459
        %v9492 = vpack.c.bf16 %v9460, %v9460
        %s9493 = scalar_lea.vmem %s8, 124
        %v9494 = vld [vmem:[%s9493] sm:$0xf]
        %v9495 = vld [vmem:[%s9493 + $0x4] sm:$0xf]
        %v9496 = vld [vmem:[%s9493 + $0x8] sm:$0xf]
        %v9497 = vld [vmem:[%s9493 + $0xc] sm:$0xf]
        %v9498 = vld [vmem:[%s9493 + $0x10] sm:$0xf]
        %v9499 = vld [vmem:[%s9493 + $0x14] sm:$0xf]
        %v9500 = vld [vmem:[%s9493 + $0x18] sm:$0xf]
        %v9501 = vld [vmem:[%s9493 + $0x1c] sm:$0xf]
        %v9502 = vld [vmem:[%s9493 + $0x20] sm:$0xf]
        %v9503 = vld [vmem:[%s9493 + $0x24] sm:$0xf]
        %v9504 = vld [vmem:[%s9493 + $0x28] sm:$0xf]
        %v9505 = vld [vmem:[%s9493 + $0x2c] sm:$0xf]
        %v9506 = vld [vmem:[%s9493 + $0x30] sm:$0xf]
        %v9507 = vld [vmem:[%s9493 + $0x34] sm:$0xf]
        %v9508 = vld [vmem:[%s9493 + $0x38] sm:$0xf]
        %v9509 = vld [vmem:[%s9493 + $0x3c] sm:$0xf]
        %v9510 = vld [vmem:[%s9493 + $0x40] sm:$0xf]
        %v9511 = vld [vmem:[%s9493 + $0x44] sm:$0xf]
        %v9512 = vld [vmem:[%s9493 + $0x48] sm:$0xf]
        %v9513 = vld [vmem:[%s9493 + $0x4c] sm:$0xf]
        %v9514 = vld [vmem:[%s9493 + $0x50] sm:$0xf]
        %v9515 = vld [vmem:[%s9493 + $0x54] sm:$0xf]
        %v9516 = vld [vmem:[%s9493 + $0x58] sm:$0xf]
        %v9517 = vld [vmem:[%s9493 + $0x5c] sm:$0xf]
        %v9518 = vld [vmem:[%s9493 + $0x60] sm:$0xf]
        %v9519 = vld [vmem:[%s9493 + $0x64] sm:$0xf]
        %v9520 = vld [vmem:[%s9493 + $0x68] sm:$0xf]
        %v9521 = vld [vmem:[%s9493 + $0x6c] sm:$0xf]
        %v9522 = vld [vmem:[%s9493 + $0x70] sm:$0xf]
        %v9523 = vld [vmem:[%s9493 + $0x74] sm:$0xf]
        %v9524 = vld [vmem:[%s9493 + $0x78] sm:$0xf]
        %v9541 = vunpack.c.l.b16 %v9477
        %v9542 = vunpack.c.l.b16 %v9478
        %v9543 = vunpack.c.l.b16 %v9479
        %v9544 = vunpack.c.l.b16 %v9480
        %v9545 = vunpack.c.l.b16 %v9481
        %v9546 = vunpack.c.l.b16 %v9482
        %v9547 = vunpack.c.l.b16 %v9483
        %v9548 = vunpack.c.l.b16 %v9484
        %v9549 = vunpack.c.l.b16 %v9485
        %v9550 = vunpack.c.l.b16 %v9486
        %v9551 = vunpack.c.l.b16 %v9487
        %v9552 = vunpack.c.l.b16 %v9488
        %v9553 = vunpack.c.l.b16 %v9489
        %v9554 = vunpack.c.l.b16 %v9490
        %v9555 = vunpack.c.l.b16 %v9491
        %v9556 = vunpack.c.l.b16 %v9492
        %v9557 = vrot.slane %v9543, 7
        %vm9558 = vcmask 1041409
        %v9559 = vsel %vm9558, %v9557, %v9541
        %v9560 = vrot.slane %v9545, 6
        %vm9561 = vcmask 1042434
        %v9562 = vsel %vm9561, %v9560, %v9559
        %v9563 = vrot.slane %v9547, 5
        %vm9564 = vcmask 1043459
        %v9565 = vsel %vm9564, %v9563, %v9562
        %v9566 = vrot.slane %v9549, 4
        %vm9567 = vcmask 1044484
        %v9568 = vsel %vm9567, %v9566, %v9565
        %v9569 = vrot.slane %v9551, 3
        %vm9570 = vcmask 1045509
        %v9571 = vsel %vm9570, %v9569, %v9568
        %v9572 = vrot.slane %v9553, 2
        %vm9573 = vcmask 1046534
        %v9574 = vsel %vm9573, %v9572, %v9571
        %v9575 = vrot.slane %v9555, 1
        %vm9576 = vcmask 1047559
        %v9577 = vsel %vm9576, %v9575, %v9574
        %v9578 = vrot.slane %v9544, 7
        %v9579 = vsel %vm9558, %v9578, %v9542
        %v9580 = vrot.slane %v9546, 6
        %v9581 = vsel %vm9561, %v9580, %v9579
        %v9582 = vrot.slane %v9548, 5
        %v9583 = vsel %vm9564, %v9582, %v9581
        %v9584 = vrot.slane %v9550, 4
        %v9585 = vsel %vm9567, %v9584, %v9583
        %v9586 = vrot.slane %v9552, 3
        %v9587 = vsel %vm9570, %v9586, %v9585
        %v9588 = vrot.slane %v9554, 2
        %v9589 = vsel %vm9573, %v9588, %v9587
        %v9590 = vrot.slane %v9556, 1
        %v9591 = vsel %vm9576, %v9590, %v9589
        %v9592 = vpack.c.b16 %v9577, %v9577
        %v9593 = vpack.c.b16 %v9591, %v9591
        %v9626 = vunpack.c.l.b16 %v9494
        %v9627 = vunpack.c.l.b16 %v9495
        %v9628 = vunpack.c.l.b16 %v9496
        %v9629 = vunpack.c.l.b16 %v9497
        %v9630 = vunpack.c.l.b16 %v9498
        %v9631 = vunpack.c.l.b16 %v9499
        %v9632 = vunpack.c.l.b16 %v9500
        %v9633 = vunpack.c.l.b16 %v9501
        %v9634 = vunpack.c.l.b16 %v9502
        %v9635 = vunpack.c.l.b16 %v9503
        %v9636 = vunpack.c.l.b16 %v9504
        %v9637 = vunpack.c.l.b16 %v9505
        %v9638 = vunpack.c.l.b16 %v9506
        %v9639 = vunpack.c.l.b16 %v9507
        %v9640 = vunpack.c.l.b16 %v9508
        %v9641 = vunpack.c.l.b16 %v9509
        %v9642 = vunpack.c.l.b16 %v9510
        %v9643 = vunpack.c.l.b16 %v9511
        %v9644 = vunpack.c.l.b16 %v9512
        %v9645 = vunpack.c.l.b16 %v9513
        %v9646 = vunpack.c.l.b16 %v9514
        %v9647 = vunpack.c.l.b16 %v9515
        %v9648 = vunpack.c.l.b16 %v9516
        %v9649 = vunpack.c.l.b16 %v9517
        %v9650 = vunpack.c.l.b16 %v9518
        %v9651 = vunpack.c.l.b16 %v9519
        %v9652 = vunpack.c.l.b16 %v9520
        %v9653 = vunpack.c.l.b16 %v9521
        %v9654 = vunpack.c.l.b16 %v9522
        %v9655 = vunpack.c.l.b16 %v9523
        %v9656 = vunpack.c.l.b16 %v9524
        %v9657 = vpack.c.b16 %v9627, %v9626
        %v9658 = vpack.c.b16 %v9629, %v9628
        %v9659 = vpack.c.b16 %v9631, %v9630
        %v9660 = vpack.c.b16 %v9633, %v9632
        %v9661 = vpack.c.b16 %v9635, %v9634
        %v9662 = vpack.c.b16 %v9637, %v9636
        %v9663 = vpack.c.b16 %v9639, %v9638
        %v9664 = vpack.c.b16 %v9641, %v9640
        %v9665 = vpack.c.b16 %v9643, %v9642
        %v9666 = vpack.c.b16 %v9645, %v9644
        %v9667 = vpack.c.b16 %v9647, %v9646
        %v9668 = vpack.c.b16 %v9649, %v9648
        %v9669 = vpack.c.b16 %v9651, %v9650
        %v9670 = vpack.c.b16 %v9653, %v9652
        %v9671 = vpack.c.b16 %v9655, %v9654
        %v9672 = vpack.c.b16 %v9656, %v9656
        %vm9688 = vcmask 973824
        %v9690 = vsel %vm9688, %v9593, 0
        %vm9692 = vcmask 1042432
        %vm9693 = vcmask 1043456
        %v9694 = vsel %vm9692, 4294967295, 65535
        %v9695 = vsel %vm9693, %v9694, 0
        %v9697 = vand.u32 %v9672, %v9695
        %9699 = vmatpush.bf16.msra.mxu0 %v9664
        %9700 = vmatpush.bf16.msra.mxu0 %v9663
        %9701 = vmatpush.bf16.msra.mxu0 %v9662
        %9702 = vmatpush.bf16.msra.mxu0 %v9661
        %9703 = vmatpush.bf16.msra.mxu0 %v9660
        %9704 = vmatpush.bf16.msra.mxu0 %v9659
        %9705 = vmatpush.bf16.msra.mxu0 %v9658
        %9706 = vmatpush.bf16.msra.mxu0 %v9657
        %9707 = vmatmul.bf16.gmra.mxu0 %v9592
        %v9708 = vpop.f32.mrf.mxu0
        %v9709 = vadd.f32 0.0, %v9708
        %v9710 = vpop.f32.mrf.mxu0
        %9711 = vdwg.mxu0
        %9712 = vmatpush.bf16.msra.mxu0 %v9697
        %9713 = vmatpush.bf16.msra.mxu0 %v9671
        %9714 = vmatpush.bf16.msra.mxu0 %v9670
        %9715 = vmatpush.bf16.msra.mxu0 %v9669
        %9716 = vmatpush.bf16.msra.mxu0 %v9668
        %9717 = vmatpush.bf16.msra.mxu0 %v9667
        %9718 = vmatpush.bf16.msra.mxu0 %v9666
        %9719 = vmatpush.bf16.msra.mxu0 %v9665
        %9720 = vmatmul.bf16.gmra.mxu0 %v9690
        %v9721 = vpop.f32.mrf.mxu0
        %v9722 = vadd.f32 %v9709, %v9721
        %v9723 = vpop.f32.mrf.mxu0
        %9724 = vdwg.mxu0
        %v9741 = vunpack.c.l.b16 %v9374
        %v9742 = vunpack.c.l.b16 %v9375
        %v9743 = vunpack.c.l.b16 %v9376
        %v9744 = vunpack.c.l.b16 %v9377
        %v9745 = vunpack.c.l.b16 %v9378
        %v9746 = vunpack.c.l.b16 %v9379
        %v9747 = vunpack.c.l.b16 %v9380
        %v9748 = vunpack.c.l.b16 %v9381
        %v9749 = vunpack.c.l.b16 %v9382
        %v9750 = vunpack.c.l.b16 %v9383
        %v9751 = vunpack.c.l.b16 %v9384
        %v9752 = vunpack.c.l.b16 %v9385
        %v9753 = vunpack.c.l.b16 %v9386
        %v9754 = vunpack.c.l.b16 %v9387
        %v9755 = vunpack.c.l.b16 %v9388
        %v9756 = vunpack.c.l.b16 %v9389
        %v9757 = vrot.slane %v9743, 7
        %v9758 = vsel %vm9558, %v9757, %v9741
        %v9759 = vrot.slane %v9745, 6
        %v9760 = vsel %vm9561, %v9759, %v9758
        %v9761 = vrot.slane %v9747, 5
        %v9762 = vsel %vm9564, %v9761, %v9760
        %v9763 = vrot.slane %v9749, 4
        %v9764 = vsel %vm9567, %v9763, %v9762
        %v9765 = vrot.slane %v9751, 3
        %v9766 = vsel %vm9570, %v9765, %v9764
        %v9767 = vrot.slane %v9753, 2
        %v9768 = vsel %vm9573, %v9767, %v9766
        %v9769 = vrot.slane %v9755, 1
        %v9770 = vsel %vm9576, %v9769, %v9768
        %v9771 = vrot.slane %v9744, 7
        %v9772 = vsel %vm9558, %v9771, %v9742
        %v9773 = vrot.slane %v9746, 6
        %v9774 = vsel %vm9561, %v9773, %v9772
        %v9775 = vrot.slane %v9748, 5
        %v9776 = vsel %vm9564, %v9775, %v9774
        %v9777 = vrot.slane %v9750, 4
        %v9778 = vsel %vm9567, %v9777, %v9776
        %v9779 = vrot.slane %v9752, 3
        %v9780 = vsel %vm9570, %v9779, %v9778
        %v9781 = vrot.slane %v9754, 2
        %v9782 = vsel %vm9573, %v9781, %v9780
        %v9783 = vrot.slane %v9756, 1
        %v9784 = vsel %vm9576, %v9783, %v9782
        %v9785 = vpack.c.b16 %v9770, %v9770
        %v9786 = vpack.c.b16 %v9784, %v9784
        %v9819 = vunpack.c.l.b16 %v9390
        %v9820 = vunpack.c.l.b16 %v9391
        %v9821 = vunpack.c.l.b16 %v9392
        %v9822 = vunpack.c.l.b16 %v9393
        %v9823 = vunpack.c.l.b16 %v9394
        %v9824 = vunpack.c.l.b16 %v9395
        %v9825 = vunpack.c.l.b16 %v9396
        %v9826 = vunpack.c.l.b16 %v9397
        %v9827 = vunpack.c.l.b16 %v9398
        %v9828 = vunpack.c.l.b16 %v9399
        %v9829 = vunpack.c.l.b16 %v9400
        %v9830 = vunpack.c.l.b16 %v9401
        %v9831 = vunpack.c.l.b16 %v9402
        %v9832 = vunpack.c.l.b16 %v9403
        %v9833 = vunpack.c.l.b16 %v9404
        %v9834 = vunpack.c.l.b16 %v9405
        %v9835 = vunpack.c.l.b16 %v9406
        %v9836 = vunpack.c.l.b16 %v9407
        %v9837 = vunpack.c.l.b16 %v9408
        %v9838 = vunpack.c.l.b16 %v9409
        %v9839 = vunpack.c.l.b16 %v9410
        %v9840 = vunpack.c.l.b16 %v9411
        %v9841 = vunpack.c.l.b16 %v9412
        %v9842 = vunpack.c.l.b16 %v9413
        %v9843 = vunpack.c.l.b16 %v9414
        %v9844 = vunpack.c.l.b16 %v9415
        %v9845 = vunpack.c.l.b16 %v9416
        %v9846 = vunpack.c.l.b16 %v9417
        %v9847 = vunpack.c.l.b16 %v9418
        %v9848 = vunpack.c.l.b16 %v9419
        %v9849 = vunpack.c.l.b16 %v9420
        %v9850 = vpack.c.b16 %v9820, %v9819
        %v9851 = vpack.c.b16 %v9822, %v9821
        %v9852 = vpack.c.b16 %v9824, %v9823
        %v9853 = vpack.c.b16 %v9826, %v9825
        %v9854 = vpack.c.b16 %v9828, %v9827
        %v9855 = vpack.c.b16 %v9830, %v9829
        %v9856 = vpack.c.b16 %v9832, %v9831
        %v9857 = vpack.c.b16 %v9834, %v9833
        %v9858 = vpack.c.b16 %v9836, %v9835
        %v9859 = vpack.c.b16 %v9838, %v9837
        %v9860 = vpack.c.b16 %v9840, %v9839
        %v9861 = vpack.c.b16 %v9842, %v9841
        %v9862 = vpack.c.b16 %v9844, %v9843
        %v9863 = vpack.c.b16 %v9846, %v9845
        %v9864 = vpack.c.b16 %v9848, %v9847
        %v9865 = vpack.c.b16 %v9849, %v9849
        %v9882 = vsel %vm9688, %v9786, 0
        %v9885 = vand.u32 %v9865, %v9695
        %9887 = vmatpush.bf16.msra.mxu0 %v9857
        %9888 = vmatpush.bf16.msra.mxu0 %v9856
        %9889 = vmatpush.bf16.msra.mxu0 %v9855
        %9890 = vmatpush.bf16.msra.mxu0 %v9854
        %9891 = vmatpush.bf16.msra.mxu0 %v9853
        %9892 = vmatpush.bf16.msra.mxu0 %v9852
        %9893 = vmatpush.bf16.msra.mxu0 %v9851
        %9894 = vmatpush.bf16.msra.mxu0 %v9850
        %9895 = vmatmul.bf16.gmra.mxu0 %v9785
        %v9896 = vpop.f32.mrf.mxu0
        %v9897 = vadd.f32 %v9722, %v9896
        %v9898 = vpop.f32.mrf.mxu0
        %9899 = vdwg.mxu0
        %9900 = vmatpush.bf16.msra.mxu0 %v9885
        %9901 = vmatpush.bf16.msra.mxu0 %v9864
        %9902 = vmatpush.bf16.msra.mxu0 %v9863
        %9903 = vmatpush.bf16.msra.mxu0 %v9862
        %9904 = vmatpush.bf16.msra.mxu0 %v9861
        %9905 = vmatpush.bf16.msra.mxu0 %v9860
        %9906 = vmatpush.bf16.msra.mxu0 %v9859
        %9907 = vmatpush.bf16.msra.mxu0 %v9858
        %9908 = vmatmul.bf16.gmra.mxu0 %v9882
        %v9909 = vpop.f32.mrf.mxu0
        %v9910 = vadd.f32 %v9897, %v9909
        %v9911 = vpop.f32.mrf.mxu0
        %9912 = vdwg.mxu0
        %s9913 = scalar_lea.vmem [#allocation5], 2
        %v9914 = vld [vmem:[%s9913] ss:$8 sm:$0x3]
        %s9915 = scalar_lea.vmem [#allocation5], 18
        %v9916 = vld [vmem:[%s9915] ss:$8 sm:$0x3]
        %s9917 = scalar_lea.vmem [#allocation5], 34
        %v9918 = vld [vmem:[%s9917] ss:$8 sm:$0x3]
        %s9919 = scalar_lea.vmem [#allocation5], 50
        %v9920 = vld [vmem:[%s9919] ss:$8 sm:$0x3]
        %s9921 = scalar_lea.vmem [#allocation5], 66
        %v9922 = vld [vmem:[%s9921] ss:$8 sm:$0x3]
        %s9923 = scalar_lea.vmem [#allocation5], 82
        %v9924 = vld [vmem:[%s9923] ss:$8 sm:$0x3]
        %s9925 = scalar_lea.vmem [#allocation5], 98
        %v9926 = vld [vmem:[%s9925] ss:$8 sm:$0x3]
        %s9927 = scalar_lea.vmem [#allocation5], 114
        %v9928 = vld [vmem:[%s9927] ss:$8 sm:$0x3]
        %v9937 = vperm.slane %v9914, 0
        %v9938 = vperm.slane %v9914, 1
        %v9939 = vperm.slane %v9916, 0
        %v9940 = vperm.slane %v9916, 1
        %v9941 = vperm.slane %v9918, 0
        %v9942 = vperm.slane %v9918, 1
        %v9943 = vperm.slane %v9920, 0
        %v9944 = vperm.slane %v9920, 1
        %v9945 = vperm.slane %v9922, 0
        %v9946 = vperm.slane %v9922, 1
        %v9947 = vperm.slane %v9924, 0
        %v9948 = vperm.slane %v9924, 1
        %v9949 = vperm.slane %v9926, 0
        %v9950 = vperm.slane %v9926, 1
        %v9951 = vperm.slane %v9928, 0
        %v9952 = vperm.slane %v9928, 1
        %v9969 = vpack.c.bf16 %v9937, %v9937
        %v9970 = vpack.c.bf16 %v9938, %v9938
        %v9971 = vpack.c.bf16 %v9939, %v9939
        %v9972 = vpack.c.bf16 %v9940, %v9940
        %v9973 = vpack.c.bf16 %v9941, %v9941
        %v9974 = vpack.c.bf16 %v9942, %v9942
        %v9975 = vpack.c.bf16 %v9943, %v9943
        %v9976 = vpack.c.bf16 %v9944, %v9944
        %v9977 = vpack.c.bf16 %v9945, %v9945
        %v9978 = vpack.c.bf16 %v9946, %v9946
        %v9979 = vpack.c.bf16 %v9947, %v9947
        %v9980 = vpack.c.bf16 %v9948, %v9948
        %v9981 = vpack.c.bf16 %v9949, %v9949
        %v9982 = vpack.c.bf16 %v9950, %v9950
        %v9983 = vpack.c.bf16 %v9951, %v9951
        %v9984 = vpack.c.bf16 %v9952, %v9952
        %s9985 = scalar_lea.vmem %s8, 248
        %v9986 = vld [vmem:[%s9985] sm:$0xf]
        %v9987 = vld [vmem:[%s9985 + $0x4] sm:$0xf]
        %v9988 = vld [vmem:[%s9985 + $0x8] sm:$0xf]
        %v9989 = vld [vmem:[%s9985 + $0xc] sm:$0xf]
        %v9990 = vld [vmem:[%s9985 + $0x10] sm:$0xf]
        %v9991 = vld [vmem:[%s9985 + $0x14] sm:$0xf]
        %v9992 = vld [vmem:[%s9985 + $0x18] sm:$0xf]
        %v9993 = vld [vmem:[%s9985 + $0x1c] sm:$0xf]
        %v9994 = vld [vmem:[%s9985 + $0x20] sm:$0xf]
        %v9995 = vld [vmem:[%s9985 + $0x24] sm:$0xf]
        %v9996 = vld [vmem:[%s9985 + $0x28] sm:$0xf]
        %v9997 = vld [vmem:[%s9985 + $0x2c] sm:$0xf]
        %v9998 = vld [vmem:[%s9985 + $0x30] sm:$0xf]
        %v9999 = vld [vmem:[%s9985 + $0x34] sm:$0xf]
        %v10000 = vld [vmem:[%s9985 + $0x38] sm:$0xf]
        %v10001 = vld [vmem:[%s9985 + $0x3c] sm:$0xf]
        %v10002 = vld [vmem:[%s9985 + $0x40] sm:$0xf]
        %v10003 = vld [vmem:[%s9985 + $0x44] sm:$0xf]
        %v10004 = vld [vmem:[%s9985 + $0x48] sm:$0xf]
        %v10005 = vld [vmem:[%s9985 + $0x4c] sm:$0xf]
        %v10006 = vld [vmem:[%s9985 + $0x50] sm:$0xf]
        %v10007 = vld [vmem:[%s9985 + $0x54] sm:$0xf]
        %v10008 = vld [vmem:[%s9985 + $0x58] sm:$0xf]
        %v10009 = vld [vmem:[%s9985 + $0x5c] sm:$0xf]
        %v10010 = vld [vmem:[%s9985 + $0x60] sm:$0xf]
        %v10011 = vld [vmem:[%s9985 + $0x64] sm:$0xf]
        %v10012 = vld [vmem:[%s9985 + $0x68] sm:$0xf]
        %v10013 = vld [vmem:[%s9985 + $0x6c] sm:$0xf]
        %v10014 = vld [vmem:[%s9985 + $0x70] sm:$0xf]
        %v10015 = vld [vmem:[%s9985 + $0x74] sm:$0xf]
        %v10016 = vld [vmem:[%s9985 + $0x78] sm:$0xf]
        %v10033 = vunpack.c.l.b16 %v9969
        %v10034 = vunpack.c.l.b16 %v9970
        %v10035 = vunpack.c.l.b16 %v9971
        %v10036 = vunpack.c.l.b16 %v9972
        %v10037 = vunpack.c.l.b16 %v9973
        %v10038 = vunpack.c.l.b16 %v9974
        %v10039 = vunpack.c.l.b16 %v9975
        %v10040 = vunpack.c.l.b16 %v9976
        %v10041 = vunpack.c.l.b16 %v9977
        %v10042 = vunpack.c.l.b16 %v9978
        %v10043 = vunpack.c.l.b16 %v9979
        %v10044 = vunpack.c.l.b16 %v9980
        %v10045 = vunpack.c.l.b16 %v9981
        %v10046 = vunpack.c.l.b16 %v9982
        %v10047 = vunpack.c.l.b16 %v9983
        %v10048 = vunpack.c.l.b16 %v9984
        %v10049 = vrot.slane %v10035, 7
        %v10050 = vsel %vm9558, %v10049, %v10033
        %v10051 = vrot.slane %v10037, 6
        %v10052 = vsel %vm9561, %v10051, %v10050
        %v10053 = vrot.slane %v10039, 5
        %v10054 = vsel %vm9564, %v10053, %v10052
        %v10055 = vrot.slane %v10041, 4
        %v10056 = vsel %vm9567, %v10055, %v10054
        %v10057 = vrot.slane %v10043, 3
        %v10058 = vsel %vm9570, %v10057, %v10056
        %v10059 = vrot.slane %v10045, 2
        %v10060 = vsel %vm9573, %v10059, %v10058
        %v10061 = vrot.slane %v10047, 1
        %v10062 = vsel %vm9576, %v10061, %v10060
        %v10063 = vrot.slane %v10036, 7
        %v10064 = vsel %vm9558, %v10063, %v10034
        %v10065 = vrot.slane %v10038, 6
        %v10066 = vsel %vm9561, %v10065, %v10064
        %v10067 = vrot.slane %v10040, 5
        %v10068 = vsel %vm9564, %v10067, %v10066
        %v10069 = vrot.slane %v10042, 4
        %v10070 = vsel %vm9567, %v10069, %v10068
        %v10071 = vrot.slane %v10044, 3
        %v10072 = vsel %vm9570, %v10071, %v10070
        %v10073 = vrot.slane %v10046, 2
        %v10074 = vsel %vm9573, %v10073, %v10072
        %v10075 = vrot.slane %v10048, 1
        %v10076 = vsel %vm9576, %v10075, %v10074
        %v10077 = vpack.c.b16 %v10062, %v10062
        %v10078 = vpack.c.b16 %v10076, %v10076
        %v10111 = vunpack.c.l.b16 %v9986
        %v10112 = vunpack.c.l.b16 %v9987
        %v10113 = vunpack.c.l.b16 %v9988
        %v10114 = vunpack.c.l.b16 %v9989
        %v10115 = vunpack.c.l.b16 %v9990
        %v10116 = vunpack.c.l.b16 %v9991
        %v10117 = vunpack.c.l.b16 %v9992
        %v10118 = vunpack.c.l.b16 %v9993
        %v10119 = vunpack.c.l.b16 %v9994
        %v10120 = vunpack.c.l.b16 %v9995
        %v10121 = vunpack.c.l.b16 %v9996
        %v10122 = vunpack.c.l.b16 %v9997
        %v10123 = vunpack.c.l.b16 %v9998
        %v10124 = vunpack.c.l.b16 %v9999
        %v10125 = vunpack.c.l.b16 %v10000
        %v10126 = vunpack.c.l.b16 %v10001
        %v10127 = vunpack.c.l.b16 %v10002
        %v10128 = vunpack.c.l.b16 %v10003
        %v10129 = vunpack.c.l.b16 %v10004
        %v10130 = vunpack.c.l.b16 %v10005
        %v10131 = vunpack.c.l.b16 %v10006
        %v10132 = vunpack.c.l.b16 %v10007
        %v10133 = vunpack.c.l.b16 %v10008
        %v10134 = vunpack.c.l.b16 %v10009
        %v10135 = vunpack.c.l.b16 %v10010
        %v10136 = vunpack.c.l.b16 %v10011
        %v10137 = vunpack.c.l.b16 %v10012
        %v10138 = vunpack.c.l.b16 %v10013
        %v10139 = vunpack.c.l.b16 %v10014
        %v10140 = vunpack.c.l.b16 %v10015
        %v10141 = vunpack.c.l.b16 %v10016
        %v10142 = vpack.c.b16 %v10112, %v10111
        %v10143 = vpack.c.b16 %v10114, %v10113
        %v10144 = vpack.c.b16 %v10116, %v10115
        %v10145 = vpack.c.b16 %v10118, %v10117
        %v10146 = vpack.c.b16 %v10120, %v10119
        %v10147 = vpack.c.b16 %v10122, %v10121
        %v10148 = vpack.c.b16 %v10124, %v10123
        %v10149 = vpack.c.b16 %v10126, %v10125
        %v10150 = vpack.c.b16 %v10128, %v10127
        %v10151 = vpack.c.b16 %v10130, %v10129
        %v10152 = vpack.c.b16 %v10132, %v10131
        %v10153 = vpack.c.b16 %v10134, %v10133
        %v10154 = vpack.c.b16 %v10136, %v10135
        %v10155 = vpack.c.b16 %v10138, %v10137
        %v10156 = vpack.c.b16 %v10140, %v10139
        %v10157 = vpack.c.b16 %v10141, %v10141
        %v10174 = vsel %vm9688, %v10078, 0
        %v10177 = vand.u32 %v10157, %v9695
        %10179 = vmatpush.bf16.msra.mxu0 %v10149
        %10180 = vmatpush.bf16.msra.mxu0 %v10148
        %10181 = vmatpush.bf16.msra.mxu0 %v10147
        %10182 = vmatpush.bf16.msra.mxu0 %v10146
        %10183 = vmatpush.bf16.msra.mxu0 %v10145
        %10184 = vmatpush.bf16.msra.mxu0 %v10144
        %10185 = vmatpush.bf16.msra.mxu0 %v10143
        %10186 = vmatpush.bf16.msra.mxu0 %v10142
        %10187 = vmatmul.bf16.gmra.mxu0 %v10077
        %v10188 = vpop.f32.mrf.mxu0
        %v10189 = vadd.f32 0.0, %v10188
        %v10190 = vpop.f32.mrf.mxu0
        %10191 = vdwg.mxu0
        %10192 = vmatpush.bf16.msra.mxu0 %v10177
        %10193 = vmatpush.bf16.msra.mxu0 %v10156
        %10194 = vmatpush.bf16.msra.mxu0 %v10155
        %10195 = vmatpush.bf16.msra.mxu0 %v10154
        %10196 = vmatpush.bf16.msra.mxu0 %v10153
        %10197 = vmatpush.bf16.msra.mxu0 %v10152
        %10198 = vmatpush.bf16.msra.mxu0 %v10151
        %10199 = vmatpush.bf16.msra.mxu0 %v10150
        %10200 = vmatmul.bf16.gmra.mxu0 %v10174
        %v10201 = vpop.f32.mrf.mxu0
        %v10202 = vadd.f32 %v10189, %v10201
        %v10203 = vpop.f32.mrf.mxu0
        %10204 = vdwg.mxu0
        %v10205 = vadd.f32 %v9910, %v10202
        %s10206 = scalar_lea.vmem [#allocation5], 3
        %v10207 = vld [vmem:[%s10206] ss:$8 sm:$0x3]
        %s10208 = scalar_lea.vmem [#allocation5], 19
        %v10209 = vld [vmem:[%s10208] ss:$8 sm:$0x3]
        %s10210 = scalar_lea.vmem [#allocation5], 35
        %v10211 = vld [vmem:[%s10210] ss:$8 sm:$0x3]
        %s10212 = scalar_lea.vmem [#allocation5], 51
        %v10213 = vld [vmem:[%s10212] ss:$8 sm:$0x3]
        %s10214 = scalar_lea.vmem [#allocation5], 67
        %v10215 = vld [vmem:[%s10214] ss:$8 sm:$0x3]
        %s10216 = scalar_lea.vmem [#allocation5], 83
        %v10217 = vld [vmem:[%s10216] ss:$8 sm:$0x3]
        %s10218 = scalar_lea.vmem [#allocation5], 99
        %v10219 = vld [vmem:[%s10218] ss:$8 sm:$0x3]
        %s10220 = scalar_lea.vmem [#allocation5], 115
        %v10221 = vld [vmem:[%s10220] ss:$8 sm:$0x3]
        %v10230 = vperm.slane %v10207, 0
        %v10231 = vperm.slane %v10207, 1
        %v10232 = vperm.slane %v10209, 0
        %v10233 = vperm.slane %v10209, 1
        %v10234 = vperm.slane %v10211, 0
        %v10235 = vperm.slane %v10211, 1
        %v10236 = vperm.slane %v10213, 0
        %v10237 = vperm.slane %v10213, 1
        %v10238 = vperm.slane %v10215, 0
        %v10239 = vperm.slane %v10215, 1
        %v10240 = vperm.slane %v10217, 0
        %v10241 = vperm.slane %v10217, 1
        %v10242 = vperm.slane %v10219, 0
        %v10243 = vperm.slane %v10219, 1
        %v10244 = vperm.slane %v10221, 0
        %v10245 = vperm.slane %v10221, 1
        %v10262 = vpack.c.bf16 %v10230, %v10230
        %v10263 = vpack.c.bf16 %v10231, %v10231
        %v10264 = vpack.c.bf16 %v10232, %v10232
        %v10265 = vpack.c.bf16 %v10233, %v10233
        %v10266 = vpack.c.bf16 %v10234, %v10234
        %v10267 = vpack.c.bf16 %v10235, %v10235
        %v10268 = vpack.c.bf16 %v10236, %v10236
        %v10269 = vpack.c.bf16 %v10237, %v10237
        %v10270 = vpack.c.bf16 %v10238, %v10238
        %v10271 = vpack.c.bf16 %v10239, %v10239
        %v10272 = vpack.c.bf16 %v10240, %v10240
        %v10273 = vpack.c.bf16 %v10241, %v10241
        %v10274 = vpack.c.bf16 %v10242, %v10242
        %v10275 = vpack.c.bf16 %v10243, %v10243
        %v10276 = vpack.c.bf16 %v10244, %v10244
        %v10277 = vpack.c.bf16 %v10245, %v10245
        %s10278 = scalar_lea.vmem %s8, 372
        %v10279 = vld [vmem:[%s10278] sm:$0xf]
        %v10280 = vld [vmem:[%s10278 + $0x4] sm:$0xf]
        %v10281 = vld [vmem:[%s10278 + $0x8] sm:$0xf]
        %v10282 = vld [vmem:[%s10278 + $0xc] sm:$0xf]
        %v10283 = vld [vmem:[%s10278 + $0x10] sm:$0xf]
        %v10284 = vld [vmem:[%s10278 + $0x14] sm:$0xf]
        %v10285 = vld [vmem:[%s10278 + $0x18] sm:$0xf]
        %v10286 = vld [vmem:[%s10278 + $0x1c] sm:$0xf]
        %v10287 = vld [vmem:[%s10278 + $0x20] sm:$0xf]
        %v10288 = vld [vmem:[%s10278 + $0x24] sm:$0xf]
        %v10289 = vld [vmem:[%s10278 + $0x28] sm:$0xf]
        %v10290 = vld [vmem:[%s10278 + $0x2c] sm:$0xf]
        %v10291 = vld [vmem:[%s10278 + $0x30] sm:$0xf]
        %v10292 = vld [vmem:[%s10278 + $0x34] sm:$0xf]
        %v10293 = vld [vmem:[%s10278 + $0x38] sm:$0xf]
        %v10294 = vld [vmem:[%s10278 + $0x3c] sm:$0xf]
        %v10295 = vld [vmem:[%s10278 + $0x40] sm:$0xf]
        %v10296 = vld [vmem:[%s10278 + $0x44] sm:$0xf]
        %v10297 = vld [vmem:[%s10278 + $0x48] sm:$0xf]
        %v10298 = vld [vmem:[%s10278 + $0x4c] sm:$0xf]
        %v10299 = vld [vmem:[%s10278 + $0x50] sm:$0xf]
        %v10300 = vld [vmem:[%s10278 + $0x54] sm:$0xf]
        %v10301 = vld [vmem:[%s10278 + $0x58] sm:$0xf]
        %v10302 = vld [vmem:[%s10278 + $0x5c] sm:$0xf]
        %v10303 = vld [vmem:[%s10278 + $0x60] sm:$0xf]
        %v10304 = vld [vmem:[%s10278 + $0x64] sm:$0xf]
        %v10305 = vld [vmem:[%s10278 + $0x68] sm:$0xf]
        %v10306 = vld [vmem:[%s10278 + $0x6c] sm:$0xf]
        %v10307 = vld [vmem:[%s10278 + $0x70] sm:$0xf]
        %v10308 = vld [vmem:[%s10278 + $0x74] sm:$0xf]
        %v10309 = vld [vmem:[%s10278 + $0x78] sm:$0xf]
        %v10326 = vunpack.c.l.b16 %v10262
        %v10327 = vunpack.c.l.b16 %v10263
        %v10328 = vunpack.c.l.b16 %v10264
        %v10329 = vunpack.c.l.b16 %v10265
        %v10330 = vunpack.c.l.b16 %v10266
        %v10331 = vunpack.c.l.b16 %v10267
        %v10332 = vunpack.c.l.b16 %v10268
        %v10333 = vunpack.c.l.b16 %v10269
        %v10334 = vunpack.c.l.b16 %v10270
        %v10335 = vunpack.c.l.b16 %v10271
        %v10336 = vunpack.c.l.b16 %v10272
        %v10337 = vunpack.c.l.b16 %v10273
        %v10338 = vunpack.c.l.b16 %v10274
        %v10339 = vunpack.c.l.b16 %v10275
        %v10340 = vunpack.c.l.b16 %v10276
        %v10341 = vunpack.c.l.b16 %v10277
        %v10342 = vrot.slane %v10328, 7
        %v10343 = vsel %vm9558, %v10342, %v10326
        %v10344 = vrot.slane %v10330, 6
        %v10345 = vsel %vm9561, %v10344, %v10343
        %v10346 = vrot.slane %v10332, 5
        %v10347 = vsel %vm9564, %v10346, %v10345
        %v10348 = vrot.slane %v10334, 4
        %v10349 = vsel %vm9567, %v10348, %v10347
        %v10350 = vrot.slane %v10336, 3
        %v10351 = vsel %vm9570, %v10350, %v10349
        %v10352 = vrot.slane %v10338, 2
        %v10353 = vsel %vm9573, %v10352, %v10351
        %v10354 = vrot.slane %v10340, 1
        %v10355 = vsel %vm9576, %v10354, %v10353
        %v10356 = vrot.slane %v10329, 7
        %v10357 = vsel %vm9558, %v10356, %v10327
        %v10358 = vrot.slane %v10331, 6
        %v10359 = vsel %vm9561, %v10358, %v10357
        %v10360 = vrot.slane %v10333, 5
        %v10361 = vsel %vm9564, %v10360, %v10359
        %v10362 = vrot.slane %v10335, 4
        %v10363 = vsel %vm9567, %v10362, %v10361
        %v10364 = vrot.slane %v10337, 3
        %v10365 = vsel %vm9570, %v10364, %v10363
        %v10366 = vrot.slane %v10339, 2
        %v10367 = vsel %vm9573, %v10366, %v10365
        %v10368 = vrot.slane %v10341, 1
        %v10369 = vsel %vm9576, %v10368, %v10367
        %v10370 = vpack.c.b16 %v10355, %v10355
        %v10371 = vpack.c.b16 %v10369, %v10369
        %v10404 = vunpack.c.l.b16 %v10279
        %v10405 = vunpack.c.l.b16 %v10280
        %v10406 = vunpack.c.l.b16 %v10281
        %v10407 = vunpack.c.l.b16 %v10282
        %v10408 = vunpack.c.l.b16 %v10283
        %v10409 = vunpack.c.l.b16 %v10284
        %v10410 = vunpack.c.l.b16 %v10285
        %v10411 = vunpack.c.l.b16 %v10286
        %v10412 = vunpack.c.l.b16 %v10287
        %v10413 = vunpack.c.l.b16 %v10288
        %v10414 = vunpack.c.l.b16 %v10289
        %v10415 = vunpack.c.l.b16 %v10290
        %v10416 = vunpack.c.l.b16 %v10291
        %v10417 = vunpack.c.l.b16 %v10292
        %v10418 = vunpack.c.l.b16 %v10293
        %v10419 = vunpack.c.l.b16 %v10294
        %v10420 = vunpack.c.l.b16 %v10295
        %v10421 = vunpack.c.l.b16 %v10296
        %v10422 = vunpack.c.l.b16 %v10297
        %v10423 = vunpack.c.l.b16 %v10298
        %v10424 = vunpack.c.l.b16 %v10299
        %v10425 = vunpack.c.l.b16 %v10300
        %v10426 = vunpack.c.l.b16 %v10301
        %v10427 = vunpack.c.l.b16 %v10302
        %v10428 = vunpack.c.l.b16 %v10303
        %v10429 = vunpack.c.l.b16 %v10304
        %v10430 = vunpack.c.l.b16 %v10305
        %v10431 = vunpack.c.l.b16 %v10306
        %v10432 = vunpack.c.l.b16 %v10307
        %v10433 = vunpack.c.l.b16 %v10308
        %v10434 = vunpack.c.l.b16 %v10309
        %v10435 = vpack.c.b16 %v10405, %v10404
        %v10436 = vpack.c.b16 %v10407, %v10406
        %v10437 = vpack.c.b16 %v10409, %v10408
        %v10438 = vpack.c.b16 %v10411, %v10410
        %v10439 = vpack.c.b16 %v10413, %v10412
        %v10440 = vpack.c.b16 %v10415, %v10414
        %v10441 = vpack.c.b16 %v10417, %v10416
        %v10442 = vpack.c.b16 %v10419, %v10418
        %v10443 = vpack.c.b16 %v10421, %v10420
        %v10444 = vpack.c.b16 %v10423, %v10422
        %v10445 = vpack.c.b16 %v10425, %v10424
        %v10446 = vpack.c.b16 %v10427, %v10426
        %v10447 = vpack.c.b16 %v10429, %v10428
        %v10448 = vpack.c.b16 %v10431, %v10430
        %v10449 = vpack.c.b16 %v10433, %v10432
        %v10450 = vpack.c.b16 %v10434, %v10434
        %v10467 = vsel %vm9688, %v10371, 0
        %v10470 = vand.u32 %v10450, %v9695
        %10472 = vmatpush.bf16.msra.mxu0 %v10442
        %10473 = vmatpush.bf16.msra.mxu0 %v10441
        %10474 = vmatpush.bf16.msra.mxu0 %v10440
        %10475 = vmatpush.bf16.msra.mxu0 %v10439
        %10476 = vmatpush.bf16.msra.mxu0 %v10438
        %10477 = vmatpush.bf16.msra.mxu0 %v10437
        %10478 = vmatpush.bf16.msra.mxu0 %v10436
        %10479 = vmatpush.bf16.msra.mxu0 %v10435
        %10480 = vmatmul.bf16.gmra.mxu0 %v10370
        %v10481 = vpop.f32.mrf.mxu0
        %v10482 = vadd.f32 0.0, %v10481
        %v10483 = vpop.f32.mrf.mxu0
        %10484 = vdwg.mxu0
        %10485 = vmatpush.bf16.msra.mxu0 %v10470
        %10486 = vmatpush.bf16.msra.mxu0 %v10449
        %10487 = vmatpush.bf16.msra.mxu0 %v10448
        %10488 = vmatpush.bf16.msra.mxu0 %v10447
        %10489 = vmatpush.bf16.msra.mxu0 %v10446
        %10490 = vmatpush.bf16.msra.mxu0 %v10445
        %10491 = vmatpush.bf16.msra.mxu0 %v10444
        %10492 = vmatpush.bf16.msra.mxu0 %v10443
        %10493 = vmatmul.bf16.gmra.mxu0 %v10467
        %v10494 = vpop.f32.mrf.mxu0
        %v10495 = vadd.f32 %v10482, %v10494
        %v10496 = vpop.f32.mrf.mxu0
        %10497 = vdwg.mxu0
        %v10498 = vadd.f32 %v10205, %v10495
        %s10499 = scalar_lea.vmem [#allocation5], 4
        %v10500 = vld [vmem:[%s10499] ss:$8 sm:$0x3]
        %s10501 = scalar_lea.vmem [#allocation5], 20
        %v10502 = vld [vmem:[%s10501] ss:$8 sm:$0x3]
        %s10503 = scalar_lea.vmem [#allocation5], 36
        %v10504 = vld [vmem:[%s10503] ss:$8 sm:$0x3]
        %s10505 = scalar_lea.vmem [#allocation5], 52
        %v10506 = vld [vmem:[%s10505] ss:$8 sm:$0x3]
        %s10507 = scalar_lea.vmem [#allocation5], 68
        %v10508 = vld [vmem:[%s10507] ss:$8 sm:$0x3]
        %s10509 = scalar_lea.vmem [#allocation5], 84
        %v10510 = vld [vmem:[%s10509] ss:$8 sm:$0x3]
        %s10511 = scalar_lea.vmem [#allocation5], 100
        %v10512 = vld [vmem:[%s10511] ss:$8 sm:$0x3]
        %s10513 = scalar_lea.vmem [#allocation5], 116
        %v10514 = vld [vmem:[%s10513] ss:$8 sm:$0x3]
        %v10523 = vperm.slane %v10500, 0
        %v10524 = vperm.slane %v10500, 1
        %v10525 = vperm.slane %v10502, 0
        %v10526 = vperm.slane %v10502, 1
        %v10527 = vperm.slane %v10504, 0
        %v10528 = vperm.slane %v10504, 1
        %v10529 = vperm.slane %v10506, 0
        %v10530 = vperm.slane %v10506, 1
        %v10531 = vperm.slane %v10508, 0
        %v10532 = vperm.slane %v10508, 1
        %v10533 = vperm.slane %v10510, 0
        %v10534 = vperm.slane %v10510, 1
        %v10535 = vperm.slane %v10512, 0
        %v10536 = vperm.slane %v10512, 1
        %v10537 = vperm.slane %v10514, 0
        %v10538 = vperm.slane %v10514, 1
        %v10555 = vpack.c.bf16 %v10523, %v10523
        %v10556 = vpack.c.bf16 %v10524, %v10524
        %v10557 = vpack.c.bf16 %v10525, %v10525
        %v10558 = vpack.c.bf16 %v10526, %v10526
        %v10559 = vpack.c.bf16 %v10527, %v10527
        %v10560 = vpack.c.bf16 %v10528, %v10528
        %v10561 = vpack.c.bf16 %v10529, %v10529
        %v10562 = vpack.c.bf16 %v10530, %v10530
        %v10563 = vpack.c.bf16 %v10531, %v10531
        %v10564 = vpack.c.bf16 %v10532, %v10532
        %v10565 = vpack.c.bf16 %v10533, %v10533
        %v10566 = vpack.c.bf16 %v10534, %v10534
        %v10567 = vpack.c.bf16 %v10535, %v10535
        %v10568 = vpack.c.bf16 %v10536, %v10536
        %v10569 = vpack.c.bf16 %v10537, %v10537
        %v10570 = vpack.c.bf16 %v10538, %v10538
        %s10571 = scalar_lea.vmem %s8, 496
        %v10572 = vld [vmem:[%s10571] sm:$0xf]
        %v10573 = vld [vmem:[%s10571 + $0x4] sm:$0xf]
        %v10574 = vld [vmem:[%s10571 + $0x8] sm:$0xf]
        %v10575 = vld [vmem:[%s10571 + $0xc] sm:$0xf]
        %v10576 = vld [vmem:[%s10571 + $0x10] sm:$0xf]
        %v10577 = vld [vmem:[%s10571 + $0x14] sm:$0xf]
        %v10578 = vld [vmem:[%s10571 + $0x18] sm:$0xf]
        %v10579 = vld [vmem:[%s10571 + $0x1c] sm:$0xf]
        %v10580 = vld [vmem:[%s10571 + $0x20] sm:$0xf]
        %v10581 = vld [vmem:[%s10571 + $0x24] sm:$0xf]
        %v10582 = vld [vmem:[%s10571 + $0x28] sm:$0xf]
        %v10583 = vld [vmem:[%s10571 + $0x2c] sm:$0xf]
        %v10584 = vld [vmem:[%s10571 + $0x30] sm:$0xf]
        %v10585 = vld [vmem:[%s10571 + $0x34] sm:$0xf]
        %v10586 = vld [vmem:[%s10571 + $0x38] sm:$0xf]
        %v10587 = vld [vmem:[%s10571 + $0x3c] sm:$0xf]
        %v10588 = vld [vmem:[%s10571 + $0x40] sm:$0xf]
        %v10589 = vld [vmem:[%s10571 + $0x44] sm:$0xf]
        %v10590 = vld [vmem:[%s10571 + $0x48] sm:$0xf]
        %v10591 = vld [vmem:[%s10571 + $0x4c] sm:$0xf]
        %v10592 = vld [vmem:[%s10571 + $0x50] sm:$0xf]
        %v10593 = vld [vmem:[%s10571 + $0x54] sm:$0xf]
        %v10594 = vld [vmem:[%s10571 + $0x58] sm:$0xf]
        %v10595 = vld [vmem:[%s10571 + $0x5c] sm:$0xf]
        %v10596 = vld [vmem:[%s10571 + $0x60] sm:$0xf]
        %v10597 = vld [vmem:[%s10571 + $0x64] sm:$0xf]
        %v10598 = vld [vmem:[%s10571 + $0x68] sm:$0xf]
        %v10599 = vld [vmem:[%s10571 + $0x6c] sm:$0xf]
        %v10600 = vld [vmem:[%s10571 + $0x70] sm:$0xf]
        %v10601 = vld [vmem:[%s10571 + $0x74] sm:$0xf]
        %v10602 = vld [vmem:[%s10571 + $0x78] sm:$0xf]
        %v10619 = vunpack.c.l.b16 %v10555
        %v10620 = vunpack.c.l.b16 %v10556
        %v10621 = vunpack.c.l.b16 %v10557
        %v10622 = vunpack.c.l.b16 %v10558
        %v10623 = vunpack.c.l.b16 %v10559
        %v10624 = vunpack.c.l.b16 %v10560
        %v10625 = vunpack.c.l.b16 %v10561
        %v10626 = vunpack.c.l.b16 %v10562
        %v10627 = vunpack.c.l.b16 %v10563
        %v10628 = vunpack.c.l.b16 %v10564
        %v10629 = vunpack.c.l.b16 %v10565
        %v10630 = vunpack.c.l.b16 %v10566
        %v10631 = vunpack.c.l.b16 %v10567
        %v10632 = vunpack.c.l.b16 %v10568
        %v10633 = vunpack.c.l.b16 %v10569
        %v10634 = vunpack.c.l.b16 %v10570
        %v10635 = vrot.slane %v10621, 7
        %v10636 = vsel %vm9558, %v10635, %v10619
        %v10637 = vrot.slane %v10623, 6
        %v10638 = vsel %vm9561, %v10637, %v10636
        %v10639 = vrot.slane %v10625, 5
        %v10640 = vsel %vm9564, %v10639, %v10638
        %v10641 = vrot.slane %v10627, 4
        %v10642 = vsel %vm9567, %v10641, %v10640
        %v10643 = vrot.slane %v10629, 3
        %v10644 = vsel %vm9570, %v10643, %v10642
        %v10645 = vrot.slane %v10631, 2
        %v10646 = vsel %vm9573, %v10645, %v10644
        %v10647 = vrot.slane %v10633, 1
        %v10648 = vsel %vm9576, %v10647, %v10646
        %v10649 = vrot.slane %v10622, 7
        %v10650 = vsel %vm9558, %v10649, %v10620
        %v10651 = vrot.slane %v10624, 6
        %v10652 = vsel %vm9561, %v10651, %v10650
        %v10653 = vrot.slane %v10626, 5
        %v10654 = vsel %vm9564, %v10653, %v10652
        %v10655 = vrot.slane %v10628, 4
        %v10656 = vsel %vm9567, %v10655, %v10654
        %v10657 = vrot.slane %v10630, 3
        %v10658 = vsel %vm9570, %v10657, %v10656
        %v10659 = vrot.slane %v10632, 2
        %v10660 = vsel %vm9573, %v10659, %v10658
        %v10661 = vrot.slane %v10634, 1
        %v10662 = vsel %vm9576, %v10661, %v10660
        %v10663 = vpack.c.b16 %v10648, %v10648
        %v10664 = vpack.c.b16 %v10662, %v10662
        %v10697 = vunpack.c.l.b16 %v10572
        %v10698 = vunpack.c.l.b16 %v10573
        %v10699 = vunpack.c.l.b16 %v10574
        %v10700 = vunpack.c.l.b16 %v10575
        %v10701 = vunpack.c.l.b16 %v10576
        %v10702 = vunpack.c.l.b16 %v10577
        %v10703 = vunpack.c.l.b16 %v10578
        %v10704 = vunpack.c.l.b16 %v10579
        %v10705 = vunpack.c.l.b16 %v10580
        %v10706 = vunpack.c.l.b16 %v10581
        %v10707 = vunpack.c.l.b16 %v10582
        %v10708 = vunpack.c.l.b16 %v10583
        %v10709 = vunpack.c.l.b16 %v10584
        %v10710 = vunpack.c.l.b16 %v10585
        %v10711 = vunpack.c.l.b16 %v10586
        %v10712 = vunpack.c.l.b16 %v10587
        %v10713 = vunpack.c.l.b16 %v10588
        %v10714 = vunpack.c.l.b16 %v10589
        %v10715 = vunpack.c.l.b16 %v10590
        %v10716 = vunpack.c.l.b16 %v10591
        %v10717 = vunpack.c.l.b16 %v10592
        %v10718 = vunpack.c.l.b16 %v10593
        %v10719 = vunpack.c.l.b16 %v10594
        %v10720 = vunpack.c.l.b16 %v10595
        %v10721 = vunpack.c.l.b16 %v10596
        %v10722 = vunpack.c.l.b16 %v10597
        %v10723 = vunpack.c.l.b16 %v10598
        %v10724 = vunpack.c.l.b16 %v10599
        %v10725 = vunpack.c.l.b16 %v10600
        %v10726 = vunpack.c.l.b16 %v10601
        %v10727 = vunpack.c.l.b16 %v10602
        %v10728 = vpack.c.b16 %v10698, %v10697
        %v10729 = vpack.c.b16 %v10700, %v10699
        %v10730 = vpack.c.b16 %v10702, %v10701
        %v10731 = vpack.c.b16 %v10704, %v10703
        %v10732 = vpack.c.b16 %v10706, %v10705
        %v10733 = vpack.c.b16 %v10708, %v10707
        %v10734 = vpack.c.b16 %v10710, %v10709
        %v10735 = vpack.c.b16 %v10712, %v10711
        %v10736 = vpack.c.b16 %v10714, %v10713
        %v10737 = vpack.c.b16 %v10716, %v10715
        %v10738 = vpack.c.b16 %v10718, %v10717
        %v10739 = vpack.c.b16 %v10720, %v10719
        %v10740 = vpack.c.b16 %v10722, %v10721
        %v10741 = vpack.c.b16 %v10724, %v10723
        %v10742 = vpack.c.b16 %v10726, %v10725
        %v10743 = vpack.c.b16 %v10727, %v10727
        %v10760 = vsel %vm9688, %v10664, 0
        %v10763 = vand.u32 %v10743, %v9695
        %10765 = vmatpush.bf16.msra.mxu0 %v10735
        %10766 = vmatpush.bf16.msra.mxu0 %v10734
        %10767 = vmatpush.bf16.msra.mxu0 %v10733
        %10768 = vmatpush.bf16.msra.mxu0 %v10732
        %10769 = vmatpush.bf16.msra.mxu0 %v10731
        %10770 = vmatpush.bf16.msra.mxu0 %v10730
        %10771 = vmatpush.bf16.msra.mxu0 %v10729
        %10772 = vmatpush.bf16.msra.mxu0 %v10728
        %10773 = vmatmul.bf16.gmra.mxu0 %v10663
        %v10774 = vpop.f32.mrf.mxu0
        %v10775 = vadd.f32 0.0, %v10774
        %v10776 = vpop.f32.mrf.mxu0
        %10777 = vdwg.mxu0
        %10778 = vmatpush.bf16.msra.mxu0 %v10763
        %10779 = vmatpush.bf16.msra.mxu0 %v10742
        %10780 = vmatpush.bf16.msra.mxu0 %v10741
        %10781 = vmatpush.bf16.msra.mxu0 %v10740
        %10782 = vmatpush.bf16.msra.mxu0 %v10739
        %10783 = vmatpush.bf16.msra.mxu0 %v10738
        %10784 = vmatpush.bf16.msra.mxu0 %v10737
        %10785 = vmatpush.bf16.msra.mxu0 %v10736
        %10786 = vmatmul.bf16.gmra.mxu0 %v10760
        %v10787 = vpop.f32.mrf.mxu0
        %v10788 = vadd.f32 %v10775, %v10787
        %v10789 = vpop.f32.mrf.mxu0
        %10790 = vdwg.mxu0
        %v10791 = vadd.f32 %v10498, %v10788
        %s10792 = scalar_lea.vmem [#allocation5], 5
        %v10793 = vld [vmem:[%s10792] ss:$8 sm:$0x3]
        %s10794 = scalar_lea.vmem [#allocation5], 21
        %v10795 = vld [vmem:[%s10794] ss:$8 sm:$0x3]
        %s10796 = scalar_lea.vmem [#allocation5], 37
        %v10797 = vld [vmem:[%s10796] ss:$8 sm:$0x3]
        %s10798 = scalar_lea.vmem [#allocation5], 53
        %v10799 = vld [vmem:[%s10798] ss:$8 sm:$0x3]
        %s10800 = scalar_lea.vmem [#allocation5], 69
        %v10801 = vld [vmem:[%s10800] ss:$8 sm:$0x3]
        %s10802 = scalar_lea.vmem [#allocation5], 85
        %v10803 = vld [vmem:[%s10802] ss:$8 sm:$0x3]
        %s10804 = scalar_lea.vmem [#allocation5], 101
        %v10805 = vld [vmem:[%s10804] ss:$8 sm:$0x3]
        %s10806 = scalar_lea.vmem [#allocation5], 117
        %v10807 = vld [vmem:[%s10806] ss:$8 sm:$0x3]
        %v10816 = vperm.slane %v10793, 0
        %v10817 = vperm.slane %v10793, 1
        %v10818 = vperm.slane %v10795, 0
        %v10819 = vperm.slane %v10795, 1
        %v10820 = vperm.slane %v10797, 0
        %v10821 = vperm.slane %v10797, 1
        %v10822 = vperm.slane %v10799, 0
        %v10823 = vperm.slane %v10799, 1
        %v10824 = vperm.slane %v10801, 0
        %v10825 = vperm.slane %v10801, 1
        %v10826 = vperm.slane %v10803, 0
        %v10827 = vperm.slane %v10803, 1
        %v10828 = vperm.slane %v10805, 0
        %v10829 = vperm.slane %v10805, 1
        %v10830 = vperm.slane %v10807, 0
        %v10831 = vperm.slane %v10807, 1
        %v10848 = vpack.c.bf16 %v10816, %v10816
        %v10849 = vpack.c.bf16 %v10817, %v10817
        %v10850 = vpack.c.bf16 %v10818, %v10818
        %v10851 = vpack.c.bf16 %v10819, %v10819
        %v10852 = vpack.c.bf16 %v10820, %v10820
        %v10853 = vpack.c.bf16 %v10821, %v10821
        %v10854 = vpack.c.bf16 %v10822, %v10822
        %v10855 = vpack.c.bf16 %v10823, %v10823
        %v10856 = vpack.c.bf16 %v10824, %v10824
        %v10857 = vpack.c.bf16 %v10825, %v10825
        %v10858 = vpack.c.bf16 %v10826, %v10826
        %v10859 = vpack.c.bf16 %v10827, %v10827
        %v10860 = vpack.c.bf16 %v10828, %v10828
        %v10861 = vpack.c.bf16 %v10829, %v10829
        %v10862 = vpack.c.bf16 %v10830, %v10830
        %v10863 = vpack.c.bf16 %v10831, %v10831
        %s10864 = scalar_lea.vmem %s8, 620
        %v10865 = vld [vmem:[%s10864] sm:$0xf]
        %v10866 = vld [vmem:[%s10864 + $0x4] sm:$0xf]
        %v10867 = vld [vmem:[%s10864 + $0x8] sm:$0xf]
        %v10868 = vld [vmem:[%s10864 + $0xc] sm:$0xf]
        %v10869 = vld [vmem:[%s10864 + $0x10] sm:$0xf]
        %v10870 = vld [vmem:[%s10864 + $0x14] sm:$0xf]
        %v10871 = vld [vmem:[%s10864 + $0x18] sm:$0xf]
        %v10872 = vld [vmem:[%s10864 + $0x1c] sm:$0xf]
        %v10873 = vld [vmem:[%s10864 + $0x20] sm:$0xf]
        %v10874 = vld [vmem:[%s10864 + $0x24] sm:$0xf]
        %v10875 = vld [vmem:[%s10864 + $0x28] sm:$0xf]
        %v10876 = vld [vmem:[%s10864 + $0x2c] sm:$0xf]
        %v10877 = vld [vmem:[%s10864 + $0x30] sm:$0xf]
        %v10878 = vld [vmem:[%s10864 + $0x34] sm:$0xf]
        %v10879 = vld [vmem:[%s10864 + $0x38] sm:$0xf]
        %v10880 = vld [vmem:[%s10864 + $0x3c] sm:$0xf]
        %v10881 = vld [vmem:[%s10864 + $0x40] sm:$0xf]
        %v10882 = vld [vmem:[%s10864 + $0x44] sm:$0xf]
        %v10883 = vld [vmem:[%s10864 + $0x48] sm:$0xf]
        %v10884 = vld [vmem:[%s10864 + $0x4c] sm:$0xf]
        %v10885 = vld [vmem:[%s10864 + $0x50] sm:$0xf]
        %v10886 = vld [vmem:[%s10864 + $0x54] sm:$0xf]
        %v10887 = vld [vmem:[%s10864 + $0x58] sm:$0xf]
        %v10888 = vld [vmem:[%s10864 + $0x5c] sm:$0xf]
        %v10889 = vld [vmem:[%s10864 + $0x60] sm:$0xf]
        %v10890 = vld [vmem:[%s10864 + $0x64] sm:$0xf]
        %v10891 = vld [vmem:[%s10864 + $0x68] sm:$0xf]
        %v10892 = vld [vmem:[%s10864 + $0x6c] sm:$0xf]
        %v10893 = vld [vmem:[%s10864 + $0x70] sm:$0xf]
        %v10894 = vld [vmem:[%s10864 + $0x74] sm:$0xf]
        %v10895 = vld [vmem:[%s10864 + $0x78] sm:$0xf]
        %v10912 = vunpack.c.l.b16 %v10848
        %v10913 = vunpack.c.l.b16 %v10849
        %v10914 = vunpack.c.l.b16 %v10850
        %v10915 = vunpack.c.l.b16 %v10851
        %v10916 = vunpack.c.l.b16 %v10852
        %v10917 = vunpack.c.l.b16 %v10853
        %v10918 = vunpack.c.l.b16 %v10854
        %v10919 = vunpack.c.l.b16 %v10855
        %v10920 = vunpack.c.l.b16 %v10856
        %v10921 = vunpack.c.l.b16 %v10857
        %v10922 = vunpack.c.l.b16 %v10858
        %v10923 = vunpack.c.l.b16 %v10859
        %v10924 = vunpack.c.l.b16 %v10860
        %v10925 = vunpack.c.l.b16 %v10861
        %v10926 = vunpack.c.l.b16 %v10862
        %v10927 = vunpack.c.l.b16 %v10863
        %v10928 = vrot.slane %v10914, 7
        %v10929 = vsel %vm9558, %v10928, %v10912
        %v10930 = vrot.slane %v10916, 6
        %v10931 = vsel %vm9561, %v10930, %v10929
        %v10932 = vrot.slane %v10918, 5
        %v10933 = vsel %vm9564, %v10932, %v10931
        %v10934 = vrot.slane %v10920, 4
        %v10935 = vsel %vm9567, %v10934, %v10933
        %v10936 = vrot.slane %v10922, 3
        %v10937 = vsel %vm9570, %v10936, %v10935
        %v10938 = vrot.slane %v10924, 2
        %v10939 = vsel %vm9573, %v10938, %v10937
        %v10940 = vrot.slane %v10926, 1
        %v10941 = vsel %vm9576, %v10940, %v10939
        %v10942 = vrot.slane %v10915, 7
        %v10943 = vsel %vm9558, %v10942, %v10913
        %v10944 = vrot.slane %v10917, 6
        %v10945 = vsel %vm9561, %v10944, %v10943
        %v10946 = vrot.slane %v10919, 5
        %v10947 = vsel %vm9564, %v10946, %v10945
        %v10948 = vrot.slane %v10921, 4
        %v10949 = vsel %vm9567, %v10948, %v10947
        %v10950 = vrot.slane %v10923, 3
        %v10951 = vsel %vm9570, %v10950, %v10949
        %v10952 = vrot.slane %v10925, 2
        %v10953 = vsel %vm9573, %v10952, %v10951
        %v10954 = vrot.slane %v10927, 1
        %v10955 = vsel %vm9576, %v10954, %v10953
        %v10956 = vpack.c.b16 %v10941, %v10941
        %v10957 = vpack.c.b16 %v10955, %v10955
        %v10990 = vunpack.c.l.b16 %v10865
        %v10991 = vunpack.c.l.b16 %v10866
        %v10992 = vunpack.c.l.b16 %v10867
        %v10993 = vunpack.c.l.b16 %v10868
        %v10994 = vunpack.c.l.b16 %v10869
        %v10995 = vunpack.c.l.b16 %v10870
        %v10996 = vunpack.c.l.b16 %v10871
        %v10997 = vunpack.c.l.b16 %v10872
        %v10998 = vunpack.c.l.b16 %v10873
        %v10999 = vunpack.c.l.b16 %v10874
        %v11000 = vunpack.c.l.b16 %v10875
        %v11001 = vunpack.c.l.b16 %v10876
        %v11002 = vunpack.c.l.b16 %v10877
        %v11003 = vunpack.c.l.b16 %v10878
        %v11004 = vunpack.c.l.b16 %v10879
        %v11005 = vunpack.c.l.b16 %v10880
        %v11006 = vunpack.c.l.b16 %v10881
        %v11007 = vunpack.c.l.b16 %v10882
        %v11008 = vunpack.c.l.b16 %v10883
        %v11009 = vunpack.c.l.b16 %v10884
        %v11010 = vunpack.c.l.b16 %v10885
        %v11011 = vunpack.c.l.b16 %v10886
        %v11012 = vunpack.c.l.b16 %v10887
        %v11013 = vunpack.c.l.b16 %v10888
        %v11014 = vunpack.c.l.b16 %v10889
        %v11015 = vunpack.c.l.b16 %v10890
        %v11016 = vunpack.c.l.b16 %v10891
        %v11017 = vunpack.c.l.b16 %v10892
        %v11018 = vunpack.c.l.b16 %v10893
        %v11019 = vunpack.c.l.b16 %v10894
        %v11020 = vunpack.c.l.b16 %v10895
        %v11021 = vpack.c.b16 %v10991, %v10990
        %v11022 = vpack.c.b16 %v10993, %v10992
        %v11023 = vpack.c.b16 %v10995, %v10994
        %v11024 = vpack.c.b16 %v10997, %v10996
        %v11025 = vpack.c.b16 %v10999, %v10998
        %v11026 = vpack.c.b16 %v11001, %v11000
        %v11027 = vpack.c.b16 %v11003, %v11002
        %v11028 = vpack.c.b16 %v11005, %v11004
        %v11029 = vpack.c.b16 %v11007, %v11006
        %v11030 = vpack.c.b16 %v11009, %v11008
        %v11031 = vpack.c.b16 %v11011, %v11010
        %v11032 = vpack.c.b16 %v11013, %v11012
        %v11033 = vpack.c.b16 %v11015, %v11014
        %v11034 = vpack.c.b16 %v11017, %v11016
        %v11035 = vpack.c.b16 %v11019, %v11018
        %v11036 = vpack.c.b16 %v11020, %v11020
        %v11053 = vsel %vm9688, %v10957, 0
        %v11056 = vand.u32 %v11036, %v9695
        %11058 = vmatpush.bf16.msra.mxu0 %v11028
        %11059 = vmatpush.bf16.msra.mxu0 %v11027
        %11060 = vmatpush.bf16.msra.mxu0 %v11026
        %11061 = vmatpush.bf16.msra.mxu0 %v11025
        %11062 = vmatpush.bf16.msra.mxu0 %v11024
        %11063 = vmatpush.bf16.msra.mxu0 %v11023
        %11064 = vmatpush.bf16.msra.mxu0 %v11022
        %11065 = vmatpush.bf16.msra.mxu0 %v11021
        %11066 = vmatmul.bf16.gmra.mxu0 %v10956
        %v11067 = vpop.f32.mrf.mxu0
        %v11068 = vadd.f32 0.0, %v11067
        %v11069 = vpop.f32.mrf.mxu0
        %11070 = vdwg.mxu0
        %11071 = vmatpush.bf16.msra.mxu0 %v11056
        %11072 = vmatpush.bf16.msra.mxu0 %v11035
        %11073 = vmatpush.bf16.msra.mxu0 %v11034
        %11074 = vmatpush.bf16.msra.mxu0 %v11033
        %11075 = vmatpush.bf16.msra.mxu0 %v11032
        %11076 = vmatpush.bf16.msra.mxu0 %v11031
        %11077 = vmatpush.bf16.msra.mxu0 %v11030
        %11078 = vmatpush.bf16.msra.mxu0 %v11029
        %11079 = vmatmul.bf16.gmra.mxu0 %v11053
        %v11080 = vpop.f32.mrf.mxu0
        %v11081 = vadd.f32 %v11068, %v11080
        %v11082 = vpop.f32.mrf.mxu0
        %11083 = vdwg.mxu0
        %v11084 = vadd.f32 %v10791, %v11081
        %s11085 = scalar_lea.vmem [#allocation5], 6
        %v11086 = vld [vmem:[%s11085] ss:$8 sm:$0x3]
        %s11087 = scalar_lea.vmem [#allocation5], 22
        %v11088 = vld [vmem:[%s11087] ss:$8 sm:$0x3]
        %s11089 = scalar_lea.vmem [#allocation5], 38
        %v11090 = vld [vmem:[%s11089] ss:$8 sm:$0x3]
        %s11091 = scalar_lea.vmem [#allocation5], 54
        %v11092 = vld [vmem:[%s11091] ss:$8 sm:$0x3]
        %s11093 = scalar_lea.vmem [#allocation5], 70
        %v11094 = vld [vmem:[%s11093] ss:$8 sm:$0x3]
        %s11095 = scalar_lea.vmem [#allocation5], 86
        %v11096 = vld [vmem:[%s11095] ss:$8 sm:$0x3]
        %s11097 = scalar_lea.vmem [#allocation5], 102
        %v11098 = vld [vmem:[%s11097] ss:$8 sm:$0x3]
        %s11099 = scalar_lea.vmem [#allocation5], 118
        %v11100 = vld [vmem:[%s11099] ss:$8 sm:$0x3]
        %v11109 = vperm.slane %v11086, 0
        %v11110 = vperm.slane %v11086, 1
        %v11111 = vperm.slane %v11088, 0
        %v11112 = vperm.slane %v11088, 1
        %v11113 = vperm.slane %v11090, 0
        %v11114 = vperm.slane %v11090, 1
        %v11115 = vperm.slane %v11092, 0
        %v11116 = vperm.slane %v11092, 1
        %v11117 = vperm.slane %v11094, 0
        %v11118 = vperm.slane %v11094, 1
        %v11119 = vperm.slane %v11096, 0
        %v11120 = vperm.slane %v11096, 1
        %v11121 = vperm.slane %v11098, 0
        %v11122 = vperm.slane %v11098, 1
        %v11123 = vperm.slane %v11100, 0
        %v11124 = vperm.slane %v11100, 1
        %v11141 = vpack.c.bf16 %v11109, %v11109
        %v11142 = vpack.c.bf16 %v11110, %v11110
        %v11143 = vpack.c.bf16 %v11111, %v11111
        %v11144 = vpack.c.bf16 %v11112, %v11112
        %v11145 = vpack.c.bf16 %v11113, %v11113
        %v11146 = vpack.c.bf16 %v11114, %v11114
        %v11147 = vpack.c.bf16 %v11115, %v11115
        %v11148 = vpack.c.bf16 %v11116, %v11116
        %v11149 = vpack.c.bf16 %v11117, %v11117
        %v11150 = vpack.c.bf16 %v11118, %v11118
        %v11151 = vpack.c.bf16 %v11119, %v11119
        %v11152 = vpack.c.bf16 %v11120, %v11120
        %v11153 = vpack.c.bf16 %v11121, %v11121
        %v11154 = vpack.c.bf16 %v11122, %v11122
        %v11155 = vpack.c.bf16 %v11123, %v11123
        %v11156 = vpack.c.bf16 %v11124, %v11124
        %s11157 = scalar_lea.vmem %s8, 744
        %v11158 = vld [vmem:[%s11157] sm:$0xf]
        %v11159 = vld [vmem:[%s11157 + $0x4] sm:$0xf]
        %v11160 = vld [vmem:[%s11157 + $0x8] sm:$0xf]
        %v11161 = vld [vmem:[%s11157 + $0xc] sm:$0xf]
        %v11162 = vld [vmem:[%s11157 + $0x10] sm:$0xf]
        %v11163 = vld [vmem:[%s11157 + $0x14] sm:$0xf]
        %v11164 = vld [vmem:[%s11157 + $0x18] sm:$0xf]
        %v11165 = vld [vmem:[%s11157 + $0x1c] sm:$0xf]
        %v11166 = vld [vmem:[%s11157 + $0x20] sm:$0xf]
        %v11167 = vld [vmem:[%s11157 + $0x24] sm:$0xf]
        %v11168 = vld [vmem:[%s11157 + $0x28] sm:$0xf]
        %v11169 = vld [vmem:[%s11157 + $0x2c] sm:$0xf]
        %v11170 = vld [vmem:[%s11157 + $0x30] sm:$0xf]
        %v11171 = vld [vmem:[%s11157 + $0x34] sm:$0xf]
        %v11172 = vld [vmem:[%s11157 + $0x38] sm:$0xf]
        %v11173 = vld [vmem:[%s11157 + $0x3c] sm:$0xf]
        %v11174 = vld [vmem:[%s11157 + $0x40] sm:$0xf]
        %v11175 = vld [vmem:[%s11157 + $0x44] sm:$0xf]
        %v11176 = vld [vmem:[%s11157 + $0x48] sm:$0xf]
        %v11177 = vld [vmem:[%s11157 + $0x4c] sm:$0xf]
        %v11178 = vld [vmem:[%s11157 + $0x50] sm:$0xf]
        %v11179 = vld [vmem:[%s11157 + $0x54] sm:$0xf]
        %v11180 = vld [vmem:[%s11157 + $0x58] sm:$0xf]
        %v11181 = vld [vmem:[%s11157 + $0x5c] sm:$0xf]
        %v11182 = vld [vmem:[%s11157 + $0x60] sm:$0xf]
        %v11183 = vld [vmem:[%s11157 + $0x64] sm:$0xf]
        %v11184 = vld [vmem:[%s11157 + $0x68] sm:$0xf]
        %v11185 = vld [vmem:[%s11157 + $0x6c] sm:$0xf]
        %v11186 = vld [vmem:[%s11157 + $0x70] sm:$0xf]
        %v11187 = vld [vmem:[%s11157 + $0x74] sm:$0xf]
        %v11188 = vld [vmem:[%s11157 + $0x78] sm:$0xf]
        %v11205 = vunpack.c.l.b16 %v11141
        %v11206 = vunpack.c.l.b16 %v11142
        %v11207 = vunpack.c.l.b16 %v11143
        %v11208 = vunpack.c.l.b16 %v11144
        %v11209 = vunpack.c.l.b16 %v11145
        %v11210 = vunpack.c.l.b16 %v11146
        %v11211 = vunpack.c.l.b16 %v11147
        %v11212 = vunpack.c.l.b16 %v11148
        %v11213 = vunpack.c.l.b16 %v11149
        %v11214 = vunpack.c.l.b16 %v11150
        %v11215 = vunpack.c.l.b16 %v11151
        %v11216 = vunpack.c.l.b16 %v11152
        %v11217 = vunpack.c.l.b16 %v11153
        %v11218 = vunpack.c.l.b16 %v11154
        %v11219 = vunpack.c.l.b16 %v11155
        %v11220 = vunpack.c.l.b16 %v11156
        %v11221 = vrot.slane %v11207, 7
        %v11222 = vsel %vm9558, %v11221, %v11205
        %v11223 = vrot.slane %v11209, 6
        %v11224 = vsel %vm9561, %v11223, %v11222
        %v11225 = vrot.slane %v11211, 5
        %v11226 = vsel %vm9564, %v11225, %v11224
        %v11227 = vrot.slane %v11213, 4
        %v11228 = vsel %vm9567, %v11227, %v11226
        %v11229 = vrot.slane %v11215, 3
        %v11230 = vsel %vm9570, %v11229, %v11228
        %v11231 = vrot.slane %v11217, 2
        %v11232 = vsel %vm9573, %v11231, %v11230
        %v11233 = vrot.slane %v11219, 1
        %v11234 = vsel %vm9576, %v11233, %v11232
        %v11235 = vrot.slane %v11208, 7
        %v11236 = vsel %vm9558, %v11235, %v11206
        %v11237 = vrot.slane %v11210, 6
        %v11238 = vsel %vm9561, %v11237, %v11236
        %v11239 = vrot.slane %v11212, 5
        %v11240 = vsel %vm9564, %v11239, %v11238
        %v11241 = vrot.slane %v11214, 4
        %v11242 = vsel %vm9567, %v11241, %v11240
        %v11243 = vrot.slane %v11216, 3
        %v11244 = vsel %vm9570, %v11243, %v11242
        %v11245 = vrot.slane %v11218, 2
        %v11246 = vsel %vm9573, %v11245, %v11244
        %v11247 = vrot.slane %v11220, 1
        %v11248 = vsel %vm9576, %v11247, %v11246
        %v11249 = vpack.c.b16 %v11234, %v11234
        %v11250 = vpack.c.b16 %v11248, %v11248
        %v11283 = vunpack.c.l.b16 %v11158
        %v11284 = vunpack.c.l.b16 %v11159
        %v11285 = vunpack.c.l.b16 %v11160
        %v11286 = vunpack.c.l.b16 %v11161
        %v11287 = vunpack.c.l.b16 %v11162
        %v11288 = vunpack.c.l.b16 %v11163
        %v11289 = vunpack.c.l.b16 %v11164
        %v11290 = vunpack.c.l.b16 %v11165
        %v11291 = vunpack.c.l.b16 %v11166
        %v11292 = vunpack.c.l.b16 %v11167
        %v11293 = vunpack.c.l.b16 %v11168
        %v11294 = vunpack.c.l.b16 %v11169
        %v11295 = vunpack.c.l.b16 %v11170
        %v11296 = vunpack.c.l.b16 %v11171
        %v11297 = vunpack.c.l.b16 %v11172
        %v11298 = vunpack.c.l.b16 %v11173
        %v11299 = vunpack.c.l.b16 %v11174
        %v11300 = vunpack.c.l.b16 %v11175
        %v11301 = vunpack.c.l.b16 %v11176
        %v11302 = vunpack.c.l.b16 %v11177
        %v11303 = vunpack.c.l.b16 %v11178
        %v11304 = vunpack.c.l.b16 %v11179
        %v11305 = vunpack.c.l.b16 %v11180
        %v11306 = vunpack.c.l.b16 %v11181
        %v11307 = vunpack.c.l.b16 %v11182
        %v11308 = vunpack.c.l.b16 %v11183
        %v11309 = vunpack.c.l.b16 %v11184
        %v11310 = vunpack.c.l.b16 %v11185
        %v11311 = vunpack.c.l.b16 %v11186
        %v11312 = vunpack.c.l.b16 %v11187
        %v11313 = vunpack.c.l.b16 %v11188
        %v11314 = vpack.c.b16 %v11284, %v11283
        %v11315 = vpack.c.b16 %v11286, %v11285
        %v11316 = vpack.c.b16 %v11288, %v11287
        %v11317 = vpack.c.b16 %v11290, %v11289
        %v11318 = vpack.c.b16 %v11292, %v11291
        %v11319 = vpack.c.b16 %v11294, %v11293
        %v11320 = vpack.c.b16 %v11296, %v11295
        %v11321 = vpack.c.b16 %v11298, %v11297
        %v11322 = vpack.c.b16 %v11300, %v11299
        %v11323 = vpack.c.b16 %v11302, %v11301
        %v11324 = vpack.c.b16 %v11304, %v11303
        %v11325 = vpack.c.b16 %v11306, %v11305
        %v11326 = vpack.c.b16 %v11308, %v11307
        %v11327 = vpack.c.b16 %v11310, %v11309
        %v11328 = vpack.c.b16 %v11312, %v11311
        %v11329 = vpack.c.b16 %v11313, %v11313
        %v11346 = vsel %vm9688, %v11250, 0
        %v11349 = vand.u32 %v11329, %v9695
        %11351 = vmatpush.bf16.msra.mxu0 %v11321
        %11352 = vmatpush.bf16.msra.mxu0 %v11320
        %11353 = vmatpush.bf16.msra.mxu0 %v11319
        %11354 = vmatpush.bf16.msra.mxu0 %v11318
        %11355 = vmatpush.bf16.msra.mxu0 %v11317
        %11356 = vmatpush.bf16.msra.mxu0 %v11316
        %11357 = vmatpush.bf16.msra.mxu0 %v11315
        %11358 = vmatpush.bf16.msra.mxu0 %v11314
        %11359 = vmatmul.bf16.gmra.mxu0 %v11249
        %v11360 = vpop.f32.mrf.mxu0
        %v11361 = vadd.f32 0.0, %v11360
        %v11362 = vpop.f32.mrf.mxu0
        %11363 = vdwg.mxu0
        %11364 = vmatpush.bf16.msra.mxu0 %v11349
        %11365 = vmatpush.bf16.msra.mxu0 %v11328
        %11366 = vmatpush.bf16.msra.mxu0 %v11327
        %11367 = vmatpush.bf16.msra.mxu0 %v11326
        %11368 = vmatpush.bf16.msra.mxu0 %v11325
        %11369 = vmatpush.bf16.msra.mxu0 %v11324
        %11370 = vmatpush.bf16.msra.mxu0 %v11323
        %11371 = vmatpush.bf16.msra.mxu0 %v11322
        %11372 = vmatmul.bf16.gmra.mxu0 %v11346
        %v11373 = vpop.f32.mrf.mxu0
        %v11374 = vadd.f32 %v11361, %v11373
        %v11375 = vpop.f32.mrf.mxu0
        %11376 = vdwg.mxu0
        %v11377 = vadd.f32 %v11084, %v11374
        %s11378 = scalar_lea.vmem [#allocation5], 7
        %v11379 = vld [vmem:[%s11378] ss:$8 sm:$0x3]
        %s11380 = scalar_lea.vmem [#allocation5], 23
        %v11381 = vld [vmem:[%s11380] ss:$8 sm:$0x3]
        %s11382 = scalar_lea.vmem [#allocation5], 39
        %v11383 = vld [vmem:[%s11382] ss:$8 sm:$0x3]
        %s11384 = scalar_lea.vmem [#allocation5], 55
        %v11385 = vld [vmem:[%s11384] ss:$8 sm:$0x3]
        %s11386 = scalar_lea.vmem [#allocation5], 71
        %v11387 = vld [vmem:[%s11386] ss:$8 sm:$0x3]
        %s11388 = scalar_lea.vmem [#allocation5], 87
        %v11389 = vld [vmem:[%s11388] ss:$8 sm:$0x3]
        %s11390 = scalar_lea.vmem [#allocation5], 103
        %v11391 = vld [vmem:[%s11390] ss:$8 sm:$0x3]
        %s11392 = scalar_lea.vmem [#allocation5], 119
        %v11393 = vld [vmem:[%s11392] ss:$8 sm:$0x3]
        %v11402 = vperm.slane %v11379, 0
        %v11403 = vperm.slane %v11379, 1
        %v11404 = vperm.slane %v11381, 0
        %v11405 = vperm.slane %v11381, 1
        %v11406 = vperm.slane %v11383, 0
        %v11407 = vperm.slane %v11383, 1
        %v11408 = vperm.slane %v11385, 0
        %v11409 = vperm.slane %v11385, 1
        %v11410 = vperm.slane %v11387, 0
        %v11411 = vperm.slane %v11387, 1
        %v11412 = vperm.slane %v11389, 0
        %v11413 = vperm.slane %v11389, 1
        %v11414 = vperm.slane %v11391, 0
        %v11415 = vperm.slane %v11391, 1
        %v11416 = vperm.slane %v11393, 0
        %v11417 = vperm.slane %v11393, 1
        %v11434 = vpack.c.bf16 %v11402, %v11402
        %v11435 = vpack.c.bf16 %v11403, %v11403
        %v11436 = vpack.c.bf16 %v11404, %v11404
        %v11437 = vpack.c.bf16 %v11405, %v11405
        %v11438 = vpack.c.bf16 %v11406, %v11406
        %v11439 = vpack.c.bf16 %v11407, %v11407
        %v11440 = vpack.c.bf16 %v11408, %v11408
        %v11441 = vpack.c.bf16 %v11409, %v11409
        %v11442 = vpack.c.bf16 %v11410, %v11410
        %v11443 = vpack.c.bf16 %v11411, %v11411
        %v11444 = vpack.c.bf16 %v11412, %v11412
        %v11445 = vpack.c.bf16 %v11413, %v11413
        %v11446 = vpack.c.bf16 %v11414, %v11414
        %v11447 = vpack.c.bf16 %v11415, %v11415
        %v11448 = vpack.c.bf16 %v11416, %v11416
        %v11449 = vpack.c.bf16 %v11417, %v11417
        %s11450 = scalar_lea.vmem %s8, 868
        %v11451 = vld [vmem:[%s11450] sm:$0xf]
        %v11452 = vld [vmem:[%s11450 + $0x4] sm:$0xf]
        %v11453 = vld [vmem:[%s11450 + $0x8] sm:$0xf]
        %v11454 = vld [vmem:[%s11450 + $0xc] sm:$0xf]
        %v11455 = vld [vmem:[%s11450 + $0x10] sm:$0xf]
        %v11456 = vld [vmem:[%s11450 + $0x14] sm:$0xf]
        %v11457 = vld [vmem:[%s11450 + $0x18] sm:$0xf]
        %v11458 = vld [vmem:[%s11450 + $0x1c] sm:$0xf]
        %v11459 = vld [vmem:[%s11450 + $0x20] sm:$0xf]
        %v11460 = vld [vmem:[%s11450 + $0x24] sm:$0xf]
        %v11461 = vld [vmem:[%s11450 + $0x28] sm:$0xf]
        %v11462 = vld [vmem:[%s11450 + $0x2c] sm:$0xf]
        %v11463 = vld [vmem:[%s11450 + $0x30] sm:$0xf]
        %v11464 = vld [vmem:[%s11450 + $0x34] sm:$0xf]
        %v11465 = vld [vmem:[%s11450 + $0x38] sm:$0xf]
        %v11466 = vld [vmem:[%s11450 + $0x3c] sm:$0xf]
        %v11467 = vld [vmem:[%s11450 + $0x40] sm:$0xf]
        %v11468 = vld [vmem:[%s11450 + $0x44] sm:$0xf]
        %v11469 = vld [vmem:[%s11450 + $0x48] sm:$0xf]
        %v11470 = vld [vmem:[%s11450 + $0x4c] sm:$0xf]
        %v11471 = vld [vmem:[%s11450 + $0x50] sm:$0xf]
        %v11472 = vld [vmem:[%s11450 + $0x54] sm:$0xf]
        %v11473 = vld [vmem:[%s11450 + $0x58] sm:$0xf]
        %v11474 = vld [vmem:[%s11450 + $0x5c] sm:$0xf]
        %v11475 = vld [vmem:[%s11450 + $0x60] sm:$0xf]
        %v11476 = vld [vmem:[%s11450 + $0x64] sm:$0xf]
        %v11477 = vld [vmem:[%s11450 + $0x68] sm:$0xf]
        %v11478 = vld [vmem:[%s11450 + $0x6c] sm:$0xf]
        %v11479 = vld [vmem:[%s11450 + $0x70] sm:$0xf]
        %v11480 = vld [vmem:[%s11450 + $0x74] sm:$0xf]
        %v11481 = vld [vmem:[%s11450 + $0x78] sm:$0xf]
        %v11498 = vunpack.c.l.b16 %v11434
        %v11499 = vunpack.c.l.b16 %v11435
        %v11500 = vunpack.c.l.b16 %v11436
        %v11501 = vunpack.c.l.b16 %v11437
        %v11502 = vunpack.c.l.b16 %v11438
        %v11503 = vunpack.c.l.b16 %v11439
        %v11504 = vunpack.c.l.b16 %v11440
        %v11505 = vunpack.c.l.b16 %v11441
        %v11506 = vunpack.c.l.b16 %v11442
        %v11507 = vunpack.c.l.b16 %v11443
        %v11508 = vunpack.c.l.b16 %v11444
        %v11509 = vunpack.c.l.b16 %v11445
        %v11510 = vunpack.c.l.b16 %v11446
        %v11511 = vunpack.c.l.b16 %v11447
        %v11512 = vunpack.c.l.b16 %v11448
        %v11513 = vunpack.c.l.b16 %v11449
        %v11514 = vrot.slane %v11500, 7
        %v11515 = vsel %vm9558, %v11514, %v11498
        %v11516 = vrot.slane %v11502, 6
        %v11517 = vsel %vm9561, %v11516, %v11515
        %v11518 = vrot.slane %v11504, 5
        %v11519 = vsel %vm9564, %v11518, %v11517
        %v11520 = vrot.slane %v11506, 4
        %v11521 = vsel %vm9567, %v11520, %v11519
        %v11522 = vrot.slane %v11508, 3
        %v11523 = vsel %vm9570, %v11522, %v11521
        %v11524 = vrot.slane %v11510, 2
        %v11525 = vsel %vm9573, %v11524, %v11523
        %v11526 = vrot.slane %v11512, 1
        %v11527 = vsel %vm9576, %v11526, %v11525
        %v11528 = vrot.slane %v11501, 7
        %v11529 = vsel %vm9558, %v11528, %v11499
        %v11530 = vrot.slane %v11503, 6
        %v11531 = vsel %vm9561, %v11530, %v11529
        %v11532 = vrot.slane %v11505, 5
        %v11533 = vsel %vm9564, %v11532, %v11531
        %v11534 = vrot.slane %v11507, 4
        %v11535 = vsel %vm9567, %v11534, %v11533
        %v11536 = vrot.slane %v11509, 3
        %v11537 = vsel %vm9570, %v11536, %v11535
        %v11538 = vrot.slane %v11511, 2
        %v11539 = vsel %vm9573, %v11538, %v11537
        %v11540 = vrot.slane %v11513, 1
        %v11541 = vsel %vm9576, %v11540, %v11539
        %v11542 = vpack.c.b16 %v11527, %v11527
        %v11543 = vpack.c.b16 %v11541, %v11541
        %v11576 = vunpack.c.l.b16 %v11451
        %v11577 = vunpack.c.l.b16 %v11452
        %v11578 = vunpack.c.l.b16 %v11453
        %v11579 = vunpack.c.l.b16 %v11454
        %v11580 = vunpack.c.l.b16 %v11455
        %v11581 = vunpack.c.l.b16 %v11456
        %v11582 = vunpack.c.l.b16 %v11457
        %v11583 = vunpack.c.l.b16 %v11458
        %v11584 = vunpack.c.l.b16 %v11459
        %v11585 = vunpack.c.l.b16 %v11460
        %v11586 = vunpack.c.l.b16 %v11461
        %v11587 = vunpack.c.l.b16 %v11462
        %v11588 = vunpack.c.l.b16 %v11463
        %v11589 = vunpack.c.l.b16 %v11464
        %v11590 = vunpack.c.l.b16 %v11465
        %v11591 = vunpack.c.l.b16 %v11466
        %v11592 = vunpack.c.l.b16 %v11467
        %v11593 = vunpack.c.l.b16 %v11468
        %v11594 = vunpack.c.l.b16 %v11469
        %v11595 = vunpack.c.l.b16 %v11470
        %v11596 = vunpack.c.l.b16 %v11471
        %v11597 = vunpack.c.l.b16 %v11472
        %v11598 = vunpack.c.l.b16 %v11473
        %v11599 = vunpack.c.l.b16 %v11474
        %v11600 = vunpack.c.l.b16 %v11475
        %v11601 = vunpack.c.l.b16 %v11476
        %v11602 = vunpack.c.l.b16 %v11477
        %v11603 = vunpack.c.l.b16 %v11478
        %v11604 = vunpack.c.l.b16 %v11479
        %v11605 = vunpack.c.l.b16 %v11480
        %v11606 = vunpack.c.l.b16 %v11481
        %v11607 = vpack.c.b16 %v11577, %v11576
        %v11608 = vpack.c.b16 %v11579, %v11578
        %v11609 = vpack.c.b16 %v11581, %v11580
        %v11610 = vpack.c.b16 %v11583, %v11582
        %v11611 = vpack.c.b16 %v11585, %v11584
        %v11612 = vpack.c.b16 %v11587, %v11586
        %v11613 = vpack.c.b16 %v11589, %v11588
        %v11614 = vpack.c.b16 %v11591, %v11590
        %v11615 = vpack.c.b16 %v11593, %v11592
        %v11616 = vpack.c.b16 %v11595, %v11594
        %v11617 = vpack.c.b16 %v11597, %v11596
        %v11618 = vpack.c.b16 %v11599, %v11598
        %v11619 = vpack.c.b16 %v11601, %v11600
        %v11620 = vpack.c.b16 %v11603, %v11602
        %v11621 = vpack.c.b16 %v11605, %v11604
        %v11622 = vpack.c.b16 %v11606, %v11606
        %v11639 = vsel %vm9688, %v11543, 0
        %v11642 = vand.u32 %v11622, %v9695
        %11644 = vmatpush.bf16.msra.mxu0 %v11614
        %11645 = vmatpush.bf16.msra.mxu0 %v11613
        %11646 = vmatpush.bf16.msra.mxu0 %v11612
        %11647 = vmatpush.bf16.msra.mxu0 %v11611
        %11648 = vmatpush.bf16.msra.mxu0 %v11610
        %11649 = vmatpush.bf16.msra.mxu0 %v11609
        %11650 = vmatpush.bf16.msra.mxu0 %v11608
        %11651 = vmatpush.bf16.msra.mxu0 %v11607
        %11652 = vmatmul.bf16.gmra.mxu0 %v11542
        %v11653 = vpop.f32.mrf.mxu0
        %v11654 = vadd.f32 0.0, %v11653
        %v11655 = vpop.f32.mrf.mxu0
        %11656 = vdwg.mxu0
        %11657 = vmatpush.bf16.msra.mxu0 %v11642
        %11658 = vmatpush.bf16.msra.mxu0 %v11621
        %11659 = vmatpush.bf16.msra.mxu0 %v11620
        %11660 = vmatpush.bf16.msra.mxu0 %v11619
        %11661 = vmatpush.bf16.msra.mxu0 %v11618
        %11662 = vmatpush.bf16.msra.mxu0 %v11617
        %11663 = vmatpush.bf16.msra.mxu0 %v11616
        %11664 = vmatpush.bf16.msra.mxu0 %v11615
        %11665 = vmatmul.bf16.gmra.mxu0 %v11639
        %v11666 = vpop.f32.mrf.mxu0
        %v11667 = vadd.f32 %v11654, %v11666
        %v11668 = vpop.f32.mrf.mxu0
        %11669 = vdwg.mxu0
        %v11670 = vadd.f32 %v11377, %v11667
        %v11671 = vld [vmem:[#allocation15] sm:$0x1]
        %v11673 = vperm.slane %v11671, 0
        %v11675 = vadd.f32 %v11670, %v11673
        %v11676 = vmax.f32 %v11675, 0.0
        %v11677 = vld [vmem:[#allocation17] sm:$0xff]
        %v11678 = vld [vmem:[#allocation17 + $0x8] sm:$0xff]
        %v11679 = vld [vmem:[#allocation17 + $0x10] sm:$0xff]
        %v11680 = vld [vmem:[#allocation17 + $0x18] sm:$0xff]
        %v11681 = vld [vmem:[#allocation17 + $0x20] sm:$0xff]
        %v11682 = vld [vmem:[#allocation17 + $0x28] sm:$0xff]
        %v11683 = vld [vmem:[#allocation17 + $0x30] sm:$0xff]
        %v11684 = vld [vmem:[#allocation17 + $0x38] sm:$0xff]
        %v11685 = vld [vmem:[#allocation17 + $0x40] sm:$0xff]
        %v11686 = vld [vmem:[#allocation17 + $0x48] sm:$0xff]
        %v11687 = vld [vmem:[#allocation17 + $0x50] sm:$0xff]
        %v11688 = vld [vmem:[#allocation17 + $0x58] sm:$0xff]
        %v11689 = vld [vmem:[#allocation17 + $0x60] sm:$0xff]
        %v11690 = vld [vmem:[#allocation17 + $0x68] sm:$0xff]
        %v11691 = vld [vmem:[#allocation17 + $0x70] sm:$0xff]
        %v11692 = vld [vmem:[#allocation17 + $0x78] sm:$0xff]
        %v11693 = vld [vmem:[#allocation18] sm:$0x1]
        %v11695 = vperm.slane %v11693, 0
        %11697 = vmatpush.msra.mxu0 %v11692
        %11698 = vmatpush.msra.mxu0 %v11691
        %11699 = vmatpush.msra.mxu0 %v11690
        %11700 = vmatpush.msra.mxu0 %v11689
        %11701 = vmatpush.msra.mxu0 %v11688
        %11702 = vmatpush.msra.mxu0 %v11687
        %11703 = vmatpush.msra.mxu0 %v11686
        %11704 = vmatpush.msra.mxu0 %v11685
        %11705 = vmatpush.msra.mxu0 %v11684
        %11706 = vmatpush.msra.mxu0 %v11683
        %11707 = vmatpush.msra.mxu0 %v11682
        %11708 = vmatpush.msra.mxu0 %v11681
        %11709 = vmatpush.msra.mxu0 %v11680
        %11710 = vmatpush.msra.mxu0 %v11679
        %11711 = vmatpush.msra.mxu0 %v11678
        %11712 = vmatpush.msra.mxu0 %v11677
        %11713 = vmatmul.f32.gmra.mxu0 %v11676
        %v11714 = vpop.f32.mrf.mxu0
        %v11715 = vadd.f32 %v11695, %v11714
        %11716 = vdwg.mxu0
        %11717 = vst [vmem:[%s568] sm:$0xff] %v11715
        %s11718 = sand.u32 %s305, 1
        %s11719 = scalar_lea.sflag [#allocation8], %s11718
        %s11720 = sand.u32 %s305, 1
        %s11721 = smul.addr %s11720, 8
        %s11722 = scalar_lea.vmem [#allocation20], %s11721
        // Predicated region
        $region108: #{tpu_custom_call.1} parent=67 // pred_check
          %p11723 = pneg %p315
        $region109: #{tpu_custom_call.1} parent=67 // pred_check_branch
          %11725 = sbr.rel (%p11723) target = $region111
        $region110: #{tpu_custom_call.1} parent=67 // pred_region
          %11727 = vsyncadd %s11719, 0
          %s11728 = smul.addr %s35, 8
          %s11729 = scalar_lea.hbm %s12, %s11728
          %s11731 = sshll.u32 %s11722, 4
          %s11732 = int_to_ptr.vmem [resolvable:$true] %s11731
          %s11733 = sshll.u32 %s11729, 4
          %s11734 = int_to_ptr.hbm [resolvable:$true] %s11733
          %11736 = dma.vmem_to_hbm [thread:$0]  %s11732, 128, %s11734, %s11719
        $region111: #{tpu_custom_call.1} parent=67 // pred_fallthru
          _
      $region68: #{tpu_custom_call.1} parent=5 // pred_fallthru
        _
      %p11737 = scmp.le.s32.totalorder 2, %s30
      // Predicated region
      $region112: #{tpu_custom_call.1} parent=5 // pred_check
        %p11738 = pneg %p11737
      $region113: #{tpu_custom_call.1} parent=5 // pred_check_branch
        %11740 = sbr.rel (%p11738) target = $region115
      $region114: #{tpu_custom_call.1} parent=5 // pred_region
        %s11741 = ssub.s32 %s30, 2
        // Predicated region
        $region116: #{tpu_custom_call.1} parent=114 // pred_check
          %p11742 = pneg %p321
        $region117: #{tpu_custom_call.1} parent=114 // pred_check_branch
          %11744 = sbr.rel (%p11742) target = $region119
        $region118: #{tpu_custom_call.1} parent=114 // pred_region
          %s11745 = sand.u32 %s306, 1
          %s11746 = scalar_lea.sflag [#allocation8], %s11745
          %s11747 = sand.u32 %s306, 1
          %s11748 = smul.addr %s11747, 8
          %s11749 = scalar_lea.vmem [#allocation20], %s11748
          %11751 = dma.done %s11746, 128
        $region119: #{tpu_custom_call.1} parent=114 // pred_fallthru
          _
      $region115: #{tpu_custom_call.1} parent=5 // pred_fallthru
        _
    $region6: #{tpu_custom_call.1} parent=1 // loop_footer
      %s34 = sadd.s32 1, %s30
    $region7: #{tpu_custom_call.1} parent=1 // loop_footer_branch
      %29 = sbr.rel target = $region3
    $region8: #{tpu_custom_call.1} parent=1 // loop_exit
      _
    %11752 = vsyncpa [#allocation7], 1
    %s11753 = scalar_lea.sflag [#allocation7], 1
    %11754 = vsyncpa %s11753, 1
    %11755 = vsyncpa [#allocation10], 1
    %s11756 = scalar_lea.sflag [#allocation10], 1
    %11757 = vsyncpa %s11756, 1
    %11758 = vsyncpa [#allocation13], 1
    %11759 = vsyncpa [#allocation16], 1
    %11760 = vsyncpa [#allocation19], 1
    %11761 = vsyncpa [#allocation8], 1
    %s11762 = scalar_lea.sflag [#allocation8], 1
    %11763 = vsyncpa %s11762, 1

</llo_original>
